<compile_context>
chip_gen: v5e
topology: v5e:2x2
jax: 0.10.0
libtpu: 0.0.40
codegen_flags: <defaults>
</compile_context>

<pallas_src>
import math

import jax
import jax.numpy as jnp
from jax import lax
from jax.experimental import pallas as pl
from jax.experimental.pallas import tpu as pltpu

LN_EPS = 1e-5


def _round_up(x, m):
    return (x + m - 1) // m * m


# ------------------------------ kernel builder -------------------------------
def _build_kernel(layer_meta, num_sel_packs, matmul_dtype):
    num_layers = len(layer_meta)

    def kernel(*refs):
        x_ref = refs[0]
        o_ref = refs[-1]
        pos = 1
        layer_refs = []
        for _ in range(num_layers):
            layer_refs.append(refs[pos:pos + 4])
            pos += 4
        sel_refs = []
        for _ in range(num_sel_packs):
            sel_refs.append(refs[pos:pos + 7])
            pos += 7
        wf_ref, bf_ref = refs[pos], refs[pos + 1]

        x = x_ref[...].astype(jnp.float32)                       # [TB, in]

        for li in range(num_layers):
            meta = layer_meta[li]
            G, H = meta["G"], meta["H"]
            GH = G * H
            wd_ref, wqkv_ref, wo_ref, vec_ref = layer_refs[li]
            (selscore_ref, bcasta_ref, selctx_ref, selden_ref,
             bcastg_ref, selmean_ref, bcastln_ref) = sel_refs[meta["sel"]]

            vecs = vec_ref[...]                                   # [4, H] f32
            bd, bo = vecs[0:1, :], vecs[1:2, :]
            gamma, beta = vecs[2:3, :], vecs[3:4, :]

            # ---- DenseBlock: Linear (MXU, f32 acc) + ELU (f32) ----
            h = jnp.dot(x.astype(matmul_dtype), wd_ref[...],
                        preferred_element_type=jnp.float32) + bd  # [TB, H]
            h = jnp.where(h > 0, h, jnp.exp(jnp.minimum(h, 0.0)) - 1.0)

            # ---- grouped single-head attention, lane-dense formulation ----
            # q replicated per (query-group, key-group) pair; k/v tiled per
            # query group; 1/sqrt(E) already folded into the q columns.
            qkv = jnp.dot(h.astype(matmul_dtype), wqkv_ref[...],
                          preferred_element_type=jnp.float32)     # [TB, 3GH]
            q_rep = qkv[:, :GH]
            k_rep = qkv[:, GH:2 * GH]
            v_rep = qkv[:, 2 * GH:]

            # scores[b, g*G+j] = sum_e q[b,g,e]*k[b,j,e]: VPU mul + MXU seg-sum
            scores = jnp.dot(q_rep * k_rep, selscore_ref[...],
                             preferred_element_type=jnp.float32)  # [TB, G*G]
            # per-sample max is a valid per-(b,g)-row shift (softmax invariant)
            m = jnp.max(scores, axis=-1, keepdims=True)           # lone XLU op
            e_s = jnp.exp(scores - m)                             # EUP
            den = jnp.dot(e_s, selden_ref[...],
                          preferred_element_type=jnp.float32)     # [TB, G]
            inv = pl.reciprocal(den, approx=True)                 # EUP
            e_rep = jnp.dot(e_s, bcasta_ref[...],
                            preferred_element_type=jnp.float32)   # [TB, GH]
            inv_rep = jnp.dot(inv, bcastg_ref[...],
                              preferred_element_type=jnp.float32)  # [TB, GH]
            ctx = jnp.dot(e_rep * inv_rep * v_rep, selctx_ref[...],
                          preferred_element_type=jnp.float32)     # [TB, H]

            # ---- out_linear DenseBlock: Linear + per-group LayerNorm ----
            o = jnp.dot(ctx.astype(matmul_dtype), wo_ref[...],
                        preferred_element_type=jnp.float32) + bo  # [TB, H]
            mu = jnp.dot(o, selmean_ref[...],
                         preferred_element_type=jnp.float32)      # [TB, G]
            msq = jnp.dot(o * o, selmean_ref[...],
                          preferred_element_type=jnp.float32)     # [TB, G]
            rstd = lax.rsqrt(msq - mu * mu + LN_EPS)
            mu_rep = jnp.dot(mu, bcastln_ref[...],
                             preferred_element_type=jnp.float32)  # [TB, H]
            rstd_rep = jnp.dot(rstd, bcastln_ref[...],
                               preferred_element_type=jnp.float32)
            o = (o - mu_rep) * rstd_rep * gamma + beta

            x = o + h                                             # residual

        # ---- final Linear(hidden, 1); [TB,1] store accepted (tiny) ----
        o_ref[...] = jnp.dot(x, wf_ref[...],
                             preferred_element_type=jnp.float32) + bf_ref[...]

    return kernel


# -------------------------- wrapper-side weight prep --------------------------
def _selector_pack(H, G):
    """0/1 segment-sum / broadcast matrices used as MXU operands."""
    E = H // G
    GG = G * G
    f32 = jnp.float32
    eyeG = jnp.eye(G, dtype=f32)
    eyeE = jnp.eye(E, dtype=f32)
    eyeGG = jnp.eye(GG, dtype=f32)
    sel_score = jnp.kron(eyeGG, jnp.ones((E, 1), f32))        # [GH, GG]
    bcast_a = jnp.kron(eyeGG, jnp.ones((1, E), f32))          # [GG, GH]
    sel_ctx = jnp.kron(eyeG, jnp.tile(eyeE, (G, 1)))          # [GH, H]
    sel_den = jnp.kron(eyeG, jnp.ones((G, 1), f32))           # [GG, G]
    bcast_g = jnp.kron(eyeG, jnp.ones((1, H), f32))           # [G, GH]
    sel_mean = jnp.kron(eyeG, jnp.ones((E, 1), f32)) / E      # [H, G]
    bcast_ln = jnp.kron(eyeG, jnp.ones((1, E), f32))          # [G, H]
    return (sel_score, bcast_a, sel_ctx, sel_den, bcast_g, sel_mean, bcast_ln)


def _layer_weights(p, n_group, matmul_dtype):
    # TODO(synk): for large E (>=128) the replicated qkv weight does G× redundant
    # FLOPs/bytes; switch to per-group dense [E,3E] matmuls in that regime.
    G = n_group
    H = p["wd"].shape[0]
    E = H // G
    scale = 1.0 / math.sqrt(E)                     # head_dim = E (num_heads=1)
    eyeG = jnp.eye(G, dtype=jnp.float32)
    # torch to_qkv: qkv = x @ W.T, chunk(3,-1) <-> row splits of the [3E,E] weight
    wq_t = p["wqkv"][:E].T * scale                 # fold score scale into q
    wk_t = p["wqkv"][E:2 * E].T
    wv_t = p["wqkv"][2 * E:].T
    # q: column block (g, j) = wq_t placed at input row-block g (for all j)
    w_q_rep = jnp.kron(eyeG, jnp.tile(wq_t, (1, G)))                  # [H, GH]
    # k/v: every query-group column block = the block-diagonal projection
    w_k_rep = jnp.tile(jnp.kron(eyeG, wk_t), (1, G))                  # [H, GH]
    w_v_rep = jnp.tile(jnp.kron(eyeG, wv_t), (1, G))                  # [H, GH]
    w_qkv_rep = jnp.concatenate([w_q_rep, w_k_rep, w_v_rep], axis=1)  # [H, 3GH]
    w_o_blk = jnp.kron(eyeG, p["wo"].T)                               # [H, H]
    vecs = jnp.stack([p["bd"], jnp.tile(p["bo"], G),
                      jnp.tile(p["gamma"], G), jnp.tile(p["beta"], G)])  # [4,H]
    weights = (p["wd"].T.astype(matmul_dtype),
               w_qkv_rep.astype(matmul_dtype),
               w_o_blk.astype(matmul_dtype),
               vecs.astype(jnp.float32))
    return weights, dict(G=G, H=H, E=E)


def feature_group_transformer_forward(x, layer_params, out_params, n_group=4,
                                      tile_b=256, matmul_dtype=jnp.bfloat16):
    """Pallas forward for FeatureGroupTransformer (inference)."""
    B, in0 = x.shape
    TILE_B = tile_b if B >= tile_b else _round_up(max(B, 1), 8)
    B_pad = _round_up(B, TILE_B)
    x_pad = x if B_pad == B else jnp.pad(x, ((0, B_pad - B), (0, 0)))

    layer_args, layer_meta = [], []
    sel_pack_idx, sel_args = {}, []
    for p in layer_params:
        w, meta = _layer_weights(p, n_group, matmul_dtype)
        layer_args += list(w)
        H = meta["H"]
        if H not in sel_pack_idx:                  # dedupe selectors per H
            sel_pack_idx[H] = len(sel_pack_idx)
            sel_args += list(_selector_pack(H, n_group))
        meta["sel"] = sel_pack_idx[H]
        layer_meta.append(meta)

    wf, bf = out_params
    head_args = [wf.reshape(-1, 1).astype(jnp.float32),
                 bf.reshape(1, 1).astype(jnp.float32)]

    const_args = layer_args + sel_args + head_args
    args = [x_pad] + const_args

    def _const_spec(a):
        nd = a.ndim
        return pl.BlockSpec(a.shape, lambda i, _nd=nd: (0,) * _nd)

    in_specs = ([pl.BlockSpec((TILE_B, in0), lambda i: (i, 0))]
                + [_const_spec(a) for a in const_args])
    out_specs = pl.BlockSpec((TILE_B, 1), lambda i: (i, 0))

    # explicit VMEM budget: resident weights + double-buffered IO tiles +
    # compiler-managed per-step activations (a few [TILE_B, 3*GH] f32 values).
    weight_bytes = sum(int(a.size) * a.dtype.itemsize for a in const_args)
    max_gh = max(m["G"] * m["H"] for m in layer_meta)
    act_bytes = 8 * TILE_B * 3 * max_gh * 4
    io_bytes = 2 * 2 * TILE_B * (in0 + 1) * 4
    vmem_limit = int(min(max(2 * (weight_bytes + act_bytes + io_bytes),
                             16 << 20), 64 << 20))

    kernel = _build_kernel(layer_meta, len(sel_pack_idx), matmul_dtype)
    y = pl.pallas_call(
        kernel,
        grid=(B_pad // TILE_B,),
        out_shape=jax.ShapeDtypeStruct((B_pad, 1), jnp.float32),
        in_specs=in_specs,
        out_specs=out_specs,
        compiler_params=pltpu.CompilerParams(
            dimension_semantics=("parallel",),      # v7x: shard batch on 2 TCs
            vmem_limit_bytes=vmem_limit),
    )(*args)
    return y[:B, 0]                                 # matches torch .squeeze()


# ----------------------- parameter init (deterministic) -----------------------
def init_params(key, input_size, hidden_sizes, n_group):
    layer_params = []
    inp = input_size
    for h in hidden_sizes:
        assert h % n_group == 0
        E = h // n_group
        key, kd_w, kd_b, kqkv, ko_w, ko_b = jax.random.split(key, 6)
        bd = 1.0 / math.sqrt(inp)
        ba = 1.0 / math.sqrt(E)
        layer_params.append(dict(
            wd=jax.random.uniform(kd_w, (h, inp), jnp.float32, -bd, bd),
            bd=jax.random.uniform(kd_b, (h,), jnp.float32, -bd, bd),
            wqkv=jax.random.uniform(kqkv, (3 * E, E), jnp.float32, -ba, ba),
            wo=jax.random.uniform(ko_w, (E, E), jnp.float32, -ba, ba),
            bo=jax.random.uniform(ko_b, (E,), jnp.float32, -ba, ba),
            gamma=jnp.ones((E,), jnp.float32),
            beta=jnp.zeros((E,), jnp.float32),
        ))
        inp = h
    key, kf_w, kf_b = jax.random.split(key, 3)
    bf = 1.0 / math.sqrt(inp)
    out_params = (
        jax.random.uniform(kf_w, (1, inp), jnp.float32, -bf, bf),
        jax.random.uniform(kf_b, (1,), jnp.float32, -bf, bf),
    )
    return layer_params, out_params


# --------------------------- pure-JAX reference check --------------------------
def _reference_forward(x, layer_params, out_params, n_group):
    for p in layer_params:
        b = x.shape[0]
        h = x @ p["wd"].T + p["bd"]
        h = jnp.where(h > 0, h, jnp.exp(h) - 1.0)                    # ELU
        H = h.shape[-1]
        E = H // n_group
        a_in = h.reshape(b, n_group, E)
        qkv = a_in @ p["wqkv"].T                                     # [b,G,3E]
        q, k, v = qkv[..., :E], qkv[..., E:2 * E], qkv[..., 2 * E:]
        scores = jnp.einsum('bge,bhe->bgh', q, k) / math.sqrt(E)
        attn = jax.nn.softmax(scores, axis=-1)
        out = jnp.einsum('bgh,bhe->bge', attn, v)                    # [b,G,E]
        out = out @ p["wo"].T + p["bo"]
        mu = out.mean(-1, keepdims=True)
        var = ((out - mu) ** 2).mean(-1, keepdims=True)
        out = (out - mu) / jnp.sqrt(var + LN_EPS) * p["gamma"] + p["beta"]
        x = out.reshape(b, H) + h                                    # resnet
    wf, bf = out_params
    return jnp.squeeze(x @ wf.T + bf)


if __name__ == "__main__":
    batch = 300          # not a multiple of TILE_B -> exercises padding + 2-step grid
    input_size = 16
    hidden_sizes = [32, 32]
    n_group = 4

    key = jax.random.PRNGKey(0)
    key, kx = jax.random.split(key)
    x = jax.random.normal(kx, (batch, input_size), jnp.float32)

    layer_params, out_params = init_params(key, input_size, hidden_sizes, n_group)

    # fast path: bf16 matmul operands, f32 accumulation / elementwise
    y_bf16 = feature_group_transformer_forward(
        x, layer_params, out_params, n_group=n_group,
        matmul_dtype=jnp.bfloat16)
    # reference-precision path (same kernel, f32 matmul operands)
    y_f32 = feature_group_transformer_forward(
        x, layer_params, out_params, n_group=n_group,
        matmul_dtype=jnp.float32)
    y_bf16, y_f32 = jax.block_until_ready((y_bf16, y_f32))

    y_ref = _reference_forward(x, layer_params, out_params, n_group)
    assert y_bf16.shape == (batch,), y_bf16.shape
    assert y_f32.shape == (batch,), y_f32.shape
    # f32 path: only the EUP approx-reciprocal differs from the pure-JAX reference
    assert jnp.allclose(y_f32, y_ref, atol=1e-2, rtol=1e-2), (
        "f32 max err", float(jnp.max(jnp.abs(y_f32 - y_ref))))
    # bf16 path: tolerance covers bf16 operand rounding across 2 layers + approx recip
    assert jnp.allclose(y_bf16, y_ref, atol=5e-2, rtol=5e-2), (
        "bf16 max err", float(jnp.max(jnp.abs(y_bf16 - y_ref))))

    print("KERNEL_OK")
</pallas_src>

<mosaic_0001>
module attributes {stable_mosaic.version = 11 : i64} {
  func.func @kernel(%arg0: i32, %arg1: memref<256x16xf32, #tpu.memory_space<vmem>>, %arg2: memref<16x32xbf16, #tpu.memory_space<vmem>>, %arg3: memref<32x384xbf16, #tpu.memory_space<vmem>>, %arg4: memref<32x32xbf16, #tpu.memory_space<vmem>>, %arg5: memref<4x32xf32, #tpu.memory_space<vmem>>, %arg6: memref<32x32xbf16, #tpu.memory_space<vmem>>, %arg7: memref<32x384xbf16, #tpu.memory_space<vmem>>, %arg8: memref<32x32xbf16, #tpu.memory_space<vmem>>, %arg9: memref<4x32xf32, #tpu.memory_space<vmem>>, %arg10: memref<128x16xf32, #tpu.memory_space<vmem>>, %arg11: memref<16x128xf32, #tpu.memory_space<vmem>>, %arg12: memref<128x32xf32, #tpu.memory_space<vmem>>, %arg13: memref<16x4xf32, #tpu.memory_space<vmem>>, %arg14: memref<4x128xf32, #tpu.memory_space<vmem>>, %arg15: memref<32x4xf32, #tpu.memory_space<vmem>>, %arg16: memref<4x32xf32, #tpu.memory_space<vmem>>, %arg17: memref<32x1xf32, #tpu.memory_space<vmem>>, %arg18: memref<1x1xf32, #tpu.memory_space<vmem>>, %arg19: memref<256x1xf32, #tpu.memory_space<vmem>>) attributes {dimension_semantics = [#tpu.dimension_semantics<parallel>], iteration_bounds = array<i64: 2>, scalar_prefetch = 0 : i64, scratch_operands = 0 : i64, tpu.core_type = #tpu.core_type<tc>, window_params = [{transform_indices = @transform_0, window_bounds = array<i64: 256, 16>}, {pipeline_mode = #tpu.pipeline_mode<synchronous>, transform_indices = @transform_1, window_bounds = array<i64: 16, 32>}, {pipeline_mode = #tpu.pipeline_mode<synchronous>, transform_indices = @transform_2, window_bounds = array<i64: 32, 384>}, {pipeline_mode = #tpu.pipeline_mode<synchronous>, transform_indices = @transform_3, window_bounds = array<i64: 32, 32>}, {pipeline_mode = #tpu.pipeline_mode<synchronous>, transform_indices = @transform_4, window_bounds = array<i64: 4, 32>}, {pipeline_mode = #tpu.pipeline_mode<synchronous>, transform_indices = @transform_5, window_bounds = array<i64: 32, 32>}, {pipeline_mode = #tpu.pipeline_mode<synchronous>, transform_indices = @transform_6, window_bounds = array<i64: 32, 384>}, {pipeline_mode = #tpu.pipeline_mode<synchronous>, transform_indices = @transform_7, window_bounds = array<i64: 32, 32>}, {pipeline_mode = #tpu.pipeline_mode<synchronous>, transform_indices = @transform_8, window_bounds = array<i64: 4, 32>}, {pipeline_mode = #tpu.pipeline_mode<synchronous>, transform_indices = @transform_9, window_bounds = array<i64: 128, 16>}, {pipeline_mode = #tpu.pipeline_mode<synchronous>, transform_indices = @transform_10, window_bounds = array<i64: 16, 128>}, {pipeline_mode = #tpu.pipeline_mode<synchronous>, transform_indices = @transform_11, window_bounds = array<i64: 128, 32>}, {pipeline_mode = #tpu.pipeline_mode<synchronous>, transform_indices = @transform_12, window_bounds = array<i64: 16, 4>}, {pipeline_mode = #tpu.pipeline_mode<synchronous>, transform_indices = @transform_13, window_bounds = array<i64: 4, 128>}, {pipeline_mode = #tpu.pipeline_mode<synchronous>, transform_indices = @transform_14, window_bounds = array<i64: 32, 4>}, {pipeline_mode = #tpu.pipeline_mode<synchronous>, transform_indices = @transform_15, window_bounds = array<i64: 4, 32>}, {pipeline_mode = #tpu.pipeline_mode<synchronous>, transform_indices = @transform_16, window_bounds = array<i64: 32, 1>}, {pipeline_mode = #tpu.pipeline_mode<synchronous>, transform_indices = @transform_17, window_bounds = array<i64: 1, 1>}, {transform_indices = @transform_18, window_bounds = array<i64: 256, 1>}]} {
    %c0 = arith.constant 0 : index
    %c0_0 = arith.constant 0 : index
    %0 = vector.load %arg1[%c0, %c0_0] : memref<256x16xf32, #tpu.memory_space<vmem>>, vector<256x16xf32>
    %c0_1 = arith.constant 0 : index
    %c0_2 = arith.constant 0 : index
    %1 = vector.load %arg5[%c0_1, %c0_2] : memref<4x32xf32, #tpu.memory_space<vmem>>, vector<4x32xf32>
    %2 = vector.extract_strided_slice %1 {offsets = [0, 0], sizes = [1, 32], strides = [1, 1]} : vector<4x32xf32> to vector<1x32xf32>
    %3 = vector.extract_strided_slice %1 {offsets = [1, 0], sizes = [1, 32], strides = [1, 1]} : vector<4x32xf32> to vector<1x32xf32>
    %4 = vector.extract_strided_slice %1 {offsets = [2, 0], sizes = [1, 32], strides = [1, 1]} : vector<4x32xf32> to vector<1x32xf32>
    %5 = vector.extract_strided_slice %1 {offsets = [3, 0], sizes = [1, 32], strides = [1, 1]} : vector<4x32xf32> to vector<1x32xf32>
    %6 = arith.truncf %0 : vector<256x16xf32> to vector<256x16xbf16>
    %c0_3 = arith.constant 0 : index
    %c0_4 = arith.constant 0 : index
    %7 = vector.load %arg2[%c0_3, %c0_4] : memref<16x32xbf16, #tpu.memory_space<vmem>>, vector<16x32xbf16>
    %cst = arith.constant dense<0.000000e+00> : vector<256x32xf32>
    %8 = tpu.matmul %6, %7, %cst {dimension_numbers = #tpu.dot_dimension_numbers<[1], [0], [0], [1], [0, 0, 1, 1], [], []>} : vector<256x16xbf16>, vector<16x32xbf16>, vector<256x32xf32> -> vector<256x32xf32>
    %9 = vector.broadcast %2 : vector<1x32xf32> to vector<256x32xf32>
    %10 = arith.addf %8, %9 : vector<256x32xf32>
    %cst_5 = arith.constant 0.000000e+00 : f32
    %11 = vector.broadcast %cst_5 : f32 to vector<256x32xf32>
    %12 = arith.cmpf ogt, %10, %11 : vector<256x32xf32>
    %cst_6 = arith.constant 0.000000e+00 : f32
    %13 = vector.broadcast %cst_6 : f32 to vector<256x32xf32>
    %14 = arith.minimumf %10, %13 : vector<256x32xf32>
    %15 = math.exp %14 : vector<256x32xf32>
    %cst_7 = arith.constant 1.000000e+00 : f32
    %16 = vector.broadcast %cst_7 : f32 to vector<256x32xf32>
    %17 = arith.subf %15, %16 : vector<256x32xf32>
    %18 = arith.select %12, %10, %17 : vector<256x32xi1>, vector<256x32xf32>
    %19 = arith.truncf %18 : vector<256x32xf32> to vector<256x32xbf16>
    %c0_8 = arith.constant 0 : index
    %c0_9 = arith.constant 0 : index
    %20 = vector.load %arg3[%c0_8, %c0_9] : memref<32x384xbf16, #tpu.memory_space<vmem>>, vector<32x384xbf16>
    %cst_10 = arith.constant dense<0.000000e+00> : vector<256x384xf32>
    %21 = tpu.matmul %19, %20, %cst_10 {dimension_numbers = #tpu.dot_dimension_numbers<[1], [0], [0], [1], [0, 0, 1, 1], [], []>} : vector<256x32xbf16>, vector<32x384xbf16>, vector<256x384xf32> -> vector<256x384xf32>
    %22 = vector.extract_strided_slice %21 {offsets = [0, 0], sizes = [256, 128], strides = [1, 1]} : vector<256x384xf32> to vector<256x128xf32>
    %23 = vector.extract_strided_slice %21 {offsets = [0, 128], sizes = [256, 128], strides = [1, 1]} : vector<256x384xf32> to vector<256x128xf32>
    %24 = vector.extract_strided_slice %21 {offsets = [0, 256], sizes = [256, 128], strides = [1, 1]} : vector<256x384xf32> to vector<256x128xf32>
    %25 = arith.mulf %22, %23 : vector<256x128xf32>
    %c0_11 = arith.constant 0 : index
    %c0_12 = arith.constant 0 : index
    %26 = vector.load %arg10[%c0_11, %c0_12] : memref<128x16xf32, #tpu.memory_space<vmem>>, vector<128x16xf32>
    %cst_13 = arith.constant dense<0.000000e+00> : vector<256x16xf32>
    %27 = tpu.matmul %25, %26, %cst_13 {dimension_numbers = #tpu.dot_dimension_numbers<[1], [0], [0], [1], [0, 0, 1, 1], [], []>} : vector<256x128xf32>, vector<128x16xf32>, vector<256x16xf32> -> vector<256x16xf32>
    %cst_14 = arith.constant dense<0xFF800000> : vector<256xf32>
    %28 = vector.multi_reduction <maximumf>, %27, %cst_14 [1] : vector<256x16xf32> to vector<256xf32>
    %29 = vector.shape_cast %28 : vector<256xf32> to vector<256x1xf32>
    %30 = vector.broadcast %29 : vector<256x1xf32> to vector<256x16xf32>
    %31 = arith.subf %27, %30 : vector<256x16xf32>
    %32 = math.exp %31 : vector<256x16xf32>
    %c0_15 = arith.constant 0 : index
    %c0_16 = arith.constant 0 : index
    %33 = vector.load %arg13[%c0_15, %c0_16] : memref<16x4xf32, #tpu.memory_space<vmem>>, vector<16x4xf32>
    %cst_17 = arith.constant dense<0.000000e+00> : vector<256x4xf32>
    %34 = tpu.matmul %32, %33, %cst_17 {dimension_numbers = #tpu.dot_dimension_numbers<[1], [0], [0], [1], [0, 0, 1, 1], [], []>} : vector<256x16xf32>, vector<16x4xf32>, vector<256x4xf32> -> vector<256x4xf32>
    %35 = tpu.reciprocal %34 {approx = true} : vector<256x4xf32> -> vector<256x4xf32>
    %c0_18 = arith.constant 0 : index
    %c0_19 = arith.constant 0 : index
    %36 = vector.load %arg11[%c0_18, %c0_19] : memref<16x128xf32, #tpu.memory_space<vmem>>, vector<16x128xf32>
    %cst_20 = arith.constant dense<0.000000e+00> : vector<256x128xf32>
    %37 = tpu.matmul %32, %36, %cst_20 {dimension_numbers = #tpu.dot_dimension_numbers<[1], [0], [0], [1], [0, 0, 1, 1], [], []>} : vector<256x16xf32>, vector<16x128xf32>, vector<256x128xf32> -> vector<256x128xf32>
    %c0_21 = arith.constant 0 : index
    %c0_22 = arith.constant 0 : index
    %38 = vector.load %arg14[%c0_21, %c0_22] : memref<4x128xf32, #tpu.memory_space<vmem>>, vector<4x128xf32>
    %cst_23 = arith.constant dense<0.000000e+00> : vector<256x128xf32>
    %39 = tpu.matmul %35, %38, %cst_23 {dimension_numbers = #tpu.dot_dimension_numbers<[1], [0], [0], [1], [0, 0, 1, 1], [], []>} : vector<256x4xf32>, vector<4x128xf32>, vector<256x128xf32> -> vector<256x128xf32>
    %40 = arith.mulf %37, %39 : vector<256x128xf32>
    %41 = arith.mulf %40, %24 : vector<256x128xf32>
    %c0_24 = arith.constant 0 : index
    %c0_25 = arith.constant 0 : index
    %42 = vector.load %arg12[%c0_24, %c0_25] : memref<128x32xf32, #tpu.memory_space<vmem>>, vector<128x32xf32>
    %cst_26 = arith.constant dense<0.000000e+00> : vector<256x32xf32>
    %43 = tpu.matmul %41, %42, %cst_26 {dimension_numbers = #tpu.dot_dimension_numbers<[1], [0], [0], [1], [0, 0, 1, 1], [], []>} : vector<256x128xf32>, vector<128x32xf32>, vector<256x32xf32> -> vector<256x32xf32>
    %44 = arith.truncf %43 : vector<256x32xf32> to vector<256x32xbf16>
    %c0_27 = arith.constant 0 : index
    %c0_28 = arith.constant 0 : index
    %45 = vector.load %arg4[%c0_27, %c0_28] : memref<32x32xbf16, #tpu.memory_space<vmem>>, vector<32x32xbf16>
    %cst_29 = arith.constant dense<0.000000e+00> : vector<256x32xf32>
    %46 = tpu.matmul %44, %45, %cst_29 {dimension_numbers = #tpu.dot_dimension_numbers<[1], [0], [0], [1], [0, 0, 1, 1], [], []>} : vector<256x32xbf16>, vector<32x32xbf16>, vector<256x32xf32> -> vector<256x32xf32>
    %47 = vector.broadcast %3 : vector<1x32xf32> to vector<256x32xf32>
    %48 = arith.addf %46, %47 : vector<256x32xf32>
    %c0_30 = arith.constant 0 : index
    %c0_31 = arith.constant 0 : index
    %49 = vector.load %arg15[%c0_30, %c0_31] : memref<32x4xf32, #tpu.memory_space<vmem>>, vector<32x4xf32>
    %cst_32 = arith.constant dense<0.000000e+00> : vector<256x4xf32>
    %50 = tpu.matmul %48, %49, %cst_32 {dimension_numbers = #tpu.dot_dimension_numbers<[1], [0], [0], [1], [0, 0, 1, 1], [], []>} : vector<256x32xf32>, vector<32x4xf32>, vector<256x4xf32> -> vector<256x4xf32>
    %51 = arith.mulf %48, %48 : vector<256x32xf32>
    %c0_33 = arith.constant 0 : index
    %c0_34 = arith.constant 0 : index
    %52 = vector.load %arg15[%c0_33, %c0_34] : memref<32x4xf32, #tpu.memory_space<vmem>>, vector<32x4xf32>
    %cst_35 = arith.constant dense<0.000000e+00> : vector<256x4xf32>
    %53 = tpu.matmul %51, %52, %cst_35 {dimension_numbers = #tpu.dot_dimension_numbers<[1], [0], [0], [1], [0, 0, 1, 1], [], []>} : vector<256x32xf32>, vector<32x4xf32>, vector<256x4xf32> -> vector<256x4xf32>
    %54 = arith.mulf %50, %50 : vector<256x4xf32>
    %55 = arith.subf %53, %54 : vector<256x4xf32>
    %cst_36 = arith.constant 9.99999974E-6 : f32
    %56 = vector.broadcast %cst_36 : f32 to vector<256x4xf32>
    %57 = arith.addf %55, %56 : vector<256x4xf32>
    %58 = math.rsqrt %57 : vector<256x4xf32>
    %c0_37 = arith.constant 0 : index
    %c0_38 = arith.constant 0 : index
    %59 = vector.load %arg16[%c0_37, %c0_38] : memref<4x32xf32, #tpu.memory_space<vmem>>, vector<4x32xf32>
    %cst_39 = arith.constant dense<0.000000e+00> : vector<256x32xf32>
    %60 = tpu.matmul %50, %59, %cst_39 {dimension_numbers = #tpu.dot_dimension_numbers<[1], [0], [0], [1], [0, 0, 1, 1], [], []>} : vector<256x4xf32>, vector<4x32xf32>, vector<256x32xf32> -> vector<256x32xf32>
    %c0_40 = arith.constant 0 : index
    %c0_41 = arith.constant 0 : index
    %61 = vector.load %arg16[%c0_40, %c0_41] : memref<4x32xf32, #tpu.memory_space<vmem>>, vector<4x32xf32>
    %cst_42 = arith.constant dense<0.000000e+00> : vector<256x32xf32>
    %62 = tpu.matmul %58, %61, %cst_42 {dimension_numbers = #tpu.dot_dimension_numbers<[1], [0], [0], [1], [0, 0, 1, 1], [], []>} : vector<256x4xf32>, vector<4x32xf32>, vector<256x32xf32> -> vector<256x32xf32>
    %63 = arith.subf %48, %60 : vector<256x32xf32>
    %64 = arith.mulf %63, %62 : vector<256x32xf32>
    %65 = vector.broadcast %4 : vector<1x32xf32> to vector<256x32xf32>
    %66 = arith.mulf %64, %65 : vector<256x32xf32>
    %67 = vector.broadcast %5 : vector<1x32xf32> to vector<256x32xf32>
    %68 = arith.addf %66, %67 : vector<256x32xf32>
    %69 = arith.addf %68, %18 : vector<256x32xf32>
    %c0_43 = arith.constant 0 : index
    %c0_44 = arith.constant 0 : index
    %70 = vector.load %arg9[%c0_43, %c0_44] : memref<4x32xf32, #tpu.memory_space<vmem>>, vector<4x32xf32>
    %71 = vector.extract_strided_slice %70 {offsets = [0, 0], sizes = [1, 32], strides = [1, 1]} : vector<4x32xf32> to vector<1x32xf32>
    %72 = vector.extract_strided_slice %70 {offsets = [1, 0], sizes = [1, 32], strides = [1, 1]} : vector<4x32xf32> to vector<1x32xf32>
    %73 = vector.extract_strided_slice %70 {offsets = [2, 0], sizes = [1, 32], strides = [1, 1]} : vector<4x32xf32> to vector<1x32xf32>
    %74 = vector.extract_strided_slice %70 {offsets = [3, 0], sizes = [1, 32], strides = [1, 1]} : vector<4x32xf32> to vector<1x32xf32>
    %75 = arith.truncf %69 : vector<256x32xf32> to vector<256x32xbf16>
    %c0_45 = arith.constant 0 : index
    %c0_46 = arith.constant 0 : index
    %76 = vector.load %arg6[%c0_45, %c0_46] : memref<32x32xbf16, #tpu.memory_space<vmem>>, vector<32x32xbf16>
    %cst_47 = arith.constant dense<0.000000e+00> : vector<256x32xf32>
    %77 = tpu.matmul %75, %76, %cst_47 {dimension_numbers = #tpu.dot_dimension_numbers<[1], [0], [0], [1], [0, 0, 1, 1], [], []>} : vector<256x32xbf16>, vector<32x32xbf16>, vector<256x32xf32> -> vector<256x32xf32>
    %78 = vector.broadcast %71 : vector<1x32xf32> to vector<256x32xf32>
    %79 = arith.addf %77, %78 : vector<256x32xf32>
    %cst_48 = arith.constant 0.000000e+00 : f32
    %80 = vector.broadcast %cst_48 : f32 to vector<256x32xf32>
    %81 = arith.cmpf ogt, %79, %80 : vector<256x32xf32>
    %cst_49 = arith.constant 0.000000e+00 : f32
    %82 = vector.broadcast %cst_49 : f32 to vector<256x32xf32>
    %83 = arith.minimumf %79, %82 : vector<256x32xf32>
    %84 = math.exp %83 : vector<256x32xf32>
    %cst_50 = arith.constant 1.000000e+00 : f32
    %85 = vector.broadcast %cst_50 : f32 to vector<256x32xf32>
    %86 = arith.subf %84, %85 : vector<256x32xf32>
    %87 = arith.select %81, %79, %86 : vector<256x32xi1>, vector<256x32xf32>
    %88 = arith.truncf %87 : vector<256x32xf32> to vector<256x32xbf16>
    %c0_51 = arith.constant 0 : index
    %c0_52 = arith.constant 0 : index
    %89 = vector.load %arg7[%c0_51, %c0_52] : memref<32x384xbf16, #tpu.memory_space<vmem>>, vector<32x384xbf16>
    %cst_53 = arith.constant dense<0.000000e+00> : vector<256x384xf32>
    %90 = tpu.matmul %88, %89, %cst_53 {dimension_numbers = #tpu.dot_dimension_numbers<[1], [0], [0], [1], [0, 0, 1, 1], [], []>} : vector<256x32xbf16>, vector<32x384xbf16>, vector<256x384xf32> -> vector<256x384xf32>
    %91 = vector.extract_strided_slice %90 {offsets = [0, 0], sizes = [256, 128], strides = [1, 1]} : vector<256x384xf32> to vector<256x128xf32>
    %92 = vector.extract_strided_slice %90 {offsets = [0, 128], sizes = [256, 128], strides = [1, 1]} : vector<256x384xf32> to vector<256x128xf32>
    %93 = vector.extract_strided_slice %90 {offsets = [0, 256], sizes = [256, 128], strides = [1, 1]} : vector<256x384xf32> to vector<256x128xf32>
    %94 = arith.mulf %91, %92 : vector<256x128xf32>
    %c0_54 = arith.constant 0 : index
    %c0_55 = arith.constant 0 : index
    %95 = vector.load %arg10[%c0_54, %c0_55] : memref<128x16xf32, #tpu.memory_space<vmem>>, vector<128x16xf32>
    %cst_56 = arith.constant dense<0.000000e+00> : vector<256x16xf32>
    %96 = tpu.matmul %94, %95, %cst_56 {dimension_numbers = #tpu.dot_dimension_numbers<[1], [0], [0], [1], [0, 0, 1, 1], [], []>} : vector<256x128xf32>, vector<128x16xf32>, vector<256x16xf32> -> vector<256x16xf32>
    %cst_57 = arith.constant dense<0xFF800000> : vector<256xf32>
    %97 = vector.multi_reduction <maximumf>, %96, %cst_57 [1] : vector<256x16xf32> to vector<256xf32>
    %98 = vector.shape_cast %97 : vector<256xf32> to vector<256x1xf32>
    %99 = vector.broadcast %98 : vector<256x1xf32> to vector<256x16xf32>
    %100 = arith.subf %96, %99 : vector<256x16xf32>
    %101 = math.exp %100 : vector<256x16xf32>
    %c0_58 = arith.constant 0 : index
    %c0_59 = arith.constant 0 : index
    %102 = vector.load %arg13[%c0_58, %c0_59] : memref<16x4xf32, #tpu.memory_space<vmem>>, vector<16x4xf32>
    %cst_60 = arith.constant dense<0.000000e+00> : vector<256x4xf32>
    %103 = tpu.matmul %101, %102, %cst_60 {dimension_numbers = #tpu.dot_dimension_numbers<[1], [0], [0], [1], [0, 0, 1, 1], [], []>} : vector<256x16xf32>, vector<16x4xf32>, vector<256x4xf32> -> vector<256x4xf32>
    %104 = tpu.reciprocal %103 {approx = true} : vector<256x4xf32> -> vector<256x4xf32>
    %c0_61 = arith.constant 0 : index
    %c0_62 = arith.constant 0 : index
    %105 = vector.load %arg11[%c0_61, %c0_62] : memref<16x128xf32, #tpu.memory_space<vmem>>, vector<16x128xf32>
    %cst_63 = arith.constant dense<0.000000e+00> : vector<256x128xf32>
    %106 = tpu.matmul %101, %105, %cst_63 {dimension_numbers = #tpu.dot_dimension_numbers<[1], [0], [0], [1], [0, 0, 1, 1], [], []>} : vector<256x16xf32>, vector<16x128xf32>, vector<256x128xf32> -> vector<256x128xf32>
    %c0_64 = arith.constant 0 : index
    %c0_65 = arith.constant 0 : index
    %107 = vector.load %arg14[%c0_64, %c0_65] : memref<4x128xf32, #tpu.memory_space<vmem>>, vector<4x128xf32>
    %cst_66 = arith.constant dense<0.000000e+00> : vector<256x128xf32>
    %108 = tpu.matmul %104, %107, %cst_66 {dimension_numbers = #tpu.dot_dimension_numbers<[1], [0], [0], [1], [0, 0, 1, 1], [], []>} : vector<256x4xf32>, vector<4x128xf32>, vector<256x128xf32> -> vector<256x128xf32>
    %109 = arith.mulf %106, %108 : vector<256x128xf32>
    %110 = arith.mulf %109, %93 : vector<256x128xf32>
    %c0_67 = arith.constant 0 : index
    %c0_68 = arith.constant 0 : index
    %111 = vector.load %arg12[%c0_67, %c0_68] : memref<128x32xf32, #tpu.memory_space<vmem>>, vector<128x32xf32>
    %cst_69 = arith.constant dense<0.000000e+00> : vector<256x32xf32>
    %112 = tpu.matmul %110, %111, %cst_69 {dimension_numbers = #tpu.dot_dimension_numbers<[1], [0], [0], [1], [0, 0, 1, 1], [], []>} : vector<256x128xf32>, vector<128x32xf32>, vector<256x32xf32> -> vector<256x32xf32>
    %113 = arith.truncf %112 : vector<256x32xf32> to vector<256x32xbf16>
    %c0_70 = arith.constant 0 : index
    %c0_71 = arith.constant 0 : index
    %114 = vector.load %arg8[%c0_70, %c0_71] : memref<32x32xbf16, #tpu.memory_space<vmem>>, vector<32x32xbf16>
    %cst_72 = arith.constant dense<0.000000e+00> : vector<256x32xf32>
    %115 = tpu.matmul %113, %114, %cst_72 {dimension_numbers = #tpu.dot_dimension_numbers<[1], [0], [0], [1], [0, 0, 1, 1], [], []>} : vector<256x32xbf16>, vector<32x32xbf16>, vector<256x32xf32> -> vector<256x32xf32>
    %116 = vector.broadcast %72 : vector<1x32xf32> to vector<256x32xf32>
    %117 = arith.addf %115, %116 : vector<256x32xf32>
    %c0_73 = arith.constant 0 : index
    %c0_74 = arith.constant 0 : index
    %118 = vector.load %arg15[%c0_73, %c0_74] : memref<32x4xf32, #tpu.memory_space<vmem>>, vector<32x4xf32>
    %cst_75 = arith.constant dense<0.000000e+00> : vector<256x4xf32>
    %119 = tpu.matmul %117, %118, %cst_75 {dimension_numbers = #tpu.dot_dimension_numbers<[1], [0], [0], [1], [0, 0, 1, 1], [], []>} : vector<256x32xf32>, vector<32x4xf32>, vector<256x4xf32> -> vector<256x4xf32>
    %120 = arith.mulf %117, %117 : vector<256x32xf32>
    %c0_76 = arith.constant 0 : index
    %c0_77 = arith.constant 0 : index
    %121 = vector.load %arg15[%c0_76, %c0_77] : memref<32x4xf32, #tpu.memory_space<vmem>>, vector<32x4xf32>
    %cst_78 = arith.constant dense<0.000000e+00> : vector<256x4xf32>
    %122 = tpu.matmul %120, %121, %cst_78 {dimension_numbers = #tpu.dot_dimension_numbers<[1], [0], [0], [1], [0, 0, 1, 1], [], []>} : vector<256x32xf32>, vector<32x4xf32>, vector<256x4xf32> -> vector<256x4xf32>
    %123 = arith.mulf %119, %119 : vector<256x4xf32>
    %124 = arith.subf %122, %123 : vector<256x4xf32>
    %cst_79 = arith.constant 9.99999974E-6 : f32
    %125 = vector.broadcast %cst_79 : f32 to vector<256x4xf32>
    %126 = arith.addf %124, %125 : vector<256x4xf32>
    %127 = math.rsqrt %126 : vector<256x4xf32>
    %c0_80 = arith.constant 0 : index
    %c0_81 = arith.constant 0 : index
    %128 = vector.load %arg16[%c0_80, %c0_81] : memref<4x32xf32, #tpu.memory_space<vmem>>, vector<4x32xf32>
    %cst_82 = arith.constant dense<0.000000e+00> : vector<256x32xf32>
    %129 = tpu.matmul %119, %128, %cst_82 {dimension_numbers = #tpu.dot_dimension_numbers<[1], [0], [0], [1], [0, 0, 1, 1], [], []>} : vector<256x4xf32>, vector<4x32xf32>, vector<256x32xf32> -> vector<256x32xf32>
    %c0_83 = arith.constant 0 : index
    %c0_84 = arith.constant 0 : index
    %130 = vector.load %arg16[%c0_83, %c0_84] : memref<4x32xf32, #tpu.memory_space<vmem>>, vector<4x32xf32>
    %cst_85 = arith.constant dense<0.000000e+00> : vector<256x32xf32>
    %131 = tpu.matmul %127, %130, %cst_85 {dimension_numbers = #tpu.dot_dimension_numbers<[1], [0], [0], [1], [0, 0, 1, 1], [], []>} : vector<256x4xf32>, vector<4x32xf32>, vector<256x32xf32> -> vector<256x32xf32>
    %132 = arith.subf %117, %129 : vector<256x32xf32>
    %133 = arith.mulf %132, %131 : vector<256x32xf32>
    %134 = vector.broadcast %73 : vector<1x32xf32> to vector<256x32xf32>
    %135 = arith.mulf %133, %134 : vector<256x32xf32>
    %136 = vector.broadcast %74 : vector<1x32xf32> to vector<256x32xf32>
    %137 = arith.addf %135, %136 : vector<256x32xf32>
    %138 = arith.addf %137, %87 : vector<256x32xf32>
    %c0_86 = arith.constant 0 : index
    %c0_87 = arith.constant 0 : index
    %139 = vector.load %arg17[%c0_86, %c0_87] : memref<32x1xf32, #tpu.memory_space<vmem>>, vector<32x1xf32>
    %cst_88 = arith.constant dense<0.000000e+00> : vector<256x1xf32>
    %140 = tpu.matmul %138, %139, %cst_88 {dimension_numbers = #tpu.dot_dimension_numbers<[1], [0], [0], [1], [0, 0, 1, 1], [], []>} : vector<256x32xf32>, vector<32x1xf32>, vector<256x1xf32> -> vector<256x1xf32>
    %c0_89 = arith.constant 0 : index
    %c0_90 = arith.constant 0 : index
    %141 = vector.load %arg18[%c0_89, %c0_90] : memref<1x1xf32, #tpu.memory_space<vmem>>, vector<1x1xf32>
    %142 = vector.broadcast %141 : vector<1x1xf32> to vector<256x1xf32>
    %143 = arith.addf %140, %142 : vector<256x1xf32>
    %c0_91 = arith.constant 0 : index
    %c0_92 = arith.constant 0 : index
    %144 = vector.load %arg19[%c0_91, %c0_92] : memref<256x1xf32, #tpu.memory_space<vmem>>, vector<256x1xf32>
    tpu.vector_store %arg19[%c0_91, %c0_92], %143 {strides = array<i32>} : memref<256x1xf32, #tpu.memory_space<vmem>>, vector<256x1xf32>,
    return
  }
  func.func @transform_0(%arg0: i32) -> (i32, i32) {
    %c0_i32 = arith.constant 0 : i32
    %c0_i32_0 = arith.constant 0 : i32
    return %arg0, %c0_i32 : i32, i32
  }
  func.func @transform_1(%arg0: i32) -> (i32, i32) {
    %c0_i32 = arith.constant 0 : i32
    %c0_i32_0 = arith.constant 0 : i32
    %c0_i32_1 = arith.constant 0 : i32
    return %c0_i32, %c0_i32_0 : i32, i32
  }
  func.func @transform_2(%arg0: i32) -> (i32, i32) {
    %c0_i32 = arith.constant 0 : i32
    %c0_i32_0 = arith.constant 0 : i32
    %c0_i32_1 = arith.constant 0 : i32
    return %c0_i32, %c0_i32_0 : i32, i32
  }
  func.func @transform_3(%arg0: i32) -> (i32, i32) {
    %c0_i32 = arith.constant 0 : i32
    %c0_i32_0 = arith.constant 0 : i32
    %c0_i32_1 = arith.constant 0 : i32
    return %c0_i32, %c0_i32_0 : i32, i32
  }
  func.func @transform_4(%arg0: i32) -> (i32, i32) {
    %c0_i32 = arith.constant 0 : i32
    %c0_i32_0 = arith.constant 0 : i32
    %c0_i32_1 = arith.constant 0 : i32
    return %c0_i32, %c0_i32_0 : i32, i32
  }
  func.func @transform_5(%arg0: i32) -> (i32, i32) {
    %c0_i32 = arith.constant 0 : i32
    %c0_i32_0 = arith.constant 0 : i32
    %c0_i32_1 = arith.constant 0 : i32
    return %c0_i32, %c0_i32_0 : i32, i32
  }
  func.func @transform_6(%arg0: i32) -> (i32, i32) {
    %c0_i32 = arith.constant 0 : i32
    %c0_i32_0 = arith.constant 0 : i32
    %c0_i32_1 = arith.constant 0 : i32
    return %c0_i32, %c0_i32_0 : i32, i32
  }
  func.func @transform_7(%arg0: i32) -> (i32, i32) {
    %c0_i32 = arith.constant 0 : i32
    %c0_i32_0 = arith.constant 0 : i32
    %c0_i32_1 = arith.constant 0 : i32
    return %c0_i32, %c0_i32_0 : i32, i32
  }
  func.func @transform_8(%arg0: i32) -> (i32, i32) {
    %c0_i32 = arith.constant 0 : i32
    %c0_i32_0 = arith.constant 0 : i32
    %c0_i32_1 = arith.constant 0 : i32
    return %c0_i32, %c0_i32_0 : i32, i32
  }
  func.func @transform_9(%arg0: i32) -> (i32, i32) {
    %c0_i32 = arith.constant 0 : i32
    %c0_i32_0 = arith.constant 0 : i32
    %c0_i32_1 = arith.constant 0 : i32
    return %c0_i32, %c0_i32_0 : i32, i32
  }
  func.func @transform_10(%arg0: i32) -> (i32, i32) {
    %c0_i32 = arith.constant 0 : i32
    %c0_i32_0 = arith.constant 0 : i32
    %c0_i32_1 = arith.constant 0 : i32
    return %c0_i32, %c0_i32_0 : i32, i32
  }
  func.func @transform_11(%arg0: i32) -> (i32, i32) {
    %c0_i32 = arith.constant 0 : i32
    %c0_i32_0 = arith.constant 0 : i32
    %c0_i32_1 = arith.constant 0 : i32
    return %c0_i32, %c0_i32_0 : i32, i32
  }
  func.func @transform_12(%arg0: i32) -> (i32, i32) {
    %c0_i32 = arith.constant 0 : i32
    %c0_i32_0 = arith.constant 0 : i32
    %c0_i32_1 = arith.constant 0 : i32
    return %c0_i32, %c0_i32_0 : i32, i32
  }
  func.func @transform_13(%arg0: i32) -> (i32, i32) {
    %c0_i32 = arith.constant 0 : i32
    %c0_i32_0 = arith.constant 0 : i32
    %c0_i32_1 = arith.constant 0 : i32
    return %c0_i32, %c0_i32_0 : i32, i32
  }
  func.func @transform_14(%arg0: i32) -> (i32, i32) {
    %c0_i32 = arith.constant 0 : i32
    %c0_i32_0 = arith.constant 0 : i32
    %c0_i32_1 = arith.constant 0 : i32
    return %c0_i32, %c0_i32_0 : i32, i32
  }
  func.func @transform_15(%arg0: i32) -> (i32, i32) {
    %c0_i32 = arith.constant 0 : i32
    %c0_i32_0 = arith.constant 0 : i32
    %c0_i32_1 = arith.constant 0 : i32
    return %c0_i32, %c0_i32_0 : i32, i32
  }
  func.func @transform_16(%arg0: i32) -> (i32, i32) {
    %c0_i32 = arith.constant 0 : i32
    %c0_i32_0 = arith.constant 0 : i32
    %c0_i32_1 = arith.constant 0 : i32
    return %c0_i32, %c0_i32_0 : i32, i32
  }
  func.func @transform_17(%arg0: i32) -> (i32, i32) {
    %c0_i32 = arith.constant 0 : i32
    %c0_i32_0 = arith.constant 0 : i32
    %c0_i32_1 = arith.constant 0 : i32
    return %c0_i32, %c0_i32_0 : i32, i32
  }
  func.func @transform_18(%arg0: i32) -> (i32, i32) {
    %c0_i32 = arith.constant 0 : i32
    %c0_i32_0 = arith.constant 0 : i32
    return %arg0, %c0_i32 : i32, i32
  }
}

</mosaic_0001>

<llo_original>
// kernel: tpu_custom_call.1
$region0: #{tpu_custom_call.1}
  #allocation0 [shape = 'u32[]', space=smem, size = 0x4, offset = 0x4, fixed_abs, tag = 'smem constant byte address 0x4 - core index']
  #allocation1 [shape = 'u32[72,128]{1,0:T(1,128)}', space=vmem, size = 0x9000, scoped, tag = 'internal scratch']
  #allocation2 [shape = 'f32[1,1]{1,0:T(1,128)S(1)}', space=vmem, size = 0x200, scoped, tag = 'scoped memory for tpu_custom_call.1']
  %s0 = inlined_call_operand.vmem [shape: f32[512,16], index: 0, kind: input, shape index: {}]
  %s1 = inlined_call_operand.vmem [shape: bf16[16,32], index: 1, kind: input, shape index: {}]
  %s2 = inlined_call_operand.vmem [shape: bf16[32,384], index: 2, kind: input, shape index: {}]
  %s3 = inlined_call_operand.vmem [shape: bf16[32,32], index: 3, kind: input, shape index: {}]
  %s4 = inlined_call_operand.vmem [shape: f32[4,32], index: 4, kind: input, shape index: {}]
  %s5 = inlined_call_operand.vmem [shape: bf16[32,32], index: 5, kind: input, shape index: {}]
  %s6 = inlined_call_operand.vmem [shape: bf16[32,384], index: 6, kind: input, shape index: {}]
  %s7 = inlined_call_operand.vmem [shape: bf16[32,32], index: 7, kind: input, shape index: {}]
  %s8 = inlined_call_operand.vmem [shape: f32[4,32], index: 8, kind: input, shape index: {}]
  %s9 = inlined_call_operand.vmem [shape: f32[128,16], index: 9, kind: input, shape index: {}]
  %s10 = inlined_call_operand.vmem [shape: f32[16,128], index: 10, kind: input, shape index: {}]
  %s11 = inlined_call_operand.vmem [shape: f32[128,32], index: 11, kind: input, shape index: {}]
  %s12 = inlined_call_operand.vmem [shape: f32[16,4], index: 12, kind: input, shape index: {}]
  %s13 = inlined_call_operand.vmem [shape: f32[4,128], index: 13, kind: input, shape index: {}]
  %s14 = inlined_call_operand.vmem [shape: f32[32,4], index: 14, kind: input, shape index: {}]
  %s15 = inlined_call_operand.vmem [shape: f32[4,32], index: 15, kind: input, shape index: {}]
  %s16 = inlined_call_operand.vmem [shape: f32[32,1], index: 16, kind: input, shape index: {}]
  %s17 = inlined_call_operand.<no memory space> [shape: f32[1,1], index: 17, kind: input, shape index: {}]
  %s18 = inlined_call_operand.vmem [shape: f32[512,1], index: 18, kind: output, shape index: {}]
  %s19 = sld [smem:[#allocation0]]
  $region105: #{tpu_custom_call.1} parent=0
    _
  %s21 = ssub.s32 1, %s19
  %s22 = scalar_select 0, %s21, %s19
  %v23 = vstv %s17
  %24 = vst [vmem:[#allocation2] sm:$0x1] %v23
  loop: start=0, step=1, limit=4
  $region2: #{tpu_custom_call.1} parent=0 // loop_pre_header
    _
  $region3: #{tpu_custom_call.1} parent=0 // loop_header
    %s26 = sphi 0, %s30
    %p27 = scmp.ge.s32.totalorder %s26, 4
    %s36 = sphi 0, %s38
    %s39 = sphi 0, %s36
    %s40 = sphi 0, %s39
    %s56 = sphi 0, %s40
    %s60 = sphi 0, %s60
    %s62 = sphi 0, %s60
    %s63 = sphi 0, %s62
    %s77 = sphi 0, %s63
    %s81 = sphi 0, %s81
    %s83 = sphi 0, %s81
    %s84 = sphi 0, %s83
    %s98 = sphi 0, %s84
    %s102 = sphi 0, %s102
    %s104 = sphi 0, %s102
    %s105 = sphi 0, %s104
    %s119 = sphi 0, %s105
    %s123 = sphi 0, %s123
    %s125 = sphi 0, %s123
    %s126 = sphi 0, %s125
    %s140 = sphi 0, %s126
    %s144 = sphi 0, %s144
    %s146 = sphi 0, %s144
    %s147 = sphi 0, %s146
    %s161 = sphi 0, %s147
    %s165 = sphi 0, %s165
    %s167 = sphi 0, %s165
    %s168 = sphi 0, %s167
    %s182 = sphi 0, %s168
    %s186 = sphi 0, %s186
    %s188 = sphi 0, %s186
    %s189 = sphi 0, %s188
    %s203 = sphi 0, %s189
    %s207 = sphi 0, %s207
    %s209 = sphi 0, %s207
    %s210 = sphi 0, %s209
    %s224 = sphi 0, %s210
    %s228 = sphi 0, %s228
    %s230 = sphi 0, %s228
    %s231 = sphi 0, %s230
    %s245 = sphi 0, %s231
    %s249 = sphi 0, %s249
    %s251 = sphi 0, %s249
    %s252 = sphi 0, %s251
    %s266 = sphi 0, %s252
    %s270 = sphi 0, %s270
    %s272 = sphi 0, %s270
    %s273 = sphi 0, %s272
    %s287 = sphi 0, %s273
    %s291 = sphi 0, %s291
    %s293 = sphi 0, %s291
    %s294 = sphi 0, %s293
    %s308 = sphi 0, %s294
    %s312 = sphi 0, %s312
    %s314 = sphi 0, %s312
    %s315 = sphi 0, %s314
    %s329 = sphi 0, %s315
    %s333 = sphi 0, %s333
    %s335 = sphi 0, %s333
    %s336 = sphi 0, %s335
    %s350 = sphi 0, %s336
    %s354 = sphi 0, %s354
    %s356 = sphi 0, %s354
    %s357 = sphi 0, %s356
    %s371 = sphi 0, %s357
    %s375 = sphi 0, %s375
    %s377 = sphi 0, %s375
    %s378 = sphi 0, %s377
    %s392 = sphi 0, %s378
    %s396 = sphi 0, %s396
    %s398 = sphi 0, %s396
    %s399 = sphi 0, %s398
    %s413 = sphi 0, %s399
    %s419 = sphi 0, %s421
    %s422 = sphi 0, %s419
    %s423 = sphi 0, %s422
    %s439 = sphi 0, %s423
  $region4: #{tpu_custom_call.1} parent=0 // loop_header_branch
    %29 = sbr.rel (%p27) target = $region8
  $region5: #{tpu_custom_call.1} parent=0 // loop_body
    %s31 = ssub.s32 %s26, 1
    %s32 = ssub.s32 %s26, 2
    %s33 = sadd.s32 %s26, 1
    %s34 = ssub.s32 %s26, %s33
    %p35 = scmp.eq.s32.totalorder %s34, 0
    %s37 = sadd.s32 %s36, 1
    %s38 = scalar_select %p35, %s36, %s37
    %p41 = pneg %p35
    %p42 = scmp.eq.s32.totalorder %s26, 1
    %p43 = por %p41, %p42
    %p44 = scmp.ne.s32.totalorder %s36, %s39
    %p45 = scmp.eq.s32.totalorder %s26, 0
    %p46 = por %p44, %p45
    %p47 = scmp.ne.s32.totalorder %s36, %s39
    %p48 = scmp.eq.s32.totalorder %s31, 1
    %p49 = por %p47, %p48
    %p50 = scmp.ne.s32.totalorder %s39, %s40
    %p51 = scmp.eq.s32.totalorder %s31, 0
    %p52 = por %p50, %p51
    %p53 = scmp.ne.s32.totalorder %s39, %s40
    %p54 = scmp.eq.s32.totalorder %s32, 1
    %p55 = por %p53, %p54
    %p57 = scmp.ne.s32.totalorder %s40, %s56
    %p58 = scmp.eq.s32.totalorder %s32, 0
    %p59 = por %p57, %p58
    %s61 = sadd.s32 %s60, 1
    %p64 = scmp.eq.s32.totalorder %s26, 1
    %p65 = scmp.ne.s32.totalorder %s60, %s62
    %p66 = scmp.eq.s32.totalorder %s26, 0
    %p67 = por %p65, %p66
    %p68 = scmp.ne.s32.totalorder %s60, %s62
    %p69 = scmp.eq.s32.totalorder %s31, 1
    %p70 = por %p68, %p69
    %p71 = scmp.ne.s32.totalorder %s62, %s63
    %p72 = scmp.eq.s32.totalorder %s31, 0
    %p73 = por %p71, %p72
    %p74 = scmp.ne.s32.totalorder %s62, %s63
    %p75 = scmp.eq.s32.totalorder %s32, 1
    %p76 = por %p74, %p75
    %p78 = scmp.ne.s32.totalorder %s63, %s77
    %p79 = scmp.eq.s32.totalorder %s32, 0
    %p80 = por %p78, %p79
    %s82 = sadd.s32 %s81, 1
    %p85 = scmp.eq.s32.totalorder %s26, 1
    %p86 = scmp.ne.s32.totalorder %s81, %s83
    %p87 = scmp.eq.s32.totalorder %s26, 0
    %p88 = por %p86, %p87
    %p89 = scmp.ne.s32.totalorder %s81, %s83
    %p90 = scmp.eq.s32.totalorder %s31, 1
    %p91 = por %p89, %p90
    %p92 = scmp.ne.s32.totalorder %s83, %s84
    %p93 = scmp.eq.s32.totalorder %s31, 0
    %p94 = por %p92, %p93
    %p95 = scmp.ne.s32.totalorder %s83, %s84
    %p96 = scmp.eq.s32.totalorder %s32, 1
    %p97 = por %p95, %p96
    %p99 = scmp.ne.s32.totalorder %s84, %s98
    %p100 = scmp.eq.s32.totalorder %s32, 0
    %p101 = por %p99, %p100
    %s103 = sadd.s32 %s102, 1
    %p106 = scmp.eq.s32.totalorder %s26, 1
    %p107 = scmp.ne.s32.totalorder %s102, %s104
    %p108 = scmp.eq.s32.totalorder %s26, 0
    %p109 = por %p107, %p108
    %p110 = scmp.ne.s32.totalorder %s102, %s104
    %p111 = scmp.eq.s32.totalorder %s31, 1
    %p112 = por %p110, %p111
    %p113 = scmp.ne.s32.totalorder %s104, %s105
    %p114 = scmp.eq.s32.totalorder %s31, 0
    %p115 = por %p113, %p114
    %p116 = scmp.ne.s32.totalorder %s104, %s105
    %p117 = scmp.eq.s32.totalorder %s32, 1
    %p118 = por %p116, %p117
    %p120 = scmp.ne.s32.totalorder %s105, %s119
    %p121 = scmp.eq.s32.totalorder %s32, 0
    %p122 = por %p120, %p121
    %s124 = sadd.s32 %s123, 1
    %p127 = scmp.eq.s32.totalorder %s26, 1
    %p128 = scmp.ne.s32.totalorder %s123, %s125
    %p129 = scmp.eq.s32.totalorder %s26, 0
    %p130 = por %p128, %p129
    %p131 = scmp.ne.s32.totalorder %s123, %s125
    %p132 = scmp.eq.s32.totalorder %s31, 1
    %p133 = por %p131, %p132
    %p134 = scmp.ne.s32.totalorder %s125, %s126
    %p135 = scmp.eq.s32.totalorder %s31, 0
    %p136 = por %p134, %p135
    %p137 = scmp.ne.s32.totalorder %s125, %s126
    %p138 = scmp.eq.s32.totalorder %s32, 1
    %p139 = por %p137, %p138
    %p141 = scmp.ne.s32.totalorder %s126, %s140
    %p142 = scmp.eq.s32.totalorder %s32, 0
    %p143 = por %p141, %p142
    %s145 = sadd.s32 %s144, 1
    %p148 = scmp.eq.s32.totalorder %s26, 1
    %p149 = scmp.ne.s32.totalorder %s144, %s146
    %p150 = scmp.eq.s32.totalorder %s26, 0
    %p151 = por %p149, %p150
    %p152 = scmp.ne.s32.totalorder %s144, %s146
    %p153 = scmp.eq.s32.totalorder %s31, 1
    %p154 = por %p152, %p153
    %p155 = scmp.ne.s32.totalorder %s146, %s147
    %p156 = scmp.eq.s32.totalorder %s31, 0
    %p157 = por %p155, %p156
    %p158 = scmp.ne.s32.totalorder %s146, %s147
    %p159 = scmp.eq.s32.totalorder %s32, 1
    %p160 = por %p158, %p159
    %p162 = scmp.ne.s32.totalorder %s147, %s161
    %p163 = scmp.eq.s32.totalorder %s32, 0
    %p164 = por %p162, %p163
    %s166 = sadd.s32 %s165, 1
    %p169 = scmp.eq.s32.totalorder %s26, 1
    %p170 = scmp.ne.s32.totalorder %s165, %s167
    %p171 = scmp.eq.s32.totalorder %s26, 0
    %p172 = por %p170, %p171
    %p173 = scmp.ne.s32.totalorder %s165, %s167
    %p174 = scmp.eq.s32.totalorder %s31, 1
    %p175 = por %p173, %p174
    %p176 = scmp.ne.s32.totalorder %s167, %s168
    %p177 = scmp.eq.s32.totalorder %s31, 0
    %p178 = por %p176, %p177
    %p179 = scmp.ne.s32.totalorder %s167, %s168
    %p180 = scmp.eq.s32.totalorder %s32, 1
    %p181 = por %p179, %p180
    %p183 = scmp.ne.s32.totalorder %s168, %s182
    %p184 = scmp.eq.s32.totalorder %s32, 0
    %p185 = por %p183, %p184
    %s187 = sadd.s32 %s186, 1
    %p190 = scmp.eq.s32.totalorder %s26, 1
    %p191 = scmp.ne.s32.totalorder %s186, %s188
    %p192 = scmp.eq.s32.totalorder %s26, 0
    %p193 = por %p191, %p192
    %p194 = scmp.ne.s32.totalorder %s186, %s188
    %p195 = scmp.eq.s32.totalorder %s31, 1
    %p196 = por %p194, %p195
    %p197 = scmp.ne.s32.totalorder %s188, %s189
    %p198 = scmp.eq.s32.totalorder %s31, 0
    %p199 = por %p197, %p198
    %p200 = scmp.ne.s32.totalorder %s188, %s189
    %p201 = scmp.eq.s32.totalorder %s32, 1
    %p202 = por %p200, %p201
    %p204 = scmp.ne.s32.totalorder %s189, %s203
    %p205 = scmp.eq.s32.totalorder %s32, 0
    %p206 = por %p204, %p205
    %s208 = sadd.s32 %s207, 1
    %p211 = scmp.eq.s32.totalorder %s26, 1
    %p212 = scmp.ne.s32.totalorder %s207, %s209
    %p213 = scmp.eq.s32.totalorder %s26, 0
    %p214 = por %p212, %p213
    %p215 = scmp.ne.s32.totalorder %s207, %s209
    %p216 = scmp.eq.s32.totalorder %s31, 1
    %p217 = por %p215, %p216
    %p218 = scmp.ne.s32.totalorder %s209, %s210
    %p219 = scmp.eq.s32.totalorder %s31, 0
    %p220 = por %p218, %p219
    %p221 = scmp.ne.s32.totalorder %s209, %s210
    %p222 = scmp.eq.s32.totalorder %s32, 1
    %p223 = por %p221, %p222
    %p225 = scmp.ne.s32.totalorder %s210, %s224
    %p226 = scmp.eq.s32.totalorder %s32, 0
    %p227 = por %p225, %p226
    %s229 = sadd.s32 %s228, 1
    %p232 = scmp.eq.s32.totalorder %s26, 1
    %p233 = scmp.ne.s32.totalorder %s228, %s230
    %p234 = scmp.eq.s32.totalorder %s26, 0
    %p235 = por %p233, %p234
    %p236 = scmp.ne.s32.totalorder %s228, %s230
    %p237 = scmp.eq.s32.totalorder %s31, 1
    %p238 = por %p236, %p237
    %p239 = scmp.ne.s32.totalorder %s230, %s231
    %p240 = scmp.eq.s32.totalorder %s31, 0
    %p241 = por %p239, %p240
    %p242 = scmp.ne.s32.totalorder %s230, %s231
    %p243 = scmp.eq.s32.totalorder %s32, 1
    %p244 = por %p242, %p243
    %p246 = scmp.ne.s32.totalorder %s231, %s245
    %p247 = scmp.eq.s32.totalorder %s32, 0
    %p248 = por %p246, %p247
    %s250 = sadd.s32 %s249, 1
    %p253 = scmp.eq.s32.totalorder %s26, 1
    %p254 = scmp.ne.s32.totalorder %s249, %s251
    %p255 = scmp.eq.s32.totalorder %s26, 0
    %p256 = por %p254, %p255
    %p257 = scmp.ne.s32.totalorder %s249, %s251
    %p258 = scmp.eq.s32.totalorder %s31, 1
    %p259 = por %p257, %p258
    %p260 = scmp.ne.s32.totalorder %s251, %s252
    %p261 = scmp.eq.s32.totalorder %s31, 0
    %p262 = por %p260, %p261
    %p263 = scmp.ne.s32.totalorder %s251, %s252
    %p264 = scmp.eq.s32.totalorder %s32, 1
    %p265 = por %p263, %p264
    %p267 = scmp.ne.s32.totalorder %s252, %s266
    %p268 = scmp.eq.s32.totalorder %s32, 0
    %p269 = por %p267, %p268
    %s271 = sadd.s32 %s270, 1
    %p274 = scmp.eq.s32.totalorder %s26, 1
    %p275 = scmp.ne.s32.totalorder %s270, %s272
    %p276 = scmp.eq.s32.totalorder %s26, 0
    %p277 = por %p275, %p276
    %p278 = scmp.ne.s32.totalorder %s270, %s272
    %p279 = scmp.eq.s32.totalorder %s31, 1
    %p280 = por %p278, %p279
    %p281 = scmp.ne.s32.totalorder %s272, %s273
    %p282 = scmp.eq.s32.totalorder %s31, 0
    %p283 = por %p281, %p282
    %p284 = scmp.ne.s32.totalorder %s272, %s273
    %p285 = scmp.eq.s32.totalorder %s32, 1
    %p286 = por %p284, %p285
    %p288 = scmp.ne.s32.totalorder %s273, %s287
    %p289 = scmp.eq.s32.totalorder %s32, 0
    %p290 = por %p288, %p289
    %s292 = sadd.s32 %s291, 1
    %p295 = scmp.eq.s32.totalorder %s26, 1
    %p296 = scmp.ne.s32.totalorder %s291, %s293
    %p297 = scmp.eq.s32.totalorder %s26, 0
    %p298 = por %p296, %p297
    %p299 = scmp.ne.s32.totalorder %s291, %s293
    %p300 = scmp.eq.s32.totalorder %s31, 1
    %p301 = por %p299, %p300
    %p302 = scmp.ne.s32.totalorder %s293, %s294
    %p303 = scmp.eq.s32.totalorder %s31, 0
    %p304 = por %p302, %p303
    %p305 = scmp.ne.s32.totalorder %s293, %s294
    %p306 = scmp.eq.s32.totalorder %s32, 1
    %p307 = por %p305, %p306
    %p309 = scmp.ne.s32.totalorder %s294, %s308
    %p310 = scmp.eq.s32.totalorder %s32, 0
    %p311 = por %p309, %p310
    %s313 = sadd.s32 %s312, 1
    %p316 = scmp.eq.s32.totalorder %s26, 1
    %p317 = scmp.ne.s32.totalorder %s312, %s314
    %p318 = scmp.eq.s32.totalorder %s26, 0
    %p319 = por %p317, %p318
    %p320 = scmp.ne.s32.totalorder %s312, %s314
    %p321 = scmp.eq.s32.totalorder %s31, 1
    %p322 = por %p320, %p321
    %p323 = scmp.ne.s32.totalorder %s314, %s315
    %p324 = scmp.eq.s32.totalorder %s31, 0
    %p325 = por %p323, %p324
    %p326 = scmp.ne.s32.totalorder %s314, %s315
    %p327 = scmp.eq.s32.totalorder %s32, 1
    %p328 = por %p326, %p327
    %p330 = scmp.ne.s32.totalorder %s315, %s329
    %p331 = scmp.eq.s32.totalorder %s32, 0
    %p332 = por %p330, %p331
    %s334 = sadd.s32 %s333, 1
    %p337 = scmp.eq.s32.totalorder %s26, 1
    %p338 = scmp.ne.s32.totalorder %s333, %s335
    %p339 = scmp.eq.s32.totalorder %s26, 0
    %p340 = por %p338, %p339
    %p341 = scmp.ne.s32.totalorder %s333, %s335
    %p342 = scmp.eq.s32.totalorder %s31, 1
    %p343 = por %p341, %p342
    %p344 = scmp.ne.s32.totalorder %s335, %s336
    %p345 = scmp.eq.s32.totalorder %s31, 0
    %p346 = por %p344, %p345
    %p347 = scmp.ne.s32.totalorder %s335, %s336
    %p348 = scmp.eq.s32.totalorder %s32, 1
    %p349 = por %p347, %p348
    %p351 = scmp.ne.s32.totalorder %s336, %s350
    %p352 = scmp.eq.s32.totalorder %s32, 0
    %p353 = por %p351, %p352
    %s355 = sadd.s32 %s354, 1
    %p358 = scmp.eq.s32.totalorder %s26, 1
    %p359 = scmp.ne.s32.totalorder %s354, %s356
    %p360 = scmp.eq.s32.totalorder %s26, 0
    %p361 = por %p359, %p360
    %p362 = scmp.ne.s32.totalorder %s354, %s356
    %p363 = scmp.eq.s32.totalorder %s31, 1
    %p364 = por %p362, %p363
    %p365 = scmp.ne.s32.totalorder %s356, %s357
    %p366 = scmp.eq.s32.totalorder %s31, 0
    %p367 = por %p365, %p366
    %p368 = scmp.ne.s32.totalorder %s356, %s357
    %p369 = scmp.eq.s32.totalorder %s32, 1
    %p370 = por %p368, %p369
    %p372 = scmp.ne.s32.totalorder %s357, %s371
    %p373 = scmp.eq.s32.totalorder %s32, 0
    %p374 = por %p372, %p373
    %s376 = sadd.s32 %s375, 1
    %p379 = scmp.eq.s32.totalorder %s26, 1
    %p380 = scmp.ne.s32.totalorder %s375, %s377
    %p381 = scmp.eq.s32.totalorder %s26, 0
    %p382 = por %p380, %p381
    %p383 = scmp.ne.s32.totalorder %s375, %s377
    %p384 = scmp.eq.s32.totalorder %s31, 1
    %p385 = por %p383, %p384
    %p386 = scmp.ne.s32.totalorder %s377, %s378
    %p387 = scmp.eq.s32.totalorder %s31, 0
    %p388 = por %p386, %p387
    %p389 = scmp.ne.s32.totalorder %s377, %s378
    %p390 = scmp.eq.s32.totalorder %s32, 1
    %p391 = por %p389, %p390
    %p393 = scmp.ne.s32.totalorder %s378, %s392
    %p394 = scmp.eq.s32.totalorder %s32, 0
    %p395 = por %p393, %p394
    %s397 = sadd.s32 %s396, 1
    %p400 = scmp.eq.s32.totalorder %s26, 1
    %p401 = scmp.ne.s32.totalorder %s396, %s398
    %p402 = scmp.eq.s32.totalorder %s26, 0
    %p403 = por %p401, %p402
    %p404 = scmp.ne.s32.totalorder %s396, %s398
    %p405 = scmp.eq.s32.totalorder %s31, 1
    %p406 = por %p404, %p405
    %p407 = scmp.ne.s32.totalorder %s398, %s399
    %p408 = scmp.eq.s32.totalorder %s31, 0
    %p409 = por %p407, %p408
    %p410 = scmp.ne.s32.totalorder %s398, %s399
    %p411 = scmp.eq.s32.totalorder %s32, 1
    %p412 = por %p410, %p411
    %p414 = scmp.ne.s32.totalorder %s399, %s413
    %p415 = scmp.eq.s32.totalorder %s32, 0
    %p416 = por %p414, %p415
    %s417 = ssub.s32 %s26, %s33
    %p418 = scmp.eq.s32.totalorder %s417, 0
    %s420 = sadd.s32 %s419, 1
    %s421 = scalar_select %p418, %s419, %s420
    %p424 = pneg %p418
    %p425 = scmp.eq.s32.totalorder %s26, 1
    %p426 = por %p424, %p425
    %p427 = scmp.ne.s32.totalorder %s419, %s422
    %p428 = scmp.eq.s32.totalorder %s26, 0
    %p429 = por %p427, %p428
    %p430 = scmp.ne.s32.totalorder %s419, %s422
    %p431 = scmp.eq.s32.totalorder %s31, 1
    %p432 = por %p430, %p431
    %p433 = scmp.ne.s32.totalorder %s422, %s423
    %p434 = scmp.eq.s32.totalorder %s31, 0
    %p435 = por %p433, %p434
    %p436 = scmp.ne.s32.totalorder %s422, %s423
    %p437 = scmp.eq.s32.totalorder %s32, 1
    %p438 = por %p436, %p437
    %p440 = scmp.ne.s32.totalorder %s423, %s439
    %p441 = scmp.eq.s32.totalorder %s32, 0
    %p442 = por %p440, %p441
    %p443 = scmp.le.s32.totalorder 1, %s26
    %p444 = scmp.lt.s32.totalorder %s26, 3
    %p445 = pnand %p443, %p444
    %p446 = pneg %p445
    // Predicated region
    $region9: #{tpu_custom_call.1} parent=5 // pred_check
      _
    $region10: #{tpu_custom_call.1} parent=5 // pred_check_branch
      %448 = sbr.rel (%p445) target = $region12
    $region11: #{tpu_custom_call.1} parent=5 // pred_region
      %s449 = ssub.s32 %s26, 1
      // Predicated region
      $region13: #{tpu_custom_call.1} parent=11 // pred_check
        %p450 = pneg %p73
      $region14: #{tpu_custom_call.1} parent=11 // pred_check_branch
        %452 = sbr.rel (%p450) target = $region16
      $region15: #{tpu_custom_call.1} parent=11 // pred_region
        _
      $region16: #{tpu_custom_call.1} parent=11 // pred_fallthru
        _
      // Predicated region
      $region17: #{tpu_custom_call.1} parent=11 // pred_check
        %p453 = pneg %p94
      $region18: #{tpu_custom_call.1} parent=11 // pred_check_branch
        %455 = sbr.rel (%p453) target = $region20
      $region19: #{tpu_custom_call.1} parent=11 // pred_region
        _
      $region20: #{tpu_custom_call.1} parent=11 // pred_fallthru
        _
      // Predicated region
      $region21: #{tpu_custom_call.1} parent=11 // pred_check
        %p456 = pneg %p115
      $region22: #{tpu_custom_call.1} parent=11 // pred_check_branch
        %458 = sbr.rel (%p456) target = $region24
      $region23: #{tpu_custom_call.1} parent=11 // pred_region
        _
      $region24: #{tpu_custom_call.1} parent=11 // pred_fallthru
        _
      // Predicated region
      $region25: #{tpu_custom_call.1} parent=11 // pred_check
        %p459 = pneg %p136
      $region26: #{tpu_custom_call.1} parent=11 // pred_check_branch
        %461 = sbr.rel (%p459) target = $region28
      $region27: #{tpu_custom_call.1} parent=11 // pred_region
        _
      $region28: #{tpu_custom_call.1} parent=11 // pred_fallthru
        _
      // Predicated region
      $region29: #{tpu_custom_call.1} parent=11 // pred_check
        %p462 = pneg %p157
      $region30: #{tpu_custom_call.1} parent=11 // pred_check_branch
        %464 = sbr.rel (%p462) target = $region32
      $region31: #{tpu_custom_call.1} parent=11 // pred_region
        _
      $region32: #{tpu_custom_call.1} parent=11 // pred_fallthru
        _
      // Predicated region
      $region33: #{tpu_custom_call.1} parent=11 // pred_check
        %p465 = pneg %p178
      $region34: #{tpu_custom_call.1} parent=11 // pred_check_branch
        %467 = sbr.rel (%p465) target = $region36
      $region35: #{tpu_custom_call.1} parent=11 // pred_region
        _
      $region36: #{tpu_custom_call.1} parent=11 // pred_fallthru
        _
      // Predicated region
      $region37: #{tpu_custom_call.1} parent=11 // pred_check
        %p468 = pneg %p199
      $region38: #{tpu_custom_call.1} parent=11 // pred_check_branch
        %470 = sbr.rel (%p468) target = $region40
      $region39: #{tpu_custom_call.1} parent=11 // pred_region
        _
      $region40: #{tpu_custom_call.1} parent=11 // pred_fallthru
        _
      // Predicated region
      $region41: #{tpu_custom_call.1} parent=11 // pred_check
        %p471 = pneg %p220
      $region42: #{tpu_custom_call.1} parent=11 // pred_check_branch
        %473 = sbr.rel (%p471) target = $region44
      $region43: #{tpu_custom_call.1} parent=11 // pred_region
        _
      $region44: #{tpu_custom_call.1} parent=11 // pred_fallthru
        _
      // Predicated region
      $region45: #{tpu_custom_call.1} parent=11 // pred_check
        %p474 = pneg %p241
      $region46: #{tpu_custom_call.1} parent=11 // pred_check_branch
        %476 = sbr.rel (%p474) target = $region48
      $region47: #{tpu_custom_call.1} parent=11 // pred_region
        _
      $region48: #{tpu_custom_call.1} parent=11 // pred_fallthru
        _
      // Predicated region
      $region49: #{tpu_custom_call.1} parent=11 // pred_check
        %p477 = pneg %p262
      $region50: #{tpu_custom_call.1} parent=11 // pred_check_branch
        %479 = sbr.rel (%p477) target = $region52
      $region51: #{tpu_custom_call.1} parent=11 // pred_region
        _
      $region52: #{tpu_custom_call.1} parent=11 // pred_fallthru
        _
      // Predicated region
      $region53: #{tpu_custom_call.1} parent=11 // pred_check
        %p480 = pneg %p283
      $region54: #{tpu_custom_call.1} parent=11 // pred_check_branch
        %482 = sbr.rel (%p480) target = $region56
      $region55: #{tpu_custom_call.1} parent=11 // pred_region
        _
      $region56: #{tpu_custom_call.1} parent=11 // pred_fallthru
        _
      // Predicated region
      $region57: #{tpu_custom_call.1} parent=11 // pred_check
        %p483 = pneg %p304
      $region58: #{tpu_custom_call.1} parent=11 // pred_check_branch
        %485 = sbr.rel (%p483) target = $region60
      $region59: #{tpu_custom_call.1} parent=11 // pred_region
        _
      $region60: #{tpu_custom_call.1} parent=11 // pred_fallthru
        _
      // Predicated region
      $region61: #{tpu_custom_call.1} parent=11 // pred_check
        %p486 = pneg %p325
      $region62: #{tpu_custom_call.1} parent=11 // pred_check_branch
        %488 = sbr.rel (%p486) target = $region64
      $region63: #{tpu_custom_call.1} parent=11 // pred_region
        _
      $region64: #{tpu_custom_call.1} parent=11 // pred_fallthru
        _
      // Predicated region
      $region65: #{tpu_custom_call.1} parent=11 // pred_check
        %p489 = pneg %p346
      $region66: #{tpu_custom_call.1} parent=11 // pred_check_branch
        %491 = sbr.rel (%p489) target = $region68
      $region67: #{tpu_custom_call.1} parent=11 // pred_region
        _
      $region68: #{tpu_custom_call.1} parent=11 // pred_fallthru
        _
      // Predicated region
      $region69: #{tpu_custom_call.1} parent=11 // pred_check
        %p492 = pneg %p367
      $region70: #{tpu_custom_call.1} parent=11 // pred_check_branch
        %494 = sbr.rel (%p492) target = $region72
      $region71: #{tpu_custom_call.1} parent=11 // pred_region
        _
      $region72: #{tpu_custom_call.1} parent=11 // pred_fallthru
        _
      // Predicated region
      $region73: #{tpu_custom_call.1} parent=11 // pred_check
        %p495 = pneg %p388
      $region74: #{tpu_custom_call.1} parent=11 // pred_check_branch
        %497 = sbr.rel (%p495) target = $region76
      $region75: #{tpu_custom_call.1} parent=11 // pred_region
        _
      $region76: #{tpu_custom_call.1} parent=11 // pred_fallthru
        _
      // Predicated region
      $region77: #{tpu_custom_call.1} parent=11 // pred_check
        %p498 = pneg %p409
      $region78: #{tpu_custom_call.1} parent=11 // pred_check_branch
        %500 = sbr.rel (%p498) target = $region80
      $region79: #{tpu_custom_call.1} parent=11 // pred_region
        _
      $region80: #{tpu_custom_call.1} parent=11 // pred_fallthru
        _
    $region12: #{tpu_custom_call.1} parent=5 // pred_fallthru
      _
    %p501 = scmp.lt.s32.totalorder %s26, 2
    // Predicated region
    $region81: #{tpu_custom_call.1} parent=5 // pred_check
      %p502 = pneg %p501
    $region82: #{tpu_custom_call.1} parent=5 // pred_check_branch
      %504 = sbr.rel (%p502) target = $region84
    $region83: #{tpu_custom_call.1} parent=5 // pred_region
      // Predicated region
      $region85: #{tpu_custom_call.1} parent=83 // pred_check
        %p505 = pneg %p46
      $region86: #{tpu_custom_call.1} parent=83 // pred_check_branch
        %507 = sbr.rel (%p505) target = $region88
      $region87: #{tpu_custom_call.1} parent=83 // pred_region
        %s508 = smul.u32 32, %s26
        %p509 = scmp.lt.s32.totalorder %s508, 63
        %s510 = scalar_select %p509, %s508, 63
        %s511 = smul.addr %s510, 8
        %s512 = scalar_lea.vmem %s0, %s511
        %s513 = smul.u32 32, %s26
      $region88: #{tpu_custom_call.1} parent=83 // pred_fallthru
        _
    $region84: #{tpu_custom_call.1} parent=5 // pred_fallthru
      _
    %p514 = scmp.le.s32.totalorder 1, %s26
    %p515 = scmp.lt.s32.totalorder %s26, 3
    %p516 = pnand %p514, %p515
    %p517 = pneg %p516
    // Predicated region
    $region89: #{tpu_custom_call.1} parent=5 // pred_check
      _
    $region90: #{tpu_custom_call.1} parent=5 // pred_check_branch
      %519 = sbr.rel (%p516) target = $region92
    $region91: #{tpu_custom_call.1} parent=5 // pred_region
      %s520 = ssub.s32 %s26, 1
      %s521 = smul.u32 32, %s31
      %p522 = scmp.lt.s32.totalorder %s521, 63
      %s523 = scalar_select %p522, %s521, 63
      %s524 = smul.addr %s523, 8
      %s525 = scalar_lea.vmem %s0, %s524
      %p526 = pneg %p52
      %p527 = pneg %p49
      %p528 = pneg %p73
      %p529 = pneg %p70
      %p530 = pneg %p94
      %p531 = pneg %p91
      %p532 = pneg %p115
      %p533 = pneg %p112
      %p534 = pneg %p136
      %p535 = pneg %p133
      %p536 = pneg %p157
      %p537 = pneg %p154
      %p538 = pneg %p178
      %p539 = pneg %p175
      %p540 = pneg %p199
      %p541 = pneg %p196
      %p542 = pneg %p220
      %p543 = pneg %p217
      %p544 = pneg %p241
      %p545 = pneg %p238
      %p546 = pneg %p262
      %p547 = pneg %p259
      %p548 = pneg %p283
      %p549 = pneg %p280
      %p550 = pneg %p304
      %p551 = pneg %p301
      %p552 = pneg %p325
      %p553 = pneg %p322
      %p554 = pneg %p346
      %p555 = pneg %p343
      %p556 = pneg %p367
      %p557 = pneg %p364
      %p558 = pneg %p388
      %p559 = pneg %p385
      %p560 = pneg %p409
      %p561 = pneg %p406
      %p562 = pneg %p435
      %p563 = pneg %p432
      %s564 = smul.u32 32, %s31
      %p565 = scmp.lt.s32.totalorder %s564, 63
      %s566 = scalar_select %p565, %s564, 63
      %s567 = smul.addr %s566, 8
      %s568 = scalar_lea.vmem %s18, %s567
      %s569 = smul.u32 32, %s31
      %p570 = scmp.lt.s32.totalorder %s569, 63
      %s571 = scalar_select %p570, %s569, 63
      %s572 = smul.addr %s571, 8
      %s573 = scalar_lea.vmem %s0, %s572
      %s574 = smul.u32 32, %s31
      %s575 = smul.u32 32, %s31
      %p576 = scmp.lt.s32.totalorder %s575, 63
      %s577 = scalar_select %p576, %s575, 63
      %s578 = smul.addr %s577, 8
      %s579 = scalar_lea.vmem %s18, %s578
      %s580 = smul.u32 32, %s31
      %v582 = vld [vmem:[%s573] sm:$0xff]
      %v583 = vld [vmem:[%s573 + $0x8] sm:$0xff]
      %v584 = vld [vmem:[%s573 + $0x10] sm:$0xff]
      %v585 = vld [vmem:[%s573 + $0x18] sm:$0xff]
      %v586 = vld [vmem:[%s573 + $0x20] sm:$0xff]
      %v587 = vld [vmem:[%s573 + $0x28] sm:$0xff]
      %v588 = vld [vmem:[%s573 + $0x30] sm:$0xff]
      %v589 = vld [vmem:[%s573 + $0x38] sm:$0xff]
      %v590 = vld [vmem:[%s573 + $0x40] sm:$0xff]
      %v591 = vld [vmem:[%s573 + $0x48] sm:$0xff]
      %v592 = vld [vmem:[%s573 + $0x50] sm:$0xff]
      %v593 = vld [vmem:[%s573 + $0x58] sm:$0xff]
      %v594 = vld [vmem:[%s573 + $0x60] sm:$0xff]
      %v595 = vld [vmem:[%s573 + $0x68] sm:$0xff]
      %v596 = vld [vmem:[%s573 + $0x70] sm:$0xff]
      %v597 = vld [vmem:[%s573 + $0x78] sm:$0xff]
      %v598 = vld [vmem:[%s573 + $0x80] sm:$0xff]
      %v599 = vld [vmem:[%s573 + $0x88] sm:$0xff]
      %v600 = vld [vmem:[%s573 + $0x90] sm:$0xff]
      %v601 = vld [vmem:[%s573 + $0x98] sm:$0xff]
      %v602 = vld [vmem:[%s573 + $0xa0] sm:$0xff]
      %v603 = vld [vmem:[%s573 + $0xa8] sm:$0xff]
      %v604 = vld [vmem:[%s573 + $0xb0] sm:$0xff]
      %v605 = vld [vmem:[%s573 + $0xb8] sm:$0xff]
      %v606 = vld [vmem:[%s573 + $0xc0] sm:$0xff]
      %v607 = vld [vmem:[%s573 + $0xc8] sm:$0xff]
      %v608 = vld [vmem:[%s573 + $0xd0] sm:$0xff]
      %v609 = vld [vmem:[%s573 + $0xd8] sm:$0xff]
      %v610 = vld [vmem:[%s573 + $0xe0] sm:$0xff]
      %v611 = vld [vmem:[%s573 + $0xe8] sm:$0xff]
      %v612 = vld [vmem:[%s573 + $0xf0] sm:$0xff]
      %v613 = vld [vmem:[%s573 + $0xf8] sm:$0xff]
      %v614 = vld [vmem:[%s4] sm:$0xf]
      %v615 = vpack.c.bf16 %v583, %v582
      %v616 = vpack.c.bf16 %v585, %v584
      %v617 = vpack.c.bf16 %v587, %v586
      %v618 = vpack.c.bf16 %v589, %v588
      %v619 = vpack.c.bf16 %v591, %v590
      %v620 = vpack.c.bf16 %v593, %v592
      %v621 = vpack.c.bf16 %v595, %v594
      %v622 = vpack.c.bf16 %v597, %v596
      %v623 = vpack.c.bf16 %v599, %v598
      %v624 = vpack.c.bf16 %v601, %v600
      %v625 = vpack.c.bf16 %v603, %v602
      %v626 = vpack.c.bf16 %v605, %v604
      %v627 = vpack.c.bf16 %v607, %v606
      %v628 = vpack.c.bf16 %v609, %v608
      %v629 = vpack.c.bf16 %v611, %v610
      %v630 = vpack.c.bf16 %v613, %v612
      %v631 = vld [vmem:[%s1] sm:$0xf]
      %v632 = vld [vmem:[%s1 + $0x4] sm:$0xf]
      %v633 = vperm.slane %v614, 0
      %v636 = vunpack.c.l.b16 %v631
      %v637 = vunpack.c.l.b16 %v632
      %v638 = vpack.c.b16 %v637, %v636
      %vm640 = vcmask 130048
      %v642 = vsel %vm640, %v615, 0
      %v645 = vsel %vm640, %v616, 0
      %v648 = vsel %vm640, %v617, 0
      %v651 = vsel %vm640, %v618, 0
      %v654 = vsel %vm640, %v619, 0
      %v657 = vsel %vm640, %v620, 0
      %v660 = vsel %vm640, %v621, 0
      %v663 = vsel %vm640, %v622, 0
      %v666 = vsel %vm640, %v623, 0
      %v669 = vsel %vm640, %v624, 0
      %v672 = vsel %vm640, %v625, 0
      %v675 = vsel %vm640, %v626, 0
      %v678 = vsel %vm640, %v627, 0
      %v681 = vsel %vm640, %v628, 0
      %v684 = vsel %vm640, %v629, 0
      %v687 = vsel %vm640, %v630, 0
      %689 = vmatpush.bf16.msra.mxu0 0
      %690 = vmatpush.bf16.msra.mxu0 0
      %691 = vmatpush.bf16.msra.mxu0 0
      %692 = vmatpush.bf16.msra.mxu0 0
      %693 = vmatpush.bf16.msra.mxu0 0
      %694 = vmatpush.bf16.msra.mxu0 0
      %695 = vmatpush.bf16.msra.mxu0 0
      %696 = vmatpush.bf16.msra.mxu0 %v638
      %697 = vmatmul.bf16.gmra.mxu0 %v642
      %v698 = vpop.f32.mrf.mxu0
      %v699 = vadd.f32 %v633, %v698
      %v700 = vpop.f32.mrf.mxu0
      %v701 = vadd.f32 %v633, %v700
      %702 = vmatmul.bf16.gmra.mxu0 %v645
      %v703 = vpop.f32.mrf.mxu0
      %v704 = vadd.f32 %v633, %v703
      %v705 = vpop.f32.mrf.mxu0
      %v706 = vadd.f32 %v633, %v705
      %707 = vmatmul.bf16.gmra.mxu0 %v648
      %v708 = vpop.f32.mrf.mxu0
      %v709 = vadd.f32 %v633, %v708
      %v710 = vpop.f32.mrf.mxu0
      %v711 = vadd.f32 %v633, %v710
      %712 = vmatmul.bf16.gmra.mxu0 %v651
      %v713 = vpop.f32.mrf.mxu0
      %v714 = vadd.f32 %v633, %v713
      %v715 = vpop.f32.mrf.mxu0
      %v716 = vadd.f32 %v633, %v715
      %717 = vmatmul.bf16.gmra.mxu0 %v654
      %v718 = vpop.f32.mrf.mxu0
      %v719 = vadd.f32 %v633, %v718
      %v720 = vpop.f32.mrf.mxu0
      %v721 = vadd.f32 %v633, %v720
      %722 = vmatmul.bf16.gmra.mxu0 %v657
      %v723 = vpop.f32.mrf.mxu0
      %v724 = vadd.f32 %v633, %v723
      %v725 = vpop.f32.mrf.mxu0
      %v726 = vadd.f32 %v633, %v725
      %727 = vmatmul.bf16.gmra.mxu0 %v660
      %v728 = vpop.f32.mrf.mxu0
      %v729 = vadd.f32 %v633, %v728
      %v730 = vpop.f32.mrf.mxu0
      %v731 = vadd.f32 %v633, %v730
      %732 = vmatmul.bf16.gmra.mxu0 %v663
      %v733 = vpop.f32.mrf.mxu0
      %v734 = vadd.f32 %v633, %v733
      %v735 = vpop.f32.mrf.mxu0
      %v736 = vadd.f32 %v633, %v735
      %737 = vmatmul.bf16.gmra.mxu0 %v666
      %v738 = vpop.f32.mrf.mxu0
      %v739 = vadd.f32 %v633, %v738
      %v740 = vpop.f32.mrf.mxu0
      %v741 = vadd.f32 %v633, %v740
      %742 = vmatmul.bf16.gmra.mxu0 %v669
      %v743 = vpop.f32.mrf.mxu0
      %v744 = vadd.f32 %v633, %v743
      %v745 = vpop.f32.mrf.mxu0
      %v746 = vadd.f32 %v633, %v745
      %747 = vmatmul.bf16.gmra.mxu0 %v672
      %v748 = vpop.f32.mrf.mxu0
      %v749 = vadd.f32 %v633, %v748
      %v750 = vpop.f32.mrf.mxu0
      %v751 = vadd.f32 %v633, %v750
      %752 = vmatmul.bf16.gmra.mxu0 %v675
      %v753 = vpop.f32.mrf.mxu0
      %v754 = vadd.f32 %v633, %v753
      %v755 = vpop.f32.mrf.mxu0
      %v756 = vadd.f32 %v633, %v755
      %757 = vmatmul.bf16.gmra.mxu0 %v678
      %v758 = vpop.f32.mrf.mxu0
      %v759 = vadd.f32 %v633, %v758
      %v760 = vpop.f32.mrf.mxu0
      %v761 = vadd.f32 %v633, %v760
      %762 = vmatmul.bf16.gmra.mxu0 %v681
      %v763 = vpop.f32.mrf.mxu0
      %v764 = vadd.f32 %v633, %v763
      %v765 = vpop.f32.mrf.mxu0
      %v766 = vadd.f32 %v633, %v765
      %767 = vmatmul.bf16.gmra.mxu0 %v684
      %v768 = vpop.f32.mrf.mxu0
      %v769 = vadd.f32 %v633, %v768
      %v770 = vpop.f32.mrf.mxu0
      %v771 = vadd.f32 %v633, %v770
      %772 = vmatmul.bf16.gmra.mxu0 %v687
      %v773 = vpop.f32.mrf.mxu0
      %v774 = vadd.f32 %v633, %v773
      %v775 = vpop.f32.mrf.mxu0
      %v776 = vadd.f32 %v633, %v775
      %777 = vdwg.mxu0
      %vm778 = vcmp.gt.f32.partialorder %v699, 0.0
      %vm779 = vcmp.gt.f32.partialorder %v701, 0.0
      %vm780 = vcmp.gt.f32.partialorder %v704, 0.0
      %vm781 = vcmp.gt.f32.partialorder %v706, 0.0
      %vm782 = vcmp.gt.f32.partialorder %v709, 0.0
      %vm783 = vcmp.gt.f32.partialorder %v711, 0.0
      %vm784 = vcmp.gt.f32.partialorder %v714, 0.0
      %vm785 = vcmp.gt.f32.partialorder %v716, 0.0
      %vm786 = vcmp.gt.f32.partialorder %v719, 0.0
      %vm787 = vcmp.gt.f32.partialorder %v721, 0.0
      %vm788 = vcmp.gt.f32.partialorder %v724, 0.0
      %vm789 = vcmp.gt.f32.partialorder %v726, 0.0
      %vm790 = vcmp.gt.f32.partialorder %v729, 0.0
      %vm791 = vcmp.gt.f32.partialorder %v731, 0.0
      %vm792 = vcmp.gt.f32.partialorder %v734, 0.0
      %vm793 = vcmp.gt.f32.partialorder %v736, 0.0
      %vm794 = vcmp.gt.f32.partialorder %v739, 0.0
      %vm795 = vcmp.gt.f32.partialorder %v741, 0.0
      %vm796 = vcmp.gt.f32.partialorder %v744, 0.0
      %vm797 = vcmp.gt.f32.partialorder %v746, 0.0
      %vm798 = vcmp.gt.f32.partialorder %v749, 0.0
      %vm799 = vcmp.gt.f32.partialorder %v751, 0.0
      %vm800 = vcmp.gt.f32.partialorder %v754, 0.0
      %vm801 = vcmp.gt.f32.partialorder %v756, 0.0
      %vm802 = vcmp.gt.f32.partialorder %v759, 0.0
      %vm803 = vcmp.gt.f32.partialorder %v761, 0.0
      %vm804 = vcmp.gt.f32.partialorder %v764, 0.0
      %vm805 = vcmp.gt.f32.partialorder %v766, 0.0
      %vm806 = vcmp.gt.f32.partialorder %v769, 0.0
      %vm807 = vcmp.gt.f32.partialorder %v771, 0.0
      %vm808 = vcmp.gt.f32.partialorder %v774, 0.0
      %vm809 = vcmp.gt.f32.partialorder %v776, 0.0
      %v810 = vmin.f32 %v699, 0.0
      %v811 = vmin.f32 %v701, 0.0
      %v812 = vmin.f32 %v704, 0.0
      %v813 = vmin.f32 %v706, 0.0
      %v814 = vmin.f32 %v709, 0.0
      %v815 = vmin.f32 %v711, 0.0
      %v816 = vmin.f32 %v714, 0.0
      %v817 = vmin.f32 %v716, 0.0
      %v818 = vmin.f32 %v719, 0.0
      %v819 = vmin.f32 %v721, 0.0
      %v820 = vmin.f32 %v724, 0.0
      %v821 = vmin.f32 %v726, 0.0
      %v822 = vmin.f32 %v729, 0.0
      %v823 = vmin.f32 %v731, 0.0
      %v824 = vmin.f32 %v734, 0.0
      %v825 = vmin.f32 %v736, 0.0
      %v826 = vmin.f32 %v739, 0.0
      %v827 = vmin.f32 %v741, 0.0
      %v828 = vmin.f32 %v744, 0.0
      %v829 = vmin.f32 %v746, 0.0
      %v830 = vmin.f32 %v749, 0.0
      %v831 = vmin.f32 %v751, 0.0
      %v832 = vmin.f32 %v754, 0.0
      %v833 = vmin.f32 %v756, 0.0
      %v834 = vmin.f32 %v759, 0.0
      %v835 = vmin.f32 %v761, 0.0
      %v836 = vmin.f32 %v764, 0.0
      %v837 = vmin.f32 %v766, 0.0
      %v838 = vmin.f32 %v769, 0.0
      %v839 = vmin.f32 %v771, 0.0
      %v840 = vmin.f32 %v774, 0.0
      %v841 = vmin.f32 %v776, 0.0
      %v842 = vmul.f32 %v810, 1.442695
      %v843 = vpow.pop %v842
      %v844 = vmul.f32 %v811, 1.442695
      %v845 = vpow.pop %v844
      %v846 = vmul.f32 %v812, 1.442695
      %v847 = vpow.pop %v846
      %v848 = vmul.f32 %v813, 1.442695
      %v849 = vpow.pop %v848
      %v850 = vmul.f32 %v814, 1.442695
      %v851 = vpow.pop %v850
      %v852 = vmul.f32 %v815, 1.442695
      %v853 = vpow.pop %v852
      %v854 = vmul.f32 %v816, 1.442695
      %v855 = vpow.pop %v854
      %v856 = vmul.f32 %v817, 1.442695
      %v857 = vpow.pop %v856
      %v858 = vmul.f32 %v818, 1.442695
      %v859 = vpow.pop %v858
      %v860 = vmul.f32 %v819, 1.442695
      %v861 = vpow.pop %v860
      %v862 = vmul.f32 %v820, 1.442695
      %v863 = vpow.pop %v862
      %v864 = vmul.f32 %v821, 1.442695
      %v865 = vpow.pop %v864
      %v866 = vmul.f32 %v822, 1.442695
      %v867 = vpow.pop %v866
      %v868 = vmul.f32 %v823, 1.442695
      %v869 = vpow.pop %v868
      %v870 = vmul.f32 %v824, 1.442695
      %v871 = vpow.pop %v870
      %v872 = vmul.f32 %v825, 1.442695
      %v873 = vpow.pop %v872
      %v874 = vmul.f32 %v826, 1.442695
      %v875 = vpow.pop %v874
      %v876 = vmul.f32 %v827, 1.442695
      %v877 = vpow.pop %v876
      %v878 = vmul.f32 %v828, 1.442695
      %v879 = vpow.pop %v878
      %v880 = vmul.f32 %v829, 1.442695
      %v881 = vpow.pop %v880
      %v882 = vmul.f32 %v830, 1.442695
      %v883 = vpow.pop %v882
      %v884 = vmul.f32 %v831, 1.442695
      %v885 = vpow.pop %v884
      %v886 = vmul.f32 %v832, 1.442695
      %v887 = vpow.pop %v886
      %v888 = vmul.f32 %v833, 1.442695
      %v889 = vpow.pop %v888
      %v890 = vmul.f32 %v834, 1.442695
      %v891 = vpow.pop %v890
      %v892 = vmul.f32 %v835, 1.442695
      %v893 = vpow.pop %v892
      %v894 = vmul.f32 %v836, 1.442695
      %v895 = vpow.pop %v894
      %v896 = vmul.f32 %v837, 1.442695
      %v897 = vpow.pop %v896
      %v898 = vmul.f32 %v838, 1.442695
      %v899 = vpow.pop %v898
      %v900 = vmul.f32 %v839, 1.442695
      %v901 = vpow.pop %v900
      %v902 = vmul.f32 %v840, 1.442695
      %v903 = vpow.pop %v902
      %v904 = vmul.f32 %v841, 1.442695
      %v905 = vpow.pop %v904
      %v906 = vsub.f32 %v843, 1.0
      %v907 = vsub.f32 %v845, 1.0
      %v908 = vsub.f32 %v847, 1.0
      %v909 = vsub.f32 %v849, 1.0
      %v910 = vsub.f32 %v851, 1.0
      %v911 = vsub.f32 %v853, 1.0
      %v912 = vsub.f32 %v855, 1.0
      %v913 = vsub.f32 %v857, 1.0
      %v914 = vsub.f32 %v859, 1.0
      %v915 = vsub.f32 %v861, 1.0
      %v916 = vsub.f32 %v863, 1.0
      %v917 = vsub.f32 %v865, 1.0
      %v918 = vsub.f32 %v867, 1.0
      %v919 = vsub.f32 %v869, 1.0
      %v920 = vsub.f32 %v871, 1.0
      %v921 = vsub.f32 %v873, 1.0
      %v922 = vsub.f32 %v875, 1.0
      %v923 = vsub.f32 %v877, 1.0
      %v924 = vsub.f32 %v879, 1.0
      %v925 = vsub.f32 %v881, 1.0
      %v926 = vsub.f32 %v883, 1.0
      %v927 = vsub.f32 %v885, 1.0
      %v928 = vsub.f32 %v887, 1.0
      %v929 = vsub.f32 %v889, 1.0
      %v930 = vsub.f32 %v891, 1.0
      %v931 = vsub.f32 %v893, 1.0
      %v932 = vsub.f32 %v895, 1.0
      %v933 = vsub.f32 %v897, 1.0
      %v934 = vsub.f32 %v899, 1.0
      %v935 = vsub.f32 %v901, 1.0
      %v936 = vsub.f32 %v903, 1.0
      %v937 = vsub.f32 %v905, 1.0
      %v938 = vsel %vm778, %v699, %v906
      %v939 = vsel %vm779, %v701, %v907
      %v940 = vsel %vm780, %v704, %v908
      %v941 = vsel %vm781, %v706, %v909
      %v942 = vsel %vm782, %v709, %v910
      %v943 = vsel %vm783, %v711, %v911
      %v944 = vsel %vm784, %v714, %v912
      %v945 = vsel %vm785, %v716, %v913
      %v946 = vsel %vm786, %v719, %v914
      %v947 = vsel %vm787, %v721, %v915
      %v948 = vsel %vm788, %v724, %v916
      %v949 = vsel %vm789, %v726, %v917
      %v950 = vsel %vm790, %v729, %v918
      %v951 = vsel %vm791, %v731, %v919
      %v952 = vsel %vm792, %v734, %v920
      %v953 = vsel %vm793, %v736, %v921
      %v954 = vsel %vm794, %v739, %v922
      %v955 = vsel %vm795, %v741, %v923
      %v956 = vsel %vm796, %v744, %v924
      %v957 = vsel %vm797, %v746, %v925
      %v958 = vsel %vm798, %v749, %v926
      %v959 = vsel %vm799, %v751, %v927
      %v960 = vsel %vm800, %v754, %v928
      %v961 = vsel %vm801, %v756, %v929
      %v962 = vsel %vm802, %v759, %v930
      %v963 = vsel %vm803, %v761, %v931
      %v964 = vsel %vm804, %v764, %v932
      %v965 = vsel %vm805, %v766, %v933
      %v966 = vsel %vm806, %v769, %v934
      %v967 = vsel %vm807, %v771, %v935
      %v968 = vsel %vm808, %v774, %v936
      %v969 = vsel %vm809, %v776, %v937
      %v970 = vpack.c.bf16 %v939, %v938
      %v971 = vpack.c.bf16 %v941, %v940
      %v972 = vpack.c.bf16 %v943, %v942
      %v973 = vpack.c.bf16 %v945, %v944
      %v974 = vpack.c.bf16 %v947, %v946
      %v975 = vpack.c.bf16 %v949, %v948
      %v976 = vpack.c.bf16 %v951, %v950
      %v977 = vpack.c.bf16 %v953, %v952
      %v978 = vpack.c.bf16 %v955, %v954
      %v979 = vpack.c.bf16 %v957, %v956
      %v980 = vpack.c.bf16 %v959, %v958
      %v981 = vpack.c.bf16 %v961, %v960
      %v982 = vpack.c.bf16 %v963, %v962
      %v983 = vpack.c.bf16 %v965, %v964
      %v984 = vpack.c.bf16 %v967, %v966
      %v985 = vpack.c.bf16 %v969, %v968
      %v986 = vld [vmem:[%s2] sm:$0xff]
      %v987 = vld [vmem:[%s2 + $0x8] sm:$0xf]
      %v988 = vld [vmem:[%s2 + $0xc] sm:$0xff]
      %v989 = vld [vmem:[%s2 + $0x14] sm:$0xf]
      %v990 = vld [vmem:[%s2 + $0x18] sm:$0xff]
      %v991 = vld [vmem:[%s2 + $0x20] sm:$0xf]
      %v992 = vld [vmem:[%s2 + $0x24] sm:$0xff]
      %v993 = vld [vmem:[%s2 + $0x2c] sm:$0xf]
      %v1002 = vunpack.c.l.b16 %v986
      %v1003 = vunpack.c.h.b16 %v986
      %v1004 = vunpack.c.l.b16 %v987
      %v1005 = vunpack.c.l.b16 %v988
      %v1006 = vunpack.c.h.b16 %v988
      %v1007 = vunpack.c.l.b16 %v989
      %v1008 = vunpack.c.l.b16 %v990
      %v1009 = vunpack.c.h.b16 %v990
      %v1010 = vunpack.c.l.b16 %v991
      %v1011 = vunpack.c.l.b16 %v992
      %v1012 = vunpack.c.h.b16 %v992
      %v1013 = vunpack.c.l.b16 %v993
      %v1014 = vpack.c.b16 %v1005, %v1002
      %v1015 = vpack.c.b16 %v1006, %v1003
      %v1016 = vpack.c.b16 %v1007, %v1004
      %v1017 = vpack.c.b16 %v1011, %v1008
      %v1018 = vpack.c.b16 %v1012, %v1009
      %v1019 = vpack.c.b16 %v1013, %v1010
      %vm1026 = vcmask 261120
      %v1028 = vsel %vm1026, %v970, 0
      %v1031 = vsel %vm1026, %v971, 0
      %v1034 = vsel %vm1026, %v972, 0
      %v1037 = vsel %vm1026, %v973, 0
      %v1040 = vsel %vm1026, %v974, 0
      %v1043 = vsel %vm1026, %v975, 0
      %v1046 = vsel %vm1026, %v976, 0
      %v1049 = vsel %vm1026, %v977, 0
      %v1052 = vsel %vm1026, %v978, 0
      %v1055 = vsel %vm1026, %v979, 0
      %v1058 = vsel %vm1026, %v980, 0
      %v1061 = vsel %vm1026, %v981, 0
      %v1064 = vsel %vm1026, %v982, 0
      %v1067 = vsel %vm1026, %v983, 0
      %v1070 = vsel %vm1026, %v984, 0
      %v1073 = vsel %vm1026, %v985, 0
      %1075 = vmatpush.bf16.msra.mxu0 0
      %1076 = vmatpush.bf16.msra.mxu0 0
      %1077 = vmatpush.bf16.msra.mxu0 0
      %1078 = vmatpush.bf16.msra.mxu0 0
      %1079 = vmatpush.bf16.msra.mxu0 0
      %1080 = vmatpush.bf16.msra.mxu0 0
      %1081 = vmatpush.bf16.msra.mxu0 %v1017
      %1082 = vmatpush.bf16.msra.mxu0 %v1014
      %1083 = vmatmul.bf16.gmra.mxu0 %v1028
      %v1084 = vpop.f32.mrf.mxu0
      %v1085 = vadd.f32 0.0, %v1084
      %v1086 = vpop.f32.mrf.mxu0
      %v1087 = vadd.f32 0.0, %v1086
      %1088 = vmatmul.bf16.gmra.mxu0 %v1031
      %v1089 = vpop.f32.mrf.mxu0
      %v1090 = vadd.f32 0.0, %v1089
      %v1091 = vpop.f32.mrf.mxu0
      %v1092 = vadd.f32 0.0, %v1091
      %1093 = vmatmul.bf16.gmra.mxu0 %v1034
      %v1094 = vpop.f32.mrf.mxu0
      %v1095 = vadd.f32 0.0, %v1094
      %v1096 = vpop.f32.mrf.mxu0
      %v1097 = vadd.f32 0.0, %v1096
      %1098 = vmatmul.bf16.gmra.mxu0 %v1037
      %v1099 = vpop.f32.mrf.mxu0
      %v1100 = vadd.f32 0.0, %v1099
      %v1101 = vpop.f32.mrf.mxu0
      %v1102 = vadd.f32 0.0, %v1101
      %1103 = vmatmul.bf16.gmra.mxu0 %v1040
      %v1104 = vpop.f32.mrf.mxu0
      %v1105 = vadd.f32 0.0, %v1104
      %v1106 = vpop.f32.mrf.mxu0
      %v1107 = vadd.f32 0.0, %v1106
      %1108 = vmatmul.bf16.gmra.mxu0 %v1043
      %v1109 = vpop.f32.mrf.mxu0
      %v1110 = vadd.f32 0.0, %v1109
      %v1111 = vpop.f32.mrf.mxu0
      %v1112 = vadd.f32 0.0, %v1111
      %1113 = vmatmul.bf16.gmra.mxu0 %v1046
      %v1114 = vpop.f32.mrf.mxu0
      %v1115 = vadd.f32 0.0, %v1114
      %v1116 = vpop.f32.mrf.mxu0
      %v1117 = vadd.f32 0.0, %v1116
      %1118 = vmatmul.bf16.gmra.mxu0 %v1049
      %v1119 = vpop.f32.mrf.mxu0
      %v1120 = vadd.f32 0.0, %v1119
      %v1121 = vpop.f32.mrf.mxu0
      %v1122 = vadd.f32 0.0, %v1121
      %1123 = vmatmul.bf16.gmra.mxu0 %v1052
      %v1124 = vpop.f32.mrf.mxu0
      %v1125 = vadd.f32 0.0, %v1124
      %v1126 = vpop.f32.mrf.mxu0
      %v1127 = vadd.f32 0.0, %v1126
      %1128 = vmatmul.bf16.gmra.mxu0 %v1055
      %v1129 = vpop.f32.mrf.mxu0
      %v1130 = vadd.f32 0.0, %v1129
      %v1131 = vpop.f32.mrf.mxu0
      %v1132 = vadd.f32 0.0, %v1131
      %1133 = vmatmul.bf16.gmra.mxu0 %v1058
      %v1134 = vpop.f32.mrf.mxu0
      %v1135 = vadd.f32 0.0, %v1134
      %v1136 = vpop.f32.mrf.mxu0
      %v1137 = vadd.f32 0.0, %v1136
      %1138 = vmatmul.bf16.gmra.mxu0 %v1061
      %v1139 = vpop.f32.mrf.mxu0
      %v1140 = vadd.f32 0.0, %v1139
      %v1141 = vpop.f32.mrf.mxu0
      %v1142 = vadd.f32 0.0, %v1141
      %1143 = vmatmul.bf16.gmra.mxu0 %v1064
      %v1144 = vpop.f32.mrf.mxu0
      %v1145 = vadd.f32 0.0, %v1144
      %v1146 = vpop.f32.mrf.mxu0
      %v1147 = vadd.f32 0.0, %v1146
      %1148 = vmatmul.bf16.gmra.mxu0 %v1067
      %v1149 = vpop.f32.mrf.mxu0
      %v1150 = vadd.f32 0.0, %v1149
      %v1151 = vpop.f32.mrf.mxu0
      %v1152 = vadd.f32 0.0, %v1151
      %1153 = vmatmul.bf16.gmra.mxu0 %v1070
      %v1154 = vpop.f32.mrf.mxu0
      %v1155 = vadd.f32 0.0, %v1154
      %v1156 = vpop.f32.mrf.mxu0
      %v1157 = vadd.f32 0.0, %v1156
      %1158 = vmatmul.bf16.gmra.mxu0 %v1073
      %v1159 = vpop.f32.mrf.mxu0
      %v1160 = vadd.f32 0.0, %v1159
      %v1161 = vpop.f32.mrf.mxu0
      %v1162 = vadd.f32 0.0, %v1161
      %1163 = vdwg.mxu0
      %1164 = vmatpush.bf16.msra.mxu0 0
      %1165 = vmatpush.bf16.msra.mxu0 0
      %1166 = vmatpush.bf16.msra.mxu0 0
      %1167 = vmatpush.bf16.msra.mxu0 0
      %1168 = vmatpush.bf16.msra.mxu0 0
      %1169 = vmatpush.bf16.msra.mxu0 0
      %1170 = vmatpush.bf16.msra.mxu0 %v1018
      %1171 = vmatpush.bf16.msra.mxu0 %v1015
      %1172 = vmatmul.bf16.gmra.mxu0 %v1028
      %v1173 = vpop.f32.mrf.mxu0
      %v1174 = vadd.f32 0.0, %v1173
      %v1175 = vpop.f32.mrf.mxu0
      %v1176 = vadd.f32 0.0, %v1175
      %1177 = vmatmul.bf16.gmra.mxu0 %v1031
      %v1178 = vpop.f32.mrf.mxu0
      %v1179 = vadd.f32 0.0, %v1178
      %v1180 = vpop.f32.mrf.mxu0
      %v1181 = vadd.f32 0.0, %v1180
      %1182 = vmatmul.bf16.gmra.mxu0 %v1034
      %v1183 = vpop.f32.mrf.mxu0
      %v1184 = vadd.f32 0.0, %v1183
      %v1185 = vpop.f32.mrf.mxu0
      %v1186 = vadd.f32 0.0, %v1185
      %1187 = vmatmul.bf16.gmra.mxu0 %v1037
      %v1188 = vpop.f32.mrf.mxu0
      %v1189 = vadd.f32 0.0, %v1188
      %v1190 = vpop.f32.mrf.mxu0
      %v1191 = vadd.f32 0.0, %v1190
      %1192 = vmatmul.bf16.gmra.mxu0 %v1040
      %v1193 = vpop.f32.mrf.mxu0
      %v1194 = vadd.f32 0.0, %v1193
      %v1195 = vpop.f32.mrf.mxu0
      %v1196 = vadd.f32 0.0, %v1195
      %1197 = vmatmul.bf16.gmra.mxu0 %v1043
      %v1198 = vpop.f32.mrf.mxu0
      %v1199 = vadd.f32 0.0, %v1198
      %v1200 = vpop.f32.mrf.mxu0
      %v1201 = vadd.f32 0.0, %v1200
      %1202 = vmatmul.bf16.gmra.mxu0 %v1046
      %v1203 = vpop.f32.mrf.mxu0
      %v1204 = vadd.f32 0.0, %v1203
      %v1205 = vpop.f32.mrf.mxu0
      %v1206 = vadd.f32 0.0, %v1205
      %1207 = vmatmul.bf16.gmra.mxu0 %v1049
      %v1208 = vpop.f32.mrf.mxu0
      %v1209 = vadd.f32 0.0, %v1208
      %v1210 = vpop.f32.mrf.mxu0
      %v1211 = vadd.f32 0.0, %v1210
      %1212 = vmatmul.bf16.gmra.mxu0 %v1052
      %v1213 = vpop.f32.mrf.mxu0
      %v1214 = vadd.f32 0.0, %v1213
      %v1215 = vpop.f32.mrf.mxu0
      %v1216 = vadd.f32 0.0, %v1215
      %1217 = vmatmul.bf16.gmra.mxu0 %v1055
      %v1218 = vpop.f32.mrf.mxu0
      %v1219 = vadd.f32 0.0, %v1218
      %v1220 = vpop.f32.mrf.mxu0
      %v1221 = vadd.f32 0.0, %v1220
      %1222 = vmatmul.bf16.gmra.mxu0 %v1058
      %v1223 = vpop.f32.mrf.mxu0
      %v1224 = vadd.f32 0.0, %v1223
      %v1225 = vpop.f32.mrf.mxu0
      %v1226 = vadd.f32 0.0, %v1225
      %1227 = vmatmul.bf16.gmra.mxu0 %v1061
      %v1228 = vpop.f32.mrf.mxu0
      %v1229 = vadd.f32 0.0, %v1228
      %v1230 = vpop.f32.mrf.mxu0
      %v1231 = vadd.f32 0.0, %v1230
      %1232 = vmatmul.bf16.gmra.mxu0 %v1064
      %v1233 = vpop.f32.mrf.mxu0
      %v1234 = vadd.f32 0.0, %v1233
      %v1235 = vpop.f32.mrf.mxu0
      %v1236 = vadd.f32 0.0, %v1235
      %1237 = vmatmul.bf16.gmra.mxu0 %v1067
      %v1238 = vpop.f32.mrf.mxu0
      %v1239 = vadd.f32 0.0, %v1238
      %v1240 = vpop.f32.mrf.mxu0
      %v1241 = vadd.f32 0.0, %v1240
      %1242 = vmatmul.bf16.gmra.mxu0 %v1070
      %v1243 = vpop.f32.mrf.mxu0
      %v1244 = vadd.f32 0.0, %v1243
      %v1245 = vpop.f32.mrf.mxu0
      %v1246 = vadd.f32 0.0, %v1245
      %1247 = vmatmul.bf16.gmra.mxu0 %v1073
      %v1248 = vpop.f32.mrf.mxu0
      %v1249 = vadd.f32 0.0, %v1248
      %v1250 = vpop.f32.mrf.mxu0
      %v1251 = vadd.f32 0.0, %v1250
      %1252 = vdwg.mxu0
      %1253 = vmatpush.bf16.msra.mxu0 0
      %1254 = vmatpush.bf16.msra.mxu0 0
      %1255 = vmatpush.bf16.msra.mxu0 0
      %1256 = vmatpush.bf16.msra.mxu0 0
      %1257 = vmatpush.bf16.msra.mxu0 0
      %1258 = vmatpush.bf16.msra.mxu0 0
      %1259 = vmatpush.bf16.msra.mxu0 %v1019
      %1260 = vmatpush.bf16.msra.mxu0 %v1016
      %1261 = vmatmul.bf16.gmra.mxu0 %v1028
      %v1262 = vpop.f32.mrf.mxu0
      %v1263 = vadd.f32 0.0, %v1262
      %v1264 = vpop.f32.mrf.mxu0
      %v1265 = vadd.f32 0.0, %v1264
      %1266 = vmatmul.bf16.gmra.mxu0 %v1031
      %v1267 = vpop.f32.mrf.mxu0
      %v1268 = vadd.f32 0.0, %v1267
      %v1269 = vpop.f32.mrf.mxu0
      %v1270 = vadd.f32 0.0, %v1269
      %1271 = vmatmul.bf16.gmra.mxu0 %v1034
      %v1272 = vpop.f32.mrf.mxu0
      %v1273 = vadd.f32 0.0, %v1272
      %v1274 = vpop.f32.mrf.mxu0
      %v1275 = vadd.f32 0.0, %v1274
      %1276 = vmatmul.bf16.gmra.mxu0 %v1037
      %v1277 = vpop.f32.mrf.mxu0
      %v1278 = vadd.f32 0.0, %v1277
      %v1279 = vpop.f32.mrf.mxu0
      %v1280 = vadd.f32 0.0, %v1279
      %1281 = vmatmul.bf16.gmra.mxu0 %v1040
      %v1282 = vpop.f32.mrf.mxu0
      %v1283 = vadd.f32 0.0, %v1282
      %v1284 = vpop.f32.mrf.mxu0
      %v1285 = vadd.f32 0.0, %v1284
      %1286 = vmatmul.bf16.gmra.mxu0 %v1043
      %v1287 = vpop.f32.mrf.mxu0
      %v1288 = vadd.f32 0.0, %v1287
      %v1289 = vpop.f32.mrf.mxu0
      %v1290 = vadd.f32 0.0, %v1289
      %1291 = vmatmul.bf16.gmra.mxu0 %v1046
      %v1292 = vpop.f32.mrf.mxu0
      %v1293 = vadd.f32 0.0, %v1292
      %v1294 = vpop.f32.mrf.mxu0
      %v1295 = vadd.f32 0.0, %v1294
      %1296 = vmatmul.bf16.gmra.mxu0 %v1049
      %v1297 = vpop.f32.mrf.mxu0
      %v1298 = vadd.f32 0.0, %v1297
      %v1299 = vpop.f32.mrf.mxu0
      %v1300 = vadd.f32 0.0, %v1299
      %1301 = vmatmul.bf16.gmra.mxu0 %v1052
      %v1302 = vpop.f32.mrf.mxu0
      %v1303 = vadd.f32 0.0, %v1302
      %v1304 = vpop.f32.mrf.mxu0
      %v1305 = vadd.f32 0.0, %v1304
      %1306 = vmatmul.bf16.gmra.mxu0 %v1055
      %v1307 = vpop.f32.mrf.mxu0
      %v1308 = vadd.f32 0.0, %v1307
      %v1309 = vpop.f32.mrf.mxu0
      %v1310 = vadd.f32 0.0, %v1309
      %1311 = vmatmul.bf16.gmra.mxu0 %v1058
      %v1312 = vpop.f32.mrf.mxu0
      %v1313 = vadd.f32 0.0, %v1312
      %v1314 = vpop.f32.mrf.mxu0
      %v1315 = vadd.f32 0.0, %v1314
      %1316 = vmatmul.bf16.gmra.mxu0 %v1061
      %v1317 = vpop.f32.mrf.mxu0
      %v1318 = vadd.f32 0.0, %v1317
      %v1319 = vpop.f32.mrf.mxu0
      %v1320 = vadd.f32 0.0, %v1319
      %1321 = vmatmul.bf16.gmra.mxu0 %v1064
      %v1322 = vpop.f32.mrf.mxu0
      %v1323 = vadd.f32 0.0, %v1322
      %v1324 = vpop.f32.mrf.mxu0
      %v1325 = vadd.f32 0.0, %v1324
      %1326 = vmatmul.bf16.gmra.mxu0 %v1067
      %v1327 = vpop.f32.mrf.mxu0
      %v1328 = vadd.f32 0.0, %v1327
      %v1329 = vpop.f32.mrf.mxu0
      %v1330 = vadd.f32 0.0, %v1329
      %1331 = vmatmul.bf16.gmra.mxu0 %v1070
      %v1332 = vpop.f32.mrf.mxu0
      %v1333 = vadd.f32 0.0, %v1332
      %v1334 = vpop.f32.mrf.mxu0
      %v1335 = vadd.f32 0.0, %v1334
      %1336 = vmatmul.bf16.gmra.mxu0 %v1073
      %v1337 = vpop.f32.mrf.mxu0
      %v1338 = vadd.f32 0.0, %v1337
      %v1339 = vpop.f32.mrf.mxu0
      %v1340 = vadd.f32 0.0, %v1339
      %1341 = vdwg.mxu0
      %v1342 = vmul.f32 %v1085, %v1174
      %v1343 = vmul.f32 %v1087, %v1176
      %v1344 = vmul.f32 %v1090, %v1179
      %v1345 = vmul.f32 %v1092, %v1181
      %v1346 = vmul.f32 %v1095, %v1184
      %v1347 = vmul.f32 %v1097, %v1186
      %v1348 = vmul.f32 %v1100, %v1189
      %v1349 = vmul.f32 %v1102, %v1191
      %v1350 = vmul.f32 %v1105, %v1194
      %v1351 = vmul.f32 %v1107, %v1196
      %v1352 = vmul.f32 %v1110, %v1199
      %v1353 = vmul.f32 %v1112, %v1201
      %v1354 = vmul.f32 %v1115, %v1204
      %v1355 = vmul.f32 %v1117, %v1206
      %v1356 = vmul.f32 %v1120, %v1209
      %v1357 = vmul.f32 %v1122, %v1211
      %v1358 = vmul.f32 %v1125, %v1214
      %v1359 = vmul.f32 %v1127, %v1216
      %v1360 = vmul.f32 %v1130, %v1219
      %v1361 = vmul.f32 %v1132, %v1221
      %v1362 = vmul.f32 %v1135, %v1224
      %v1363 = vmul.f32 %v1137, %v1226
      %v1364 = vmul.f32 %v1140, %v1229
      %v1365 = vmul.f32 %v1142, %v1231
      %v1366 = vmul.f32 %v1145, %v1234
      %v1367 = vmul.f32 %v1147, %v1236
      %v1368 = vmul.f32 %v1150, %v1239
      %v1369 = vmul.f32 %v1152, %v1241
      %v1370 = vmul.f32 %v1155, %v1244
      %v1371 = vmul.f32 %v1157, %v1246
      %v1372 = vmul.f32 %v1160, %v1249
      %v1373 = vmul.f32 %v1162, %v1251
      %v1374 = vld [vmem:[%s9] sm:$0xff]
      %v1375 = vld [vmem:[%s9 + $0x8] sm:$0xff]
      %v1376 = vld [vmem:[%s9 + $0x10] sm:$0xff]
      %v1377 = vld [vmem:[%s9 + $0x18] sm:$0xff]
      %v1378 = vld [vmem:[%s9 + $0x20] sm:$0xff]
      %v1379 = vld [vmem:[%s9 + $0x28] sm:$0xff]
      %v1380 = vld [vmem:[%s9 + $0x30] sm:$0xff]
      %v1381 = vld [vmem:[%s9 + $0x38] sm:$0xff]
      %v1382 = vld [vmem:[%s9 + $0x40] sm:$0xff]
      %v1383 = vld [vmem:[%s9 + $0x48] sm:$0xff]
      %v1384 = vld [vmem:[%s9 + $0x50] sm:$0xff]
      %v1385 = vld [vmem:[%s9 + $0x58] sm:$0xff]
      %v1386 = vld [vmem:[%s9 + $0x60] sm:$0xff]
      %v1387 = vld [vmem:[%s9 + $0x68] sm:$0xff]
      %v1388 = vld [vmem:[%s9 + $0x70] sm:$0xff]
      %v1389 = vld [vmem:[%s9 + $0x78] sm:$0xff]
      %1390 = vmatpush.msra.mxu0 %v1389
      %1391 = vmatpush.msra.mxu0 %v1388
      %1392 = vmatpush.msra.mxu0 %v1387
      %1393 = vmatpush.msra.mxu0 %v1386
      %1394 = vmatpush.msra.mxu0 %v1385
      %1395 = vmatpush.msra.mxu0 %v1384
      %1396 = vmatpush.msra.mxu0 %v1383
      %1397 = vmatpush.msra.mxu0 %v1382
      %1398 = vmatpush.msra.mxu0 %v1381
      %1399 = vmatpush.msra.mxu0 %v1380
      %1400 = vmatpush.msra.mxu0 %v1379
      %1401 = vmatpush.msra.mxu0 %v1378
      %1402 = vmatpush.msra.mxu0 %v1377
      %1403 = vmatpush.msra.mxu0 %v1376
      %1404 = vmatpush.msra.mxu0 %v1375
      %1405 = vmatpush.msra.mxu0 %v1374
      %1406 = vmatmul.f32.gmra.mxu0 %v1342
      %v1407 = vpop.f32.mrf.mxu0
      %v1408 = vadd.f32 0.0, %v1407
      %1409 = vmatmul.f32.gmra.mxu0 %v1343
      %v1410 = vpop.f32.mrf.mxu0
      %v1411 = vadd.f32 0.0, %v1410
      %1412 = vmatmul.f32.gmra.mxu0 %v1344
      %v1413 = vpop.f32.mrf.mxu0
      %v1414 = vadd.f32 0.0, %v1413
      %1415 = vmatmul.f32.gmra.mxu0 %v1345
      %v1416 = vpop.f32.mrf.mxu0
      %v1417 = vadd.f32 0.0, %v1416
      %1418 = vmatmul.f32.gmra.mxu0 %v1346
      %v1419 = vpop.f32.mrf.mxu0
      %v1420 = vadd.f32 0.0, %v1419
      %1421 = vmatmul.f32.gmra.mxu0 %v1347
      %v1422 = vpop.f32.mrf.mxu0
      %v1423 = vadd.f32 0.0, %v1422
      %1424 = vmatmul.f32.gmra.mxu0 %v1348
      %v1425 = vpop.f32.mrf.mxu0
      %v1426 = vadd.f32 0.0, %v1425
      %1427 = vmatmul.f32.gmra.mxu0 %v1349
      %v1428 = vpop.f32.mrf.mxu0
      %v1429 = vadd.f32 0.0, %v1428
      %1430 = vmatmul.f32.gmra.mxu0 %v1350
      %v1431 = vpop.f32.mrf.mxu0
      %v1432 = vadd.f32 0.0, %v1431
      %1433 = vmatmul.f32.gmra.mxu0 %v1351
      %v1434 = vpop.f32.mrf.mxu0
      %v1435 = vadd.f32 0.0, %v1434
      %1436 = vmatmul.f32.gmra.mxu0 %v1352
      %v1437 = vpop.f32.mrf.mxu0
      %v1438 = vadd.f32 0.0, %v1437
      %1439 = vmatmul.f32.gmra.mxu0 %v1353
      %v1440 = vpop.f32.mrf.mxu0
      %v1441 = vadd.f32 0.0, %v1440
      %1442 = vmatmul.f32.gmra.mxu0 %v1354
      %v1443 = vpop.f32.mrf.mxu0
      %v1444 = vadd.f32 0.0, %v1443
      %1445 = vmatmul.f32.gmra.mxu0 %v1355
      %v1446 = vpop.f32.mrf.mxu0
      %v1447 = vadd.f32 0.0, %v1446
      %1448 = vmatmul.f32.gmra.mxu0 %v1356
      %v1449 = vpop.f32.mrf.mxu0
      %v1450 = vadd.f32 0.0, %v1449
      %1451 = vmatmul.f32.gmra.mxu0 %v1357
      %v1452 = vpop.f32.mrf.mxu0
      %v1453 = vadd.f32 0.0, %v1452
      %1454 = vmatmul.f32.gmra.mxu0 %v1358
      %v1455 = vpop.f32.mrf.mxu0
      %v1456 = vadd.f32 0.0, %v1455
      %1457 = vmatmul.f32.gmra.mxu0 %v1359
      %v1458 = vpop.f32.mrf.mxu0
      %v1459 = vadd.f32 0.0, %v1458
      %1460 = vmatmul.f32.gmra.mxu0 %v1360
      %v1461 = vpop.f32.mrf.mxu0
      %v1462 = vadd.f32 0.0, %v1461
      %1463 = vmatmul.f32.gmra.mxu0 %v1361
      %v1464 = vpop.f32.mrf.mxu0
      %v1465 = vadd.f32 0.0, %v1464
      %1466 = vmatmul.f32.gmra.mxu0 %v1362
      %v1467 = vpop.f32.mrf.mxu0
      %v1468 = vadd.f32 0.0, %v1467
      %1469 = vmatmul.f32.gmra.mxu0 %v1363
      %v1470 = vpop.f32.mrf.mxu0
      %v1471 = vadd.f32 0.0, %v1470
      %1472 = vmatmul.f32.gmra.mxu0 %v1364
      %v1473 = vpop.f32.mrf.mxu0
      %v1474 = vadd.f32 0.0, %v1473
      %1475 = vmatmul.f32.gmra.mxu0 %v1365
      %v1476 = vpop.f32.mrf.mxu0
      %v1477 = vadd.f32 0.0, %v1476
      %1478 = vmatmul.f32.gmra.mxu0 %v1366
      %v1479 = vpop.f32.mrf.mxu0
      %v1480 = vadd.f32 0.0, %v1479
      %1481 = vmatmul.f32.gmra.mxu0 %v1367
      %v1482 = vpop.f32.mrf.mxu0
      %v1483 = vadd.f32 0.0, %v1482
      %1484 = vmatmul.f32.gmra.mxu0 %v1368
      %v1485 = vpop.f32.mrf.mxu0
      %v1486 = vadd.f32 0.0, %v1485
      %1487 = vmatmul.f32.gmra.mxu0 %v1369
      %v1488 = vpop.f32.mrf.mxu0
      %v1489 = vadd.f32 0.0, %v1488
      %1490 = vmatmul.f32.gmra.mxu0 %v1370
      %v1491 = vpop.f32.mrf.mxu0
      %v1492 = vadd.f32 0.0, %v1491
      %1493 = vmatmul.f32.gmra.mxu0 %v1371
      %v1494 = vpop.f32.mrf.mxu0
      %v1495 = vadd.f32 0.0, %v1494
      %1496 = vmatmul.f32.gmra.mxu0 %v1372
      %v1497 = vpop.f32.mrf.mxu0
      %v1498 = vadd.f32 0.0, %v1497
      %1499 = vmatmul.f32.gmra.mxu0 %v1373
      %v1500 = vpop.f32.mrf.mxu0
      %v1501 = vadd.f32 0.0, %v1500
      %1502 = vdwg.mxu0
      %v1503 = vsel %vm640, %v1408, -inf
      %1504 = vmax.xlane.f32.xlu0 %v1503
      %v1505 = vpop.xlane.xlu0 %1504
      %v1506 = vsel %vm640, %v1411, -inf
      %1507 = vmax.xlane.f32.xlu0 %v1506
      %v1508 = vpop.xlane.xlu0 %1507
      %v1509 = vsel %vm640, %v1414, -inf
      %1510 = vmax.xlane.f32.xlu0 %v1509
      %v1511 = vpop.xlane.xlu0 %1510
      %v1512 = vsel %vm640, %v1417, -inf
      %1513 = vmax.xlane.f32.xlu0 %v1512
      %v1514 = vpop.xlane.xlu0 %1513
      %v1515 = vsel %vm640, %v1420, -inf
      %1516 = vmax.xlane.f32.xlu0 %v1515
      %v1517 = vpop.xlane.xlu0 %1516
      %v1518 = vsel %vm640, %v1423, -inf
      %1519 = vmax.xlane.f32.xlu0 %v1518
      %v1520 = vpop.xlane.xlu0 %1519
      %v1521 = vsel %vm640, %v1426, -inf
      %1522 = vmax.xlane.f32.xlu0 %v1521
      %v1523 = vpop.xlane.xlu0 %1522
      %v1524 = vsel %vm640, %v1429, -inf
      %1525 = vmax.xlane.f32.xlu0 %v1524
      %v1526 = vpop.xlane.xlu0 %1525
      %v1527 = vsel %vm640, %v1432, -inf
      %1528 = vmax.xlane.f32.xlu0 %v1527
      %v1529 = vpop.xlane.xlu0 %1528
      %v1530 = vsel %vm640, %v1435, -inf
      %1531 = vmax.xlane.f32.xlu0 %v1530
      %v1532 = vpop.xlane.xlu0 %1531
      %v1533 = vsel %vm640, %v1438, -inf
      %1534 = vmax.xlane.f32.xlu0 %v1533
      %v1535 = vpop.xlane.xlu0 %1534
      %v1536 = vsel %vm640, %v1441, -inf
      %1537 = vmax.xlane.f32.xlu0 %v1536
      %v1538 = vpop.xlane.xlu0 %1537
      %v1539 = vsel %vm640, %v1444, -inf
      %1540 = vmax.xlane.f32.xlu0 %v1539
      %v1541 = vpop.xlane.xlu0 %1540
      %v1542 = vsel %vm640, %v1447, -inf
      %1543 = vmax.xlane.f32.xlu0 %v1542
      %v1544 = vpop.xlane.xlu0 %1543
      %v1545 = vsel %vm640, %v1450, -inf
      %1546 = vmax.xlane.f32.xlu0 %v1545
      %v1547 = vpop.xlane.xlu0 %1546
      %v1548 = vsel %vm640, %v1453, -inf
      %1549 = vmax.xlane.f32.xlu0 %v1548
      %v1550 = vpop.xlane.xlu0 %1549
      %v1551 = vsel %vm640, %v1456, -inf
      %1552 = vmax.xlane.f32.xlu0 %v1551
      %v1553 = vpop.xlane.xlu0 %1552
      %v1554 = vsel %vm640, %v1459, -inf
      %1555 = vmax.xlane.f32.xlu0 %v1554
      %v1556 = vpop.xlane.xlu0 %1555
      %v1557 = vsel %vm640, %v1462, -inf
      %1558 = vmax.xlane.f32.xlu0 %v1557
      %v1559 = vpop.xlane.xlu0 %1558
      %v1560 = vsel %vm640, %v1465, -inf
      %1561 = vmax.xlane.f32.xlu0 %v1560
      %v1562 = vpop.xlane.xlu0 %1561
      %v1563 = vsel %vm640, %v1468, -inf
      %1564 = vmax.xlane.f32.xlu0 %v1563
      %v1565 = vpop.xlane.xlu0 %1564
      %v1566 = vsel %vm640, %v1471, -inf
      %1567 = vmax.xlane.f32.xlu0 %v1566
      %v1568 = vpop.xlane.xlu0 %1567
      %v1569 = vsel %vm640, %v1474, -inf
      %1570 = vmax.xlane.f32.xlu0 %v1569
      %v1571 = vpop.xlane.xlu0 %1570
      %v1572 = vsel %vm640, %v1477, -inf
      %1573 = vmax.xlane.f32.xlu0 %v1572
      %v1574 = vpop.xlane.xlu0 %1573
      %v1575 = vsel %vm640, %v1480, -inf
      %1576 = vmax.xlane.f32.xlu0 %v1575
      %v1577 = vpop.xlane.xlu0 %1576
      %v1578 = vsel %vm640, %v1483, -inf
      %1579 = vmax.xlane.f32.xlu0 %v1578
      %v1580 = vpop.xlane.xlu0 %1579
      %v1581 = vsel %vm640, %v1486, -inf
      %1582 = vmax.xlane.f32.xlu0 %v1581
      %v1583 = vpop.xlane.xlu0 %1582
      %v1584 = vsel %vm640, %v1489, -inf
      %1585 = vmax.xlane.f32.xlu0 %v1584
      %v1586 = vpop.xlane.xlu0 %1585
      %v1587 = vsel %vm640, %v1492, -inf
      %1588 = vmax.xlane.f32.xlu0 %v1587
      %v1589 = vpop.xlane.xlu0 %1588
      %v1590 = vsel %vm640, %v1495, -inf
      %1591 = vmax.xlane.f32.xlu0 %v1590
      %v1592 = vpop.xlane.xlu0 %1591
      %v1593 = vsel %vm640, %v1498, -inf
      %1594 = vmax.xlane.f32.xlu0 %v1593
      %v1595 = vpop.xlane.xlu0 %1594
      %v1596 = vsel %vm640, %v1501, -inf
      %1597 = vmax.xlane.f32.xlu0 %v1596
      %v1598 = vpop.xlane.xlu0 %1597
      %v1599 = vsub.f32 %v1408, %v1505
      %v1600 = vsub.f32 %v1411, %v1508
      %v1601 = vsub.f32 %v1414, %v1511
      %v1602 = vsub.f32 %v1417, %v1514
      %v1603 = vsub.f32 %v1420, %v1517
      %v1604 = vsub.f32 %v1423, %v1520
      %v1605 = vsub.f32 %v1426, %v1523
      %v1606 = vsub.f32 %v1429, %v1526
      %v1607 = vsub.f32 %v1432, %v1529
      %v1608 = vsub.f32 %v1435, %v1532
      %v1609 = vsub.f32 %v1438, %v1535
      %v1610 = vsub.f32 %v1441, %v1538
      %v1611 = vsub.f32 %v1444, %v1541
      %v1612 = vsub.f32 %v1447, %v1544
      %v1613 = vsub.f32 %v1450, %v1547
      %v1614 = vsub.f32 %v1453, %v1550
      %v1615 = vsub.f32 %v1456, %v1553
      %v1616 = vsub.f32 %v1459, %v1556
      %v1617 = vsub.f32 %v1462, %v1559
      %v1618 = vsub.f32 %v1465, %v1562
      %v1619 = vsub.f32 %v1468, %v1565
      %v1620 = vsub.f32 %v1471, %v1568
      %v1621 = vsub.f32 %v1474, %v1571
      %v1622 = vsub.f32 %v1477, %v1574
      %v1623 = vsub.f32 %v1480, %v1577
      %v1624 = vsub.f32 %v1483, %v1580
      %v1625 = vsub.f32 %v1486, %v1583
      %v1626 = vsub.f32 %v1489, %v1586
      %v1627 = vsub.f32 %v1492, %v1589
      %v1628 = vsub.f32 %v1495, %v1592
      %v1629 = vsub.f32 %v1498, %v1595
      %v1630 = vsub.f32 %v1501, %v1598
      %v1631 = vmul.f32 %v1599, 1.442695
      %v1632 = vpow.pop %v1631
      %v1633 = vmul.f32 %v1600, 1.442695
      %v1634 = vpow.pop %v1633
      %v1635 = vmul.f32 %v1601, 1.442695
      %v1636 = vpow.pop %v1635
      %v1637 = vmul.f32 %v1602, 1.442695
      %v1638 = vpow.pop %v1637
      %v1639 = vmul.f32 %v1603, 1.442695
      %v1640 = vpow.pop %v1639
      %v1641 = vmul.f32 %v1604, 1.442695
      %v1642 = vpow.pop %v1641
      %v1643 = vmul.f32 %v1605, 1.442695
      %v1644 = vpow.pop %v1643
      %v1645 = vmul.f32 %v1606, 1.442695
      %v1646 = vpow.pop %v1645
      %v1647 = vmul.f32 %v1607, 1.442695
      %v1648 = vpow.pop %v1647
      %v1649 = vmul.f32 %v1608, 1.442695
      %v1650 = vpow.pop %v1649
      %v1651 = vmul.f32 %v1609, 1.442695
      %v1652 = vpow.pop %v1651
      %v1653 = vmul.f32 %v1610, 1.442695
      %v1654 = vpow.pop %v1653
      %v1655 = vmul.f32 %v1611, 1.442695
      %v1656 = vpow.pop %v1655
      %v1657 = vmul.f32 %v1612, 1.442695
      %v1658 = vpow.pop %v1657
      %v1659 = vmul.f32 %v1613, 1.442695
      %v1660 = vpow.pop %v1659
      %v1661 = vmul.f32 %v1614, 1.442695
      %v1662 = vpow.pop %v1661
      %v1663 = vmul.f32 %v1615, 1.442695
      %v1664 = vpow.pop %v1663
      %v1665 = vmul.f32 %v1616, 1.442695
      %v1666 = vpow.pop %v1665
      %v1667 = vmul.f32 %v1617, 1.442695
      %v1668 = vpow.pop %v1667
      %v1669 = vmul.f32 %v1618, 1.442695
      %v1670 = vpow.pop %v1669
      %v1671 = vmul.f32 %v1619, 1.442695
      %v1672 = vpow.pop %v1671
      %v1673 = vmul.f32 %v1620, 1.442695
      %v1674 = vpow.pop %v1673
      %v1675 = vmul.f32 %v1621, 1.442695
      %v1676 = vpow.pop %v1675
      %v1677 = vmul.f32 %v1622, 1.442695
      %v1678 = vpow.pop %v1677
      %v1679 = vmul.f32 %v1623, 1.442695
      %v1680 = vpow.pop %v1679
      %v1681 = vmul.f32 %v1624, 1.442695
      %v1682 = vpow.pop %v1681
      %v1683 = vmul.f32 %v1625, 1.442695
      %v1684 = vpow.pop %v1683
      %v1685 = vmul.f32 %v1626, 1.442695
      %v1686 = vpow.pop %v1685
      %v1687 = vmul.f32 %v1627, 1.442695
      %v1688 = vpow.pop %v1687
      %v1689 = vmul.f32 %v1628, 1.442695
      %v1690 = vpow.pop %v1689
      %v1691 = vmul.f32 %v1629, 1.442695
      %v1692 = vpow.pop %v1691
      %v1693 = vmul.f32 %v1630, 1.442695
      %v1694 = vpow.pop %v1693
      %v1695 = vld [vmem:[%s12] sm:$0xff]
      %v1696 = vld [vmem:[%s12 + $0x8] sm:$0xff]
      %v1698 = vsel %vm640, %v1632, 0
      %v1701 = vsel %vm640, %v1634, 0
      %v1704 = vsel %vm640, %v1636, 0
      %v1707 = vsel %vm640, %v1638, 0
      %v1710 = vsel %vm640, %v1640, 0
      %v1713 = vsel %vm640, %v1642, 0
      %v1716 = vsel %vm640, %v1644, 0
      %v1719 = vsel %vm640, %v1646, 0
      %v1722 = vsel %vm640, %v1648, 0
      %v1725 = vsel %vm640, %v1650, 0
      %v1728 = vsel %vm640, %v1652, 0
      %v1731 = vsel %vm640, %v1654, 0
      %v1734 = vsel %vm640, %v1656, 0
      %v1737 = vsel %vm640, %v1658, 0
      %v1740 = vsel %vm640, %v1660, 0
      %v1743 = vsel %vm640, %v1662, 0
      %v1746 = vsel %vm640, %v1664, 0
      %v1749 = vsel %vm640, %v1666, 0
      %v1752 = vsel %vm640, %v1668, 0
      %v1755 = vsel %vm640, %v1670, 0
      %v1758 = vsel %vm640, %v1672, 0
      %v1761 = vsel %vm640, %v1674, 0
      %v1764 = vsel %vm640, %v1676, 0
      %v1767 = vsel %vm640, %v1678, 0
      %v1770 = vsel %vm640, %v1680, 0
      %v1773 = vsel %vm640, %v1682, 0
      %v1776 = vsel %vm640, %v1684, 0
      %v1779 = vsel %vm640, %v1686, 0
      %v1782 = vsel %vm640, %v1688, 0
      %v1785 = vsel %vm640, %v1690, 0
      %v1788 = vsel %vm640, %v1692, 0
      %v1791 = vsel %vm640, %v1694, 0
      %1793 = vmatpush.msra.mxu0 0.0
      %1794 = vmatpush.msra.mxu0 0.0
      %1795 = vmatpush.msra.mxu0 0.0
      %1796 = vmatpush.msra.mxu0 0.0
      %1797 = vmatpush.msra.mxu0 0.0
      %1798 = vmatpush.msra.mxu0 0.0
      %1799 = vmatpush.msra.mxu0 0.0
      %1800 = vmatpush.msra.mxu0 0.0
      %1801 = vmatpush.msra.mxu0 0.0
      %1802 = vmatpush.msra.mxu0 0.0
      %1803 = vmatpush.msra.mxu0 0.0
      %1804 = vmatpush.msra.mxu0 0.0
      %1805 = vmatpush.msra.mxu0 0.0
      %1806 = vmatpush.msra.mxu0 0.0
      %1807 = vmatpush.msra.mxu0 %v1696
      %1808 = vmatpush.msra.mxu0 %v1695
      %1809 = vmatmul.f32.gmra.mxu0 %v1698
      %v1810 = vpop.f32.mrf.mxu0
      %v1811 = vadd.f32 0.0, %v1810
      %1812 = vmatmul.f32.gmra.mxu0 %v1701
      %v1813 = vpop.f32.mrf.mxu0
      %v1814 = vadd.f32 0.0, %v1813
      %1815 = vmatmul.f32.gmra.mxu0 %v1704
      %v1816 = vpop.f32.mrf.mxu0
      %v1817 = vadd.f32 0.0, %v1816
      %1818 = vmatmul.f32.gmra.mxu0 %v1707
      %v1819 = vpop.f32.mrf.mxu0
      %v1820 = vadd.f32 0.0, %v1819
      %1821 = vmatmul.f32.gmra.mxu0 %v1710
      %v1822 = vpop.f32.mrf.mxu0
      %v1823 = vadd.f32 0.0, %v1822
      %1824 = vmatmul.f32.gmra.mxu0 %v1713
      %v1825 = vpop.f32.mrf.mxu0
      %v1826 = vadd.f32 0.0, %v1825
      %1827 = vmatmul.f32.gmra.mxu0 %v1716
      %v1828 = vpop.f32.mrf.mxu0
      %v1829 = vadd.f32 0.0, %v1828
      %1830 = vmatmul.f32.gmra.mxu0 %v1719
      %v1831 = vpop.f32.mrf.mxu0
      %v1832 = vadd.f32 0.0, %v1831
      %1833 = vmatmul.f32.gmra.mxu0 %v1722
      %v1834 = vpop.f32.mrf.mxu0
      %v1835 = vadd.f32 0.0, %v1834
      %1836 = vmatmul.f32.gmra.mxu0 %v1725
      %v1837 = vpop.f32.mrf.mxu0
      %v1838 = vadd.f32 0.0, %v1837
      %1839 = vmatmul.f32.gmra.mxu0 %v1728
      %v1840 = vpop.f32.mrf.mxu0
      %v1841 = vadd.f32 0.0, %v1840
      %1842 = vmatmul.f32.gmra.mxu0 %v1731
      %v1843 = vpop.f32.mrf.mxu0
      %v1844 = vadd.f32 0.0, %v1843
      %1845 = vmatmul.f32.gmra.mxu0 %v1734
      %v1846 = vpop.f32.mrf.mxu0
      %v1847 = vadd.f32 0.0, %v1846
      %1848 = vmatmul.f32.gmra.mxu0 %v1737
      %v1849 = vpop.f32.mrf.mxu0
      %v1850 = vadd.f32 0.0, %v1849
      %1851 = vmatmul.f32.gmra.mxu0 %v1740
      %v1852 = vpop.f32.mrf.mxu0
      %v1853 = vadd.f32 0.0, %v1852
      %1854 = vmatmul.f32.gmra.mxu0 %v1743
      %v1855 = vpop.f32.mrf.mxu0
      %v1856 = vadd.f32 0.0, %v1855
      %1857 = vmatmul.f32.gmra.mxu0 %v1746
      %v1858 = vpop.f32.mrf.mxu0
      %v1859 = vadd.f32 0.0, %v1858
      %1860 = vmatmul.f32.gmra.mxu0 %v1749
      %v1861 = vpop.f32.mrf.mxu0
      %v1862 = vadd.f32 0.0, %v1861
      %1863 = vmatmul.f32.gmra.mxu0 %v1752
      %v1864 = vpop.f32.mrf.mxu0
      %v1865 = vadd.f32 0.0, %v1864
      %1866 = vmatmul.f32.gmra.mxu0 %v1755
      %v1867 = vpop.f32.mrf.mxu0
      %v1868 = vadd.f32 0.0, %v1867
      %1869 = vmatmul.f32.gmra.mxu0 %v1758
      %v1870 = vpop.f32.mrf.mxu0
      %v1871 = vadd.f32 0.0, %v1870
      %1872 = vmatmul.f32.gmra.mxu0 %v1761
      %v1873 = vpop.f32.mrf.mxu0
      %v1874 = vadd.f32 0.0, %v1873
      %1875 = vmatmul.f32.gmra.mxu0 %v1764
      %v1876 = vpop.f32.mrf.mxu0
      %v1877 = vadd.f32 0.0, %v1876
      %1878 = vmatmul.f32.gmra.mxu0 %v1767
      %v1879 = vpop.f32.mrf.mxu0
      %v1880 = vadd.f32 0.0, %v1879
      %1881 = vmatmul.f32.gmra.mxu0 %v1770
      %v1882 = vpop.f32.mrf.mxu0
      %v1883 = vadd.f32 0.0, %v1882
      %1884 = vmatmul.f32.gmra.mxu0 %v1773
      %v1885 = vpop.f32.mrf.mxu0
      %v1886 = vadd.f32 0.0, %v1885
      %1887 = vmatmul.f32.gmra.mxu0 %v1776
      %v1888 = vpop.f32.mrf.mxu0
      %v1889 = vadd.f32 0.0, %v1888
      %1890 = vmatmul.f32.gmra.mxu0 %v1779
      %v1891 = vpop.f32.mrf.mxu0
      %v1892 = vadd.f32 0.0, %v1891
      %1893 = vmatmul.f32.gmra.mxu0 %v1782
      %v1894 = vpop.f32.mrf.mxu0
      %v1895 = vadd.f32 0.0, %v1894
      %1896 = vmatmul.f32.gmra.mxu0 %v1785
      %v1897 = vpop.f32.mrf.mxu0
      %v1898 = vadd.f32 0.0, %v1897
      %1899 = vmatmul.f32.gmra.mxu0 %v1788
      %v1900 = vpop.f32.mrf.mxu0
      %v1901 = vadd.f32 0.0, %v1900
      %1902 = vmatmul.f32.gmra.mxu0 %v1791
      %v1903 = vpop.f32.mrf.mxu0
      %v1904 = vadd.f32 0.0, %v1903
      %1905 = vdwg.mxu0
      %v1906 = vrcp.pop %v1811
      %v1907 = vrcp.pop %v1814
      %v1908 = vrcp.pop %v1817
      %v1909 = vrcp.pop %v1820
      %v1910 = vrcp.pop %v1823
      %v1911 = vrcp.pop %v1826
      %v1912 = vrcp.pop %v1829
      %v1913 = vrcp.pop %v1832
      %v1914 = vrcp.pop %v1835
      %v1915 = vrcp.pop %v1838
      %v1916 = vrcp.pop %v1841
      %v1917 = vrcp.pop %v1844
      %v1918 = vrcp.pop %v1847
      %v1919 = vrcp.pop %v1850
      %v1920 = vrcp.pop %v1853
      %v1921 = vrcp.pop %v1856
      %v1922 = vrcp.pop %v1859
      %v1923 = vrcp.pop %v1862
      %v1924 = vrcp.pop %v1865
      %v1925 = vrcp.pop %v1868
      %v1926 = vrcp.pop %v1871
      %v1927 = vrcp.pop %v1874
      %v1928 = vrcp.pop %v1877
      %v1929 = vrcp.pop %v1880
      %v1930 = vrcp.pop %v1883
      %v1931 = vrcp.pop %v1886
      %v1932 = vrcp.pop %v1889
      %v1933 = vrcp.pop %v1892
      %v1934 = vrcp.pop %v1895
      %v1935 = vrcp.pop %v1898
      %v1936 = vrcp.pop %v1901
      %v1937 = vrcp.pop %v1904
      %v1938 = vld [vmem:[%s10] sm:$0xff]
      %v1939 = vld [vmem:[%s10 + $0x8] sm:$0xff]
      %1940 = vmatpush.msra.mxu0 0.0
      %1941 = vmatpush.msra.mxu0 0.0
      %1942 = vmatpush.msra.mxu0 0.0
      %1943 = vmatpush.msra.mxu0 0.0
      %1944 = vmatpush.msra.mxu0 0.0
      %1945 = vmatpush.msra.mxu0 0.0
      %1946 = vmatpush.msra.mxu0 0.0
      %1947 = vmatpush.msra.mxu0 0.0
      %1948 = vmatpush.msra.mxu0 0.0
      %1949 = vmatpush.msra.mxu0 0.0
      %1950 = vmatpush.msra.mxu0 0.0
      %1951 = vmatpush.msra.mxu0 0.0
      %1952 = vmatpush.msra.mxu0 0.0
      %1953 = vmatpush.msra.mxu0 0.0
      %1954 = vmatpush.msra.mxu0 %v1939
      %1955 = vmatpush.msra.mxu0 %v1938
      %1956 = vmatmul.f32.gmra.mxu0 %v1698
      %v1957 = vpop.f32.mrf.mxu0
      %v1958 = vadd.f32 0.0, %v1957
      %1959 = vmatmul.f32.gmra.mxu0 %v1701
      %v1960 = vpop.f32.mrf.mxu0
      %v1961 = vadd.f32 0.0, %v1960
      %1962 = vmatmul.f32.gmra.mxu0 %v1704
      %v1963 = vpop.f32.mrf.mxu0
      %v1964 = vadd.f32 0.0, %v1963
      %1965 = vmatmul.f32.gmra.mxu0 %v1707
      %v1966 = vpop.f32.mrf.mxu0
      %v1967 = vadd.f32 0.0, %v1966
      %1968 = vmatmul.f32.gmra.mxu0 %v1710
      %v1969 = vpop.f32.mrf.mxu0
      %v1970 = vadd.f32 0.0, %v1969
      %1971 = vmatmul.f32.gmra.mxu0 %v1713
      %v1972 = vpop.f32.mrf.mxu0
      %v1973 = vadd.f32 0.0, %v1972
      %1974 = vmatmul.f32.gmra.mxu0 %v1716
      %v1975 = vpop.f32.mrf.mxu0
      %v1976 = vadd.f32 0.0, %v1975
      %1977 = vmatmul.f32.gmra.mxu0 %v1719
      %v1978 = vpop.f32.mrf.mxu0
      %v1979 = vadd.f32 0.0, %v1978
      %1980 = vmatmul.f32.gmra.mxu0 %v1722
      %v1981 = vpop.f32.mrf.mxu0
      %v1982 = vadd.f32 0.0, %v1981
      %1983 = vmatmul.f32.gmra.mxu0 %v1725
      %v1984 = vpop.f32.mrf.mxu0
      %v1985 = vadd.f32 0.0, %v1984
      %1986 = vmatmul.f32.gmra.mxu0 %v1728
      %v1987 = vpop.f32.mrf.mxu0
      %v1988 = vadd.f32 0.0, %v1987
      %1989 = vmatmul.f32.gmra.mxu0 %v1731
      %v1990 = vpop.f32.mrf.mxu0
      %v1991 = vadd.f32 0.0, %v1990
      %1992 = vmatmul.f32.gmra.mxu0 %v1734
      %v1993 = vpop.f32.mrf.mxu0
      %v1994 = vadd.f32 0.0, %v1993
      %1995 = vmatmul.f32.gmra.mxu0 %v1737
      %v1996 = vpop.f32.mrf.mxu0
      %v1997 = vadd.f32 0.0, %v1996
      %1998 = vmatmul.f32.gmra.mxu0 %v1740
      %v1999 = vpop.f32.mrf.mxu0
      %v2000 = vadd.f32 0.0, %v1999
      %2001 = vmatmul.f32.gmra.mxu0 %v1743
      %v2002 = vpop.f32.mrf.mxu0
      %v2003 = vadd.f32 0.0, %v2002
      %2004 = vmatmul.f32.gmra.mxu0 %v1746
      %v2005 = vpop.f32.mrf.mxu0
      %v2006 = vadd.f32 0.0, %v2005
      %2007 = vmatmul.f32.gmra.mxu0 %v1749
      %v2008 = vpop.f32.mrf.mxu0
      %v2009 = vadd.f32 0.0, %v2008
      %2010 = vmatmul.f32.gmra.mxu0 %v1752
      %v2011 = vpop.f32.mrf.mxu0
      %v2012 = vadd.f32 0.0, %v2011
      %2013 = vmatmul.f32.gmra.mxu0 %v1755
      %v2014 = vpop.f32.mrf.mxu0
      %v2015 = vadd.f32 0.0, %v2014
      %2016 = vmatmul.f32.gmra.mxu0 %v1758
      %v2017 = vpop.f32.mrf.mxu0
      %v2018 = vadd.f32 0.0, %v2017
      %2019 = vmatmul.f32.gmra.mxu0 %v1761
      %v2020 = vpop.f32.mrf.mxu0
      %v2021 = vadd.f32 0.0, %v2020
      %2022 = vmatmul.f32.gmra.mxu0 %v1764
      %v2023 = vpop.f32.mrf.mxu0
      %v2024 = vadd.f32 0.0, %v2023
      %2025 = vmatmul.f32.gmra.mxu0 %v1767
      %v2026 = vpop.f32.mrf.mxu0
      %v2027 = vadd.f32 0.0, %v2026
      %2028 = vmatmul.f32.gmra.mxu0 %v1770
      %v2029 = vpop.f32.mrf.mxu0
      %v2030 = vadd.f32 0.0, %v2029
      %2031 = vmatmul.f32.gmra.mxu0 %v1773
      %v2032 = vpop.f32.mrf.mxu0
      %v2033 = vadd.f32 0.0, %v2032
      %2034 = vmatmul.f32.gmra.mxu0 %v1776
      %v2035 = vpop.f32.mrf.mxu0
      %v2036 = vadd.f32 0.0, %v2035
      %2037 = vmatmul.f32.gmra.mxu0 %v1779
      %v2038 = vpop.f32.mrf.mxu0
      %v2039 = vadd.f32 0.0, %v2038
      %2040 = vmatmul.f32.gmra.mxu0 %v1782
      %v2041 = vpop.f32.mrf.mxu0
      %v2042 = vadd.f32 0.0, %v2041
      %2043 = vmatmul.f32.gmra.mxu0 %v1785
      %v2044 = vpop.f32.mrf.mxu0
      %v2045 = vadd.f32 0.0, %v2044
      %2046 = vmatmul.f32.gmra.mxu0 %v1788
      %v2047 = vpop.f32.mrf.mxu0
      %v2048 = vadd.f32 0.0, %v2047
      %2049 = vmatmul.f32.gmra.mxu0 %v1791
      %v2050 = vpop.f32.mrf.mxu0
      %v2051 = vadd.f32 0.0, %v2050
      %2052 = vdwg.mxu0
      %v2053 = vld [vmem:[%s13] sm:$0xf]
      %vm2054 = vcmask 31744
      %v2056 = vsel %vm2054, %v1906, 0
      %v2059 = vsel %vm2054, %v1907, 0
      %v2062 = vsel %vm2054, %v1908, 0
      %v2065 = vsel %vm2054, %v1909, 0
      %v2068 = vsel %vm2054, %v1910, 0
      %v2071 = vsel %vm2054, %v1911, 0
      %v2074 = vsel %vm2054, %v1912, 0
      %v2077 = vsel %vm2054, %v1913, 0
      %v2080 = vsel %vm2054, %v1914, 0
      %v2083 = vsel %vm2054, %v1915, 0
      %v2086 = vsel %vm2054, %v1916, 0
      %v2089 = vsel %vm2054, %v1917, 0
      %v2092 = vsel %vm2054, %v1918, 0
      %v2095 = vsel %vm2054, %v1919, 0
      %v2098 = vsel %vm2054, %v1920, 0
      %v2101 = vsel %vm2054, %v1921, 0
      %v2104 = vsel %vm2054, %v1922, 0
      %v2107 = vsel %vm2054, %v1923, 0
      %v2110 = vsel %vm2054, %v1924, 0
      %v2113 = vsel %vm2054, %v1925, 0
      %v2116 = vsel %vm2054, %v1926, 0
      %v2119 = vsel %vm2054, %v1927, 0
      %v2122 = vsel %vm2054, %v1928, 0
      %v2125 = vsel %vm2054, %v1929, 0
      %v2128 = vsel %vm2054, %v1930, 0
      %v2131 = vsel %vm2054, %v1931, 0
      %v2134 = vsel %vm2054, %v1932, 0
      %v2137 = vsel %vm2054, %v1933, 0
      %v2140 = vsel %vm2054, %v1934, 0
      %v2143 = vsel %vm2054, %v1935, 0
      %v2146 = vsel %vm2054, %v1936, 0
      %v2149 = vsel %vm2054, %v1937, 0
      %vm2151 = vcmask 1043456
      %v2153 = vsel %vm2151, %v2053, 0
      %2155 = vmatpush.msra.mxu0 0.0
      %2156 = vmatpush.msra.mxu0 0.0
      %2157 = vmatpush.msra.mxu0 0.0
      %2158 = vmatpush.msra.mxu0 0.0
      %2159 = vmatpush.msra.mxu0 0.0
      %2160 = vmatpush.msra.mxu0 0.0
      %2161 = vmatpush.msra.mxu0 0.0
      %2162 = vmatpush.msra.mxu0 0.0
      %2163 = vmatpush.msra.mxu0 0.0
      %2164 = vmatpush.msra.mxu0 0.0
      %2165 = vmatpush.msra.mxu0 0.0
      %2166 = vmatpush.msra.mxu0 0.0
      %2167 = vmatpush.msra.mxu0 0.0
      %2168 = vmatpush.msra.mxu0 0.0
      %2169 = vmatpush.msra.mxu0 0.0
      %2170 = vmatpush.msra.mxu0 %v2153
      %2171 = vmatmul.f32.gmra.mxu0 %v2056
      %v2172 = vpop.f32.mrf.mxu0
      %v2173 = vadd.f32 0.0, %v2172
      %2174 = vmatmul.f32.gmra.mxu0 %v2059
      %v2175 = vpop.f32.mrf.mxu0
      %v2176 = vadd.f32 0.0, %v2175
      %2177 = vmatmul.f32.gmra.mxu0 %v2062
      %v2178 = vpop.f32.mrf.mxu0
      %v2179 = vadd.f32 0.0, %v2178
      %2180 = vmatmul.f32.gmra.mxu0 %v2065
      %v2181 = vpop.f32.mrf.mxu0
      %v2182 = vadd.f32 0.0, %v2181
      %2183 = vmatmul.f32.gmra.mxu0 %v2068
      %v2184 = vpop.f32.mrf.mxu0
      %v2185 = vadd.f32 0.0, %v2184
      %2186 = vmatmul.f32.gmra.mxu0 %v2071
      %v2187 = vpop.f32.mrf.mxu0
      %v2188 = vadd.f32 0.0, %v2187
      %2189 = vmatmul.f32.gmra.mxu0 %v2074
      %v2190 = vpop.f32.mrf.mxu0
      %v2191 = vadd.f32 0.0, %v2190
      %2192 = vmatmul.f32.gmra.mxu0 %v2077
      %v2193 = vpop.f32.mrf.mxu0
      %v2194 = vadd.f32 0.0, %v2193
      %2195 = vmatmul.f32.gmra.mxu0 %v2080
      %v2196 = vpop.f32.mrf.mxu0
      %v2197 = vadd.f32 0.0, %v2196
      %2198 = vmatmul.f32.gmra.mxu0 %v2083
      %v2199 = vpop.f32.mrf.mxu0
      %v2200 = vadd.f32 0.0, %v2199
      %2201 = vmatmul.f32.gmra.mxu0 %v2086
      %v2202 = vpop.f32.mrf.mxu0
      %v2203 = vadd.f32 0.0, %v2202
      %2204 = vmatmul.f32.gmra.mxu0 %v2089
      %v2205 = vpop.f32.mrf.mxu0
      %v2206 = vadd.f32 0.0, %v2205
      %2207 = vmatmul.f32.gmra.mxu0 %v2092
      %v2208 = vpop.f32.mrf.mxu0
      %v2209 = vadd.f32 0.0, %v2208
      %2210 = vmatmul.f32.gmra.mxu0 %v2095
      %v2211 = vpop.f32.mrf.mxu0
      %v2212 = vadd.f32 0.0, %v2211
      %2213 = vmatmul.f32.gmra.mxu0 %v2098
      %v2214 = vpop.f32.mrf.mxu0
      %v2215 = vadd.f32 0.0, %v2214
      %2216 = vmatmul.f32.gmra.mxu0 %v2101
      %v2217 = vpop.f32.mrf.mxu0
      %v2218 = vadd.f32 0.0, %v2217
      %2219 = vmatmul.f32.gmra.mxu0 %v2104
      %v2220 = vpop.f32.mrf.mxu0
      %v2221 = vadd.f32 0.0, %v2220
      %2222 = vmatmul.f32.gmra.mxu0 %v2107
      %v2223 = vpop.f32.mrf.mxu0
      %v2224 = vadd.f32 0.0, %v2223
      %2225 = vmatmul.f32.gmra.mxu0 %v2110
      %v2226 = vpop.f32.mrf.mxu0
      %v2227 = vadd.f32 0.0, %v2226
      %2228 = vmatmul.f32.gmra.mxu0 %v2113
      %v2229 = vpop.f32.mrf.mxu0
      %v2230 = vadd.f32 0.0, %v2229
      %2231 = vmatmul.f32.gmra.mxu0 %v2116
      %v2232 = vpop.f32.mrf.mxu0
      %v2233 = vadd.f32 0.0, %v2232
      %2234 = vmatmul.f32.gmra.mxu0 %v2119
      %v2235 = vpop.f32.mrf.mxu0
      %v2236 = vadd.f32 0.0, %v2235
      %2237 = vmatmul.f32.gmra.mxu0 %v2122
      %v2238 = vpop.f32.mrf.mxu0
      %v2239 = vadd.f32 0.0, %v2238
      %2240 = vmatmul.f32.gmra.mxu0 %v2125
      %v2241 = vpop.f32.mrf.mxu0
      %v2242 = vadd.f32 0.0, %v2241
      %2243 = vmatmul.f32.gmra.mxu0 %v2128
      %v2244 = vpop.f32.mrf.mxu0
      %v2245 = vadd.f32 0.0, %v2244
      %2246 = vmatmul.f32.gmra.mxu0 %v2131
      %v2247 = vpop.f32.mrf.mxu0
      %v2248 = vadd.f32 0.0, %v2247
      %2249 = vmatmul.f32.gmra.mxu0 %v2134
      %v2250 = vpop.f32.mrf.mxu0
      %v2251 = vadd.f32 0.0, %v2250
      %2252 = vmatmul.f32.gmra.mxu0 %v2137
      %v2253 = vpop.f32.mrf.mxu0
      %v2254 = vadd.f32 0.0, %v2253
      %2255 = vmatmul.f32.gmra.mxu0 %v2140
      %v2256 = vpop.f32.mrf.mxu0
      %v2257 = vadd.f32 0.0, %v2256
      %2258 = vmatmul.f32.gmra.mxu0 %v2143
      %v2259 = vpop.f32.mrf.mxu0
      %v2260 = vadd.f32 0.0, %v2259
      %2261 = vmatmul.f32.gmra.mxu0 %v2146
      %v2262 = vpop.f32.mrf.mxu0
      %v2263 = vadd.f32 0.0, %v2262
      %2264 = vmatmul.f32.gmra.mxu0 %v2149
      %v2265 = vpop.f32.mrf.mxu0
      %v2266 = vadd.f32 0.0, %v2265
      %2267 = vdwg.mxu0
      %v2268 = vmul.f32 %v1958, %v2173
      %v2269 = vmul.f32 %v1961, %v2176
      %v2270 = vmul.f32 %v1964, %v2179
      %v2271 = vmul.f32 %v1967, %v2182
      %v2272 = vmul.f32 %v1970, %v2185
      %v2273 = vmul.f32 %v1973, %v2188
      %v2274 = vmul.f32 %v1976, %v2191
      %v2275 = vmul.f32 %v1979, %v2194
      %v2276 = vmul.f32 %v1982, %v2197
      %v2277 = vmul.f32 %v1985, %v2200
      %v2278 = vmul.f32 %v1988, %v2203
      %v2279 = vmul.f32 %v1991, %v2206
      %v2280 = vmul.f32 %v1994, %v2209
      %v2281 = vmul.f32 %v1997, %v2212
      %v2282 = vmul.f32 %v2000, %v2215
      %v2283 = vmul.f32 %v2003, %v2218
      %v2284 = vmul.f32 %v2006, %v2221
      %v2285 = vmul.f32 %v2009, %v2224
      %v2286 = vmul.f32 %v2012, %v2227
      %v2287 = vmul.f32 %v2015, %v2230
      %v2288 = vmul.f32 %v2018, %v2233
      %v2289 = vmul.f32 %v2021, %v2236
      %v2290 = vmul.f32 %v2024, %v2239
      %v2291 = vmul.f32 %v2027, %v2242
      %v2292 = vmul.f32 %v2030, %v2245
      %v2293 = vmul.f32 %v2033, %v2248
      %v2294 = vmul.f32 %v2036, %v2251
      %v2295 = vmul.f32 %v2039, %v2254
      %v2296 = vmul.f32 %v2042, %v2257
      %v2297 = vmul.f32 %v2045, %v2260
      %v2298 = vmul.f32 %v2048, %v2263
      %v2299 = vmul.f32 %v2051, %v2266
      %v2300 = vmul.f32 %v2268, %v1263
      %v2301 = vmul.f32 %v2269, %v1265
      %v2302 = vmul.f32 %v2270, %v1268
      %v2303 = vmul.f32 %v2271, %v1270
      %v2304 = vmul.f32 %v2272, %v1273
      %v2305 = vmul.f32 %v2273, %v1275
      %v2306 = vmul.f32 %v2274, %v1278
      %v2307 = vmul.f32 %v2275, %v1280
      %v2308 = vmul.f32 %v2276, %v1283
      %v2309 = vmul.f32 %v2277, %v1285
      %v2310 = vmul.f32 %v2278, %v1288
      %v2311 = vmul.f32 %v2279, %v1290
      %v2312 = vmul.f32 %v2280, %v1293
      %v2313 = vmul.f32 %v2281, %v1295
      %v2314 = vmul.f32 %v2282, %v1298
      %v2315 = vmul.f32 %v2283, %v1300
      %v2316 = vmul.f32 %v2284, %v1303
      %v2317 = vmul.f32 %v2285, %v1305
      %v2318 = vmul.f32 %v2286, %v1308
      %v2319 = vmul.f32 %v2287, %v1310
      %v2320 = vmul.f32 %v2288, %v1313
      %v2321 = vmul.f32 %v2289, %v1315
      %v2322 = vmul.f32 %v2290, %v1318
      %v2323 = vmul.f32 %v2291, %v1320
      %v2324 = vmul.f32 %v2292, %v1323
      %v2325 = vmul.f32 %v2293, %v1325
      %v2326 = vmul.f32 %v2294, %v1328
      %v2327 = vmul.f32 %v2295, %v1330
      %v2328 = vmul.f32 %v2296, %v1333
      %v2329 = vmul.f32 %v2297, %v1335
      %v2330 = vmul.f32 %v2298, %v1338
      %v2331 = vmul.f32 %v2299, %v1340
      %v2332 = vld [vmem:[%s11] sm:$0xff]
      %v2333 = vld [vmem:[%s11 + $0x8] sm:$0xff]
      %v2334 = vld [vmem:[%s11 + $0x10] sm:$0xff]
      %v2335 = vld [vmem:[%s11 + $0x18] sm:$0xff]
      %v2336 = vld [vmem:[%s11 + $0x20] sm:$0xff]
      %v2337 = vld [vmem:[%s11 + $0x28] sm:$0xff]
      %v2338 = vld [vmem:[%s11 + $0x30] sm:$0xff]
      %v2339 = vld [vmem:[%s11 + $0x38] sm:$0xff]
      %v2340 = vld [vmem:[%s11 + $0x40] sm:$0xff]
      %v2341 = vld [vmem:[%s11 + $0x48] sm:$0xff]
      %v2342 = vld [vmem:[%s11 + $0x50] sm:$0xff]
      %v2343 = vld [vmem:[%s11 + $0x58] sm:$0xff]
      %v2344 = vld [vmem:[%s11 + $0x60] sm:$0xff]
      %v2345 = vld [vmem:[%s11 + $0x68] sm:$0xff]
      %v2346 = vld [vmem:[%s11 + $0x70] sm:$0xff]
      %v2347 = vld [vmem:[%s11 + $0x78] sm:$0xff]
      %2348 = vmatpush.msra.mxu0 %v2347
      %2349 = vmatpush.msra.mxu0 %v2346
      %2350 = vmatpush.msra.mxu0 %v2345
      %2351 = vmatpush.msra.mxu0 %v2344
      %2352 = vmatpush.msra.mxu0 %v2343
      %2353 = vmatpush.msra.mxu0 %v2342
      %2354 = vmatpush.msra.mxu0 %v2341
      %2355 = vmatpush.msra.mxu0 %v2340
      %2356 = vmatpush.msra.mxu0 %v2339
      %2357 = vmatpush.msra.mxu0 %v2338
      %2358 = vmatpush.msra.mxu0 %v2337
      %2359 = vmatpush.msra.mxu0 %v2336
      %2360 = vmatpush.msra.mxu0 %v2335
      %2361 = vmatpush.msra.mxu0 %v2334
      %2362 = vmatpush.msra.mxu0 %v2333
      %2363 = vmatpush.msra.mxu0 %v2332
      %2364 = vmatmul.f32.gmra.mxu0 %v2300
      %v2365 = vpop.f32.mrf.mxu0
      %v2366 = vadd.f32 0.0, %v2365
      %2367 = vmatmul.f32.gmra.mxu0 %v2301
      %v2368 = vpop.f32.mrf.mxu0
      %v2369 = vadd.f32 0.0, %v2368
      %2370 = vmatmul.f32.gmra.mxu0 %v2302
      %v2371 = vpop.f32.mrf.mxu0
      %v2372 = vadd.f32 0.0, %v2371
      %2373 = vmatmul.f32.gmra.mxu0 %v2303
      %v2374 = vpop.f32.mrf.mxu0
      %v2375 = vadd.f32 0.0, %v2374
      %2376 = vmatmul.f32.gmra.mxu0 %v2304
      %v2377 = vpop.f32.mrf.mxu0
      %v2378 = vadd.f32 0.0, %v2377
      %2379 = vmatmul.f32.gmra.mxu0 %v2305
      %v2380 = vpop.f32.mrf.mxu0
      %v2381 = vadd.f32 0.0, %v2380
      %2382 = vmatmul.f32.gmra.mxu0 %v2306
      %v2383 = vpop.f32.mrf.mxu0
      %v2384 = vadd.f32 0.0, %v2383
      %2385 = vmatmul.f32.gmra.mxu0 %v2307
      %v2386 = vpop.f32.mrf.mxu0
      %v2387 = vadd.f32 0.0, %v2386
      %2388 = vmatmul.f32.gmra.mxu0 %v2308
      %v2389 = vpop.f32.mrf.mxu0
      %v2390 = vadd.f32 0.0, %v2389
      %2391 = vmatmul.f32.gmra.mxu0 %v2309
      %v2392 = vpop.f32.mrf.mxu0
      %v2393 = vadd.f32 0.0, %v2392
      %2394 = vmatmul.f32.gmra.mxu0 %v2310
      %v2395 = vpop.f32.mrf.mxu0
      %v2396 = vadd.f32 0.0, %v2395
      %2397 = vmatmul.f32.gmra.mxu0 %v2311
      %v2398 = vpop.f32.mrf.mxu0
      %v2399 = vadd.f32 0.0, %v2398
      %2400 = vmatmul.f32.gmra.mxu0 %v2312
      %v2401 = vpop.f32.mrf.mxu0
      %v2402 = vadd.f32 0.0, %v2401
      %2403 = vmatmul.f32.gmra.mxu0 %v2313
      %v2404 = vpop.f32.mrf.mxu0
      %v2405 = vadd.f32 0.0, %v2404
      %2406 = vmatmul.f32.gmra.mxu0 %v2314
      %v2407 = vpop.f32.mrf.mxu0
      %v2408 = vadd.f32 0.0, %v2407
      %2409 = vmatmul.f32.gmra.mxu0 %v2315
      %v2410 = vpop.f32.mrf.mxu0
      %v2411 = vadd.f32 0.0, %v2410
      %2412 = vmatmul.f32.gmra.mxu0 %v2316
      %v2413 = vpop.f32.mrf.mxu0
      %v2414 = vadd.f32 0.0, %v2413
      %2415 = vmatmul.f32.gmra.mxu0 %v2317
      %v2416 = vpop.f32.mrf.mxu0
      %v2417 = vadd.f32 0.0, %v2416
      %2418 = vmatmul.f32.gmra.mxu0 %v2318
      %v2419 = vpop.f32.mrf.mxu0
      %v2420 = vadd.f32 0.0, %v2419
      %2421 = vmatmul.f32.gmra.mxu0 %v2319
      %v2422 = vpop.f32.mrf.mxu0
      %v2423 = vadd.f32 0.0, %v2422
      %2424 = vmatmul.f32.gmra.mxu0 %v2320
      %v2425 = vpop.f32.mrf.mxu0
      %v2426 = vadd.f32 0.0, %v2425
      %2427 = vmatmul.f32.gmra.mxu0 %v2321
      %v2428 = vpop.f32.mrf.mxu0
      %v2429 = vadd.f32 0.0, %v2428
      %2430 = vmatmul.f32.gmra.mxu0 %v2322
      %v2431 = vpop.f32.mrf.mxu0
      %v2432 = vadd.f32 0.0, %v2431
      %2433 = vmatmul.f32.gmra.mxu0 %v2323
      %v2434 = vpop.f32.mrf.mxu0
      %v2435 = vadd.f32 0.0, %v2434
      %2436 = vmatmul.f32.gmra.mxu0 %v2324
      %v2437 = vpop.f32.mrf.mxu0
      %v2438 = vadd.f32 0.0, %v2437
      %2439 = vmatmul.f32.gmra.mxu0 %v2325
      %v2440 = vpop.f32.mrf.mxu0
      %v2441 = vadd.f32 0.0, %v2440
      %2442 = vmatmul.f32.gmra.mxu0 %v2326
      %v2443 = vpop.f32.mrf.mxu0
      %v2444 = vadd.f32 0.0, %v2443
      %2445 = vmatmul.f32.gmra.mxu0 %v2327
      %v2446 = vpop.f32.mrf.mxu0
      %v2447 = vadd.f32 0.0, %v2446
      %2448 = vmatmul.f32.gmra.mxu0 %v2328
      %v2449 = vpop.f32.mrf.mxu0
      %v2450 = vadd.f32 0.0, %v2449
      %2451 = vmatmul.f32.gmra.mxu0 %v2329
      %v2452 = vpop.f32.mrf.mxu0
      %v2453 = vadd.f32 0.0, %v2452
      %2454 = vmatmul.f32.gmra.mxu0 %v2330
      %v2455 = vpop.f32.mrf.mxu0
      %v2456 = vadd.f32 0.0, %v2455
      %2457 = vmatmul.f32.gmra.mxu0 %v2331
      %v2458 = vpop.f32.mrf.mxu0
      %v2459 = vadd.f32 0.0, %v2458
      %2460 = vdwg.mxu0
      %v2461 = vpack.c.bf16 %v2369, %v2366
      %v2462 = vpack.c.bf16 %v2375, %v2372
      %v2463 = vpack.c.bf16 %v2381, %v2378
      %v2464 = vpack.c.bf16 %v2387, %v2384
      %v2465 = vpack.c.bf16 %v2393, %v2390
      %v2466 = vpack.c.bf16 %v2399, %v2396
      %v2467 = vpack.c.bf16 %v2405, %v2402
      %v2468 = vpack.c.bf16 %v2411, %v2408
      %v2469 = vpack.c.bf16 %v2417, %v2414
      %v2470 = vpack.c.bf16 %v2423, %v2420
      %v2471 = vpack.c.bf16 %v2429, %v2426
      %v2472 = vpack.c.bf16 %v2435, %v2432
      %v2473 = vpack.c.bf16 %v2441, %v2438
      %v2474 = vpack.c.bf16 %v2447, %v2444
      %v2475 = vpack.c.bf16 %v2453, %v2450
      %v2476 = vpack.c.bf16 %v2459, %v2456
      %v2477 = vld [vmem:[%s3] sm:$0xf]
      %v2478 = vld [vmem:[%s3 + $0x4] sm:$0xf]
      %v2479 = vld [vmem:[%s3 + $0x8] sm:$0xf]
      %v2480 = vld [vmem:[%s3 + $0xc] sm:$0xf]
      %v2481 = vperm.slane %v614, 1
      %v2486 = vunpack.c.l.b16 %v2477
      %v2487 = vunpack.c.l.b16 %v2478
      %v2488 = vunpack.c.l.b16 %v2479
      %v2489 = vunpack.c.l.b16 %v2480
      %v2490 = vpack.c.b16 %v2487, %v2486
      %v2491 = vpack.c.b16 %v2489, %v2488
      %v2495 = vsel %vm1026, %v2461, 0
      %v2498 = vsel %vm1026, %v2462, 0
      %v2501 = vsel %vm1026, %v2463, 0
      %v2504 = vsel %vm1026, %v2464, 0
      %v2507 = vsel %vm1026, %v2465, 0
      %v2510 = vsel %vm1026, %v2466, 0
      %v2513 = vsel %vm1026, %v2467, 0
      %v2516 = vsel %vm1026, %v2468, 0
      %v2519 = vsel %vm1026, %v2469, 0
      %v2522 = vsel %vm1026, %v2470, 0
      %v2525 = vsel %vm1026, %v2471, 0
      %v2528 = vsel %vm1026, %v2472, 0
      %v2531 = vsel %vm1026, %v2473, 0
      %v2534 = vsel %vm1026, %v2474, 0
      %v2537 = vsel %vm1026, %v2475, 0
      %v2540 = vsel %vm1026, %v2476, 0
      %2542 = vmatpush.bf16.msra.mxu0 0
      %2543 = vmatpush.bf16.msra.mxu0 0
      %2544 = vmatpush.bf16.msra.mxu0 0
      %2545 = vmatpush.bf16.msra.mxu0 0
      %2546 = vmatpush.bf16.msra.mxu0 0
      %2547 = vmatpush.bf16.msra.mxu0 0
      %2548 = vmatpush.bf16.msra.mxu0 %v2491
      %2549 = vmatpush.bf16.msra.mxu0 %v2490
      %2550 = vmatmul.bf16.gmra.mxu0 %v2495
      %v2551 = vpop.f32.mrf.mxu0
      %v2552 = vadd.f32 %v2481, %v2551
      %v2553 = vpop.f32.mrf.mxu0
      %v2554 = vadd.f32 %v2481, %v2553
      %2555 = vmatmul.bf16.gmra.mxu0 %v2498
      %v2556 = vpop.f32.mrf.mxu0
      %v2557 = vadd.f32 %v2481, %v2556
      %v2558 = vpop.f32.mrf.mxu0
      %v2559 = vadd.f32 %v2481, %v2558
      %2560 = vmatmul.bf16.gmra.mxu0 %v2501
      %v2561 = vpop.f32.mrf.mxu0
      %v2562 = vadd.f32 %v2481, %v2561
      %v2563 = vpop.f32.mrf.mxu0
      %v2564 = vadd.f32 %v2481, %v2563
      %2565 = vmatmul.bf16.gmra.mxu0 %v2504
      %v2566 = vpop.f32.mrf.mxu0
      %v2567 = vadd.f32 %v2481, %v2566
      %v2568 = vpop.f32.mrf.mxu0
      %v2569 = vadd.f32 %v2481, %v2568
      %2570 = vmatmul.bf16.gmra.mxu0 %v2507
      %v2571 = vpop.f32.mrf.mxu0
      %v2572 = vadd.f32 %v2481, %v2571
      %v2573 = vpop.f32.mrf.mxu0
      %v2574 = vadd.f32 %v2481, %v2573
      %2575 = vmatmul.bf16.gmra.mxu0 %v2510
      %v2576 = vpop.f32.mrf.mxu0
      %v2577 = vadd.f32 %v2481, %v2576
      %v2578 = vpop.f32.mrf.mxu0
      %v2579 = vadd.f32 %v2481, %v2578
      %2580 = vmatmul.bf16.gmra.mxu0 %v2513
      %v2581 = vpop.f32.mrf.mxu0
      %v2582 = vadd.f32 %v2481, %v2581
      %v2583 = vpop.f32.mrf.mxu0
      %v2584 = vadd.f32 %v2481, %v2583
      %2585 = vmatmul.bf16.gmra.mxu0 %v2516
      %v2586 = vpop.f32.mrf.mxu0
      %v2587 = vadd.f32 %v2481, %v2586
      %v2588 = vpop.f32.mrf.mxu0
      %v2589 = vadd.f32 %v2481, %v2588
      %2590 = vmatmul.bf16.gmra.mxu0 %v2519
      %v2591 = vpop.f32.mrf.mxu0
      %v2592 = vadd.f32 %v2481, %v2591
      %v2593 = vpop.f32.mrf.mxu0
      %v2594 = vadd.f32 %v2481, %v2593
      %2595 = vmatmul.bf16.gmra.mxu0 %v2522
      %v2596 = vpop.f32.mrf.mxu0
      %v2597 = vadd.f32 %v2481, %v2596
      %v2598 = vpop.f32.mrf.mxu0
      %v2599 = vadd.f32 %v2481, %v2598
      %2600 = vmatmul.bf16.gmra.mxu0 %v2525
      %v2601 = vpop.f32.mrf.mxu0
      %v2602 = vadd.f32 %v2481, %v2601
      %v2603 = vpop.f32.mrf.mxu0
      %v2604 = vadd.f32 %v2481, %v2603
      %2605 = vmatmul.bf16.gmra.mxu0 %v2528
      %v2606 = vpop.f32.mrf.mxu0
      %v2607 = vadd.f32 %v2481, %v2606
      %v2608 = vpop.f32.mrf.mxu0
      %v2609 = vadd.f32 %v2481, %v2608
      %2610 = vmatmul.bf16.gmra.mxu0 %v2531
      %v2611 = vpop.f32.mrf.mxu0
      %v2612 = vadd.f32 %v2481, %v2611
      %v2613 = vpop.f32.mrf.mxu0
      %v2614 = vadd.f32 %v2481, %v2613
      %2615 = vmatmul.bf16.gmra.mxu0 %v2534
      %v2616 = vpop.f32.mrf.mxu0
      %v2617 = vadd.f32 %v2481, %v2616
      %v2618 = vpop.f32.mrf.mxu0
      %v2619 = vadd.f32 %v2481, %v2618
      %2620 = vmatmul.bf16.gmra.mxu0 %v2537
      %v2621 = vpop.f32.mrf.mxu0
      %v2622 = vadd.f32 %v2481, %v2621
      %v2623 = vpop.f32.mrf.mxu0
      %v2624 = vadd.f32 %v2481, %v2623
      %2625 = vmatmul.bf16.gmra.mxu0 %v2540
      %v2626 = vpop.f32.mrf.mxu0
      %v2627 = vadd.f32 %v2481, %v2626
      %v2628 = vpop.f32.mrf.mxu0
      %v2629 = vadd.f32 %v2481, %v2628
      %2630 = vdwg.mxu0
      %v2631 = vld [vmem:[%s14] sm:$0xff]
      %v2632 = vld [vmem:[%s14 + $0x8] sm:$0xff]
      %v2633 = vld [vmem:[%s14 + $0x10] sm:$0xff]
      %v2634 = vld [vmem:[%s14 + $0x18] sm:$0xff]
      %v2636 = vsel %vm1026, %v2552, 0
      %v2639 = vsel %vm1026, %v2554, 0
      %v2642 = vsel %vm1026, %v2557, 0
      %v2645 = vsel %vm1026, %v2559, 0
      %v2648 = vsel %vm1026, %v2562, 0
      %v2651 = vsel %vm1026, %v2564, 0
      %v2654 = vsel %vm1026, %v2567, 0
      %v2657 = vsel %vm1026, %v2569, 0
      %v2660 = vsel %vm1026, %v2572, 0
      %v2663 = vsel %vm1026, %v2574, 0
      %v2666 = vsel %vm1026, %v2577, 0
      %v2669 = vsel %vm1026, %v2579, 0
      %v2672 = vsel %vm1026, %v2582, 0
      %v2675 = vsel %vm1026, %v2584, 0
      %v2678 = vsel %vm1026, %v2587, 0
      %v2681 = vsel %vm1026, %v2589, 0
      %v2684 = vsel %vm1026, %v2592, 0
      %v2687 = vsel %vm1026, %v2594, 0
      %v2690 = vsel %vm1026, %v2597, 0
      %v2693 = vsel %vm1026, %v2599, 0
      %v2696 = vsel %vm1026, %v2602, 0
      %v2699 = vsel %vm1026, %v2604, 0
      %v2702 = vsel %vm1026, %v2607, 0
      %v2705 = vsel %vm1026, %v2609, 0
      %v2708 = vsel %vm1026, %v2612, 0
      %v2711 = vsel %vm1026, %v2614, 0
      %v2714 = vsel %vm1026, %v2617, 0
      %v2717 = vsel %vm1026, %v2619, 0
      %v2720 = vsel %vm1026, %v2622, 0
      %v2723 = vsel %vm1026, %v2624, 0
      %v2726 = vsel %vm1026, %v2627, 0
      %v2729 = vsel %vm1026, %v2629, 0
      %2731 = vmatpush.msra.mxu0 0.0
      %2732 = vmatpush.msra.mxu0 0.0
      %2733 = vmatpush.msra.mxu0 0.0
      %2734 = vmatpush.msra.mxu0 0.0
      %2735 = vmatpush.msra.mxu0 0.0
      %2736 = vmatpush.msra.mxu0 0.0
      %2737 = vmatpush.msra.mxu0 0.0
      %2738 = vmatpush.msra.mxu0 0.0
      %2739 = vmatpush.msra.mxu0 0.0
      %2740 = vmatpush.msra.mxu0 0.0
      %2741 = vmatpush.msra.mxu0 0.0
      %2742 = vmatpush.msra.mxu0 0.0
      %2743 = vmatpush.msra.mxu0 %v2634
      %2744 = vmatpush.msra.mxu0 %v2633
      %2745 = vmatpush.msra.mxu0 %v2632
      %2746 = vmatpush.msra.mxu0 %v2631
      %2747 = vmatmul.f32.gmra.mxu0 %v2636
      %v2748 = vpop.f32.mrf.mxu0
      %v2749 = vadd.f32 0.0, %v2748
      %2750 = vmatmul.f32.gmra.mxu0 %v2639
      %v2751 = vpop.f32.mrf.mxu0
      %v2752 = vadd.f32 0.0, %v2751
      %2753 = vmatmul.f32.gmra.mxu0 %v2642
      %v2754 = vpop.f32.mrf.mxu0
      %v2755 = vadd.f32 0.0, %v2754
      %2756 = vmatmul.f32.gmra.mxu0 %v2645
      %v2757 = vpop.f32.mrf.mxu0
      %v2758 = vadd.f32 0.0, %v2757
      %2759 = vmatmul.f32.gmra.mxu0 %v2648
      %v2760 = vpop.f32.mrf.mxu0
      %v2761 = vadd.f32 0.0, %v2760
      %2762 = vmatmul.f32.gmra.mxu0 %v2651
      %v2763 = vpop.f32.mrf.mxu0
      %v2764 = vadd.f32 0.0, %v2763
      %2765 = vmatmul.f32.gmra.mxu0 %v2654
      %v2766 = vpop.f32.mrf.mxu0
      %v2767 = vadd.f32 0.0, %v2766
      %2768 = vmatmul.f32.gmra.mxu0 %v2657
      %v2769 = vpop.f32.mrf.mxu0
      %v2770 = vadd.f32 0.0, %v2769
      %2771 = vmatmul.f32.gmra.mxu0 %v2660
      %v2772 = vpop.f32.mrf.mxu0
      %v2773 = vadd.f32 0.0, %v2772
      %2774 = vmatmul.f32.gmra.mxu0 %v2663
      %v2775 = vpop.f32.mrf.mxu0
      %v2776 = vadd.f32 0.0, %v2775
      %2777 = vmatmul.f32.gmra.mxu0 %v2666
      %v2778 = vpop.f32.mrf.mxu0
      %v2779 = vadd.f32 0.0, %v2778
      %2780 = vmatmul.f32.gmra.mxu0 %v2669
      %v2781 = vpop.f32.mrf.mxu0
      %v2782 = vadd.f32 0.0, %v2781
      %2783 = vmatmul.f32.gmra.mxu0 %v2672
      %v2784 = vpop.f32.mrf.mxu0
      %v2785 = vadd.f32 0.0, %v2784
      %2786 = vmatmul.f32.gmra.mxu0 %v2675
      %v2787 = vpop.f32.mrf.mxu0
      %v2788 = vadd.f32 0.0, %v2787
      %2789 = vmatmul.f32.gmra.mxu0 %v2678
      %v2790 = vpop.f32.mrf.mxu0
      %v2791 = vadd.f32 0.0, %v2790
      %2792 = vmatmul.f32.gmra.mxu0 %v2681
      %v2793 = vpop.f32.mrf.mxu0
      %v2794 = vadd.f32 0.0, %v2793
      %2795 = vmatmul.f32.gmra.mxu0 %v2684
      %v2796 = vpop.f32.mrf.mxu0
      %v2797 = vadd.f32 0.0, %v2796
      %2798 = vmatmul.f32.gmra.mxu0 %v2687
      %v2799 = vpop.f32.mrf.mxu0
      %v2800 = vadd.f32 0.0, %v2799
      %2801 = vmatmul.f32.gmra.mxu0 %v2690
      %v2802 = vpop.f32.mrf.mxu0
      %v2803 = vadd.f32 0.0, %v2802
      %2804 = vmatmul.f32.gmra.mxu0 %v2693
      %v2805 = vpop.f32.mrf.mxu0
      %v2806 = vadd.f32 0.0, %v2805
      %2807 = vmatmul.f32.gmra.mxu0 %v2696
      %v2808 = vpop.f32.mrf.mxu0
      %v2809 = vadd.f32 0.0, %v2808
      %2810 = vmatmul.f32.gmra.mxu0 %v2699
      %v2811 = vpop.f32.mrf.mxu0
      %v2812 = vadd.f32 0.0, %v2811
      %2813 = vmatmul.f32.gmra.mxu0 %v2702
      %v2814 = vpop.f32.mrf.mxu0
      %v2815 = vadd.f32 0.0, %v2814
      %2816 = vmatmul.f32.gmra.mxu0 %v2705
      %v2817 = vpop.f32.mrf.mxu0
      %v2818 = vadd.f32 0.0, %v2817
      %2819 = vmatmul.f32.gmra.mxu0 %v2708
      %v2820 = vpop.f32.mrf.mxu0
      %v2821 = vadd.f32 0.0, %v2820
      %2822 = vmatmul.f32.gmra.mxu0 %v2711
      %v2823 = vpop.f32.mrf.mxu0
      %v2824 = vadd.f32 0.0, %v2823
      %2825 = vmatmul.f32.gmra.mxu0 %v2714
      %v2826 = vpop.f32.mrf.mxu0
      %v2827 = vadd.f32 0.0, %v2826
      %2828 = vmatmul.f32.gmra.mxu0 %v2717
      %v2829 = vpop.f32.mrf.mxu0
      %v2830 = vadd.f32 0.0, %v2829
      %2831 = vmatmul.f32.gmra.mxu0 %v2720
      %v2832 = vpop.f32.mrf.mxu0
      %v2833 = vadd.f32 0.0, %v2832
      %2834 = vmatmul.f32.gmra.mxu0 %v2723
      %v2835 = vpop.f32.mrf.mxu0
      %v2836 = vadd.f32 0.0, %v2835
      %2837 = vmatmul.f32.gmra.mxu0 %v2726
      %v2838 = vpop.f32.mrf.mxu0
      %v2839 = vadd.f32 0.0, %v2838
      %2840 = vmatmul.f32.gmra.mxu0 %v2729
      %v2841 = vpop.f32.mrf.mxu0
      %v2842 = vadd.f32 0.0, %v2841
      %2843 = vdwg.mxu0
      %v2844 = vmul.f32 %v2552, %v2552
      %v2845 = vmul.f32 %v2554, %v2554
      %v2846 = vmul.f32 %v2557, %v2557
      %v2847 = vmul.f32 %v2559, %v2559
      %v2848 = vmul.f32 %v2562, %v2562
      %v2849 = vmul.f32 %v2564, %v2564
      %v2850 = vmul.f32 %v2567, %v2567
      %v2851 = vmul.f32 %v2569, %v2569
      %v2852 = vmul.f32 %v2572, %v2572
      %v2853 = vmul.f32 %v2574, %v2574
      %v2854 = vmul.f32 %v2577, %v2577
      %v2855 = vmul.f32 %v2579, %v2579
      %v2856 = vmul.f32 %v2582, %v2582
      %v2857 = vmul.f32 %v2584, %v2584
      %v2858 = vmul.f32 %v2587, %v2587
      %v2859 = vmul.f32 %v2589, %v2589
      %v2860 = vmul.f32 %v2592, %v2592
      %v2861 = vmul.f32 %v2594, %v2594
      %v2862 = vmul.f32 %v2597, %v2597
      %v2863 = vmul.f32 %v2599, %v2599
      %v2864 = vmul.f32 %v2602, %v2602
      %v2865 = vmul.f32 %v2604, %v2604
      %v2866 = vmul.f32 %v2607, %v2607
      %v2867 = vmul.f32 %v2609, %v2609
      %v2868 = vmul.f32 %v2612, %v2612
      %v2869 = vmul.f32 %v2614, %v2614
      %v2870 = vmul.f32 %v2617, %v2617
      %v2871 = vmul.f32 %v2619, %v2619
      %v2872 = vmul.f32 %v2622, %v2622
      %v2873 = vmul.f32 %v2624, %v2624
      %v2874 = vmul.f32 %v2627, %v2627
      %v2875 = vmul.f32 %v2629, %v2629
      %v2877 = vsel %vm1026, %v2844, 0
      %v2880 = vsel %vm1026, %v2845, 0
      %v2883 = vsel %vm1026, %v2846, 0
      %v2886 = vsel %vm1026, %v2847, 0
      %v2889 = vsel %vm1026, %v2848, 0
      %v2892 = vsel %vm1026, %v2849, 0
      %v2895 = vsel %vm1026, %v2850, 0
      %v2898 = vsel %vm1026, %v2851, 0
      %v2901 = vsel %vm1026, %v2852, 0
      %v2904 = vsel %vm1026, %v2853, 0
      %v2907 = vsel %vm1026, %v2854, 0
      %v2910 = vsel %vm1026, %v2855, 0
      %v2913 = vsel %vm1026, %v2856, 0
      %v2916 = vsel %vm1026, %v2857, 0
      %v2919 = vsel %vm1026, %v2858, 0
      %v2922 = vsel %vm1026, %v2859, 0
      %v2925 = vsel %vm1026, %v2860, 0
      %v2928 = vsel %vm1026, %v2861, 0
      %v2931 = vsel %vm1026, %v2862, 0
      %v2934 = vsel %vm1026, %v2863, 0
      %v2937 = vsel %vm1026, %v2864, 0
      %v2940 = vsel %vm1026, %v2865, 0
      %v2943 = vsel %vm1026, %v2866, 0
      %v2946 = vsel %vm1026, %v2867, 0
      %v2949 = vsel %vm1026, %v2868, 0
      %v2952 = vsel %vm1026, %v2869, 0
      %v2955 = vsel %vm1026, %v2870, 0
      %v2958 = vsel %vm1026, %v2871, 0
      %v2961 = vsel %vm1026, %v2872, 0
      %v2964 = vsel %vm1026, %v2873, 0
      %v2967 = vsel %vm1026, %v2874, 0
      %v2970 = vsel %vm1026, %v2875, 0
      %2972 = vmatpush.msra.mxu0 0.0
      %2973 = vmatpush.msra.mxu0 0.0
      %2974 = vmatpush.msra.mxu0 0.0
      %2975 = vmatpush.msra.mxu0 0.0
      %2976 = vmatpush.msra.mxu0 0.0
      %2977 = vmatpush.msra.mxu0 0.0
      %2978 = vmatpush.msra.mxu0 0.0
      %2979 = vmatpush.msra.mxu0 0.0
      %2980 = vmatpush.msra.mxu0 0.0
      %2981 = vmatpush.msra.mxu0 0.0
      %2982 = vmatpush.msra.mxu0 0.0
      %2983 = vmatpush.msra.mxu0 0.0
      %2984 = vmatpush.msra.mxu0 %v2634
      %2985 = vmatpush.msra.mxu0 %v2633
      %2986 = vmatpush.msra.mxu0 %v2632
      %2987 = vmatpush.msra.mxu0 %v2631
      %2988 = vmatmul.f32.gmra.mxu0 %v2877
      %v2989 = vpop.f32.mrf.mxu0
      %v2990 = vadd.f32 0.0, %v2989
      %2991 = vmatmul.f32.gmra.mxu0 %v2880
      %v2992 = vpop.f32.mrf.mxu0
      %v2993 = vadd.f32 0.0, %v2992
      %2994 = vmatmul.f32.gmra.mxu0 %v2883
      %v2995 = vpop.f32.mrf.mxu0
      %v2996 = vadd.f32 0.0, %v2995
      %2997 = vmatmul.f32.gmra.mxu0 %v2886
      %v2998 = vpop.f32.mrf.mxu0
      %v2999 = vadd.f32 0.0, %v2998
      %3000 = vmatmul.f32.gmra.mxu0 %v2889
      %v3001 = vpop.f32.mrf.mxu0
      %v3002 = vadd.f32 0.0, %v3001
      %3003 = vmatmul.f32.gmra.mxu0 %v2892
      %v3004 = vpop.f32.mrf.mxu0
      %v3005 = vadd.f32 0.0, %v3004
      %3006 = vmatmul.f32.gmra.mxu0 %v2895
      %v3007 = vpop.f32.mrf.mxu0
      %v3008 = vadd.f32 0.0, %v3007
      %3009 = vmatmul.f32.gmra.mxu0 %v2898
      %v3010 = vpop.f32.mrf.mxu0
      %v3011 = vadd.f32 0.0, %v3010
      %3012 = vmatmul.f32.gmra.mxu0 %v2901
      %v3013 = vpop.f32.mrf.mxu0
      %v3014 = vadd.f32 0.0, %v3013
      %3015 = vmatmul.f32.gmra.mxu0 %v2904
      %v3016 = vpop.f32.mrf.mxu0
      %v3017 = vadd.f32 0.0, %v3016
      %3018 = vmatmul.f32.gmra.mxu0 %v2907
      %v3019 = vpop.f32.mrf.mxu0
      %v3020 = vadd.f32 0.0, %v3019
      %3021 = vmatmul.f32.gmra.mxu0 %v2910
      %v3022 = vpop.f32.mrf.mxu0
      %v3023 = vadd.f32 0.0, %v3022
      %3024 = vmatmul.f32.gmra.mxu0 %v2913
      %v3025 = vpop.f32.mrf.mxu0
      %v3026 = vadd.f32 0.0, %v3025
      %3027 = vmatmul.f32.gmra.mxu0 %v2916
      %v3028 = vpop.f32.mrf.mxu0
      %v3029 = vadd.f32 0.0, %v3028
      %3030 = vmatmul.f32.gmra.mxu0 %v2919
      %v3031 = vpop.f32.mrf.mxu0
      %v3032 = vadd.f32 0.0, %v3031
      %3033 = vmatmul.f32.gmra.mxu0 %v2922
      %v3034 = vpop.f32.mrf.mxu0
      %v3035 = vadd.f32 0.0, %v3034
      %3036 = vmatmul.f32.gmra.mxu0 %v2925
      %v3037 = vpop.f32.mrf.mxu0
      %v3038 = vadd.f32 0.0, %v3037
      %3039 = vmatmul.f32.gmra.mxu0 %v2928
      %v3040 = vpop.f32.mrf.mxu0
      %v3041 = vadd.f32 0.0, %v3040
      %3042 = vmatmul.f32.gmra.mxu0 %v2931
      %v3043 = vpop.f32.mrf.mxu0
      %v3044 = vadd.f32 0.0, %v3043
      %3045 = vmatmul.f32.gmra.mxu0 %v2934
      %v3046 = vpop.f32.mrf.mxu0
      %v3047 = vadd.f32 0.0, %v3046
      %3048 = vmatmul.f32.gmra.mxu0 %v2937
      %v3049 = vpop.f32.mrf.mxu0
      %v3050 = vadd.f32 0.0, %v3049
      %3051 = vmatmul.f32.gmra.mxu0 %v2940
      %v3052 = vpop.f32.mrf.mxu0
      %v3053 = vadd.f32 0.0, %v3052
      %3054 = vmatmul.f32.gmra.mxu0 %v2943
      %v3055 = vpop.f32.mrf.mxu0
      %v3056 = vadd.f32 0.0, %v3055
      %3057 = vmatmul.f32.gmra.mxu0 %v2946
      %v3058 = vpop.f32.mrf.mxu0
      %v3059 = vadd.f32 0.0, %v3058
      %3060 = vmatmul.f32.gmra.mxu0 %v2949
      %v3061 = vpop.f32.mrf.mxu0
      %v3062 = vadd.f32 0.0, %v3061
      %3063 = vmatmul.f32.gmra.mxu0 %v2952
      %v3064 = vpop.f32.mrf.mxu0
      %v3065 = vadd.f32 0.0, %v3064
      %3066 = vmatmul.f32.gmra.mxu0 %v2955
      %v3067 = vpop.f32.mrf.mxu0
      %v3068 = vadd.f32 0.0, %v3067
      %3069 = vmatmul.f32.gmra.mxu0 %v2958
      %v3070 = vpop.f32.mrf.mxu0
      %v3071 = vadd.f32 0.0, %v3070
      %3072 = vmatmul.f32.gmra.mxu0 %v2961
      %v3073 = vpop.f32.mrf.mxu0
      %v3074 = vadd.f32 0.0, %v3073
      %3075 = vmatmul.f32.gmra.mxu0 %v2964
      %v3076 = vpop.f32.mrf.mxu0
      %v3077 = vadd.f32 0.0, %v3076
      %3078 = vmatmul.f32.gmra.mxu0 %v2967
      %v3079 = vpop.f32.mrf.mxu0
      %v3080 = vadd.f32 0.0, %v3079
      %3081 = vmatmul.f32.gmra.mxu0 %v2970
      %v3082 = vpop.f32.mrf.mxu0
      %v3083 = vadd.f32 0.0, %v3082
      %3084 = vdwg.mxu0
      %v3085 = vmul.f32 %v2749, %v2749
      %v3086 = vmul.f32 %v2752, %v2752
      %v3087 = vmul.f32 %v2755, %v2755
      %v3088 = vmul.f32 %v2758, %v2758
      %v3089 = vmul.f32 %v2761, %v2761
      %v3090 = vmul.f32 %v2764, %v2764
      %v3091 = vmul.f32 %v2767, %v2767
      %v3092 = vmul.f32 %v2770, %v2770
      %v3093 = vmul.f32 %v2773, %v2773
      %v3094 = vmul.f32 %v2776, %v2776
      %v3095 = vmul.f32 %v2779, %v2779
      %v3096 = vmul.f32 %v2782, %v2782
      %v3097 = vmul.f32 %v2785, %v2785
      %v3098 = vmul.f32 %v2788, %v2788
      %v3099 = vmul.f32 %v2791, %v2791
      %v3100 = vmul.f32 %v2794, %v2794
      %v3101 = vmul.f32 %v2797, %v2797
      %v3102 = vmul.f32 %v2800, %v2800
      %v3103 = vmul.f32 %v2803, %v2803
      %v3104 = vmul.f32 %v2806, %v2806
      %v3105 = vmul.f32 %v2809, %v2809
      %v3106 = vmul.f32 %v2812, %v2812
      %v3107 = vmul.f32 %v2815, %v2815
      %v3108 = vmul.f32 %v2818, %v2818
      %v3109 = vmul.f32 %v2821, %v2821
      %v3110 = vmul.f32 %v2824, %v2824
      %v3111 = vmul.f32 %v2827, %v2827
      %v3112 = vmul.f32 %v2830, %v2830
      %v3113 = vmul.f32 %v2833, %v2833
      %v3114 = vmul.f32 %v2836, %v2836
      %v3115 = vmul.f32 %v2839, %v2839
      %v3116 = vmul.f32 %v2842, %v2842
      %v3117 = vsub.f32 %v2990, %v3085
      %v3118 = vsub.f32 %v2993, %v3086
      %v3119 = vsub.f32 %v2996, %v3087
      %v3120 = vsub.f32 %v2999, %v3088
      %v3121 = vsub.f32 %v3002, %v3089
      %v3122 = vsub.f32 %v3005, %v3090
      %v3123 = vsub.f32 %v3008, %v3091
      %v3124 = vsub.f32 %v3011, %v3092
      %v3125 = vsub.f32 %v3014, %v3093
      %v3126 = vsub.f32 %v3017, %v3094
      %v3127 = vsub.f32 %v3020, %v3095
      %v3128 = vsub.f32 %v3023, %v3096
      %v3129 = vsub.f32 %v3026, %v3097
      %v3130 = vsub.f32 %v3029, %v3098
      %v3131 = vsub.f32 %v3032, %v3099
      %v3132 = vsub.f32 %v3035, %v3100
      %v3133 = vsub.f32 %v3038, %v3101
      %v3134 = vsub.f32 %v3041, %v3102
      %v3135 = vsub.f32 %v3044, %v3103
      %v3136 = vsub.f32 %v3047, %v3104
      %v3137 = vsub.f32 %v3050, %v3105
      %v3138 = vsub.f32 %v3053, %v3106
      %v3139 = vsub.f32 %v3056, %v3107
      %v3140 = vsub.f32 %v3059, %v3108
      %v3141 = vsub.f32 %v3062, %v3109
      %v3142 = vsub.f32 %v3065, %v3110
      %v3143 = vsub.f32 %v3068, %v3111
      %v3144 = vsub.f32 %v3071, %v3112
      %v3145 = vsub.f32 %v3074, %v3113
      %v3146 = vsub.f32 %v3077, %v3114
      %v3147 = vsub.f32 %v3080, %v3115
      %v3148 = vsub.f32 %v3083, %v3116
      %v3149 = vadd.f32 %v3117, 1e-05
      %v3150 = vadd.f32 %v3118, 1e-05
      %v3151 = vadd.f32 %v3119, 1e-05
      %v3152 = vadd.f32 %v3120, 1e-05
      %v3153 = vadd.f32 %v3121, 1e-05
      %v3154 = vadd.f32 %v3122, 1e-05
      %v3155 = vadd.f32 %v3123, 1e-05
      %v3156 = vadd.f32 %v3124, 1e-05
      %v3157 = vadd.f32 %v3125, 1e-05
      %v3158 = vadd.f32 %v3126, 1e-05
      %v3159 = vadd.f32 %v3127, 1e-05
      %v3160 = vadd.f32 %v3128, 1e-05
      %v3161 = vadd.f32 %v3129, 1e-05
      %v3162 = vadd.f32 %v3130, 1e-05
      %v3163 = vadd.f32 %v3131, 1e-05
      %v3164 = vadd.f32 %v3132, 1e-05
      %v3165 = vadd.f32 %v3133, 1e-05
      %v3166 = vadd.f32 %v3134, 1e-05
      %v3167 = vadd.f32 %v3135, 1e-05
      %v3168 = vadd.f32 %v3136, 1e-05
      %v3169 = vadd.f32 %v3137, 1e-05
      %v3170 = vadd.f32 %v3138, 1e-05
      %v3171 = vadd.f32 %v3139, 1e-05
      %v3172 = vadd.f32 %v3140, 1e-05
      %v3173 = vadd.f32 %v3141, 1e-05
      %v3174 = vadd.f32 %v3142, 1e-05
      %v3175 = vadd.f32 %v3143, 1e-05
      %v3176 = vadd.f32 %v3144, 1e-05
      %v3177 = vadd.f32 %v3145, 1e-05
      %v3178 = vadd.f32 %v3146, 1e-05
      %v3179 = vadd.f32 %v3147, 1e-05
      %v3180 = vadd.f32 %v3148, 1e-05
      %v3181 = vrsqrt.pop %v3149
      %v3182 = vmul.f32 %v3181, %v3149
      %v3183 = vmul.f32 %v3182, %v3181
      %v3184 = vmul.f32 0.5, %v3183
      %v3185 = vsub.f32 1.5, %v3184
      %v3186 = vmul.f32 %v3181, %v3185
      %vm3187 = vweird.f32 %v3149
      %vm3188 = vweird.f32 %v3181
      %vm3189 = vmor %vm3187, %vm3188
      %v3190 = vsel %vm3189, %v3181, %v3186
      %v3191 = vrsqrt.pop %v3150
      %v3192 = vmul.f32 %v3191, %v3150
      %v3193 = vmul.f32 %v3192, %v3191
      %v3194 = vmul.f32 0.5, %v3193
      %v3195 = vsub.f32 1.5, %v3194
      %v3196 = vmul.f32 %v3191, %v3195
      %vm3197 = vweird.f32 %v3150
      %vm3198 = vweird.f32 %v3191
      %vm3199 = vmor %vm3197, %vm3198
      %v3200 = vsel %vm3199, %v3191, %v3196
      %v3201 = vrsqrt.pop %v3151
      %v3202 = vmul.f32 %v3201, %v3151
      %v3203 = vmul.f32 %v3202, %v3201
      %v3204 = vmul.f32 0.5, %v3203
      %v3205 = vsub.f32 1.5, %v3204
      %v3206 = vmul.f32 %v3201, %v3205
      %vm3207 = vweird.f32 %v3151
      %vm3208 = vweird.f32 %v3201
      %vm3209 = vmor %vm3207, %vm3208
      %v3210 = vsel %vm3209, %v3201, %v3206
      %v3211 = vrsqrt.pop %v3152
      %v3212 = vmul.f32 %v3211, %v3152
      %v3213 = vmul.f32 %v3212, %v3211
      %v3214 = vmul.f32 0.5, %v3213
      %v3215 = vsub.f32 1.5, %v3214
      %v3216 = vmul.f32 %v3211, %v3215
      %vm3217 = vweird.f32 %v3152
      %vm3218 = vweird.f32 %v3211
      %vm3219 = vmor %vm3217, %vm3218
      %v3220 = vsel %vm3219, %v3211, %v3216
      %v3221 = vrsqrt.pop %v3153
      %v3222 = vmul.f32 %v3221, %v3153
      %v3223 = vmul.f32 %v3222, %v3221
      %v3224 = vmul.f32 0.5, %v3223
      %v3225 = vsub.f32 1.5, %v3224
      %v3226 = vmul.f32 %v3221, %v3225
      %vm3227 = vweird.f32 %v3153
      %vm3228 = vweird.f32 %v3221
      %vm3229 = vmor %vm3227, %vm3228
      %v3230 = vsel %vm3229, %v3221, %v3226
      %v3231 = vrsqrt.pop %v3154
      %v3232 = vmul.f32 %v3231, %v3154
      %v3233 = vmul.f32 %v3232, %v3231
      %v3234 = vmul.f32 0.5, %v3233
      %v3235 = vsub.f32 1.5, %v3234
      %v3236 = vmul.f32 %v3231, %v3235
      %vm3237 = vweird.f32 %v3154
      %vm3238 = vweird.f32 %v3231
      %vm3239 = vmor %vm3237, %vm3238
      %v3240 = vsel %vm3239, %v3231, %v3236
      %v3241 = vrsqrt.pop %v3155
      %v3242 = vmul.f32 %v3241, %v3155
      %v3243 = vmul.f32 %v3242, %v3241
      %v3244 = vmul.f32 0.5, %v3243
      %v3245 = vsub.f32 1.5, %v3244
      %v3246 = vmul.f32 %v3241, %v3245
      %vm3247 = vweird.f32 %v3155
      %vm3248 = vweird.f32 %v3241
      %vm3249 = vmor %vm3247, %vm3248
      %v3250 = vsel %vm3249, %v3241, %v3246
      %v3251 = vrsqrt.pop %v3156
      %v3252 = vmul.f32 %v3251, %v3156
      %v3253 = vmul.f32 %v3252, %v3251
      %v3254 = vmul.f32 0.5, %v3253
      %v3255 = vsub.f32 1.5, %v3254
      %v3256 = vmul.f32 %v3251, %v3255
      %vm3257 = vweird.f32 %v3156
      %vm3258 = vweird.f32 %v3251
      %vm3259 = vmor %vm3257, %vm3258
      %v3260 = vsel %vm3259, %v3251, %v3256
      %v3261 = vrsqrt.pop %v3157
      %v3262 = vmul.f32 %v3261, %v3157
      %v3263 = vmul.f32 %v3262, %v3261
      %v3264 = vmul.f32 0.5, %v3263
      %v3265 = vsub.f32 1.5, %v3264
      %v3266 = vmul.f32 %v3261, %v3265
      %vm3267 = vweird.f32 %v3157
      %vm3268 = vweird.f32 %v3261
      %vm3269 = vmor %vm3267, %vm3268
      %v3270 = vsel %vm3269, %v3261, %v3266
      %v3271 = vrsqrt.pop %v3158
      %v3272 = vmul.f32 %v3271, %v3158
      %v3273 = vmul.f32 %v3272, %v3271
      %v3274 = vmul.f32 0.5, %v3273
      %v3275 = vsub.f32 1.5, %v3274
      %v3276 = vmul.f32 %v3271, %v3275
      %vm3277 = vweird.f32 %v3158
      %vm3278 = vweird.f32 %v3271
      %vm3279 = vmor %vm3277, %vm3278
      %v3280 = vsel %vm3279, %v3271, %v3276
      %v3281 = vrsqrt.pop %v3159
      %v3282 = vmul.f32 %v3281, %v3159
      %v3283 = vmul.f32 %v3282, %v3281
      %v3284 = vmul.f32 0.5, %v3283
      %v3285 = vsub.f32 1.5, %v3284
      %v3286 = vmul.f32 %v3281, %v3285
      %vm3287 = vweird.f32 %v3159
      %vm3288 = vweird.f32 %v3281
      %vm3289 = vmor %vm3287, %vm3288
      %v3290 = vsel %vm3289, %v3281, %v3286
      %v3291 = vrsqrt.pop %v3160
      %v3292 = vmul.f32 %v3291, %v3160
      %v3293 = vmul.f32 %v3292, %v3291
      %v3294 = vmul.f32 0.5, %v3293
      %v3295 = vsub.f32 1.5, %v3294
      %v3296 = vmul.f32 %v3291, %v3295
      %vm3297 = vweird.f32 %v3160
      %vm3298 = vweird.f32 %v3291
      %vm3299 = vmor %vm3297, %vm3298
      %v3300 = vsel %vm3299, %v3291, %v3296
      %v3301 = vrsqrt.pop %v3161
      %v3302 = vmul.f32 %v3301, %v3161
      %v3303 = vmul.f32 %v3302, %v3301
      %v3304 = vmul.f32 0.5, %v3303
      %v3305 = vsub.f32 1.5, %v3304
      %v3306 = vmul.f32 %v3301, %v3305
      %vm3307 = vweird.f32 %v3161
      %vm3308 = vweird.f32 %v3301
      %vm3309 = vmor %vm3307, %vm3308
      %v3310 = vsel %vm3309, %v3301, %v3306
      %v3311 = vrsqrt.pop %v3162
      %v3312 = vmul.f32 %v3311, %v3162
      %v3313 = vmul.f32 %v3312, %v3311
      %v3314 = vmul.f32 0.5, %v3313
      %v3315 = vsub.f32 1.5, %v3314
      %v3316 = vmul.f32 %v3311, %v3315
      %vm3317 = vweird.f32 %v3162
      %vm3318 = vweird.f32 %v3311
      %vm3319 = vmor %vm3317, %vm3318
      %v3320 = vsel %vm3319, %v3311, %v3316
      %v3321 = vrsqrt.pop %v3163
      %v3322 = vmul.f32 %v3321, %v3163
      %v3323 = vmul.f32 %v3322, %v3321
      %v3324 = vmul.f32 0.5, %v3323
      %v3325 = vsub.f32 1.5, %v3324
      %v3326 = vmul.f32 %v3321, %v3325
      %vm3327 = vweird.f32 %v3163
      %vm3328 = vweird.f32 %v3321
      %vm3329 = vmor %vm3327, %vm3328
      %v3330 = vsel %vm3329, %v3321, %v3326
      %v3331 = vrsqrt.pop %v3164
      %v3332 = vmul.f32 %v3331, %v3164
      %v3333 = vmul.f32 %v3332, %v3331
      %v3334 = vmul.f32 0.5, %v3333
      %v3335 = vsub.f32 1.5, %v3334
      %v3336 = vmul.f32 %v3331, %v3335
      %vm3337 = vweird.f32 %v3164
      %vm3338 = vweird.f32 %v3331
      %vm3339 = vmor %vm3337, %vm3338
      %v3340 = vsel %vm3339, %v3331, %v3336
      %v3341 = vrsqrt.pop %v3165
      %v3342 = vmul.f32 %v3341, %v3165
      %v3343 = vmul.f32 %v3342, %v3341
      %v3344 = vmul.f32 0.5, %v3343
      %v3345 = vsub.f32 1.5, %v3344
      %v3346 = vmul.f32 %v3341, %v3345
      %vm3347 = vweird.f32 %v3165
      %vm3348 = vweird.f32 %v3341
      %vm3349 = vmor %vm3347, %vm3348
      %v3350 = vsel %vm3349, %v3341, %v3346
      %v3351 = vrsqrt.pop %v3166
      %v3352 = vmul.f32 %v3351, %v3166
      %v3353 = vmul.f32 %v3352, %v3351
      %v3354 = vmul.f32 0.5, %v3353
      %v3355 = vsub.f32 1.5, %v3354
      %v3356 = vmul.f32 %v3351, %v3355
      %vm3357 = vweird.f32 %v3166
      %vm3358 = vweird.f32 %v3351
      %vm3359 = vmor %vm3357, %vm3358
      %v3360 = vsel %vm3359, %v3351, %v3356
      %v3361 = vrsqrt.pop %v3167
      %v3362 = vmul.f32 %v3361, %v3167
      %v3363 = vmul.f32 %v3362, %v3361
      %v3364 = vmul.f32 0.5, %v3363
      %v3365 = vsub.f32 1.5, %v3364
      %v3366 = vmul.f32 %v3361, %v3365
      %vm3367 = vweird.f32 %v3167
      %vm3368 = vweird.f32 %v3361
      %vm3369 = vmor %vm3367, %vm3368
      %v3370 = vsel %vm3369, %v3361, %v3366
      %v3371 = vrsqrt.pop %v3168
      %v3372 = vmul.f32 %v3371, %v3168
      %v3373 = vmul.f32 %v3372, %v3371
      %v3374 = vmul.f32 0.5, %v3373
      %v3375 = vsub.f32 1.5, %v3374
      %v3376 = vmul.f32 %v3371, %v3375
      %vm3377 = vweird.f32 %v3168
      %vm3378 = vweird.f32 %v3371
      %vm3379 = vmor %vm3377, %vm3378
      %v3380 = vsel %vm3379, %v3371, %v3376
      %v3381 = vrsqrt.pop %v3169
      %v3382 = vmul.f32 %v3381, %v3169
      %v3383 = vmul.f32 %v3382, %v3381
      %v3384 = vmul.f32 0.5, %v3383
      %v3385 = vsub.f32 1.5, %v3384
      %v3386 = vmul.f32 %v3381, %v3385
      %vm3387 = vweird.f32 %v3169
      %vm3388 = vweird.f32 %v3381
      %vm3389 = vmor %vm3387, %vm3388
      %v3390 = vsel %vm3389, %v3381, %v3386
      %v3391 = vrsqrt.pop %v3170
      %v3392 = vmul.f32 %v3391, %v3170
      %v3393 = vmul.f32 %v3392, %v3391
      %v3394 = vmul.f32 0.5, %v3393
      %v3395 = vsub.f32 1.5, %v3394
      %v3396 = vmul.f32 %v3391, %v3395
      %vm3397 = vweird.f32 %v3170
      %vm3398 = vweird.f32 %v3391
      %vm3399 = vmor %vm3397, %vm3398
      %v3400 = vsel %vm3399, %v3391, %v3396
      %v3401 = vrsqrt.pop %v3171
      %v3402 = vmul.f32 %v3401, %v3171
      %v3403 = vmul.f32 %v3402, %v3401
      %v3404 = vmul.f32 0.5, %v3403
      %v3405 = vsub.f32 1.5, %v3404
      %v3406 = vmul.f32 %v3401, %v3405
      %vm3407 = vweird.f32 %v3171
      %vm3408 = vweird.f32 %v3401
      %vm3409 = vmor %vm3407, %vm3408
      %v3410 = vsel %vm3409, %v3401, %v3406
      %v3411 = vrsqrt.pop %v3172
      %v3412 = vmul.f32 %v3411, %v3172
      %v3413 = vmul.f32 %v3412, %v3411
      %v3414 = vmul.f32 0.5, %v3413
      %v3415 = vsub.f32 1.5, %v3414
      %v3416 = vmul.f32 %v3411, %v3415
      %vm3417 = vweird.f32 %v3172
      %vm3418 = vweird.f32 %v3411
      %vm3419 = vmor %vm3417, %vm3418
      %v3420 = vsel %vm3419, %v3411, %v3416
      %v3421 = vrsqrt.pop %v3173
      %v3422 = vmul.f32 %v3421, %v3173
      %v3423 = vmul.f32 %v3422, %v3421
      %v3424 = vmul.f32 0.5, %v3423
      %v3425 = vsub.f32 1.5, %v3424
      %v3426 = vmul.f32 %v3421, %v3425
      %vm3427 = vweird.f32 %v3173
      %vm3428 = vweird.f32 %v3421
      %vm3429 = vmor %vm3427, %vm3428
      %v3430 = vsel %vm3429, %v3421, %v3426
      %v3431 = vrsqrt.pop %v3174
      %v3432 = vmul.f32 %v3431, %v3174
      %v3433 = vmul.f32 %v3432, %v3431
      %v3434 = vmul.f32 0.5, %v3433
      %v3435 = vsub.f32 1.5, %v3434
      %v3436 = vmul.f32 %v3431, %v3435
      %vm3437 = vweird.f32 %v3174
      %vm3438 = vweird.f32 %v3431
      %vm3439 = vmor %vm3437, %vm3438
      %v3440 = vsel %vm3439, %v3431, %v3436
      %v3441 = vrsqrt.pop %v3175
      %v3442 = vmul.f32 %v3441, %v3175
      %v3443 = vmul.f32 %v3442, %v3441
      %v3444 = vmul.f32 0.5, %v3443
      %v3445 = vsub.f32 1.5, %v3444
      %v3446 = vmul.f32 %v3441, %v3445
      %vm3447 = vweird.f32 %v3175
      %vm3448 = vweird.f32 %v3441
      %vm3449 = vmor %vm3447, %vm3448
      %v3450 = vsel %vm3449, %v3441, %v3446
      %v3451 = vrsqrt.pop %v3176
      %v3452 = vmul.f32 %v3451, %v3176
      %v3453 = vmul.f32 %v3452, %v3451
      %v3454 = vmul.f32 0.5, %v3453
      %v3455 = vsub.f32 1.5, %v3454
      %v3456 = vmul.f32 %v3451, %v3455
      %vm3457 = vweird.f32 %v3176
      %vm3458 = vweird.f32 %v3451
      %vm3459 = vmor %vm3457, %vm3458
      %v3460 = vsel %vm3459, %v3451, %v3456
      %v3461 = vrsqrt.pop %v3177
      %v3462 = vmul.f32 %v3461, %v3177
      %v3463 = vmul.f32 %v3462, %v3461
      %v3464 = vmul.f32 0.5, %v3463
      %v3465 = vsub.f32 1.5, %v3464
      %v3466 = vmul.f32 %v3461, %v3465
      %vm3467 = vweird.f32 %v3177
      %vm3468 = vweird.f32 %v3461
      %vm3469 = vmor %vm3467, %vm3468
      %v3470 = vsel %vm3469, %v3461, %v3466
      %v3471 = vrsqrt.pop %v3178
      %v3472 = vmul.f32 %v3471, %v3178
      %v3473 = vmul.f32 %v3472, %v3471
      %v3474 = vmul.f32 0.5, %v3473
      %v3475 = vsub.f32 1.5, %v3474
      %v3476 = vmul.f32 %v3471, %v3475
      %vm3477 = vweird.f32 %v3178
      %vm3478 = vweird.f32 %v3471
      %vm3479 = vmor %vm3477, %vm3478
      %v3480 = vsel %vm3479, %v3471, %v3476
      %v3481 = vrsqrt.pop %v3179
      %v3482 = vmul.f32 %v3481, %v3179
      %v3483 = vmul.f32 %v3482, %v3481
      %v3484 = vmul.f32 0.5, %v3483
      %v3485 = vsub.f32 1.5, %v3484
      %v3486 = vmul.f32 %v3481, %v3485
      %vm3487 = vweird.f32 %v3179
      %vm3488 = vweird.f32 %v3481
      %vm3489 = vmor %vm3487, %vm3488
      %v3490 = vsel %vm3489, %v3481, %v3486
      %v3491 = vrsqrt.pop %v3180
      %v3492 = vmul.f32 %v3491, %v3180
      %v3493 = vmul.f32 %v3492, %v3491
      %v3494 = vmul.f32 0.5, %v3493
      %v3495 = vsub.f32 1.5, %v3494
      %v3496 = vmul.f32 %v3491, %v3495
      %vm3497 = vweird.f32 %v3180
      %vm3498 = vweird.f32 %v3491
      %vm3499 = vmor %vm3497, %vm3498
      %v3500 = vsel %vm3499, %v3491, %v3496
      %v3501 = vld [vmem:[%s15] sm:$0xf]
      %v3503 = vsel %vm2054, %v2749, 0
      %v3506 = vsel %vm2054, %v2752, 0
      %v3509 = vsel %vm2054, %v2755, 0
      %v3512 = vsel %vm2054, %v2758, 0
      %v3515 = vsel %vm2054, %v2761, 0
      %v3518 = vsel %vm2054, %v2764, 0
      %v3521 = vsel %vm2054, %v2767, 0
      %v3524 = vsel %vm2054, %v2770, 0
      %v3527 = vsel %vm2054, %v2773, 0
      %v3530 = vsel %vm2054, %v2776, 0
      %v3533 = vsel %vm2054, %v2779, 0
      %v3536 = vsel %vm2054, %v2782, 0
      %v3539 = vsel %vm2054, %v2785, 0
      %v3542 = vsel %vm2054, %v2788, 0
      %v3545 = vsel %vm2054, %v2791, 0
      %v3548 = vsel %vm2054, %v2794, 0
      %v3551 = vsel %vm2054, %v2797, 0
      %v3554 = vsel %vm2054, %v2800, 0
      %v3557 = vsel %vm2054, %v2803, 0
      %v3560 = vsel %vm2054, %v2806, 0
      %v3563 = vsel %vm2054, %v2809, 0
      %v3566 = vsel %vm2054, %v2812, 0
      %v3569 = vsel %vm2054, %v2815, 0
      %v3572 = vsel %vm2054, %v2818, 0
      %v3575 = vsel %vm2054, %v2821, 0
      %v3578 = vsel %vm2054, %v2824, 0
      %v3581 = vsel %vm2054, %v2827, 0
      %v3584 = vsel %vm2054, %v2830, 0
      %v3587 = vsel %vm2054, %v2833, 0
      %v3590 = vsel %vm2054, %v2836, 0
      %v3593 = vsel %vm2054, %v2839, 0
      %v3596 = vsel %vm2054, %v2842, 0
      %v3599 = vsel %vm2151, %v3501, 0
      %3601 = vmatpush.msra.mxu0 0.0
      %3602 = vmatpush.msra.mxu0 0.0
      %3603 = vmatpush.msra.mxu0 0.0
      %3604 = vmatpush.msra.mxu0 0.0
      %3605 = vmatpush.msra.mxu0 0.0
      %3606 = vmatpush.msra.mxu0 0.0
      %3607 = vmatpush.msra.mxu0 0.0
      %3608 = vmatpush.msra.mxu0 0.0
      %3609 = vmatpush.msra.mxu0 0.0
      %3610 = vmatpush.msra.mxu0 0.0
      %3611 = vmatpush.msra.mxu0 0.0
      %3612 = vmatpush.msra.mxu0 0.0
      %3613 = vmatpush.msra.mxu0 0.0
      %3614 = vmatpush.msra.mxu0 0.0
      %3615 = vmatpush.msra.mxu0 0.0
      %3616 = vmatpush.msra.mxu0 %v3599
      %3617 = vmatmul.f32.gmra.mxu0 %v3503
      %v3618 = vpop.f32.mrf.mxu0
      %v3619 = vadd.f32 0.0, %v3618
      %3620 = vmatmul.f32.gmra.mxu0 %v3506
      %v3621 = vpop.f32.mrf.mxu0
      %v3622 = vadd.f32 0.0, %v3621
      %3623 = vmatmul.f32.gmra.mxu0 %v3509
      %v3624 = vpop.f32.mrf.mxu0
      %v3625 = vadd.f32 0.0, %v3624
      %3626 = vmatmul.f32.gmra.mxu0 %v3512
      %v3627 = vpop.f32.mrf.mxu0
      %v3628 = vadd.f32 0.0, %v3627
      %3629 = vmatmul.f32.gmra.mxu0 %v3515
      %v3630 = vpop.f32.mrf.mxu0
      %v3631 = vadd.f32 0.0, %v3630
      %3632 = vmatmul.f32.gmra.mxu0 %v3518
      %v3633 = vpop.f32.mrf.mxu0
      %v3634 = vadd.f32 0.0, %v3633
      %3635 = vmatmul.f32.gmra.mxu0 %v3521
      %v3636 = vpop.f32.mrf.mxu0
      %v3637 = vadd.f32 0.0, %v3636
      %3638 = vmatmul.f32.gmra.mxu0 %v3524
      %v3639 = vpop.f32.mrf.mxu0
      %v3640 = vadd.f32 0.0, %v3639
      %3641 = vmatmul.f32.gmra.mxu0 %v3527
      %v3642 = vpop.f32.mrf.mxu0
      %v3643 = vadd.f32 0.0, %v3642
      %3644 = vmatmul.f32.gmra.mxu0 %v3530
      %v3645 = vpop.f32.mrf.mxu0
      %v3646 = vadd.f32 0.0, %v3645
      %3647 = vmatmul.f32.gmra.mxu0 %v3533
      %v3648 = vpop.f32.mrf.mxu0
      %v3649 = vadd.f32 0.0, %v3648
      %3650 = vmatmul.f32.gmra.mxu0 %v3536
      %v3651 = vpop.f32.mrf.mxu0
      %v3652 = vadd.f32 0.0, %v3651
      %3653 = vmatmul.f32.gmra.mxu0 %v3539
      %v3654 = vpop.f32.mrf.mxu0
      %v3655 = vadd.f32 0.0, %v3654
      %3656 = vmatmul.f32.gmra.mxu0 %v3542
      %v3657 = vpop.f32.mrf.mxu0
      %v3658 = vadd.f32 0.0, %v3657
      %3659 = vmatmul.f32.gmra.mxu0 %v3545
      %v3660 = vpop.f32.mrf.mxu0
      %v3661 = vadd.f32 0.0, %v3660
      %3662 = vmatmul.f32.gmra.mxu0 %v3548
      %v3663 = vpop.f32.mrf.mxu0
      %v3664 = vadd.f32 0.0, %v3663
      %3665 = vmatmul.f32.gmra.mxu0 %v3551
      %v3666 = vpop.f32.mrf.mxu0
      %v3667 = vadd.f32 0.0, %v3666
      %3668 = vmatmul.f32.gmra.mxu0 %v3554
      %v3669 = vpop.f32.mrf.mxu0
      %v3670 = vadd.f32 0.0, %v3669
      %3671 = vmatmul.f32.gmra.mxu0 %v3557
      %v3672 = vpop.f32.mrf.mxu0
      %v3673 = vadd.f32 0.0, %v3672
      %3674 = vmatmul.f32.gmra.mxu0 %v3560
      %v3675 = vpop.f32.mrf.mxu0
      %v3676 = vadd.f32 0.0, %v3675
      %3677 = vmatmul.f32.gmra.mxu0 %v3563
      %v3678 = vpop.f32.mrf.mxu0
      %v3679 = vadd.f32 0.0, %v3678
      %3680 = vmatmul.f32.gmra.mxu0 %v3566
      %v3681 = vpop.f32.mrf.mxu0
      %v3682 = vadd.f32 0.0, %v3681
      %3683 = vmatmul.f32.gmra.mxu0 %v3569
      %v3684 = vpop.f32.mrf.mxu0
      %v3685 = vadd.f32 0.0, %v3684
      %3686 = vmatmul.f32.gmra.mxu0 %v3572
      %v3687 = vpop.f32.mrf.mxu0
      %v3688 = vadd.f32 0.0, %v3687
      %3689 = vmatmul.f32.gmra.mxu0 %v3575
      %v3690 = vpop.f32.mrf.mxu0
      %v3691 = vadd.f32 0.0, %v3690
      %3692 = vmatmul.f32.gmra.mxu0 %v3578
      %v3693 = vpop.f32.mrf.mxu0
      %v3694 = vadd.f32 0.0, %v3693
      %3695 = vmatmul.f32.gmra.mxu0 %v3581
      %v3696 = vpop.f32.mrf.mxu0
      %v3697 = vadd.f32 0.0, %v3696
      %3698 = vmatmul.f32.gmra.mxu0 %v3584
      %v3699 = vpop.f32.mrf.mxu0
      %v3700 = vadd.f32 0.0, %v3699
      %3701 = vmatmul.f32.gmra.mxu0 %v3587
      %v3702 = vpop.f32.mrf.mxu0
      %v3703 = vadd.f32 0.0, %v3702
      %3704 = vmatmul.f32.gmra.mxu0 %v3590
      %v3705 = vpop.f32.mrf.mxu0
      %v3706 = vadd.f32 0.0, %v3705
      %3707 = vmatmul.f32.gmra.mxu0 %v3593
      %v3708 = vpop.f32.mrf.mxu0
      %v3709 = vadd.f32 0.0, %v3708
      %3710 = vmatmul.f32.gmra.mxu0 %v3596
      %v3711 = vpop.f32.mrf.mxu0
      %v3712 = vadd.f32 0.0, %v3711
      %3713 = vdwg.mxu0
      %v3715 = vsel %vm2054, %v3190, 0
      %v3718 = vsel %vm2054, %v3200, 0
      %v3721 = vsel %vm2054, %v3210, 0
      %v3724 = vsel %vm2054, %v3220, 0
      %v3727 = vsel %vm2054, %v3230, 0
      %v3730 = vsel %vm2054, %v3240, 0
      %v3733 = vsel %vm2054, %v3250, 0
      %v3736 = vsel %vm2054, %v3260, 0
      %v3739 = vsel %vm2054, %v3270, 0
      %v3742 = vsel %vm2054, %v3280, 0
      %v3745 = vsel %vm2054, %v3290, 0
      %v3748 = vsel %vm2054, %v3300, 0
      %v3751 = vsel %vm2054, %v3310, 0
      %v3754 = vsel %vm2054, %v3320, 0
      %v3757 = vsel %vm2054, %v3330, 0
      %v3760 = vsel %vm2054, %v3340, 0
      %v3763 = vsel %vm2054, %v3350, 0
      %v3766 = vsel %vm2054, %v3360, 0
      %v3769 = vsel %vm2054, %v3370, 0
      %v3772 = vsel %vm2054, %v3380, 0
      %v3775 = vsel %vm2054, %v3390, 0
      %v3778 = vsel %vm2054, %v3400, 0
      %v3781 = vsel %vm2054, %v3410, 0
      %v3784 = vsel %vm2054, %v3420, 0
      %v3787 = vsel %vm2054, %v3430, 0
      %v3790 = vsel %vm2054, %v3440, 0
      %v3793 = vsel %vm2054, %v3450, 0
      %v3796 = vsel %vm2054, %v3460, 0
      %v3799 = vsel %vm2054, %v3470, 0
      %v3802 = vsel %vm2054, %v3480, 0
      %v3805 = vsel %vm2054, %v3490, 0
      %v3808 = vsel %vm2054, %v3500, 0
      %3810 = vmatpush.msra.mxu0 0.0
      %3811 = vmatpush.msra.mxu0 0.0
      %3812 = vmatpush.msra.mxu0 0.0
      %3813 = vmatpush.msra.mxu0 0.0
      %3814 = vmatpush.msra.mxu0 0.0
      %3815 = vmatpush.msra.mxu0 0.0
      %3816 = vmatpush.msra.mxu0 0.0
      %3817 = vmatpush.msra.mxu0 0.0
      %3818 = vmatpush.msra.mxu0 0.0
      %3819 = vmatpush.msra.mxu0 0.0
      %3820 = vmatpush.msra.mxu0 0.0
      %3821 = vmatpush.msra.mxu0 0.0
      %3822 = vmatpush.msra.mxu0 0.0
      %3823 = vmatpush.msra.mxu0 0.0
      %3824 = vmatpush.msra.mxu0 0.0
      %3825 = vmatpush.msra.mxu0 %v3599
      %3826 = vmatmul.f32.gmra.mxu0 %v3715
      %v3827 = vpop.f32.mrf.mxu0
      %v3828 = vadd.f32 0.0, %v3827
      %3829 = vmatmul.f32.gmra.mxu0 %v3718
      %v3830 = vpop.f32.mrf.mxu0
      %v3831 = vadd.f32 0.0, %v3830
      %3832 = vmatmul.f32.gmra.mxu0 %v3721
      %v3833 = vpop.f32.mrf.mxu0
      %v3834 = vadd.f32 0.0, %v3833
      %3835 = vmatmul.f32.gmra.mxu0 %v3724
      %v3836 = vpop.f32.mrf.mxu0
      %v3837 = vadd.f32 0.0, %v3836
      %3838 = vmatmul.f32.gmra.mxu0 %v3727
      %v3839 = vpop.f32.mrf.mxu0
      %v3840 = vadd.f32 0.0, %v3839
      %3841 = vmatmul.f32.gmra.mxu0 %v3730
      %v3842 = vpop.f32.mrf.mxu0
      %v3843 = vadd.f32 0.0, %v3842
      %3844 = vmatmul.f32.gmra.mxu0 %v3733
      %v3845 = vpop.f32.mrf.mxu0
      %v3846 = vadd.f32 0.0, %v3845
      %3847 = vmatmul.f32.gmra.mxu0 %v3736
      %v3848 = vpop.f32.mrf.mxu0
      %v3849 = vadd.f32 0.0, %v3848
      %3850 = vmatmul.f32.gmra.mxu0 %v3739
      %v3851 = vpop.f32.mrf.mxu0
      %v3852 = vadd.f32 0.0, %v3851
      %3853 = vmatmul.f32.gmra.mxu0 %v3742
      %v3854 = vpop.f32.mrf.mxu0
      %v3855 = vadd.f32 0.0, %v3854
      %3856 = vmatmul.f32.gmra.mxu0 %v3745
      %v3857 = vpop.f32.mrf.mxu0
      %v3858 = vadd.f32 0.0, %v3857
      %3859 = vmatmul.f32.gmra.mxu0 %v3748
      %v3860 = vpop.f32.mrf.mxu0
      %v3861 = vadd.f32 0.0, %v3860
      %3862 = vmatmul.f32.gmra.mxu0 %v3751
      %v3863 = vpop.f32.mrf.mxu0
      %v3864 = vadd.f32 0.0, %v3863
      %3865 = vmatmul.f32.gmra.mxu0 %v3754
      %v3866 = vpop.f32.mrf.mxu0
      %v3867 = vadd.f32 0.0, %v3866
      %3868 = vmatmul.f32.gmra.mxu0 %v3757
      %v3869 = vpop.f32.mrf.mxu0
      %v3870 = vadd.f32 0.0, %v3869
      %3871 = vmatmul.f32.gmra.mxu0 %v3760
      %v3872 = vpop.f32.mrf.mxu0
      %v3873 = vadd.f32 0.0, %v3872
      %3874 = vmatmul.f32.gmra.mxu0 %v3763
      %v3875 = vpop.f32.mrf.mxu0
      %v3876 = vadd.f32 0.0, %v3875
      %3877 = vmatmul.f32.gmra.mxu0 %v3766
      %v3878 = vpop.f32.mrf.mxu0
      %v3879 = vadd.f32 0.0, %v3878
      %3880 = vmatmul.f32.gmra.mxu0 %v3769
      %v3881 = vpop.f32.mrf.mxu0
      %v3882 = vadd.f32 0.0, %v3881
      %3883 = vmatmul.f32.gmra.mxu0 %v3772
      %v3884 = vpop.f32.mrf.mxu0
      %v3885 = vadd.f32 0.0, %v3884
      %3886 = vmatmul.f32.gmra.mxu0 %v3775
      %v3887 = vpop.f32.mrf.mxu0
      %v3888 = vadd.f32 0.0, %v3887
      %3889 = vmatmul.f32.gmra.mxu0 %v3778
      %v3890 = vpop.f32.mrf.mxu0
      %v3891 = vadd.f32 0.0, %v3890
      %3892 = vmatmul.f32.gmra.mxu0 %v3781
      %v3893 = vpop.f32.mrf.mxu0
      %v3894 = vadd.f32 0.0, %v3893
      %3895 = vmatmul.f32.gmra.mxu0 %v3784
      %v3896 = vpop.f32.mrf.mxu0
      %v3897 = vadd.f32 0.0, %v3896
      %3898 = vmatmul.f32.gmra.mxu0 %v3787
      %v3899 = vpop.f32.mrf.mxu0
      %v3900 = vadd.f32 0.0, %v3899
      %3901 = vmatmul.f32.gmra.mxu0 %v3790
      %v3902 = vpop.f32.mrf.mxu0
      %v3903 = vadd.f32 0.0, %v3902
      %3904 = vmatmul.f32.gmra.mxu0 %v3793
      %v3905 = vpop.f32.mrf.mxu0
      %v3906 = vadd.f32 0.0, %v3905
      %3907 = vmatmul.f32.gmra.mxu0 %v3796
      %v3908 = vpop.f32.mrf.mxu0
      %v3909 = vadd.f32 0.0, %v3908
      %3910 = vmatmul.f32.gmra.mxu0 %v3799
      %v3911 = vpop.f32.mrf.mxu0
      %v3912 = vadd.f32 0.0, %v3911
      %3913 = vmatmul.f32.gmra.mxu0 %v3802
      %v3914 = vpop.f32.mrf.mxu0
      %v3915 = vadd.f32 0.0, %v3914
      %3916 = vmatmul.f32.gmra.mxu0 %v3805
      %v3917 = vpop.f32.mrf.mxu0
      %v3918 = vadd.f32 0.0, %v3917
      %3919 = vmatmul.f32.gmra.mxu0 %v3808
      %v3920 = vpop.f32.mrf.mxu0
      %v3921 = vadd.f32 0.0, %v3920
      %3922 = vdwg.mxu0
      %v3923 = vsub.f32 %v2552, %v3619
      %v3924 = vsub.f32 %v2554, %v3622
      %v3925 = vsub.f32 %v2557, %v3625
      %v3926 = vsub.f32 %v2559, %v3628
      %v3927 = vsub.f32 %v2562, %v3631
      %v3928 = vsub.f32 %v2564, %v3634
      %v3929 = vsub.f32 %v2567, %v3637
      %v3930 = vsub.f32 %v2569, %v3640
      %v3931 = vsub.f32 %v2572, %v3643
      %v3932 = vsub.f32 %v2574, %v3646
      %v3933 = vsub.f32 %v2577, %v3649
      %v3934 = vsub.f32 %v2579, %v3652
      %v3935 = vsub.f32 %v2582, %v3655
      %v3936 = vsub.f32 %v2584, %v3658
      %v3937 = vsub.f32 %v2587, %v3661
      %v3938 = vsub.f32 %v2589, %v3664
      %v3939 = vsub.f32 %v2592, %v3667
      %v3940 = vsub.f32 %v2594, %v3670
      %v3941 = vsub.f32 %v2597, %v3673
      %v3942 = vsub.f32 %v2599, %v3676
      %v3943 = vsub.f32 %v2602, %v3679
      %v3944 = vsub.f32 %v2604, %v3682
      %v3945 = vsub.f32 %v2607, %v3685
      %v3946 = vsub.f32 %v2609, %v3688
      %v3947 = vsub.f32 %v2612, %v3691
      %v3948 = vsub.f32 %v2614, %v3694
      %v3949 = vsub.f32 %v2617, %v3697
      %v3950 = vsub.f32 %v2619, %v3700
      %v3951 = vsub.f32 %v2622, %v3703
      %v3952 = vsub.f32 %v2624, %v3706
      %v3953 = vsub.f32 %v2627, %v3709
      %v3954 = vsub.f32 %v2629, %v3712
      %v3955 = vmul.f32 %v3923, %v3828
      %v3956 = vmul.f32 %v3924, %v3831
      %v3957 = vmul.f32 %v3925, %v3834
      %v3958 = vmul.f32 %v3926, %v3837
      %v3959 = vmul.f32 %v3927, %v3840
      %v3960 = vmul.f32 %v3928, %v3843
      %v3961 = vmul.f32 %v3929, %v3846
      %v3962 = vmul.f32 %v3930, %v3849
      %v3963 = vmul.f32 %v3931, %v3852
      %v3964 = vmul.f32 %v3932, %v3855
      %v3965 = vmul.f32 %v3933, %v3858
      %v3966 = vmul.f32 %v3934, %v3861
      %v3967 = vmul.f32 %v3935, %v3864
      %v3968 = vmul.f32 %v3936, %v3867
      %v3969 = vmul.f32 %v3937, %v3870
      %v3970 = vmul.f32 %v3938, %v3873
      %v3971 = vmul.f32 %v3939, %v3876
      %v3972 = vmul.f32 %v3940, %v3879
      %v3973 = vmul.f32 %v3941, %v3882
      %v3974 = vmul.f32 %v3942, %v3885
      %v3975 = vmul.f32 %v3943, %v3888
      %v3976 = vmul.f32 %v3944, %v3891
      %v3977 = vmul.f32 %v3945, %v3894
      %v3978 = vmul.f32 %v3946, %v3897
      %v3979 = vmul.f32 %v3947, %v3900
      %v3980 = vmul.f32 %v3948, %v3903
      %v3981 = vmul.f32 %v3949, %v3906
      %v3982 = vmul.f32 %v3950, %v3909
      %v3983 = vmul.f32 %v3951, %v3912
      %v3984 = vmul.f32 %v3952, %v3915
      %v3985 = vmul.f32 %v3953, %v3918
      %v3986 = vmul.f32 %v3954, %v3921
      %v3987 = vperm.slane %v614, 2
      %v3988 = vmul.f32 %v3955, %v3987
      %v3989 = vmul.f32 %v3956, %v3987
      %v3990 = vmul.f32 %v3957, %v3987
      %v3991 = vmul.f32 %v3958, %v3987
      %v3992 = vmul.f32 %v3959, %v3987
      %v3993 = vmul.f32 %v3960, %v3987
      %v3994 = vmul.f32 %v3961, %v3987
      %v3995 = vmul.f32 %v3962, %v3987
      %v3996 = vmul.f32 %v3963, %v3987
      %v3997 = vmul.f32 %v3964, %v3987
      %v3998 = vmul.f32 %v3965, %v3987
      %v3999 = vmul.f32 %v3966, %v3987
      %v4000 = vmul.f32 %v3967, %v3987
      %v4001 = vmul.f32 %v3968, %v3987
      %v4002 = vmul.f32 %v3969, %v3987
      %v4003 = vmul.f32 %v3970, %v3987
      %v4004 = vmul.f32 %v3971, %v3987
      %v4005 = vmul.f32 %v3972, %v3987
      %v4006 = vmul.f32 %v3973, %v3987
      %v4007 = vmul.f32 %v3974, %v3987
      %v4008 = vmul.f32 %v3975, %v3987
      %v4009 = vmul.f32 %v3976, %v3987
      %v4010 = vmul.f32 %v3977, %v3987
      %v4011 = vmul.f32 %v3978, %v3987
      %v4012 = vmul.f32 %v3979, %v3987
      %v4013 = vmul.f32 %v3980, %v3987
      %v4014 = vmul.f32 %v3981, %v3987
      %v4015 = vmul.f32 %v3982, %v3987
      %v4016 = vmul.f32 %v3983, %v3987
      %v4017 = vmul.f32 %v3984, %v3987
      %v4018 = vmul.f32 %v3985, %v3987
      %v4019 = vmul.f32 %v3986, %v3987
      %v4020 = vperm.slane %v614, 3
      %v4021 = vadd.f32 %v3988, %v4020
      %v4022 = vadd.f32 %v3989, %v4020
      %v4023 = vadd.f32 %v3990, %v4020
      %v4024 = vadd.f32 %v3991, %v4020
      %v4025 = vadd.f32 %v3992, %v4020
      %v4026 = vadd.f32 %v3993, %v4020
      %v4027 = vadd.f32 %v3994, %v4020
      %v4028 = vadd.f32 %v3995, %v4020
      %v4029 = vadd.f32 %v3996, %v4020
      %v4030 = vadd.f32 %v3997, %v4020
      %v4031 = vadd.f32 %v3998, %v4020
      %v4032 = vadd.f32 %v3999, %v4020
      %v4033 = vadd.f32 %v4000, %v4020
      %v4034 = vadd.f32 %v4001, %v4020
      %v4035 = vadd.f32 %v4002, %v4020
      %v4036 = vadd.f32 %v4003, %v4020
      %v4037 = vadd.f32 %v4004, %v4020
      %v4038 = vadd.f32 %v4005, %v4020
      %v4039 = vadd.f32 %v4006, %v4020
      %v4040 = vadd.f32 %v4007, %v4020
      %v4041 = vadd.f32 %v4008, %v4020
      %v4042 = vadd.f32 %v4009, %v4020
      %v4043 = vadd.f32 %v4010, %v4020
      %v4044 = vadd.f32 %v4011, %v4020
      %v4045 = vadd.f32 %v4012, %v4020
      %v4046 = vadd.f32 %v4013, %v4020
      %v4047 = vadd.f32 %v4014, %v4020
      %v4048 = vadd.f32 %v4015, %v4020
      %v4049 = vadd.f32 %v4016, %v4020
      %v4050 = vadd.f32 %v4017, %v4020
      %v4051 = vadd.f32 %v4018, %v4020
      %v4052 = vadd.f32 %v4019, %v4020
      %v4053 = vadd.f32 %v4021, %v938
      %v4054 = vadd.f32 %v4022, %v939
      %v4055 = vadd.f32 %v4023, %v940
      %v4056 = vadd.f32 %v4024, %v941
      %v4057 = vadd.f32 %v4025, %v942
      %v4058 = vadd.f32 %v4026, %v943
      %v4059 = vadd.f32 %v4027, %v944
      %v4060 = vadd.f32 %v4028, %v945
      %v4061 = vadd.f32 %v4029, %v946
      %v4062 = vadd.f32 %v4030, %v947
      %v4063 = vadd.f32 %v4031, %v948
      %v4064 = vadd.f32 %v4032, %v949
      %v4065 = vadd.f32 %v4033, %v950
      %v4066 = vadd.f32 %v4034, %v951
      %v4067 = vadd.f32 %v4035, %v952
      %v4068 = vadd.f32 %v4036, %v953
      %v4069 = vadd.f32 %v4037, %v954
      %v4070 = vadd.f32 %v4038, %v955
      %v4071 = vadd.f32 %v4039, %v956
      %v4072 = vadd.f32 %v4040, %v957
      %v4073 = vadd.f32 %v4041, %v958
      %v4074 = vadd.f32 %v4042, %v959
      %v4075 = vadd.f32 %v4043, %v960
      %v4076 = vadd.f32 %v4044, %v961
      %v4077 = vadd.f32 %v4045, %v962
      %v4078 = vadd.f32 %v4046, %v963
      %v4079 = vadd.f32 %v4047, %v964
      %v4080 = vadd.f32 %v4048, %v965
      %v4081 = vadd.f32 %v4049, %v966
      %v4082 = vadd.f32 %v4050, %v967
      %v4083 = vadd.f32 %v4051, %v968
      %v4084 = vadd.f32 %v4052, %v969
      %v4085 = vld [vmem:[%s8] sm:$0xf]
      %v4086 = vpack.c.bf16 %v4054, %v4053
      %v4087 = vpack.c.bf16 %v4056, %v4055
      %v4088 = vpack.c.bf16 %v4058, %v4057
      %v4089 = vpack.c.bf16 %v4060, %v4059
      %v4090 = vpack.c.bf16 %v4062, %v4061
      %v4091 = vpack.c.bf16 %v4064, %v4063
      %v4092 = vpack.c.bf16 %v4066, %v4065
      %v4093 = vpack.c.bf16 %v4068, %v4067
      %v4094 = vpack.c.bf16 %v4070, %v4069
      %v4095 = vpack.c.bf16 %v4072, %v4071
      %v4096 = vpack.c.bf16 %v4074, %v4073
      %v4097 = vpack.c.bf16 %v4076, %v4075
      %v4098 = vpack.c.bf16 %v4078, %v4077
      %v4099 = vpack.c.bf16 %v4080, %v4079
      %v4100 = vpack.c.bf16 %v4082, %v4081
      %v4101 = vpack.c.bf16 %v4084, %v4083
      %v4102 = vld [vmem:[%s5] sm:$0xf]
      %v4103 = vld [vmem:[%s5 + $0x4] sm:$0xf]
      %v4104 = vld [vmem:[%s5 + $0x8] sm:$0xf]
      %v4105 = vld [vmem:[%s5 + $0xc] sm:$0xf]
      %v4106 = vperm.slane %v4085, 0
      %v4111 = vunpack.c.l.b16 %v4102
      %v4112 = vunpack.c.l.b16 %v4103
      %v4113 = vunpack.c.l.b16 %v4104
      %v4114 = vunpack.c.l.b16 %v4105
      %v4115 = vpack.c.b16 %v4112, %v4111
      %v4116 = vpack.c.b16 %v4114, %v4113
      %v4120 = vsel %vm1026, %v4086, 0
      %v4123 = vsel %vm1026, %v4087, 0
      %v4126 = vsel %vm1026, %v4088, 0
      %v4129 = vsel %vm1026, %v4089, 0
      %v4132 = vsel %vm1026, %v4090, 0
      %v4135 = vsel %vm1026, %v4091, 0
      %v4138 = vsel %vm1026, %v4092, 0
      %v4141 = vsel %vm1026, %v4093, 0
      %v4144 = vsel %vm1026, %v4094, 0
      %v4147 = vsel %vm1026, %v4095, 0
      %v4150 = vsel %vm1026, %v4096, 0
      %v4153 = vsel %vm1026, %v4097, 0
      %v4156 = vsel %vm1026, %v4098, 0
      %v4159 = vsel %vm1026, %v4099, 0
      %v4162 = vsel %vm1026, %v4100, 0
      %v4165 = vsel %vm1026, %v4101, 0
      %4167 = vmatpush.bf16.msra.mxu0 0
      %4168 = vmatpush.bf16.msra.mxu0 0
      %4169 = vmatpush.bf16.msra.mxu0 0
      %4170 = vmatpush.bf16.msra.mxu0 0
      %4171 = vmatpush.bf16.msra.mxu0 0
      %4172 = vmatpush.bf16.msra.mxu0 0
      %4173 = vmatpush.bf16.msra.mxu0 %v4116
      %4174 = vmatpush.bf16.msra.mxu0 %v4115
      %4175 = vmatmul.bf16.gmra.mxu0 %v4120
      %v4176 = vpop.f32.mrf.mxu0
      %v4177 = vadd.f32 %v4106, %v4176
      %v4178 = vpop.f32.mrf.mxu0
      %v4179 = vadd.f32 %v4106, %v4178
      %4180 = vmatmul.bf16.gmra.mxu0 %v4123
      %v4181 = vpop.f32.mrf.mxu0
      %v4182 = vadd.f32 %v4106, %v4181
      %v4183 = vpop.f32.mrf.mxu0
      %v4184 = vadd.f32 %v4106, %v4183
      %4185 = vmatmul.bf16.gmra.mxu0 %v4126
      %v4186 = vpop.f32.mrf.mxu0
      %v4187 = vadd.f32 %v4106, %v4186
      %v4188 = vpop.f32.mrf.mxu0
      %v4189 = vadd.f32 %v4106, %v4188
      %4190 = vmatmul.bf16.gmra.mxu0 %v4129
      %v4191 = vpop.f32.mrf.mxu0
      %v4192 = vadd.f32 %v4106, %v4191
      %v4193 = vpop.f32.mrf.mxu0
      %v4194 = vadd.f32 %v4106, %v4193
      %4195 = vmatmul.bf16.gmra.mxu0 %v4132
      %v4196 = vpop.f32.mrf.mxu0
      %v4197 = vadd.f32 %v4106, %v4196
      %v4198 = vpop.f32.mrf.mxu0
      %v4199 = vadd.f32 %v4106, %v4198
      %4200 = vmatmul.bf16.gmra.mxu0 %v4135
      %v4201 = vpop.f32.mrf.mxu0
      %v4202 = vadd.f32 %v4106, %v4201
      %v4203 = vpop.f32.mrf.mxu0
      %v4204 = vadd.f32 %v4106, %v4203
      %4205 = vmatmul.bf16.gmra.mxu0 %v4138
      %v4206 = vpop.f32.mrf.mxu0
      %v4207 = vadd.f32 %v4106, %v4206
      %v4208 = vpop.f32.mrf.mxu0
      %v4209 = vadd.f32 %v4106, %v4208
      %4210 = vmatmul.bf16.gmra.mxu0 %v4141
      %v4211 = vpop.f32.mrf.mxu0
      %v4212 = vadd.f32 %v4106, %v4211
      %v4213 = vpop.f32.mrf.mxu0
      %v4214 = vadd.f32 %v4106, %v4213
      %4215 = vmatmul.bf16.gmra.mxu0 %v4144
      %v4216 = vpop.f32.mrf.mxu0
      %v4217 = vadd.f32 %v4106, %v4216
      %v4218 = vpop.f32.mrf.mxu0
      %v4219 = vadd.f32 %v4106, %v4218
      %4220 = vmatmul.bf16.gmra.mxu0 %v4147
      %v4221 = vpop.f32.mrf.mxu0
      %v4222 = vadd.f32 %v4106, %v4221
      %v4223 = vpop.f32.mrf.mxu0
      %v4224 = vadd.f32 %v4106, %v4223
      %4225 = vmatmul.bf16.gmra.mxu0 %v4150
      %v4226 = vpop.f32.mrf.mxu0
      %v4227 = vadd.f32 %v4106, %v4226
      %v4228 = vpop.f32.mrf.mxu0
      %v4229 = vadd.f32 %v4106, %v4228
      %4230 = vmatmul.bf16.gmra.mxu0 %v4153
      %v4231 = vpop.f32.mrf.mxu0
      %v4232 = vadd.f32 %v4106, %v4231
      %v4233 = vpop.f32.mrf.mxu0
      %v4234 = vadd.f32 %v4106, %v4233
      %4235 = vmatmul.bf16.gmra.mxu0 %v4156
      %v4236 = vpop.f32.mrf.mxu0
      %v4237 = vadd.f32 %v4106, %v4236
      %v4238 = vpop.f32.mrf.mxu0
      %v4239 = vadd.f32 %v4106, %v4238
      %4240 = vmatmul.bf16.gmra.mxu0 %v4159
      %v4241 = vpop.f32.mrf.mxu0
      %v4242 = vadd.f32 %v4106, %v4241
      %v4243 = vpop.f32.mrf.mxu0
      %v4244 = vadd.f32 %v4106, %v4243
      %4245 = vmatmul.bf16.gmra.mxu0 %v4162
      %v4246 = vpop.f32.mrf.mxu0
      %v4247 = vadd.f32 %v4106, %v4246
      %v4248 = vpop.f32.mrf.mxu0
      %v4249 = vadd.f32 %v4106, %v4248
      %4250 = vmatmul.bf16.gmra.mxu0 %v4165
      %v4251 = vpop.f32.mrf.mxu0
      %v4252 = vadd.f32 %v4106, %v4251
      %v4253 = vpop.f32.mrf.mxu0
      %v4254 = vadd.f32 %v4106, %v4253
      %4255 = vdwg.mxu0
      %vm4256 = vcmp.gt.f32.partialorder %v4177, 0.0
      %vm4257 = vcmp.gt.f32.partialorder %v4179, 0.0
      %vm4258 = vcmp.gt.f32.partialorder %v4182, 0.0
      %vm4259 = vcmp.gt.f32.partialorder %v4184, 0.0
      %vm4260 = vcmp.gt.f32.partialorder %v4187, 0.0
      %vm4261 = vcmp.gt.f32.partialorder %v4189, 0.0
      %vm4262 = vcmp.gt.f32.partialorder %v4192, 0.0
      %vm4263 = vcmp.gt.f32.partialorder %v4194, 0.0
      %vm4264 = vcmp.gt.f32.partialorder %v4197, 0.0
      %vm4265 = vcmp.gt.f32.partialorder %v4199, 0.0
      %vm4266 = vcmp.gt.f32.partialorder %v4202, 0.0
      %vm4267 = vcmp.gt.f32.partialorder %v4204, 0.0
      %vm4268 = vcmp.gt.f32.partialorder %v4207, 0.0
      %vm4269 = vcmp.gt.f32.partialorder %v4209, 0.0
      %vm4270 = vcmp.gt.f32.partialorder %v4212, 0.0
      %vm4271 = vcmp.gt.f32.partialorder %v4214, 0.0
      %vm4272 = vcmp.gt.f32.partialorder %v4217, 0.0
      %vm4273 = vcmp.gt.f32.partialorder %v4219, 0.0
      %vm4274 = vcmp.gt.f32.partialorder %v4222, 0.0
      %vm4275 = vcmp.gt.f32.partialorder %v4224, 0.0
      %vm4276 = vcmp.gt.f32.partialorder %v4227, 0.0
      %vm4277 = vcmp.gt.f32.partialorder %v4229, 0.0
      %vm4278 = vcmp.gt.f32.partialorder %v4232, 0.0
      %vm4279 = vcmp.gt.f32.partialorder %v4234, 0.0
      %vm4280 = vcmp.gt.f32.partialorder %v4237, 0.0
      %vm4281 = vcmp.gt.f32.partialorder %v4239, 0.0
      %vm4282 = vcmp.gt.f32.partialorder %v4242, 0.0
      %vm4283 = vcmp.gt.f32.partialorder %v4244, 0.0
      %vm4284 = vcmp.gt.f32.partialorder %v4247, 0.0
      %vm4285 = vcmp.gt.f32.partialorder %v4249, 0.0
      %vm4286 = vcmp.gt.f32.partialorder %v4252, 0.0
      %vm4287 = vcmp.gt.f32.partialorder %v4254, 0.0
      %v4288 = vmin.f32 %v4177, 0.0
      %v4289 = vmin.f32 %v4179, 0.0
      %v4290 = vmin.f32 %v4182, 0.0
      %v4291 = vmin.f32 %v4184, 0.0
      %v4292 = vmin.f32 %v4187, 0.0
      %v4293 = vmin.f32 %v4189, 0.0
      %v4294 = vmin.f32 %v4192, 0.0
      %v4295 = vmin.f32 %v4194, 0.0
      %v4296 = vmin.f32 %v4197, 0.0
      %v4297 = vmin.f32 %v4199, 0.0
      %v4298 = vmin.f32 %v4202, 0.0
      %v4299 = vmin.f32 %v4204, 0.0
      %v4300 = vmin.f32 %v4207, 0.0
      %v4301 = vmin.f32 %v4209, 0.0
      %v4302 = vmin.f32 %v4212, 0.0
      %v4303 = vmin.f32 %v4214, 0.0
      %v4304 = vmin.f32 %v4217, 0.0
      %v4305 = vmin.f32 %v4219, 0.0
      %v4306 = vmin.f32 %v4222, 0.0
      %v4307 = vmin.f32 %v4224, 0.0
      %v4308 = vmin.f32 %v4227, 0.0
      %v4309 = vmin.f32 %v4229, 0.0
      %v4310 = vmin.f32 %v4232, 0.0
      %v4311 = vmin.f32 %v4234, 0.0
      %v4312 = vmin.f32 %v4237, 0.0
      %v4313 = vmin.f32 %v4239, 0.0
      %v4314 = vmin.f32 %v4242, 0.0
      %v4315 = vmin.f32 %v4244, 0.0
      %v4316 = vmin.f32 %v4247, 0.0
      %v4317 = vmin.f32 %v4249, 0.0
      %v4318 = vmin.f32 %v4252, 0.0
      %v4319 = vmin.f32 %v4254, 0.0
      %v4320 = vmul.f32 %v4288, 1.442695
      %v4321 = vpow.pop %v4320
      %v4322 = vmul.f32 %v4289, 1.442695
      %v4323 = vpow.pop %v4322
      %v4324 = vmul.f32 %v4290, 1.442695
      %v4325 = vpow.pop %v4324
      %v4326 = vmul.f32 %v4291, 1.442695
      %v4327 = vpow.pop %v4326
      %v4328 = vmul.f32 %v4292, 1.442695
      %v4329 = vpow.pop %v4328
      %v4330 = vmul.f32 %v4293, 1.442695
      %v4331 = vpow.pop %v4330
      %v4332 = vmul.f32 %v4294, 1.442695
      %v4333 = vpow.pop %v4332
      %v4334 = vmul.f32 %v4295, 1.442695
      %v4335 = vpow.pop %v4334
      %v4336 = vmul.f32 %v4296, 1.442695
      %v4337 = vpow.pop %v4336
      %v4338 = vmul.f32 %v4297, 1.442695
      %v4339 = vpow.pop %v4338
      %v4340 = vmul.f32 %v4298, 1.442695
      %v4341 = vpow.pop %v4340
      %v4342 = vmul.f32 %v4299, 1.442695
      %v4343 = vpow.pop %v4342
      %v4344 = vmul.f32 %v4300, 1.442695
      %v4345 = vpow.pop %v4344
      %v4346 = vmul.f32 %v4301, 1.442695
      %v4347 = vpow.pop %v4346
      %v4348 = vmul.f32 %v4302, 1.442695
      %v4349 = vpow.pop %v4348
      %v4350 = vmul.f32 %v4303, 1.442695
      %v4351 = vpow.pop %v4350
      %v4352 = vmul.f32 %v4304, 1.442695
      %v4353 = vpow.pop %v4352
      %v4354 = vmul.f32 %v4305, 1.442695
      %v4355 = vpow.pop %v4354
      %v4356 = vmul.f32 %v4306, 1.442695
      %v4357 = vpow.pop %v4356
      %v4358 = vmul.f32 %v4307, 1.442695
      %v4359 = vpow.pop %v4358
      %v4360 = vmul.f32 %v4308, 1.442695
      %v4361 = vpow.pop %v4360
      %v4362 = vmul.f32 %v4309, 1.442695
      %v4363 = vpow.pop %v4362
      %v4364 = vmul.f32 %v4310, 1.442695
      %v4365 = vpow.pop %v4364
      %v4366 = vmul.f32 %v4311, 1.442695
      %v4367 = vpow.pop %v4366
      %v4368 = vmul.f32 %v4312, 1.442695
      %v4369 = vpow.pop %v4368
      %v4370 = vmul.f32 %v4313, 1.442695
      %v4371 = vpow.pop %v4370
      %v4372 = vmul.f32 %v4314, 1.442695
      %v4373 = vpow.pop %v4372
      %v4374 = vmul.f32 %v4315, 1.442695
      %v4375 = vpow.pop %v4374
      %v4376 = vmul.f32 %v4316, 1.442695
      %v4377 = vpow.pop %v4376
      %v4378 = vmul.f32 %v4317, 1.442695
      %v4379 = vpow.pop %v4378
      %v4380 = vmul.f32 %v4318, 1.442695
      %v4381 = vpow.pop %v4380
      %v4382 = vmul.f32 %v4319, 1.442695
      %v4383 = vpow.pop %v4382
      %v4384 = vsub.f32 %v4321, 1.0
      %v4385 = vsub.f32 %v4323, 1.0
      %v4386 = vsub.f32 %v4325, 1.0
      %v4387 = vsub.f32 %v4327, 1.0
      %v4388 = vsub.f32 %v4329, 1.0
      %v4389 = vsub.f32 %v4331, 1.0
      %v4390 = vsub.f32 %v4333, 1.0
      %v4391 = vsub.f32 %v4335, 1.0
      %v4392 = vsub.f32 %v4337, 1.0
      %v4393 = vsub.f32 %v4339, 1.0
      %v4394 = vsub.f32 %v4341, 1.0
      %v4395 = vsub.f32 %v4343, 1.0
      %v4396 = vsub.f32 %v4345, 1.0
      %v4397 = vsub.f32 %v4347, 1.0
      %v4398 = vsub.f32 %v4349, 1.0
      %v4399 = vsub.f32 %v4351, 1.0
      %v4400 = vsub.f32 %v4353, 1.0
      %v4401 = vsub.f32 %v4355, 1.0
      %v4402 = vsub.f32 %v4357, 1.0
      %v4403 = vsub.f32 %v4359, 1.0
      %v4404 = vsub.f32 %v4361, 1.0
      %v4405 = vsub.f32 %v4363, 1.0
      %v4406 = vsub.f32 %v4365, 1.0
      %v4407 = vsub.f32 %v4367, 1.0
      %v4408 = vsub.f32 %v4369, 1.0
      %v4409 = vsub.f32 %v4371, 1.0
      %v4410 = vsub.f32 %v4373, 1.0
      %v4411 = vsub.f32 %v4375, 1.0
      %v4412 = vsub.f32 %v4377, 1.0
      %v4413 = vsub.f32 %v4379, 1.0
      %v4414 = vsub.f32 %v4381, 1.0
      %v4415 = vsub.f32 %v4383, 1.0
      %v4416 = vsel %vm4256, %v4177, %v4384
      %v4417 = vsel %vm4257, %v4179, %v4385
      %v4418 = vsel %vm4258, %v4182, %v4386
      %v4419 = vsel %vm4259, %v4184, %v4387
      %v4420 = vsel %vm4260, %v4187, %v4388
      %v4421 = vsel %vm4261, %v4189, %v4389
      %v4422 = vsel %vm4262, %v4192, %v4390
      %v4423 = vsel %vm4263, %v4194, %v4391
      %v4424 = vsel %vm4264, %v4197, %v4392
      %v4425 = vsel %vm4265, %v4199, %v4393
      %v4426 = vsel %vm4266, %v4202, %v4394
      %v4427 = vsel %vm4267, %v4204, %v4395
      %v4428 = vsel %vm4268, %v4207, %v4396
      %v4429 = vsel %vm4269, %v4209, %v4397
      %v4430 = vsel %vm4270, %v4212, %v4398
      %v4431 = vsel %vm4271, %v4214, %v4399
      %v4432 = vsel %vm4272, %v4217, %v4400
      %v4433 = vsel %vm4273, %v4219, %v4401
      %v4434 = vsel %vm4274, %v4222, %v4402
      %v4435 = vsel %vm4275, %v4224, %v4403
      %v4436 = vsel %vm4276, %v4227, %v4404
      %v4437 = vsel %vm4277, %v4229, %v4405
      %v4438 = vsel %vm4278, %v4232, %v4406
      %v4439 = vsel %vm4279, %v4234, %v4407
      %v4440 = vsel %vm4280, %v4237, %v4408
      %v4441 = vsel %vm4281, %v4239, %v4409
      %v4442 = vsel %vm4282, %v4242, %v4410
      %v4443 = vsel %vm4283, %v4244, %v4411
      %v4444 = vsel %vm4284, %v4247, %v4412
      %v4445 = vsel %vm4285, %v4249, %v4413
      %v4446 = vsel %vm4286, %v4252, %v4414
      %v4447 = vsel %vm4287, %v4254, %v4415
      %v4448 = vpack.c.bf16 %v4417, %v4416
      %v4449 = vpack.c.bf16 %v4419, %v4418
      %v4450 = vpack.c.bf16 %v4421, %v4420
      %v4451 = vpack.c.bf16 %v4423, %v4422
      %v4452 = vpack.c.bf16 %v4425, %v4424
      %v4453 = vpack.c.bf16 %v4427, %v4426
      %v4454 = vpack.c.bf16 %v4429, %v4428
      %v4455 = vpack.c.bf16 %v4431, %v4430
      %v4456 = vpack.c.bf16 %v4433, %v4432
      %v4457 = vpack.c.bf16 %v4435, %v4434
      %v4458 = vpack.c.bf16 %v4437, %v4436
      %v4459 = vpack.c.bf16 %v4439, %v4438
      %v4460 = vpack.c.bf16 %v4441, %v4440
      %v4461 = vpack.c.bf16 %v4443, %v4442
      %v4462 = vpack.c.bf16 %v4445, %v4444
      %v4463 = vpack.c.bf16 %v4447, %v4446
      %v4464 = vld [vmem:[%s6] sm:$0xff]
      %v4465 = vld [vmem:[%s6 + $0x8] sm:$0xf]
      %v4466 = vld [vmem:[%s6 + $0xc] sm:$0xff]
      %v4467 = vld [vmem:[%s6 + $0x14] sm:$0xf]
      %v4468 = vld [vmem:[%s6 + $0x18] sm:$0xff]
      %v4469 = vld [vmem:[%s6 + $0x20] sm:$0xf]
      %v4470 = vld [vmem:[%s6 + $0x24] sm:$0xff]
      %v4471 = vld [vmem:[%s6 + $0x2c] sm:$0xf]
      %v4480 = vunpack.c.l.b16 %v4464
      %v4481 = vunpack.c.h.b16 %v4464
      %v4482 = vunpack.c.l.b16 %v4465
      %v4483 = vunpack.c.l.b16 %v4466
      %v4484 = vunpack.c.h.b16 %v4466
      %v4485 = vunpack.c.l.b16 %v4467
      %v4486 = vunpack.c.l.b16 %v4468
      %v4487 = vunpack.c.h.b16 %v4468
      %v4488 = vunpack.c.l.b16 %v4469
      %v4489 = vunpack.c.l.b16 %v4470
      %v4490 = vunpack.c.h.b16 %v4470
      %v4491 = vunpack.c.l.b16 %v4471
      %v4492 = vpack.c.b16 %v4483, %v4480
      %v4493 = vpack.c.b16 %v4484, %v4481
      %v4494 = vpack.c.b16 %v4485, %v4482
      %v4495 = vpack.c.b16 %v4489, %v4486
      %v4496 = vpack.c.b16 %v4490, %v4487
      %v4497 = vpack.c.b16 %v4491, %v4488
      %v4505 = vsel %vm1026, %v4448, 0
      %v4508 = vsel %vm1026, %v4449, 0
      %v4511 = vsel %vm1026, %v4450, 0
      %v4514 = vsel %vm1026, %v4451, 0
      %v4517 = vsel %vm1026, %v4452, 0
      %v4520 = vsel %vm1026, %v4453, 0
      %v4523 = vsel %vm1026, %v4454, 0
      %v4526 = vsel %vm1026, %v4455, 0
      %v4529 = vsel %vm1026, %v4456, 0
      %v4532 = vsel %vm1026, %v4457, 0
      %v4535 = vsel %vm1026, %v4458, 0
      %v4538 = vsel %vm1026, %v4459, 0
      %v4541 = vsel %vm1026, %v4460, 0
      %v4544 = vsel %vm1026, %v4461, 0
      %v4547 = vsel %vm1026, %v4462, 0
      %v4550 = vsel %vm1026, %v4463, 0
      %4552 = vmatpush.bf16.msra.mxu0 0
      %4553 = vmatpush.bf16.msra.mxu0 0
      %4554 = vmatpush.bf16.msra.mxu0 0
      %4555 = vmatpush.bf16.msra.mxu0 0
      %4556 = vmatpush.bf16.msra.mxu0 0
      %4557 = vmatpush.bf16.msra.mxu0 0
      %4558 = vmatpush.bf16.msra.mxu0 %v4495
      %4559 = vmatpush.bf16.msra.mxu0 %v4492
      %4560 = vmatmul.bf16.gmra.mxu0 %v4505
      %v4561 = vpop.f32.mrf.mxu0
      %v4562 = vadd.f32 0.0, %v4561
      %v4563 = vpop.f32.mrf.mxu0
      %v4564 = vadd.f32 0.0, %v4563
      %4565 = vmatmul.bf16.gmra.mxu0 %v4508
      %v4566 = vpop.f32.mrf.mxu0
      %v4567 = vadd.f32 0.0, %v4566
      %v4568 = vpop.f32.mrf.mxu0
      %v4569 = vadd.f32 0.0, %v4568
      %4570 = vmatmul.bf16.gmra.mxu0 %v4511
      %v4571 = vpop.f32.mrf.mxu0
      %v4572 = vadd.f32 0.0, %v4571
      %v4573 = vpop.f32.mrf.mxu0
      %v4574 = vadd.f32 0.0, %v4573
      %4575 = vmatmul.bf16.gmra.mxu0 %v4514
      %v4576 = vpop.f32.mrf.mxu0
      %v4577 = vadd.f32 0.0, %v4576
      %v4578 = vpop.f32.mrf.mxu0
      %v4579 = vadd.f32 0.0, %v4578
      %4580 = vmatmul.bf16.gmra.mxu0 %v4517
      %v4581 = vpop.f32.mrf.mxu0
      %v4582 = vadd.f32 0.0, %v4581
      %v4583 = vpop.f32.mrf.mxu0
      %v4584 = vadd.f32 0.0, %v4583
      %4585 = vmatmul.bf16.gmra.mxu0 %v4520
      %v4586 = vpop.f32.mrf.mxu0
      %v4587 = vadd.f32 0.0, %v4586
      %v4588 = vpop.f32.mrf.mxu0
      %v4589 = vadd.f32 0.0, %v4588
      %4590 = vmatmul.bf16.gmra.mxu0 %v4523
      %v4591 = vpop.f32.mrf.mxu0
      %v4592 = vadd.f32 0.0, %v4591
      %v4593 = vpop.f32.mrf.mxu0
      %v4594 = vadd.f32 0.0, %v4593
      %4595 = vmatmul.bf16.gmra.mxu0 %v4526
      %v4596 = vpop.f32.mrf.mxu0
      %v4597 = vadd.f32 0.0, %v4596
      %v4598 = vpop.f32.mrf.mxu0
      %v4599 = vadd.f32 0.0, %v4598
      %4600 = vmatmul.bf16.gmra.mxu0 %v4529
      %v4601 = vpop.f32.mrf.mxu0
      %v4602 = vadd.f32 0.0, %v4601
      %v4603 = vpop.f32.mrf.mxu0
      %v4604 = vadd.f32 0.0, %v4603
      %4605 = vmatmul.bf16.gmra.mxu0 %v4532
      %v4606 = vpop.f32.mrf.mxu0
      %v4607 = vadd.f32 0.0, %v4606
      %v4608 = vpop.f32.mrf.mxu0
      %v4609 = vadd.f32 0.0, %v4608
      %4610 = vmatmul.bf16.gmra.mxu0 %v4535
      %v4611 = vpop.f32.mrf.mxu0
      %v4612 = vadd.f32 0.0, %v4611
      %v4613 = vpop.f32.mrf.mxu0
      %v4614 = vadd.f32 0.0, %v4613
      %4615 = vmatmul.bf16.gmra.mxu0 %v4538
      %v4616 = vpop.f32.mrf.mxu0
      %v4617 = vadd.f32 0.0, %v4616
      %v4618 = vpop.f32.mrf.mxu0
      %v4619 = vadd.f32 0.0, %v4618
      %4620 = vmatmul.bf16.gmra.mxu0 %v4541
      %v4621 = vpop.f32.mrf.mxu0
      %v4622 = vadd.f32 0.0, %v4621
      %v4623 = vpop.f32.mrf.mxu0
      %v4624 = vadd.f32 0.0, %v4623
      %4625 = vmatmul.bf16.gmra.mxu0 %v4544
      %v4626 = vpop.f32.mrf.mxu0
      %v4627 = vadd.f32 0.0, %v4626
      %v4628 = vpop.f32.mrf.mxu0
      %v4629 = vadd.f32 0.0, %v4628
      %4630 = vmatmul.bf16.gmra.mxu0 %v4547
      %v4631 = vpop.f32.mrf.mxu0
      %v4632 = vadd.f32 0.0, %v4631
      %v4633 = vpop.f32.mrf.mxu0
      %v4634 = vadd.f32 0.0, %v4633
      %4635 = vmatmul.bf16.gmra.mxu0 %v4550
      %v4636 = vpop.f32.mrf.mxu0
      %v4637 = vadd.f32 0.0, %v4636
      %v4638 = vpop.f32.mrf.mxu0
      %v4639 = vadd.f32 0.0, %v4638
      %4640 = vdwg.mxu0
      %4641 = vmatpush.bf16.msra.mxu0 0
      %4642 = vmatpush.bf16.msra.mxu0 0
      %4643 = vmatpush.bf16.msra.mxu0 0
      %4644 = vmatpush.bf16.msra.mxu0 0
      %4645 = vmatpush.bf16.msra.mxu0 0
      %4646 = vmatpush.bf16.msra.mxu0 0
      %4647 = vmatpush.bf16.msra.mxu0 %v4496
      %4648 = vmatpush.bf16.msra.mxu0 %v4493
      %4649 = vmatmul.bf16.gmra.mxu0 %v4505
      %v4650 = vpop.f32.mrf.mxu0
      %v4651 = vadd.f32 0.0, %v4650
      %v4652 = vpop.f32.mrf.mxu0
      %v4653 = vadd.f32 0.0, %v4652
      %4654 = vmatmul.bf16.gmra.mxu0 %v4508
      %v4655 = vpop.f32.mrf.mxu0
      %v4656 = vadd.f32 0.0, %v4655
      %v4657 = vpop.f32.mrf.mxu0
      %v4658 = vadd.f32 0.0, %v4657
      %4659 = vmatmul.bf16.gmra.mxu0 %v4511
      %v4660 = vpop.f32.mrf.mxu0
      %v4661 = vadd.f32 0.0, %v4660
      %v4662 = vpop.f32.mrf.mxu0
      %v4663 = vadd.f32 0.0, %v4662
      %4664 = vmatmul.bf16.gmra.mxu0 %v4514
      %v4665 = vpop.f32.mrf.mxu0
      %v4666 = vadd.f32 0.0, %v4665
      %v4667 = vpop.f32.mrf.mxu0
      %v4668 = vadd.f32 0.0, %v4667
      %4669 = vmatmul.bf16.gmra.mxu0 %v4517
      %v4670 = vpop.f32.mrf.mxu0
      %v4671 = vadd.f32 0.0, %v4670
      %v4672 = vpop.f32.mrf.mxu0
      %v4673 = vadd.f32 0.0, %v4672
      %4674 = vmatmul.bf16.gmra.mxu0 %v4520
      %v4675 = vpop.f32.mrf.mxu0
      %v4676 = vadd.f32 0.0, %v4675
      %v4677 = vpop.f32.mrf.mxu0
      %v4678 = vadd.f32 0.0, %v4677
      %4679 = vmatmul.bf16.gmra.mxu0 %v4523
      %v4680 = vpop.f32.mrf.mxu0
      %v4681 = vadd.f32 0.0, %v4680
      %v4682 = vpop.f32.mrf.mxu0
      %v4683 = vadd.f32 0.0, %v4682
      %4684 = vmatmul.bf16.gmra.mxu0 %v4526
      %v4685 = vpop.f32.mrf.mxu0
      %v4686 = vadd.f32 0.0, %v4685
      %v4687 = vpop.f32.mrf.mxu0
      %v4688 = vadd.f32 0.0, %v4687
      %4689 = vmatmul.bf16.gmra.mxu0 %v4529
      %v4690 = vpop.f32.mrf.mxu0
      %v4691 = vadd.f32 0.0, %v4690
      %v4692 = vpop.f32.mrf.mxu0
      %v4693 = vadd.f32 0.0, %v4692
      %4694 = vmatmul.bf16.gmra.mxu0 %v4532
      %v4695 = vpop.f32.mrf.mxu0
      %v4696 = vadd.f32 0.0, %v4695
      %v4697 = vpop.f32.mrf.mxu0
      %v4698 = vadd.f32 0.0, %v4697
      %4699 = vmatmul.bf16.gmra.mxu0 %v4535
      %v4700 = vpop.f32.mrf.mxu0
      %v4701 = vadd.f32 0.0, %v4700
      %v4702 = vpop.f32.mrf.mxu0
      %v4703 = vadd.f32 0.0, %v4702
      %4704 = vmatmul.bf16.gmra.mxu0 %v4538
      %v4705 = vpop.f32.mrf.mxu0
      %v4706 = vadd.f32 0.0, %v4705
      %v4707 = vpop.f32.mrf.mxu0
      %v4708 = vadd.f32 0.0, %v4707
      %4709 = vmatmul.bf16.gmra.mxu0 %v4541
      %v4710 = vpop.f32.mrf.mxu0
      %v4711 = vadd.f32 0.0, %v4710
      %v4712 = vpop.f32.mrf.mxu0
      %v4713 = vadd.f32 0.0, %v4712
      %4714 = vmatmul.bf16.gmra.mxu0 %v4544
      %v4715 = vpop.f32.mrf.mxu0
      %v4716 = vadd.f32 0.0, %v4715
      %v4717 = vpop.f32.mrf.mxu0
      %v4718 = vadd.f32 0.0, %v4717
      %4719 = vmatmul.bf16.gmra.mxu0 %v4547
      %v4720 = vpop.f32.mrf.mxu0
      %v4721 = vadd.f32 0.0, %v4720
      %v4722 = vpop.f32.mrf.mxu0
      %v4723 = vadd.f32 0.0, %v4722
      %4724 = vmatmul.bf16.gmra.mxu0 %v4550
      %v4725 = vpop.f32.mrf.mxu0
      %v4726 = vadd.f32 0.0, %v4725
      %v4727 = vpop.f32.mrf.mxu0
      %v4728 = vadd.f32 0.0, %v4727
      %4729 = vdwg.mxu0
      %4730 = vmatpush.bf16.msra.mxu0 0
      %4731 = vmatpush.bf16.msra.mxu0 0
      %4732 = vmatpush.bf16.msra.mxu0 0
      %4733 = vmatpush.bf16.msra.mxu0 0
      %4734 = vmatpush.bf16.msra.mxu0 0
      %4735 = vmatpush.bf16.msra.mxu0 0
      %4736 = vmatpush.bf16.msra.mxu0 %v4497
      %4737 = vmatpush.bf16.msra.mxu0 %v4494
      %4738 = vmatmul.bf16.gmra.mxu0 %v4505
      %v4739 = vpop.f32.mrf.mxu0
      %v4740 = vadd.f32 0.0, %v4739
      %v4741 = vpop.f32.mrf.mxu0
      %v4742 = vadd.f32 0.0, %v4741
      %4743 = vmatmul.bf16.gmra.mxu0 %v4508
      %v4744 = vpop.f32.mrf.mxu0
      %v4745 = vadd.f32 0.0, %v4744
      %v4746 = vpop.f32.mrf.mxu0
      %v4747 = vadd.f32 0.0, %v4746
      %4748 = vmatmul.bf16.gmra.mxu0 %v4511
      %v4749 = vpop.f32.mrf.mxu0
      %v4750 = vadd.f32 0.0, %v4749
      %v4751 = vpop.f32.mrf.mxu0
      %v4752 = vadd.f32 0.0, %v4751
      %4753 = vmatmul.bf16.gmra.mxu0 %v4514
      %v4754 = vpop.f32.mrf.mxu0
      %v4755 = vadd.f32 0.0, %v4754
      %v4756 = vpop.f32.mrf.mxu0
      %v4757 = vadd.f32 0.0, %v4756
      %4758 = vmatmul.bf16.gmra.mxu0 %v4517
      %v4759 = vpop.f32.mrf.mxu0
      %v4760 = vadd.f32 0.0, %v4759
      %v4761 = vpop.f32.mrf.mxu0
      %v4762 = vadd.f32 0.0, %v4761
      %4763 = vmatmul.bf16.gmra.mxu0 %v4520
      %v4764 = vpop.f32.mrf.mxu0
      %v4765 = vadd.f32 0.0, %v4764
      %v4766 = vpop.f32.mrf.mxu0
      %v4767 = vadd.f32 0.0, %v4766
      %4768 = vmatmul.bf16.gmra.mxu0 %v4523
      %v4769 = vpop.f32.mrf.mxu0
      %v4770 = vadd.f32 0.0, %v4769
      %v4771 = vpop.f32.mrf.mxu0
      %v4772 = vadd.f32 0.0, %v4771
      %4773 = vmatmul.bf16.gmra.mxu0 %v4526
      %v4774 = vpop.f32.mrf.mxu0
      %v4775 = vadd.f32 0.0, %v4774
      %v4776 = vpop.f32.mrf.mxu0
      %v4777 = vadd.f32 0.0, %v4776
      %4778 = vmatmul.bf16.gmra.mxu0 %v4529
      %v4779 = vpop.f32.mrf.mxu0
      %v4780 = vadd.f32 0.0, %v4779
      %v4781 = vpop.f32.mrf.mxu0
      %v4782 = vadd.f32 0.0, %v4781
      %4783 = vmatmul.bf16.gmra.mxu0 %v4532
      %v4784 = vpop.f32.mrf.mxu0
      %v4785 = vadd.f32 0.0, %v4784
      %v4786 = vpop.f32.mrf.mxu0
      %v4787 = vadd.f32 0.0, %v4786
      %4788 = vmatmul.bf16.gmra.mxu0 %v4535
      %v4789 = vpop.f32.mrf.mxu0
      %v4790 = vadd.f32 0.0, %v4789
      %v4791 = vpop.f32.mrf.mxu0
      %v4792 = vadd.f32 0.0, %v4791
      %4793 = vmatmul.bf16.gmra.mxu0 %v4538
      %v4794 = vpop.f32.mrf.mxu0
      %v4795 = vadd.f32 0.0, %v4794
      %v4796 = vpop.f32.mrf.mxu0
      %v4797 = vadd.f32 0.0, %v4796
      %4798 = vmatmul.bf16.gmra.mxu0 %v4541
      %v4799 = vpop.f32.mrf.mxu0
      %v4800 = vadd.f32 0.0, %v4799
      %v4801 = vpop.f32.mrf.mxu0
      %v4802 = vadd.f32 0.0, %v4801
      %4803 = vmatmul.bf16.gmra.mxu0 %v4544
      %v4804 = vpop.f32.mrf.mxu0
      %v4805 = vadd.f32 0.0, %v4804
      %v4806 = vpop.f32.mrf.mxu0
      %v4807 = vadd.f32 0.0, %v4806
      %4808 = vmatmul.bf16.gmra.mxu0 %v4547
      %v4809 = vpop.f32.mrf.mxu0
      %v4810 = vadd.f32 0.0, %v4809
      %v4811 = vpop.f32.mrf.mxu0
      %v4812 = vadd.f32 0.0, %v4811
      %4813 = vmatmul.bf16.gmra.mxu0 %v4550
      %v4814 = vpop.f32.mrf.mxu0
      %v4815 = vadd.f32 0.0, %v4814
      %v4816 = vpop.f32.mrf.mxu0
      %v4817 = vadd.f32 0.0, %v4816
      %4818 = vdwg.mxu0
      %v4819 = vmul.f32 %v4562, %v4651
      %v4820 = vmul.f32 %v4564, %v4653
      %v4821 = vmul.f32 %v4567, %v4656
      %v4822 = vmul.f32 %v4569, %v4658
      %v4823 = vmul.f32 %v4572, %v4661
      %v4824 = vmul.f32 %v4574, %v4663
      %v4825 = vmul.f32 %v4577, %v4666
      %v4826 = vmul.f32 %v4579, %v4668
      %v4827 = vmul.f32 %v4582, %v4671
      %v4828 = vmul.f32 %v4584, %v4673
      %v4829 = vmul.f32 %v4587, %v4676
      %v4830 = vmul.f32 %v4589, %v4678
      %v4831 = vmul.f32 %v4592, %v4681
      %v4832 = vmul.f32 %v4594, %v4683
      %v4833 = vmul.f32 %v4597, %v4686
      %v4834 = vmul.f32 %v4599, %v4688
      %v4835 = vmul.f32 %v4602, %v4691
      %v4836 = vmul.f32 %v4604, %v4693
      %v4837 = vmul.f32 %v4607, %v4696
      %v4838 = vmul.f32 %v4609, %v4698
      %v4839 = vmul.f32 %v4612, %v4701
      %v4840 = vmul.f32 %v4614, %v4703
      %v4841 = vmul.f32 %v4617, %v4706
      %v4842 = vmul.f32 %v4619, %v4708
      %v4843 = vmul.f32 %v4622, %v4711
      %v4844 = vmul.f32 %v4624, %v4713
      %v4845 = vmul.f32 %v4627, %v4716
      %v4846 = vmul.f32 %v4629, %v4718
      %v4847 = vmul.f32 %v4632, %v4721
      %v4848 = vmul.f32 %v4634, %v4723
      %v4849 = vmul.f32 %v4637, %v4726
      %v4850 = vmul.f32 %v4639, %v4728
      %4851 = vmatpush.msra.mxu0 %v1389
      %4852 = vmatpush.msra.mxu0 %v1388
      %4853 = vmatpush.msra.mxu0 %v1387
      %4854 = vmatpush.msra.mxu0 %v1386
      %4855 = vmatpush.msra.mxu0 %v1385
      %4856 = vmatpush.msra.mxu0 %v1384
      %4857 = vmatpush.msra.mxu0 %v1383
      %4858 = vmatpush.msra.mxu0 %v1382
      %4859 = vmatpush.msra.mxu0 %v1381
      %4860 = vmatpush.msra.mxu0 %v1380
      %4861 = vmatpush.msra.mxu0 %v1379
      %4862 = vmatpush.msra.mxu0 %v1378
      %4863 = vmatpush.msra.mxu0 %v1377
      %4864 = vmatpush.msra.mxu0 %v1376
      %4865 = vmatpush.msra.mxu0 %v1375
      %4866 = vmatpush.msra.mxu0 %v1374
      %4867 = vmatmul.f32.gmra.mxu0 %v4819
      %v4868 = vpop.f32.mrf.mxu0
      %v4869 = vadd.f32 0.0, %v4868
      %4870 = vmatmul.f32.gmra.mxu0 %v4820
      %v4871 = vpop.f32.mrf.mxu0
      %v4872 = vadd.f32 0.0, %v4871
      %4873 = vmatmul.f32.gmra.mxu0 %v4821
      %v4874 = vpop.f32.mrf.mxu0
      %v4875 = vadd.f32 0.0, %v4874
      %4876 = vmatmul.f32.gmra.mxu0 %v4822
      %v4877 = vpop.f32.mrf.mxu0
      %v4878 = vadd.f32 0.0, %v4877
      %4879 = vmatmul.f32.gmra.mxu0 %v4823
      %v4880 = vpop.f32.mrf.mxu0
      %v4881 = vadd.f32 0.0, %v4880
      %4882 = vmatmul.f32.gmra.mxu0 %v4824
      %v4883 = vpop.f32.mrf.mxu0
      %v4884 = vadd.f32 0.0, %v4883
      %4885 = vmatmul.f32.gmra.mxu0 %v4825
      %v4886 = vpop.f32.mrf.mxu0
      %v4887 = vadd.f32 0.0, %v4886
      %4888 = vmatmul.f32.gmra.mxu0 %v4826
      %v4889 = vpop.f32.mrf.mxu0
      %v4890 = vadd.f32 0.0, %v4889
      %4891 = vmatmul.f32.gmra.mxu0 %v4827
      %v4892 = vpop.f32.mrf.mxu0
      %v4893 = vadd.f32 0.0, %v4892
      %4894 = vmatmul.f32.gmra.mxu0 %v4828
      %v4895 = vpop.f32.mrf.mxu0
      %v4896 = vadd.f32 0.0, %v4895
      %4897 = vmatmul.f32.gmra.mxu0 %v4829
      %v4898 = vpop.f32.mrf.mxu0
      %v4899 = vadd.f32 0.0, %v4898
      %4900 = vmatmul.f32.gmra.mxu0 %v4830
      %v4901 = vpop.f32.mrf.mxu0
      %v4902 = vadd.f32 0.0, %v4901
      %4903 = vmatmul.f32.gmra.mxu0 %v4831
      %v4904 = vpop.f32.mrf.mxu0
      %v4905 = vadd.f32 0.0, %v4904
      %4906 = vmatmul.f32.gmra.mxu0 %v4832
      %v4907 = vpop.f32.mrf.mxu0
      %v4908 = vadd.f32 0.0, %v4907
      %4909 = vmatmul.f32.gmra.mxu0 %v4833
      %v4910 = vpop.f32.mrf.mxu0
      %v4911 = vadd.f32 0.0, %v4910
      %4912 = vmatmul.f32.gmra.mxu0 %v4834
      %v4913 = vpop.f32.mrf.mxu0
      %v4914 = vadd.f32 0.0, %v4913
      %4915 = vmatmul.f32.gmra.mxu0 %v4835
      %v4916 = vpop.f32.mrf.mxu0
      %v4917 = vadd.f32 0.0, %v4916
      %4918 = vmatmul.f32.gmra.mxu0 %v4836
      %v4919 = vpop.f32.mrf.mxu0
      %v4920 = vadd.f32 0.0, %v4919
      %4921 = vmatmul.f32.gmra.mxu0 %v4837
      %v4922 = vpop.f32.mrf.mxu0
      %v4923 = vadd.f32 0.0, %v4922
      %4924 = vmatmul.f32.gmra.mxu0 %v4838
      %v4925 = vpop.f32.mrf.mxu0
      %v4926 = vadd.f32 0.0, %v4925
      %4927 = vmatmul.f32.gmra.mxu0 %v4839
      %v4928 = vpop.f32.mrf.mxu0
      %v4929 = vadd.f32 0.0, %v4928
      %4930 = vmatmul.f32.gmra.mxu0 %v4840
      %v4931 = vpop.f32.mrf.mxu0
      %v4932 = vadd.f32 0.0, %v4931
      %4933 = vmatmul.f32.gmra.mxu0 %v4841
      %v4934 = vpop.f32.mrf.mxu0
      %v4935 = vadd.f32 0.0, %v4934
      %4936 = vmatmul.f32.gmra.mxu0 %v4842
      %v4937 = vpop.f32.mrf.mxu0
      %v4938 = vadd.f32 0.0, %v4937
      %4939 = vmatmul.f32.gmra.mxu0 %v4843
      %v4940 = vpop.f32.mrf.mxu0
      %v4941 = vadd.f32 0.0, %v4940
      %4942 = vmatmul.f32.gmra.mxu0 %v4844
      %v4943 = vpop.f32.mrf.mxu0
      %v4944 = vadd.f32 0.0, %v4943
      %4945 = vmatmul.f32.gmra.mxu0 %v4845
      %v4946 = vpop.f32.mrf.mxu0
      %v4947 = vadd.f32 0.0, %v4946
      %4948 = vmatmul.f32.gmra.mxu0 %v4846
      %v4949 = vpop.f32.mrf.mxu0
      %v4950 = vadd.f32 0.0, %v4949
      %4951 = vmatmul.f32.gmra.mxu0 %v4847
      %v4952 = vpop.f32.mrf.mxu0
      %v4953 = vadd.f32 0.0, %v4952
      %4954 = vmatmul.f32.gmra.mxu0 %v4848
      %v4955 = vpop.f32.mrf.mxu0
      %v4956 = vadd.f32 0.0, %v4955
      %4957 = vmatmul.f32.gmra.mxu0 %v4849
      %v4958 = vpop.f32.mrf.mxu0
      %v4959 = vadd.f32 0.0, %v4958
      %4960 = vmatmul.f32.gmra.mxu0 %v4850
      %v4961 = vpop.f32.mrf.mxu0
      %v4962 = vadd.f32 0.0, %v4961
      %4963 = vdwg.mxu0
      %v4964 = vsel %vm640, %v4869, -inf
      %4965 = vmax.xlane.f32.xlu0 %v4964
      %v4966 = vpop.xlane.xlu0 %4965
      %v4967 = vsel %vm640, %v4872, -inf
      %4968 = vmax.xlane.f32.xlu0 %v4967
      %v4969 = vpop.xlane.xlu0 %4968
      %v4970 = vsel %vm640, %v4875, -inf
      %4971 = vmax.xlane.f32.xlu0 %v4970
      %v4972 = vpop.xlane.xlu0 %4971
      %v4973 = vsel %vm640, %v4878, -inf
      %4974 = vmax.xlane.f32.xlu0 %v4973
      %v4975 = vpop.xlane.xlu0 %4974
      %v4976 = vsel %vm640, %v4881, -inf
      %4977 = vmax.xlane.f32.xlu0 %v4976
      %v4978 = vpop.xlane.xlu0 %4977
      %v4979 = vsel %vm640, %v4884, -inf
      %4980 = vmax.xlane.f32.xlu0 %v4979
      %v4981 = vpop.xlane.xlu0 %4980
      %v4982 = vsel %vm640, %v4887, -inf
      %4983 = vmax.xlane.f32.xlu0 %v4982
      %v4984 = vpop.xlane.xlu0 %4983
      %v4985 = vsel %vm640, %v4890, -inf
      %4986 = vmax.xlane.f32.xlu0 %v4985
      %v4987 = vpop.xlane.xlu0 %4986
      %v4988 = vsel %vm640, %v4893, -inf
      %4989 = vmax.xlane.f32.xlu0 %v4988
      %v4990 = vpop.xlane.xlu0 %4989
      %v4991 = vsel %vm640, %v4896, -inf
      %4992 = vmax.xlane.f32.xlu0 %v4991
      %v4993 = vpop.xlane.xlu0 %4992
      %v4994 = vsel %vm640, %v4899, -inf
      %4995 = vmax.xlane.f32.xlu0 %v4994
      %v4996 = vpop.xlane.xlu0 %4995
      %v4997 = vsel %vm640, %v4902, -inf
      %4998 = vmax.xlane.f32.xlu0 %v4997
      %v4999 = vpop.xlane.xlu0 %4998
      %v5000 = vsel %vm640, %v4905, -inf
      %5001 = vmax.xlane.f32.xlu0 %v5000
      %v5002 = vpop.xlane.xlu0 %5001
      %v5003 = vsel %vm640, %v4908, -inf
      %5004 = vmax.xlane.f32.xlu0 %v5003
      %v5005 = vpop.xlane.xlu0 %5004
      %v5006 = vsel %vm640, %v4911, -inf
      %5007 = vmax.xlane.f32.xlu0 %v5006
      %v5008 = vpop.xlane.xlu0 %5007
      %v5009 = vsel %vm640, %v4914, -inf
      %5010 = vmax.xlane.f32.xlu0 %v5009
      %v5011 = vpop.xlane.xlu0 %5010
      %v5012 = vsel %vm640, %v4917, -inf
      %5013 = vmax.xlane.f32.xlu0 %v5012
      %v5014 = vpop.xlane.xlu0 %5013
      %v5015 = vsel %vm640, %v4920, -inf
      %5016 = vmax.xlane.f32.xlu0 %v5015
      %v5017 = vpop.xlane.xlu0 %5016
      %v5018 = vsel %vm640, %v4923, -inf
      %5019 = vmax.xlane.f32.xlu0 %v5018
      %v5020 = vpop.xlane.xlu0 %5019
      %v5021 = vsel %vm640, %v4926, -inf
      %5022 = vmax.xlane.f32.xlu0 %v5021
      %v5023 = vpop.xlane.xlu0 %5022
      %v5024 = vsel %vm640, %v4929, -inf
      %5025 = vmax.xlane.f32.xlu0 %v5024
      %v5026 = vpop.xlane.xlu0 %5025
      %v5027 = vsel %vm640, %v4932, -inf
      %5028 = vmax.xlane.f32.xlu0 %v5027
      %v5029 = vpop.xlane.xlu0 %5028
      %v5030 = vsel %vm640, %v4935, -inf
      %5031 = vmax.xlane.f32.xlu0 %v5030
      %v5032 = vpop.xlane.xlu0 %5031
      %v5033 = vsel %vm640, %v4938, -inf
      %5034 = vmax.xlane.f32.xlu0 %v5033
      %v5035 = vpop.xlane.xlu0 %5034
      %v5036 = vsel %vm640, %v4941, -inf
      %5037 = vmax.xlane.f32.xlu0 %v5036
      %v5038 = vpop.xlane.xlu0 %5037
      %v5039 = vsel %vm640, %v4944, -inf
      %5040 = vmax.xlane.f32.xlu0 %v5039
      %v5041 = vpop.xlane.xlu0 %5040
      %v5042 = vsel %vm640, %v4947, -inf
      %5043 = vmax.xlane.f32.xlu0 %v5042
      %v5044 = vpop.xlane.xlu0 %5043
      %v5045 = vsel %vm640, %v4950, -inf
      %5046 = vmax.xlane.f32.xlu0 %v5045
      %v5047 = vpop.xlane.xlu0 %5046
      %v5048 = vsel %vm640, %v4953, -inf
      %5049 = vmax.xlane.f32.xlu0 %v5048
      %v5050 = vpop.xlane.xlu0 %5049
      %v5051 = vsel %vm640, %v4956, -inf
      %5052 = vmax.xlane.f32.xlu0 %v5051
      %v5053 = vpop.xlane.xlu0 %5052
      %v5054 = vsel %vm640, %v4959, -inf
      %5055 = vmax.xlane.f32.xlu0 %v5054
      %v5056 = vpop.xlane.xlu0 %5055
      %v5057 = vsel %vm640, %v4962, -inf
      %5058 = vmax.xlane.f32.xlu0 %v5057
      %v5059 = vpop.xlane.xlu0 %5058
      %v5060 = vsub.f32 %v4869, %v4966
      %v5061 = vsub.f32 %v4872, %v4969
      %v5062 = vsub.f32 %v4875, %v4972
      %v5063 = vsub.f32 %v4878, %v4975
      %v5064 = vsub.f32 %v4881, %v4978
      %v5065 = vsub.f32 %v4884, %v4981
      %v5066 = vsub.f32 %v4887, %v4984
      %v5067 = vsub.f32 %v4890, %v4987
      %v5068 = vsub.f32 %v4893, %v4990
      %v5069 = vsub.f32 %v4896, %v4993
      %v5070 = vsub.f32 %v4899, %v4996
      %v5071 = vsub.f32 %v4902, %v4999
      %v5072 = vsub.f32 %v4905, %v5002
      %v5073 = vsub.f32 %v4908, %v5005
      %v5074 = vsub.f32 %v4911, %v5008
      %v5075 = vsub.f32 %v4914, %v5011
      %v5076 = vsub.f32 %v4917, %v5014
      %v5077 = vsub.f32 %v4920, %v5017
      %v5078 = vsub.f32 %v4923, %v5020
      %v5079 = vsub.f32 %v4926, %v5023
      %v5080 = vsub.f32 %v4929, %v5026
      %v5081 = vsub.f32 %v4932, %v5029
      %v5082 = vsub.f32 %v4935, %v5032
      %v5083 = vsub.f32 %v4938, %v5035
      %v5084 = vsub.f32 %v4941, %v5038
      %v5085 = vsub.f32 %v4944, %v5041
      %v5086 = vsub.f32 %v4947, %v5044
      %v5087 = vsub.f32 %v4950, %v5047
      %v5088 = vsub.f32 %v4953, %v5050
      %v5089 = vsub.f32 %v4956, %v5053
      %v5090 = vsub.f32 %v4959, %v5056
      %v5091 = vsub.f32 %v4962, %v5059
      %v5092 = vmul.f32 %v5060, 1.442695
      %v5093 = vpow.pop %v5092
      %v5094 = vmul.f32 %v5061, 1.442695
      %v5095 = vpow.pop %v5094
      %v5096 = vmul.f32 %v5062, 1.442695
      %v5097 = vpow.pop %v5096
      %v5098 = vmul.f32 %v5063, 1.442695
      %v5099 = vpow.pop %v5098
      %v5100 = vmul.f32 %v5064, 1.442695
      %v5101 = vpow.pop %v5100
      %v5102 = vmul.f32 %v5065, 1.442695
      %v5103 = vpow.pop %v5102
      %v5104 = vmul.f32 %v5066, 1.442695
      %v5105 = vpow.pop %v5104
      %v5106 = vmul.f32 %v5067, 1.442695
      %v5107 = vpow.pop %v5106
      %v5108 = vmul.f32 %v5068, 1.442695
      %v5109 = vpow.pop %v5108
      %v5110 = vmul.f32 %v5069, 1.442695
      %v5111 = vpow.pop %v5110
      %v5112 = vmul.f32 %v5070, 1.442695
      %v5113 = vpow.pop %v5112
      %v5114 = vmul.f32 %v5071, 1.442695
      %v5115 = vpow.pop %v5114
      %v5116 = vmul.f32 %v5072, 1.442695
      %v5117 = vpow.pop %v5116
      %v5118 = vmul.f32 %v5073, 1.442695
      %v5119 = vpow.pop %v5118
      %v5120 = vmul.f32 %v5074, 1.442695
      %v5121 = vpow.pop %v5120
      %v5122 = vmul.f32 %v5075, 1.442695
      %v5123 = vpow.pop %v5122
      %v5124 = vmul.f32 %v5076, 1.442695
      %v5125 = vpow.pop %v5124
      %v5126 = vmul.f32 %v5077, 1.442695
      %v5127 = vpow.pop %v5126
      %v5128 = vmul.f32 %v5078, 1.442695
      %v5129 = vpow.pop %v5128
      %v5130 = vmul.f32 %v5079, 1.442695
      %v5131 = vpow.pop %v5130
      %v5132 = vmul.f32 %v5080, 1.442695
      %v5133 = vpow.pop %v5132
      %v5134 = vmul.f32 %v5081, 1.442695
      %v5135 = vpow.pop %v5134
      %v5136 = vmul.f32 %v5082, 1.442695
      %v5137 = vpow.pop %v5136
      %v5138 = vmul.f32 %v5083, 1.442695
      %v5139 = vpow.pop %v5138
      %v5140 = vmul.f32 %v5084, 1.442695
      %v5141 = vpow.pop %v5140
      %v5142 = vmul.f32 %v5085, 1.442695
      %v5143 = vpow.pop %v5142
      %v5144 = vmul.f32 %v5086, 1.442695
      %v5145 = vpow.pop %v5144
      %v5146 = vmul.f32 %v5087, 1.442695
      %v5147 = vpow.pop %v5146
      %v5148 = vmul.f32 %v5088, 1.442695
      %v5149 = vpow.pop %v5148
      %v5150 = vmul.f32 %v5089, 1.442695
      %v5151 = vpow.pop %v5150
      %v5152 = vmul.f32 %v5090, 1.442695
      %v5153 = vpow.pop %v5152
      %v5154 = vmul.f32 %v5091, 1.442695
      %v5155 = vpow.pop %v5154
      %v5157 = vsel %vm640, %v5093, 0
      %v5160 = vsel %vm640, %v5095, 0
      %v5163 = vsel %vm640, %v5097, 0
      %v5166 = vsel %vm640, %v5099, 0
      %v5169 = vsel %vm640, %v5101, 0
      %v5172 = vsel %vm640, %v5103, 0
      %v5175 = vsel %vm640, %v5105, 0
      %v5178 = vsel %vm640, %v5107, 0
      %v5181 = vsel %vm640, %v5109, 0
      %v5184 = vsel %vm640, %v5111, 0
      %v5187 = vsel %vm640, %v5113, 0
      %v5190 = vsel %vm640, %v5115, 0
      %v5193 = vsel %vm640, %v5117, 0
      %v5196 = vsel %vm640, %v5119, 0
      %v5199 = vsel %vm640, %v5121, 0
      %v5202 = vsel %vm640, %v5123, 0
      %v5205 = vsel %vm640, %v5125, 0
      %v5208 = vsel %vm640, %v5127, 0
      %v5211 = vsel %vm640, %v5129, 0
      %v5214 = vsel %vm640, %v5131, 0
      %v5217 = vsel %vm640, %v5133, 0
      %v5220 = vsel %vm640, %v5135, 0
      %v5223 = vsel %vm640, %v5137, 0
      %v5226 = vsel %vm640, %v5139, 0
      %v5229 = vsel %vm640, %v5141, 0
      %v5232 = vsel %vm640, %v5143, 0
      %v5235 = vsel %vm640, %v5145, 0
      %v5238 = vsel %vm640, %v5147, 0
      %v5241 = vsel %vm640, %v5149, 0
      %v5244 = vsel %vm640, %v5151, 0
      %v5247 = vsel %vm640, %v5153, 0
      %v5250 = vsel %vm640, %v5155, 0
      %5252 = vmatpush.msra.mxu0 0.0
      %5253 = vmatpush.msra.mxu0 0.0
      %5254 = vmatpush.msra.mxu0 0.0
      %5255 = vmatpush.msra.mxu0 0.0
      %5256 = vmatpush.msra.mxu0 0.0
      %5257 = vmatpush.msra.mxu0 0.0
      %5258 = vmatpush.msra.mxu0 0.0
      %5259 = vmatpush.msra.mxu0 0.0
      %5260 = vmatpush.msra.mxu0 0.0
      %5261 = vmatpush.msra.mxu0 0.0
      %5262 = vmatpush.msra.mxu0 0.0
      %5263 = vmatpush.msra.mxu0 0.0
      %5264 = vmatpush.msra.mxu0 0.0
      %5265 = vmatpush.msra.mxu0 0.0
      %5266 = vmatpush.msra.mxu0 %v1696
      %5267 = vmatpush.msra.mxu0 %v1695
      %5268 = vmatmul.f32.gmra.mxu0 %v5157
      %v5269 = vpop.f32.mrf.mxu0
      %v5270 = vadd.f32 0.0, %v5269
      %5271 = vmatmul.f32.gmra.mxu0 %v5160
      %v5272 = vpop.f32.mrf.mxu0
      %v5273 = vadd.f32 0.0, %v5272
      %5274 = vmatmul.f32.gmra.mxu0 %v5163
      %v5275 = vpop.f32.mrf.mxu0
      %v5276 = vadd.f32 0.0, %v5275
      %5277 = vmatmul.f32.gmra.mxu0 %v5166
      %v5278 = vpop.f32.mrf.mxu0
      %v5279 = vadd.f32 0.0, %v5278
      %5280 = vmatmul.f32.gmra.mxu0 %v5169
      %v5281 = vpop.f32.mrf.mxu0
      %v5282 = vadd.f32 0.0, %v5281
      %5283 = vmatmul.f32.gmra.mxu0 %v5172
      %v5284 = vpop.f32.mrf.mxu0
      %v5285 = vadd.f32 0.0, %v5284
      %5286 = vmatmul.f32.gmra.mxu0 %v5175
      %v5287 = vpop.f32.mrf.mxu0
      %v5288 = vadd.f32 0.0, %v5287
      %5289 = vmatmul.f32.gmra.mxu0 %v5178
      %v5290 = vpop.f32.mrf.mxu0
      %v5291 = vadd.f32 0.0, %v5290
      %5292 = vmatmul.f32.gmra.mxu0 %v5181
      %v5293 = vpop.f32.mrf.mxu0
      %v5294 = vadd.f32 0.0, %v5293
      %5295 = vmatmul.f32.gmra.mxu0 %v5184
      %v5296 = vpop.f32.mrf.mxu0
      %v5297 = vadd.f32 0.0, %v5296
      %5298 = vmatmul.f32.gmra.mxu0 %v5187
      %v5299 = vpop.f32.mrf.mxu0
      %v5300 = vadd.f32 0.0, %v5299
      %5301 = vmatmul.f32.gmra.mxu0 %v5190
      %v5302 = vpop.f32.mrf.mxu0
      %v5303 = vadd.f32 0.0, %v5302
      %5304 = vmatmul.f32.gmra.mxu0 %v5193
      %v5305 = vpop.f32.mrf.mxu0
      %v5306 = vadd.f32 0.0, %v5305
      %5307 = vmatmul.f32.gmra.mxu0 %v5196
      %v5308 = vpop.f32.mrf.mxu0
      %v5309 = vadd.f32 0.0, %v5308
      %5310 = vmatmul.f32.gmra.mxu0 %v5199
      %v5311 = vpop.f32.mrf.mxu0
      %v5312 = vadd.f32 0.0, %v5311
      %5313 = vmatmul.f32.gmra.mxu0 %v5202
      %v5314 = vpop.f32.mrf.mxu0
      %v5315 = vadd.f32 0.0, %v5314
      %5316 = vmatmul.f32.gmra.mxu0 %v5205
      %v5317 = vpop.f32.mrf.mxu0
      %v5318 = vadd.f32 0.0, %v5317
      %5319 = vmatmul.f32.gmra.mxu0 %v5208
      %v5320 = vpop.f32.mrf.mxu0
      %v5321 = vadd.f32 0.0, %v5320
      %5322 = vmatmul.f32.gmra.mxu0 %v5211
      %v5323 = vpop.f32.mrf.mxu0
      %v5324 = vadd.f32 0.0, %v5323
      %5325 = vmatmul.f32.gmra.mxu0 %v5214
      %v5326 = vpop.f32.mrf.mxu0
      %v5327 = vadd.f32 0.0, %v5326
      %5328 = vmatmul.f32.gmra.mxu0 %v5217
      %v5329 = vpop.f32.mrf.mxu0
      %v5330 = vadd.f32 0.0, %v5329
      %5331 = vmatmul.f32.gmra.mxu0 %v5220
      %v5332 = vpop.f32.mrf.mxu0
      %v5333 = vadd.f32 0.0, %v5332
      %5334 = vmatmul.f32.gmra.mxu0 %v5223
      %v5335 = vpop.f32.mrf.mxu0
      %v5336 = vadd.f32 0.0, %v5335
      %5337 = vmatmul.f32.gmra.mxu0 %v5226
      %v5338 = vpop.f32.mrf.mxu0
      %v5339 = vadd.f32 0.0, %v5338
      %5340 = vmatmul.f32.gmra.mxu0 %v5229
      %v5341 = vpop.f32.mrf.mxu0
      %v5342 = vadd.f32 0.0, %v5341
      %5343 = vmatmul.f32.gmra.mxu0 %v5232
      %v5344 = vpop.f32.mrf.mxu0
      %v5345 = vadd.f32 0.0, %v5344
      %5346 = vmatmul.f32.gmra.mxu0 %v5235
      %v5347 = vpop.f32.mrf.mxu0
      %v5348 = vadd.f32 0.0, %v5347
      %5349 = vmatmul.f32.gmra.mxu0 %v5238
      %v5350 = vpop.f32.mrf.mxu0
      %v5351 = vadd.f32 0.0, %v5350
      %5352 = vmatmul.f32.gmra.mxu0 %v5241
      %v5353 = vpop.f32.mrf.mxu0
      %v5354 = vadd.f32 0.0, %v5353
      %5355 = vmatmul.f32.gmra.mxu0 %v5244
      %v5356 = vpop.f32.mrf.mxu0
      %v5357 = vadd.f32 0.0, %v5356
      %5358 = vmatmul.f32.gmra.mxu0 %v5247
      %v5359 = vpop.f32.mrf.mxu0
      %v5360 = vadd.f32 0.0, %v5359
      %5361 = vmatmul.f32.gmra.mxu0 %v5250
      %v5362 = vpop.f32.mrf.mxu0
      %v5363 = vadd.f32 0.0, %v5362
      %5364 = vdwg.mxu0
      %v5365 = vrcp.pop %v5270
      %v5366 = vrcp.pop %v5273
      %v5367 = vrcp.pop %v5276
      %v5368 = vrcp.pop %v5279
      %v5369 = vrcp.pop %v5282
      %v5370 = vrcp.pop %v5285
      %v5371 = vrcp.pop %v5288
      %v5372 = vrcp.pop %v5291
      %v5373 = vrcp.pop %v5294
      %v5374 = vrcp.pop %v5297
      %v5375 = vrcp.pop %v5300
      %v5376 = vrcp.pop %v5303
      %v5377 = vrcp.pop %v5306
      %v5378 = vrcp.pop %v5309
      %v5379 = vrcp.pop %v5312
      %v5380 = vrcp.pop %v5315
      %v5381 = vrcp.pop %v5318
      %v5382 = vrcp.pop %v5321
      %v5383 = vrcp.pop %v5324
      %v5384 = vrcp.pop %v5327
      %v5385 = vrcp.pop %v5330
      %v5386 = vrcp.pop %v5333
      %v5387 = vrcp.pop %v5336
      %v5388 = vrcp.pop %v5339
      %v5389 = vrcp.pop %v5342
      %v5390 = vrcp.pop %v5345
      %v5391 = vrcp.pop %v5348
      %v5392 = vrcp.pop %v5351
      %v5393 = vrcp.pop %v5354
      %v5394 = vrcp.pop %v5357
      %v5395 = vrcp.pop %v5360
      %v5396 = vrcp.pop %v5363
      %5397 = vmatpush.msra.mxu0 0.0
      %5398 = vmatpush.msra.mxu0 0.0
      %5399 = vmatpush.msra.mxu0 0.0
      %5400 = vmatpush.msra.mxu0 0.0
      %5401 = vmatpush.msra.mxu0 0.0
      %5402 = vmatpush.msra.mxu0 0.0
      %5403 = vmatpush.msra.mxu0 0.0
      %5404 = vmatpush.msra.mxu0 0.0
      %5405 = vmatpush.msra.mxu0 0.0
      %5406 = vmatpush.msra.mxu0 0.0
      %5407 = vmatpush.msra.mxu0 0.0
      %5408 = vmatpush.msra.mxu0 0.0
      %5409 = vmatpush.msra.mxu0 0.0
      %5410 = vmatpush.msra.mxu0 0.0
      %5411 = vmatpush.msra.mxu0 %v1939
      %5412 = vmatpush.msra.mxu0 %v1938
      %5413 = vmatmul.f32.gmra.mxu0 %v5157
      %v5414 = vpop.f32.mrf.mxu0
      %v5415 = vadd.f32 0.0, %v5414
      %5416 = vmatmul.f32.gmra.mxu0 %v5160
      %v5417 = vpop.f32.mrf.mxu0
      %v5418 = vadd.f32 0.0, %v5417
      %5419 = vmatmul.f32.gmra.mxu0 %v5163
      %v5420 = vpop.f32.mrf.mxu0
      %v5421 = vadd.f32 0.0, %v5420
      %5422 = vmatmul.f32.gmra.mxu0 %v5166
      %v5423 = vpop.f32.mrf.mxu0
      %v5424 = vadd.f32 0.0, %v5423
      %5425 = vmatmul.f32.gmra.mxu0 %v5169
      %v5426 = vpop.f32.mrf.mxu0
      %v5427 = vadd.f32 0.0, %v5426
      %5428 = vmatmul.f32.gmra.mxu0 %v5172
      %v5429 = vpop.f32.mrf.mxu0
      %v5430 = vadd.f32 0.0, %v5429
      %5431 = vmatmul.f32.gmra.mxu0 %v5175
      %v5432 = vpop.f32.mrf.mxu0
      %v5433 = vadd.f32 0.0, %v5432
      %5434 = vmatmul.f32.gmra.mxu0 %v5178
      %v5435 = vpop.f32.mrf.mxu0
      %v5436 = vadd.f32 0.0, %v5435
      %5437 = vmatmul.f32.gmra.mxu0 %v5181
      %v5438 = vpop.f32.mrf.mxu0
      %v5439 = vadd.f32 0.0, %v5438
      %5440 = vmatmul.f32.gmra.mxu0 %v5184
      %v5441 = vpop.f32.mrf.mxu0
      %v5442 = vadd.f32 0.0, %v5441
      %5443 = vmatmul.f32.gmra.mxu0 %v5187
      %v5444 = vpop.f32.mrf.mxu0
      %v5445 = vadd.f32 0.0, %v5444
      %5446 = vmatmul.f32.gmra.mxu0 %v5190
      %v5447 = vpop.f32.mrf.mxu0
      %v5448 = vadd.f32 0.0, %v5447
      %5449 = vmatmul.f32.gmra.mxu0 %v5193
      %v5450 = vpop.f32.mrf.mxu0
      %v5451 = vadd.f32 0.0, %v5450
      %5452 = vmatmul.f32.gmra.mxu0 %v5196
      %v5453 = vpop.f32.mrf.mxu0
      %v5454 = vadd.f32 0.0, %v5453
      %5455 = vmatmul.f32.gmra.mxu0 %v5199
      %v5456 = vpop.f32.mrf.mxu0
      %v5457 = vadd.f32 0.0, %v5456
      %5458 = vmatmul.f32.gmra.mxu0 %v5202
      %v5459 = vpop.f32.mrf.mxu0
      %v5460 = vadd.f32 0.0, %v5459
      %5461 = vmatmul.f32.gmra.mxu0 %v5205
      %v5462 = vpop.f32.mrf.mxu0
      %v5463 = vadd.f32 0.0, %v5462
      %5464 = vmatmul.f32.gmra.mxu0 %v5208
      %v5465 = vpop.f32.mrf.mxu0
      %v5466 = vadd.f32 0.0, %v5465
      %5467 = vmatmul.f32.gmra.mxu0 %v5211
      %v5468 = vpop.f32.mrf.mxu0
      %v5469 = vadd.f32 0.0, %v5468
      %5470 = vmatmul.f32.gmra.mxu0 %v5214
      %v5471 = vpop.f32.mrf.mxu0
      %v5472 = vadd.f32 0.0, %v5471
      %5473 = vmatmul.f32.gmra.mxu0 %v5217
      %v5474 = vpop.f32.mrf.mxu0
      %v5475 = vadd.f32 0.0, %v5474
      %5476 = vmatmul.f32.gmra.mxu0 %v5220
      %v5477 = vpop.f32.mrf.mxu0
      %v5478 = vadd.f32 0.0, %v5477
      %5479 = vmatmul.f32.gmra.mxu0 %v5223
      %v5480 = vpop.f32.mrf.mxu0
      %v5481 = vadd.f32 0.0, %v5480
      %5482 = vmatmul.f32.gmra.mxu0 %v5226
      %v5483 = vpop.f32.mrf.mxu0
      %v5484 = vadd.f32 0.0, %v5483
      %5485 = vmatmul.f32.gmra.mxu0 %v5229
      %v5486 = vpop.f32.mrf.mxu0
      %v5487 = vadd.f32 0.0, %v5486
      %5488 = vmatmul.f32.gmra.mxu0 %v5232
      %v5489 = vpop.f32.mrf.mxu0
      %v5490 = vadd.f32 0.0, %v5489
      %5491 = vmatmul.f32.gmra.mxu0 %v5235
      %v5492 = vpop.f32.mrf.mxu0
      %v5493 = vadd.f32 0.0, %v5492
      %5494 = vmatmul.f32.gmra.mxu0 %v5238
      %v5495 = vpop.f32.mrf.mxu0
      %v5496 = vadd.f32 0.0, %v5495
      %5497 = vmatmul.f32.gmra.mxu0 %v5241
      %v5498 = vpop.f32.mrf.mxu0
      %v5499 = vadd.f32 0.0, %v5498
      %5500 = vmatmul.f32.gmra.mxu0 %v5244
      %v5501 = vpop.f32.mrf.mxu0
      %v5502 = vadd.f32 0.0, %v5501
      %5503 = vmatmul.f32.gmra.mxu0 %v5247
      %v5504 = vpop.f32.mrf.mxu0
      %v5505 = vadd.f32 0.0, %v5504
      %5506 = vmatmul.f32.gmra.mxu0 %v5250
      %v5507 = vpop.f32.mrf.mxu0
      %v5508 = vadd.f32 0.0, %v5507
      %5509 = vdwg.mxu0
      %v5511 = vsel %vm2054, %v5365, 0
      %v5514 = vsel %vm2054, %v5366, 0
      %v5517 = vsel %vm2054, %v5367, 0
      %v5520 = vsel %vm2054, %v5368, 0
      %v5523 = vsel %vm2054, %v5369, 0
      %v5526 = vsel %vm2054, %v5370, 0
      %v5529 = vsel %vm2054, %v5371, 0
      %v5532 = vsel %vm2054, %v5372, 0
      %v5535 = vsel %vm2054, %v5373, 0
      %v5538 = vsel %vm2054, %v5374, 0
      %v5541 = vsel %vm2054, %v5375, 0
      %v5544 = vsel %vm2054, %v5376, 0
      %v5547 = vsel %vm2054, %v5377, 0
      %v5550 = vsel %vm2054, %v5378, 0
      %v5553 = vsel %vm2054, %v5379, 0
      %v5556 = vsel %vm2054, %v5380, 0
      %v5559 = vsel %vm2054, %v5381, 0
      %v5562 = vsel %vm2054, %v5382, 0
      %v5565 = vsel %vm2054, %v5383, 0
      %v5568 = vsel %vm2054, %v5384, 0
      %v5571 = vsel %vm2054, %v5385, 0
      %v5574 = vsel %vm2054, %v5386, 0
      %v5577 = vsel %vm2054, %v5387, 0
      %v5580 = vsel %vm2054, %v5388, 0
      %v5583 = vsel %vm2054, %v5389, 0
      %v5586 = vsel %vm2054, %v5390, 0
      %v5589 = vsel %vm2054, %v5391, 0
      %v5592 = vsel %vm2054, %v5392, 0
      %v5595 = vsel %vm2054, %v5393, 0
      %v5598 = vsel %vm2054, %v5394, 0
      %v5601 = vsel %vm2054, %v5395, 0
      %v5604 = vsel %vm2054, %v5396, 0
      %5606 = vmatpush.msra.mxu0 0.0
      %5607 = vmatpush.msra.mxu0 0.0
      %5608 = vmatpush.msra.mxu0 0.0
      %5609 = vmatpush.msra.mxu0 0.0
      %5610 = vmatpush.msra.mxu0 0.0
      %5611 = vmatpush.msra.mxu0 0.0
      %5612 = vmatpush.msra.mxu0 0.0
      %5613 = vmatpush.msra.mxu0 0.0
      %5614 = vmatpush.msra.mxu0 0.0
      %5615 = vmatpush.msra.mxu0 0.0
      %5616 = vmatpush.msra.mxu0 0.0
      %5617 = vmatpush.msra.mxu0 0.0
      %5618 = vmatpush.msra.mxu0 0.0
      %5619 = vmatpush.msra.mxu0 0.0
      %5620 = vmatpush.msra.mxu0 0.0
      %5621 = vmatpush.msra.mxu0 %v2153
      %5622 = vmatmul.f32.gmra.mxu0 %v5511
      %v5623 = vpop.f32.mrf.mxu0
      %v5624 = vadd.f32 0.0, %v5623
      %5625 = vmatmul.f32.gmra.mxu0 %v5514
      %v5626 = vpop.f32.mrf.mxu0
      %v5627 = vadd.f32 0.0, %v5626
      %5628 = vmatmul.f32.gmra.mxu0 %v5517
      %v5629 = vpop.f32.mrf.mxu0
      %v5630 = vadd.f32 0.0, %v5629
      %5631 = vmatmul.f32.gmra.mxu0 %v5520
      %v5632 = vpop.f32.mrf.mxu0
      %v5633 = vadd.f32 0.0, %v5632
      %5634 = vmatmul.f32.gmra.mxu0 %v5523
      %v5635 = vpop.f32.mrf.mxu0
      %v5636 = vadd.f32 0.0, %v5635
      %5637 = vmatmul.f32.gmra.mxu0 %v5526
      %v5638 = vpop.f32.mrf.mxu0
      %v5639 = vadd.f32 0.0, %v5638
      %5640 = vmatmul.f32.gmra.mxu0 %v5529
      %v5641 = vpop.f32.mrf.mxu0
      %v5642 = vadd.f32 0.0, %v5641
      %5643 = vmatmul.f32.gmra.mxu0 %v5532
      %v5644 = vpop.f32.mrf.mxu0
      %v5645 = vadd.f32 0.0, %v5644
      %5646 = vmatmul.f32.gmra.mxu0 %v5535
      %v5647 = vpop.f32.mrf.mxu0
      %v5648 = vadd.f32 0.0, %v5647
      %5649 = vmatmul.f32.gmra.mxu0 %v5538
      %v5650 = vpop.f32.mrf.mxu0
      %v5651 = vadd.f32 0.0, %v5650
      %5652 = vmatmul.f32.gmra.mxu0 %v5541
      %v5653 = vpop.f32.mrf.mxu0
      %v5654 = vadd.f32 0.0, %v5653
      %5655 = vmatmul.f32.gmra.mxu0 %v5544
      %v5656 = vpop.f32.mrf.mxu0
      %v5657 = vadd.f32 0.0, %v5656
      %5658 = vmatmul.f32.gmra.mxu0 %v5547
      %v5659 = vpop.f32.mrf.mxu0
      %v5660 = vadd.f32 0.0, %v5659
      %5661 = vmatmul.f32.gmra.mxu0 %v5550
      %v5662 = vpop.f32.mrf.mxu0
      %v5663 = vadd.f32 0.0, %v5662
      %5664 = vmatmul.f32.gmra.mxu0 %v5553
      %v5665 = vpop.f32.mrf.mxu0
      %v5666 = vadd.f32 0.0, %v5665
      %5667 = vmatmul.f32.gmra.mxu0 %v5556
      %v5668 = vpop.f32.mrf.mxu0
      %v5669 = vadd.f32 0.0, %v5668
      %5670 = vmatmul.f32.gmra.mxu0 %v5559
      %v5671 = vpop.f32.mrf.mxu0
      %v5672 = vadd.f32 0.0, %v5671
      %5673 = vmatmul.f32.gmra.mxu0 %v5562
      %v5674 = vpop.f32.mrf.mxu0
      %v5675 = vadd.f32 0.0, %v5674
      %5676 = vmatmul.f32.gmra.mxu0 %v5565
      %v5677 = vpop.f32.mrf.mxu0
      %v5678 = vadd.f32 0.0, %v5677
      %5679 = vmatmul.f32.gmra.mxu0 %v5568
      %v5680 = vpop.f32.mrf.mxu0
      %v5681 = vadd.f32 0.0, %v5680
      %5682 = vmatmul.f32.gmra.mxu0 %v5571
      %v5683 = vpop.f32.mrf.mxu0
      %v5684 = vadd.f32 0.0, %v5683
      %5685 = vmatmul.f32.gmra.mxu0 %v5574
      %v5686 = vpop.f32.mrf.mxu0
      %v5687 = vadd.f32 0.0, %v5686
      %5688 = vmatmul.f32.gmra.mxu0 %v5577
      %v5689 = vpop.f32.mrf.mxu0
      %v5690 = vadd.f32 0.0, %v5689
      %5691 = vmatmul.f32.gmra.mxu0 %v5580
      %v5692 = vpop.f32.mrf.mxu0
      %v5693 = vadd.f32 0.0, %v5692
      %5694 = vmatmul.f32.gmra.mxu0 %v5583
      %v5695 = vpop.f32.mrf.mxu0
      %v5696 = vadd.f32 0.0, %v5695
      %5697 = vmatmul.f32.gmra.mxu0 %v5586
      %v5698 = vpop.f32.mrf.mxu0
      %v5699 = vadd.f32 0.0, %v5698
      %5700 = vmatmul.f32.gmra.mxu0 %v5589
      %v5701 = vpop.f32.mrf.mxu0
      %v5702 = vadd.f32 0.0, %v5701
      %5703 = vmatmul.f32.gmra.mxu0 %v5592
      %v5704 = vpop.f32.mrf.mxu0
      %v5705 = vadd.f32 0.0, %v5704
      %5706 = vmatmul.f32.gmra.mxu0 %v5595
      %v5707 = vpop.f32.mrf.mxu0
      %v5708 = vadd.f32 0.0, %v5707
      %5709 = vmatmul.f32.gmra.mxu0 %v5598
      %v5710 = vpop.f32.mrf.mxu0
      %v5711 = vadd.f32 0.0, %v5710
      %5712 = vmatmul.f32.gmra.mxu0 %v5601
      %v5713 = vpop.f32.mrf.mxu0
      %v5714 = vadd.f32 0.0, %v5713
      %5715 = vmatmul.f32.gmra.mxu0 %v5604
      %v5716 = vpop.f32.mrf.mxu0
      %v5717 = vadd.f32 0.0, %v5716
      %5718 = vdwg.mxu0
      %v5719 = vmul.f32 %v5415, %v5624
      %v5720 = vmul.f32 %v5418, %v5627
      %v5721 = vmul.f32 %v5421, %v5630
      %v5722 = vmul.f32 %v5424, %v5633
      %v5723 = vmul.f32 %v5427, %v5636
      %v5724 = vmul.f32 %v5430, %v5639
      %v5725 = vmul.f32 %v5433, %v5642
      %v5726 = vmul.f32 %v5436, %v5645
      %v5727 = vmul.f32 %v5439, %v5648
      %v5728 = vmul.f32 %v5442, %v5651
      %v5729 = vmul.f32 %v5445, %v5654
      %v5730 = vmul.f32 %v5448, %v5657
      %v5731 = vmul.f32 %v5451, %v5660
      %v5732 = vmul.f32 %v5454, %v5663
      %v5733 = vmul.f32 %v5457, %v5666
      %v5734 = vmul.f32 %v5460, %v5669
      %v5735 = vmul.f32 %v5463, %v5672
      %v5736 = vmul.f32 %v5466, %v5675
      %v5737 = vmul.f32 %v5469, %v5678
      %v5738 = vmul.f32 %v5472, %v5681
      %v5739 = vmul.f32 %v5475, %v5684
      %v5740 = vmul.f32 %v5478, %v5687
      %v5741 = vmul.f32 %v5481, %v5690
      %v5742 = vmul.f32 %v5484, %v5693
      %v5743 = vmul.f32 %v5487, %v5696
      %v5744 = vmul.f32 %v5490, %v5699
      %v5745 = vmul.f32 %v5493, %v5702
      %v5746 = vmul.f32 %v5496, %v5705
      %v5747 = vmul.f32 %v5499, %v5708
      %v5748 = vmul.f32 %v5502, %v5711
      %v5749 = vmul.f32 %v5505, %v5714
      %v5750 = vmul.f32 %v5508, %v5717
      %v5751 = vmul.f32 %v5719, %v4740
      %v5752 = vmul.f32 %v5720, %v4742
      %v5753 = vmul.f32 %v5721, %v4745
      %v5754 = vmul.f32 %v5722, %v4747
      %v5755 = vmul.f32 %v5723, %v4750
      %v5756 = vmul.f32 %v5724, %v4752
      %v5757 = vmul.f32 %v5725, %v4755
      %v5758 = vmul.f32 %v5726, %v4757
      %v5759 = vmul.f32 %v5727, %v4760
      %v5760 = vmul.f32 %v5728, %v4762
      %v5761 = vmul.f32 %v5729, %v4765
      %v5762 = vmul.f32 %v5730, %v4767
      %v5763 = vmul.f32 %v5731, %v4770
      %v5764 = vmul.f32 %v5732, %v4772
      %v5765 = vmul.f32 %v5733, %v4775
      %v5766 = vmul.f32 %v5734, %v4777
      %v5767 = vmul.f32 %v5735, %v4780
      %v5768 = vmul.f32 %v5736, %v4782
      %v5769 = vmul.f32 %v5737, %v4785
      %v5770 = vmul.f32 %v5738, %v4787
      %v5771 = vmul.f32 %v5739, %v4790
      %v5772 = vmul.f32 %v5740, %v4792
      %v5773 = vmul.f32 %v5741, %v4795
      %v5774 = vmul.f32 %v5742, %v4797
      %v5775 = vmul.f32 %v5743, %v4800
      %v5776 = vmul.f32 %v5744, %v4802
      %v5777 = vmul.f32 %v5745, %v4805
      %v5778 = vmul.f32 %v5746, %v4807
      %v5779 = vmul.f32 %v5747, %v4810
      %v5780 = vmul.f32 %v5748, %v4812
      %v5781 = vmul.f32 %v5749, %v4815
      %v5782 = vmul.f32 %v5750, %v4817
      %5783 = vmatpush.msra.mxu0 %v2347
      %5784 = vmatpush.msra.mxu0 %v2346
      %5785 = vmatpush.msra.mxu0 %v2345
      %5786 = vmatpush.msra.mxu0 %v2344
      %5787 = vmatpush.msra.mxu0 %v2343
      %5788 = vmatpush.msra.mxu0 %v2342
      %5789 = vmatpush.msra.mxu0 %v2341
      %5790 = vmatpush.msra.mxu0 %v2340
      %5791 = vmatpush.msra.mxu0 %v2339
      %5792 = vmatpush.msra.mxu0 %v2338
      %5793 = vmatpush.msra.mxu0 %v2337
      %5794 = vmatpush.msra.mxu0 %v2336
      %5795 = vmatpush.msra.mxu0 %v2335
      %5796 = vmatpush.msra.mxu0 %v2334
      %5797 = vmatpush.msra.mxu0 %v2333
      %5798 = vmatpush.msra.mxu0 %v2332
      %5799 = vmatmul.f32.gmra.mxu0 %v5751
      %v5800 = vpop.f32.mrf.mxu0
      %v5801 = vadd.f32 0.0, %v5800
      %5802 = vmatmul.f32.gmra.mxu0 %v5752
      %v5803 = vpop.f32.mrf.mxu0
      %v5804 = vadd.f32 0.0, %v5803
      %5805 = vmatmul.f32.gmra.mxu0 %v5753
      %v5806 = vpop.f32.mrf.mxu0
      %v5807 = vadd.f32 0.0, %v5806
      %5808 = vmatmul.f32.gmra.mxu0 %v5754
      %v5809 = vpop.f32.mrf.mxu0
      %v5810 = vadd.f32 0.0, %v5809
      %5811 = vmatmul.f32.gmra.mxu0 %v5755
      %v5812 = vpop.f32.mrf.mxu0
      %v5813 = vadd.f32 0.0, %v5812
      %5814 = vmatmul.f32.gmra.mxu0 %v5756
      %v5815 = vpop.f32.mrf.mxu0
      %v5816 = vadd.f32 0.0, %v5815
      %5817 = vmatmul.f32.gmra.mxu0 %v5757
      %v5818 = vpop.f32.mrf.mxu0
      %v5819 = vadd.f32 0.0, %v5818
      %5820 = vmatmul.f32.gmra.mxu0 %v5758
      %v5821 = vpop.f32.mrf.mxu0
      %v5822 = vadd.f32 0.0, %v5821
      %5823 = vmatmul.f32.gmra.mxu0 %v5759
      %v5824 = vpop.f32.mrf.mxu0
      %v5825 = vadd.f32 0.0, %v5824
      %5826 = vmatmul.f32.gmra.mxu0 %v5760
      %v5827 = vpop.f32.mrf.mxu0
      %v5828 = vadd.f32 0.0, %v5827
      %5829 = vmatmul.f32.gmra.mxu0 %v5761
      %v5830 = vpop.f32.mrf.mxu0
      %v5831 = vadd.f32 0.0, %v5830
      %5832 = vmatmul.f32.gmra.mxu0 %v5762
      %v5833 = vpop.f32.mrf.mxu0
      %v5834 = vadd.f32 0.0, %v5833
      %5835 = vmatmul.f32.gmra.mxu0 %v5763
      %v5836 = vpop.f32.mrf.mxu0
      %v5837 = vadd.f32 0.0, %v5836
      %5838 = vmatmul.f32.gmra.mxu0 %v5764
      %v5839 = vpop.f32.mrf.mxu0
      %v5840 = vadd.f32 0.0, %v5839
      %5841 = vmatmul.f32.gmra.mxu0 %v5765
      %v5842 = vpop.f32.mrf.mxu0
      %v5843 = vadd.f32 0.0, %v5842
      %5844 = vmatmul.f32.gmra.mxu0 %v5766
      %v5845 = vpop.f32.mrf.mxu0
      %v5846 = vadd.f32 0.0, %v5845
      %5847 = vmatmul.f32.gmra.mxu0 %v5767
      %v5848 = vpop.f32.mrf.mxu0
      %v5849 = vadd.f32 0.0, %v5848
      %5850 = vmatmul.f32.gmra.mxu0 %v5768
      %v5851 = vpop.f32.mrf.mxu0
      %v5852 = vadd.f32 0.0, %v5851
      %5853 = vmatmul.f32.gmra.mxu0 %v5769
      %v5854 = vpop.f32.mrf.mxu0
      %v5855 = vadd.f32 0.0, %v5854
      %5856 = vmatmul.f32.gmra.mxu0 %v5770
      %v5857 = vpop.f32.mrf.mxu0
      %v5858 = vadd.f32 0.0, %v5857
      %5859 = vmatmul.f32.gmra.mxu0 %v5771
      %v5860 = vpop.f32.mrf.mxu0
      %v5861 = vadd.f32 0.0, %v5860
      %5862 = vmatmul.f32.gmra.mxu0 %v5772
      %v5863 = vpop.f32.mrf.mxu0
      %v5864 = vadd.f32 0.0, %v5863
      %5865 = vmatmul.f32.gmra.mxu0 %v5773
      %v5866 = vpop.f32.mrf.mxu0
      %v5867 = vadd.f32 0.0, %v5866
      %5868 = vmatmul.f32.gmra.mxu0 %v5774
      %v5869 = vpop.f32.mrf.mxu0
      %v5870 = vadd.f32 0.0, %v5869
      %5871 = vmatmul.f32.gmra.mxu0 %v5775
      %v5872 = vpop.f32.mrf.mxu0
      %v5873 = vadd.f32 0.0, %v5872
      %5874 = vmatmul.f32.gmra.mxu0 %v5776
      %v5875 = vpop.f32.mrf.mxu0
      %v5876 = vadd.f32 0.0, %v5875
      %5877 = vmatmul.f32.gmra.mxu0 %v5777
      %v5878 = vpop.f32.mrf.mxu0
      %v5879 = vadd.f32 0.0, %v5878
      %5880 = vmatmul.f32.gmra.mxu0 %v5778
      %v5881 = vpop.f32.mrf.mxu0
      %v5882 = vadd.f32 0.0, %v5881
      %5883 = vmatmul.f32.gmra.mxu0 %v5779
      %v5884 = vpop.f32.mrf.mxu0
      %v5885 = vadd.f32 0.0, %v5884
      %5886 = vmatmul.f32.gmra.mxu0 %v5780
      %v5887 = vpop.f32.mrf.mxu0
      %v5888 = vadd.f32 0.0, %v5887
      %5889 = vmatmul.f32.gmra.mxu0 %v5781
      %v5890 = vpop.f32.mrf.mxu0
      %v5891 = vadd.f32 0.0, %v5890
      %5892 = vmatmul.f32.gmra.mxu0 %v5782
      %v5893 = vpop.f32.mrf.mxu0
      %v5894 = vadd.f32 0.0, %v5893
      %5895 = vdwg.mxu0
      %v5896 = vpack.c.bf16 %v5804, %v5801
      %v5897 = vpack.c.bf16 %v5810, %v5807
      %v5898 = vpack.c.bf16 %v5816, %v5813
      %v5899 = vpack.c.bf16 %v5822, %v5819
      %v5900 = vpack.c.bf16 %v5828, %v5825
      %v5901 = vpack.c.bf16 %v5834, %v5831
      %v5902 = vpack.c.bf16 %v5840, %v5837
      %v5903 = vpack.c.bf16 %v5846, %v5843
      %v5904 = vpack.c.bf16 %v5852, %v5849
      %v5905 = vpack.c.bf16 %v5858, %v5855
      %v5906 = vpack.c.bf16 %v5864, %v5861
      %v5907 = vpack.c.bf16 %v5870, %v5867
      %v5908 = vpack.c.bf16 %v5876, %v5873
      %v5909 = vpack.c.bf16 %v5882, %v5879
      %v5910 = vpack.c.bf16 %v5888, %v5885
      %v5911 = vpack.c.bf16 %v5894, %v5891
      %v5912 = vld [vmem:[%s7] sm:$0xf]
      %v5913 = vld [vmem:[%s7 + $0x4] sm:$0xf]
      %v5914 = vld [vmem:[%s7 + $0x8] sm:$0xf]
      %v5915 = vld [vmem:[%s7 + $0xc] sm:$0xf]
      %v5916 = vperm.slane %v4085, 1
      %v5921 = vunpack.c.l.b16 %v5912
      %v5922 = vunpack.c.l.b16 %v5913
      %v5923 = vunpack.c.l.b16 %v5914
      %v5924 = vunpack.c.l.b16 %v5915
      %v5925 = vpack.c.b16 %v5922, %v5921
      %v5926 = vpack.c.b16 %v5924, %v5923
      %v5930 = vsel %vm1026, %v5896, 0
      %v5933 = vsel %vm1026, %v5897, 0
      %v5936 = vsel %vm1026, %v5898, 0
      %v5939 = vsel %vm1026, %v5899, 0
      %v5942 = vsel %vm1026, %v5900, 0
      %v5945 = vsel %vm1026, %v5901, 0
      %v5948 = vsel %vm1026, %v5902, 0
      %v5951 = vsel %vm1026, %v5903, 0
      %v5954 = vsel %vm1026, %v5904, 0
      %v5957 = vsel %vm1026, %v5905, 0
      %v5960 = vsel %vm1026, %v5906, 0
      %v5963 = vsel %vm1026, %v5907, 0
      %v5966 = vsel %vm1026, %v5908, 0
      %v5969 = vsel %vm1026, %v5909, 0
      %v5972 = vsel %vm1026, %v5910, 0
      %v5975 = vsel %vm1026, %v5911, 0
      %5977 = vmatpush.bf16.msra.mxu0 0
      %5978 = vmatpush.bf16.msra.mxu0 0
      %5979 = vmatpush.bf16.msra.mxu0 0
      %5980 = vmatpush.bf16.msra.mxu0 0
      %5981 = vmatpush.bf16.msra.mxu0 0
      %5982 = vmatpush.bf16.msra.mxu0 0
      %5983 = vmatpush.bf16.msra.mxu0 %v5926
      %5984 = vmatpush.bf16.msra.mxu0 %v5925
      %5985 = vmatmul.bf16.gmra.mxu0 %v5930
      %v5986 = vpop.f32.mrf.mxu0
      %v5987 = vadd.f32 %v5916, %v5986
      %v5988 = vpop.f32.mrf.mxu0
      %v5989 = vadd.f32 %v5916, %v5988
      %5990 = vmatmul.bf16.gmra.mxu0 %v5933
      %v5991 = vpop.f32.mrf.mxu0
      %v5992 = vadd.f32 %v5916, %v5991
      %v5993 = vpop.f32.mrf.mxu0
      %v5994 = vadd.f32 %v5916, %v5993
      %5995 = vmatmul.bf16.gmra.mxu0 %v5936
      %v5996 = vpop.f32.mrf.mxu0
      %v5997 = vadd.f32 %v5916, %v5996
      %v5998 = vpop.f32.mrf.mxu0
      %v5999 = vadd.f32 %v5916, %v5998
      %6000 = vmatmul.bf16.gmra.mxu0 %v5939
      %v6001 = vpop.f32.mrf.mxu0
      %v6002 = vadd.f32 %v5916, %v6001
      %v6003 = vpop.f32.mrf.mxu0
      %v6004 = vadd.f32 %v5916, %v6003
      %6005 = vmatmul.bf16.gmra.mxu0 %v5942
      %v6006 = vpop.f32.mrf.mxu0
      %v6007 = vadd.f32 %v5916, %v6006
      %v6008 = vpop.f32.mrf.mxu0
      %v6009 = vadd.f32 %v5916, %v6008
      %6010 = vmatmul.bf16.gmra.mxu0 %v5945
      %v6011 = vpop.f32.mrf.mxu0
      %v6012 = vadd.f32 %v5916, %v6011
      %v6013 = vpop.f32.mrf.mxu0
      %v6014 = vadd.f32 %v5916, %v6013
      %6015 = vmatmul.bf16.gmra.mxu0 %v5948
      %v6016 = vpop.f32.mrf.mxu0
      %v6017 = vadd.f32 %v5916, %v6016
      %v6018 = vpop.f32.mrf.mxu0
      %v6019 = vadd.f32 %v5916, %v6018
      %6020 = vmatmul.bf16.gmra.mxu0 %v5951
      %v6021 = vpop.f32.mrf.mxu0
      %v6022 = vadd.f32 %v5916, %v6021
      %v6023 = vpop.f32.mrf.mxu0
      %v6024 = vadd.f32 %v5916, %v6023
      %6025 = vmatmul.bf16.gmra.mxu0 %v5954
      %v6026 = vpop.f32.mrf.mxu0
      %v6027 = vadd.f32 %v5916, %v6026
      %v6028 = vpop.f32.mrf.mxu0
      %v6029 = vadd.f32 %v5916, %v6028
      %6030 = vmatmul.bf16.gmra.mxu0 %v5957
      %v6031 = vpop.f32.mrf.mxu0
      %v6032 = vadd.f32 %v5916, %v6031
      %v6033 = vpop.f32.mrf.mxu0
      %v6034 = vadd.f32 %v5916, %v6033
      %6035 = vmatmul.bf16.gmra.mxu0 %v5960
      %v6036 = vpop.f32.mrf.mxu0
      %v6037 = vadd.f32 %v5916, %v6036
      %v6038 = vpop.f32.mrf.mxu0
      %v6039 = vadd.f32 %v5916, %v6038
      %6040 = vmatmul.bf16.gmra.mxu0 %v5963
      %v6041 = vpop.f32.mrf.mxu0
      %v6042 = vadd.f32 %v5916, %v6041
      %v6043 = vpop.f32.mrf.mxu0
      %v6044 = vadd.f32 %v5916, %v6043
      %6045 = vmatmul.bf16.gmra.mxu0 %v5966
      %v6046 = vpop.f32.mrf.mxu0
      %v6047 = vadd.f32 %v5916, %v6046
      %v6048 = vpop.f32.mrf.mxu0
      %v6049 = vadd.f32 %v5916, %v6048
      %6050 = vmatmul.bf16.gmra.mxu0 %v5969
      %v6051 = vpop.f32.mrf.mxu0
      %v6052 = vadd.f32 %v5916, %v6051
      %v6053 = vpop.f32.mrf.mxu0
      %v6054 = vadd.f32 %v5916, %v6053
      %6055 = vmatmul.bf16.gmra.mxu0 %v5972
      %v6056 = vpop.f32.mrf.mxu0
      %v6057 = vadd.f32 %v5916, %v6056
      %v6058 = vpop.f32.mrf.mxu0
      %v6059 = vadd.f32 %v5916, %v6058
      %6060 = vmatmul.bf16.gmra.mxu0 %v5975
      %v6061 = vpop.f32.mrf.mxu0
      %v6062 = vadd.f32 %v5916, %v6061
      %v6063 = vpop.f32.mrf.mxu0
      %v6064 = vadd.f32 %v5916, %v6063
      %6065 = vdwg.mxu0
      %v6067 = vsel %vm1026, %v5987, 0
      %v6070 = vsel %vm1026, %v5989, 0
      %v6073 = vsel %vm1026, %v5992, 0
      %v6076 = vsel %vm1026, %v5994, 0
      %v6079 = vsel %vm1026, %v5997, 0
      %v6082 = vsel %vm1026, %v5999, 0
      %v6085 = vsel %vm1026, %v6002, 0
      %v6088 = vsel %vm1026, %v6004, 0
      %v6091 = vsel %vm1026, %v6007, 0
      %v6094 = vsel %vm1026, %v6009, 0
      %v6097 = vsel %vm1026, %v6012, 0
      %v6100 = vsel %vm1026, %v6014, 0
      %v6103 = vsel %vm1026, %v6017, 0
      %v6106 = vsel %vm1026, %v6019, 0
      %v6109 = vsel %vm1026, %v6022, 0
      %v6112 = vsel %vm1026, %v6024, 0
      %v6115 = vsel %vm1026, %v6027, 0
      %v6118 = vsel %vm1026, %v6029, 0
      %v6121 = vsel %vm1026, %v6032, 0
      %v6124 = vsel %vm1026, %v6034, 0
      %v6127 = vsel %vm1026, %v6037, 0
      %v6130 = vsel %vm1026, %v6039, 0
      %v6133 = vsel %vm1026, %v6042, 0
      %v6136 = vsel %vm1026, %v6044, 0
      %v6139 = vsel %vm1026, %v6047, 0
      %v6142 = vsel %vm1026, %v6049, 0
      %v6145 = vsel %vm1026, %v6052, 0
      %v6148 = vsel %vm1026, %v6054, 0
      %v6151 = vsel %vm1026, %v6057, 0
      %v6154 = vsel %vm1026, %v6059, 0
      %v6157 = vsel %vm1026, %v6062, 0
      %v6160 = vsel %vm1026, %v6064, 0
      %6162 = vmatpush.msra.mxu0 0.0
      %6163 = vmatpush.msra.mxu0 0.0
      %6164 = vmatpush.msra.mxu0 0.0
      %6165 = vmatpush.msra.mxu0 0.0
      %6166 = vmatpush.msra.mxu0 0.0
      %6167 = vmatpush.msra.mxu0 0.0
      %6168 = vmatpush.msra.mxu0 0.0
      %6169 = vmatpush.msra.mxu0 0.0
      %6170 = vmatpush.msra.mxu0 0.0
      %6171 = vmatpush.msra.mxu0 0.0
      %6172 = vmatpush.msra.mxu0 0.0
      %6173 = vmatpush.msra.mxu0 0.0
      %6174 = vmatpush.msra.mxu0 %v2634
      %6175 = vmatpush.msra.mxu0 %v2633
      %6176 = vmatpush.msra.mxu0 %v2632
      %6177 = vmatpush.msra.mxu0 %v2631
      %6178 = vmatmul.f32.gmra.mxu0 %v6067
      %v6179 = vpop.f32.mrf.mxu0
      %v6180 = vadd.f32 0.0, %v6179
      %6181 = vmatmul.f32.gmra.mxu0 %v6070
      %v6182 = vpop.f32.mrf.mxu0
      %v6183 = vadd.f32 0.0, %v6182
      %6184 = vmatmul.f32.gmra.mxu0 %v6073
      %v6185 = vpop.f32.mrf.mxu0
      %v6186 = vadd.f32 0.0, %v6185
      %6187 = vmatmul.f32.gmra.mxu0 %v6076
      %v6188 = vpop.f32.mrf.mxu0
      %v6189 = vadd.f32 0.0, %v6188
      %6190 = vmatmul.f32.gmra.mxu0 %v6079
      %v6191 = vpop.f32.mrf.mxu0
      %v6192 = vadd.f32 0.0, %v6191
      %6193 = vmatmul.f32.gmra.mxu0 %v6082
      %v6194 = vpop.f32.mrf.mxu0
      %v6195 = vadd.f32 0.0, %v6194
      %6196 = vmatmul.f32.gmra.mxu0 %v6085
      %v6197 = vpop.f32.mrf.mxu0
      %v6198 = vadd.f32 0.0, %v6197
      %6199 = vmatmul.f32.gmra.mxu0 %v6088
      %v6200 = vpop.f32.mrf.mxu0
      %v6201 = vadd.f32 0.0, %v6200
      %6202 = vmatmul.f32.gmra.mxu0 %v6091
      %v6203 = vpop.f32.mrf.mxu0
      %v6204 = vadd.f32 0.0, %v6203
      %6205 = vmatmul.f32.gmra.mxu0 %v6094
      %v6206 = vpop.f32.mrf.mxu0
      %v6207 = vadd.f32 0.0, %v6206
      %6208 = vmatmul.f32.gmra.mxu0 %v6097
      %v6209 = vpop.f32.mrf.mxu0
      %v6210 = vadd.f32 0.0, %v6209
      %6211 = vmatmul.f32.gmra.mxu0 %v6100
      %v6212 = vpop.f32.mrf.mxu0
      %v6213 = vadd.f32 0.0, %v6212
      %6214 = vmatmul.f32.gmra.mxu0 %v6103
      %v6215 = vpop.f32.mrf.mxu0
      %v6216 = vadd.f32 0.0, %v6215
      %6217 = vmatmul.f32.gmra.mxu0 %v6106
      %v6218 = vpop.f32.mrf.mxu0
      %v6219 = vadd.f32 0.0, %v6218
      %6220 = vmatmul.f32.gmra.mxu0 %v6109
      %v6221 = vpop.f32.mrf.mxu0
      %v6222 = vadd.f32 0.0, %v6221
      %6223 = vmatmul.f32.gmra.mxu0 %v6112
      %v6224 = vpop.f32.mrf.mxu0
      %v6225 = vadd.f32 0.0, %v6224
      %6226 = vmatmul.f32.gmra.mxu0 %v6115
      %v6227 = vpop.f32.mrf.mxu0
      %v6228 = vadd.f32 0.0, %v6227
      %6229 = vmatmul.f32.gmra.mxu0 %v6118
      %v6230 = vpop.f32.mrf.mxu0
      %v6231 = vadd.f32 0.0, %v6230
      %6232 = vmatmul.f32.gmra.mxu0 %v6121
      %v6233 = vpop.f32.mrf.mxu0
      %v6234 = vadd.f32 0.0, %v6233
      %6235 = vmatmul.f32.gmra.mxu0 %v6124
      %v6236 = vpop.f32.mrf.mxu0
      %v6237 = vadd.f32 0.0, %v6236
      %6238 = vmatmul.f32.gmra.mxu0 %v6127
      %v6239 = vpop.f32.mrf.mxu0
      %v6240 = vadd.f32 0.0, %v6239
      %6241 = vmatmul.f32.gmra.mxu0 %v6130
      %v6242 = vpop.f32.mrf.mxu0
      %v6243 = vadd.f32 0.0, %v6242
      %6244 = vmatmul.f32.gmra.mxu0 %v6133
      %v6245 = vpop.f32.mrf.mxu0
      %v6246 = vadd.f32 0.0, %v6245
      %6247 = vmatmul.f32.gmra.mxu0 %v6136
      %v6248 = vpop.f32.mrf.mxu0
      %v6249 = vadd.f32 0.0, %v6248
      %6250 = vmatmul.f32.gmra.mxu0 %v6139
      %v6251 = vpop.f32.mrf.mxu0
      %v6252 = vadd.f32 0.0, %v6251
      %6253 = vmatmul.f32.gmra.mxu0 %v6142
      %v6254 = vpop.f32.mrf.mxu0
      %v6255 = vadd.f32 0.0, %v6254
      %6256 = vmatmul.f32.gmra.mxu0 %v6145
      %v6257 = vpop.f32.mrf.mxu0
      %v6258 = vadd.f32 0.0, %v6257
      %6259 = vmatmul.f32.gmra.mxu0 %v6148
      %v6260 = vpop.f32.mrf.mxu0
      %v6261 = vadd.f32 0.0, %v6260
      %6262 = vmatmul.f32.gmra.mxu0 %v6151
      %v6263 = vpop.f32.mrf.mxu0
      %v6264 = vadd.f32 0.0, %v6263
      %6265 = vmatmul.f32.gmra.mxu0 %v6154
      %v6266 = vpop.f32.mrf.mxu0
      %v6267 = vadd.f32 0.0, %v6266
      %6268 = vmatmul.f32.gmra.mxu0 %v6157
      %v6269 = vpop.f32.mrf.mxu0
      %v6270 = vadd.f32 0.0, %v6269
      %6271 = vmatmul.f32.gmra.mxu0 %v6160
      %v6272 = vpop.f32.mrf.mxu0
      %v6273 = vadd.f32 0.0, %v6272
      %6274 = vdwg.mxu0
      %v6275 = vmul.f32 %v5987, %v5987
      %v6276 = vmul.f32 %v5989, %v5989
      %v6277 = vmul.f32 %v5992, %v5992
      %v6278 = vmul.f32 %v5994, %v5994
      %v6279 = vmul.f32 %v5997, %v5997
      %v6280 = vmul.f32 %v5999, %v5999
      %v6281 = vmul.f32 %v6002, %v6002
      %v6282 = vmul.f32 %v6004, %v6004
      %v6283 = vmul.f32 %v6007, %v6007
      %v6284 = vmul.f32 %v6009, %v6009
      %v6285 = vmul.f32 %v6012, %v6012
      %v6286 = vmul.f32 %v6014, %v6014
      %v6287 = vmul.f32 %v6017, %v6017
      %v6288 = vmul.f32 %v6019, %v6019
      %v6289 = vmul.f32 %v6022, %v6022
      %v6290 = vmul.f32 %v6024, %v6024
      %v6291 = vmul.f32 %v6027, %v6027
      %v6292 = vmul.f32 %v6029, %v6029
      %v6293 = vmul.f32 %v6032, %v6032
      %v6294 = vmul.f32 %v6034, %v6034
      %v6295 = vmul.f32 %v6037, %v6037
      %v6296 = vmul.f32 %v6039, %v6039
      %v6297 = vmul.f32 %v6042, %v6042
      %v6298 = vmul.f32 %v6044, %v6044
      %v6299 = vmul.f32 %v6047, %v6047
      %v6300 = vmul.f32 %v6049, %v6049
      %v6301 = vmul.f32 %v6052, %v6052
      %v6302 = vmul.f32 %v6054, %v6054
      %v6303 = vmul.f32 %v6057, %v6057
      %v6304 = vmul.f32 %v6059, %v6059
      %v6305 = vmul.f32 %v6062, %v6062
      %v6306 = vmul.f32 %v6064, %v6064
      %v6308 = vsel %vm1026, %v6275, 0
      %v6311 = vsel %vm1026, %v6276, 0
      %v6314 = vsel %vm1026, %v6277, 0
      %v6317 = vsel %vm1026, %v6278, 0
      %v6320 = vsel %vm1026, %v6279, 0
      %v6323 = vsel %vm1026, %v6280, 0
      %v6326 = vsel %vm1026, %v6281, 0
      %v6329 = vsel %vm1026, %v6282, 0
      %v6332 = vsel %vm1026, %v6283, 0
      %v6335 = vsel %vm1026, %v6284, 0
      %v6338 = vsel %vm1026, %v6285, 0
      %v6341 = vsel %vm1026, %v6286, 0
      %v6344 = vsel %vm1026, %v6287, 0
      %v6347 = vsel %vm1026, %v6288, 0
      %v6350 = vsel %vm1026, %v6289, 0
      %v6353 = vsel %vm1026, %v6290, 0
      %v6356 = vsel %vm1026, %v6291, 0
      %v6359 = vsel %vm1026, %v6292, 0
      %v6362 = vsel %vm1026, %v6293, 0
      %v6365 = vsel %vm1026, %v6294, 0
      %v6368 = vsel %vm1026, %v6295, 0
      %v6371 = vsel %vm1026, %v6296, 0
      %v6374 = vsel %vm1026, %v6297, 0
      %v6377 = vsel %vm1026, %v6298, 0
      %v6380 = vsel %vm1026, %v6299, 0
      %v6383 = vsel %vm1026, %v6300, 0
      %v6386 = vsel %vm1026, %v6301, 0
      %v6389 = vsel %vm1026, %v6302, 0
      %v6392 = vsel %vm1026, %v6303, 0
      %v6395 = vsel %vm1026, %v6304, 0
      %v6398 = vsel %vm1026, %v6305, 0
      %v6401 = vsel %vm1026, %v6306, 0
      %6403 = vmatpush.msra.mxu0 0.0
      %6404 = vmatpush.msra.mxu0 0.0
      %6405 = vmatpush.msra.mxu0 0.0
      %6406 = vmatpush.msra.mxu0 0.0
      %6407 = vmatpush.msra.mxu0 0.0
      %6408 = vmatpush.msra.mxu0 0.0
      %6409 = vmatpush.msra.mxu0 0.0
      %6410 = vmatpush.msra.mxu0 0.0
      %6411 = vmatpush.msra.mxu0 0.0
      %6412 = vmatpush.msra.mxu0 0.0
      %6413 = vmatpush.msra.mxu0 0.0
      %6414 = vmatpush.msra.mxu0 0.0
      %6415 = vmatpush.msra.mxu0 %v2634
      %6416 = vmatpush.msra.mxu0 %v2633
      %6417 = vmatpush.msra.mxu0 %v2632
      %6418 = vmatpush.msra.mxu0 %v2631
      %6419 = vmatmul.f32.gmra.mxu0 %v6308
      %v6420 = vpop.f32.mrf.mxu0
      %v6421 = vadd.f32 0.0, %v6420
      %6422 = vmatmul.f32.gmra.mxu0 %v6311
      %v6423 = vpop.f32.mrf.mxu0
      %v6424 = vadd.f32 0.0, %v6423
      %6425 = vmatmul.f32.gmra.mxu0 %v6314
      %v6426 = vpop.f32.mrf.mxu0
      %v6427 = vadd.f32 0.0, %v6426
      %6428 = vmatmul.f32.gmra.mxu0 %v6317
      %v6429 = vpop.f32.mrf.mxu0
      %v6430 = vadd.f32 0.0, %v6429
      %6431 = vmatmul.f32.gmra.mxu0 %v6320
      %v6432 = vpop.f32.mrf.mxu0
      %v6433 = vadd.f32 0.0, %v6432
      %6434 = vmatmul.f32.gmra.mxu0 %v6323
      %v6435 = vpop.f32.mrf.mxu0
      %v6436 = vadd.f32 0.0, %v6435
      %6437 = vmatmul.f32.gmra.mxu0 %v6326
      %v6438 = vpop.f32.mrf.mxu0
      %v6439 = vadd.f32 0.0, %v6438
      %6440 = vmatmul.f32.gmra.mxu0 %v6329
      %v6441 = vpop.f32.mrf.mxu0
      %v6442 = vadd.f32 0.0, %v6441
      %6443 = vmatmul.f32.gmra.mxu0 %v6332
      %v6444 = vpop.f32.mrf.mxu0
      %v6445 = vadd.f32 0.0, %v6444
      %6446 = vmatmul.f32.gmra.mxu0 %v6335
      %v6447 = vpop.f32.mrf.mxu0
      %v6448 = vadd.f32 0.0, %v6447
      %6449 = vmatmul.f32.gmra.mxu0 %v6338
      %v6450 = vpop.f32.mrf.mxu0
      %v6451 = vadd.f32 0.0, %v6450
      %6452 = vmatmul.f32.gmra.mxu0 %v6341
      %v6453 = vpop.f32.mrf.mxu0
      %v6454 = vadd.f32 0.0, %v6453
      %6455 = vmatmul.f32.gmra.mxu0 %v6344
      %v6456 = vpop.f32.mrf.mxu0
      %v6457 = vadd.f32 0.0, %v6456
      %6458 = vmatmul.f32.gmra.mxu0 %v6347
      %v6459 = vpop.f32.mrf.mxu0
      %v6460 = vadd.f32 0.0, %v6459
      %6461 = vmatmul.f32.gmra.mxu0 %v6350
      %v6462 = vpop.f32.mrf.mxu0
      %v6463 = vadd.f32 0.0, %v6462
      %6464 = vmatmul.f32.gmra.mxu0 %v6353
      %v6465 = vpop.f32.mrf.mxu0
      %v6466 = vadd.f32 0.0, %v6465
      %6467 = vmatmul.f32.gmra.mxu0 %v6356
      %v6468 = vpop.f32.mrf.mxu0
      %v6469 = vadd.f32 0.0, %v6468
      %6470 = vmatmul.f32.gmra.mxu0 %v6359
      %v6471 = vpop.f32.mrf.mxu0
      %v6472 = vadd.f32 0.0, %v6471
      %6473 = vmatmul.f32.gmra.mxu0 %v6362
      %v6474 = vpop.f32.mrf.mxu0
      %v6475 = vadd.f32 0.0, %v6474
      %6476 = vmatmul.f32.gmra.mxu0 %v6365
      %v6477 = vpop.f32.mrf.mxu0
      %v6478 = vadd.f32 0.0, %v6477
      %6479 = vmatmul.f32.gmra.mxu0 %v6368
      %v6480 = vpop.f32.mrf.mxu0
      %v6481 = vadd.f32 0.0, %v6480
      %6482 = vmatmul.f32.gmra.mxu0 %v6371
      %v6483 = vpop.f32.mrf.mxu0
      %v6484 = vadd.f32 0.0, %v6483
      %6485 = vmatmul.f32.gmra.mxu0 %v6374
      %v6486 = vpop.f32.mrf.mxu0
      %v6487 = vadd.f32 0.0, %v6486
      %6488 = vmatmul.f32.gmra.mxu0 %v6377
      %v6489 = vpop.f32.mrf.mxu0
      %v6490 = vadd.f32 0.0, %v6489
      %6491 = vmatmul.f32.gmra.mxu0 %v6380
      %v6492 = vpop.f32.mrf.mxu0
      %v6493 = vadd.f32 0.0, %v6492
      %6494 = vmatmul.f32.gmra.mxu0 %v6383
      %v6495 = vpop.f32.mrf.mxu0
      %v6496 = vadd.f32 0.0, %v6495
      %6497 = vmatmul.f32.gmra.mxu0 %v6386
      %v6498 = vpop.f32.mrf.mxu0
      %v6499 = vadd.f32 0.0, %v6498
      %6500 = vmatmul.f32.gmra.mxu0 %v6389
      %v6501 = vpop.f32.mrf.mxu0
      %v6502 = vadd.f32 0.0, %v6501
      %6503 = vmatmul.f32.gmra.mxu0 %v6392
      %v6504 = vpop.f32.mrf.mxu0
      %v6505 = vadd.f32 0.0, %v6504
      %6506 = vmatmul.f32.gmra.mxu0 %v6395
      %v6507 = vpop.f32.mrf.mxu0
      %v6508 = vadd.f32 0.0, %v6507
      %6509 = vmatmul.f32.gmra.mxu0 %v6398
      %v6510 = vpop.f32.mrf.mxu0
      %v6511 = vadd.f32 0.0, %v6510
      %6512 = vmatmul.f32.gmra.mxu0 %v6401
      %v6513 = vpop.f32.mrf.mxu0
      %v6514 = vadd.f32 0.0, %v6513
      %6515 = vdwg.mxu0
      %v6516 = vmul.f32 %v6180, %v6180
      %v6517 = vmul.f32 %v6183, %v6183
      %v6518 = vmul.f32 %v6186, %v6186
      %v6519 = vmul.f32 %v6189, %v6189
      %v6520 = vmul.f32 %v6192, %v6192
      %v6521 = vmul.f32 %v6195, %v6195
      %v6522 = vmul.f32 %v6198, %v6198
      %v6523 = vmul.f32 %v6201, %v6201
      %v6524 = vmul.f32 %v6204, %v6204
      %v6525 = vmul.f32 %v6207, %v6207
      %v6526 = vmul.f32 %v6210, %v6210
      %v6527 = vmul.f32 %v6213, %v6213
      %v6528 = vmul.f32 %v6216, %v6216
      %v6529 = vmul.f32 %v6219, %v6219
      %v6530 = vmul.f32 %v6222, %v6222
      %v6531 = vmul.f32 %v6225, %v6225
      %v6532 = vmul.f32 %v6228, %v6228
      %v6533 = vmul.f32 %v6231, %v6231
      %v6534 = vmul.f32 %v6234, %v6234
      %v6535 = vmul.f32 %v6237, %v6237
      %v6536 = vmul.f32 %v6240, %v6240
      %v6537 = vmul.f32 %v6243, %v6243
      %v6538 = vmul.f32 %v6246, %v6246
      %v6539 = vmul.f32 %v6249, %v6249
      %v6540 = vmul.f32 %v6252, %v6252
      %v6541 = vmul.f32 %v6255, %v6255
      %v6542 = vmul.f32 %v6258, %v6258
      %v6543 = vmul.f32 %v6261, %v6261
      %v6544 = vmul.f32 %v6264, %v6264
      %v6545 = vmul.f32 %v6267, %v6267
      %v6546 = vmul.f32 %v6270, %v6270
      %v6547 = vmul.f32 %v6273, %v6273
      %v6548 = vsub.f32 %v6421, %v6516
      %v6549 = vsub.f32 %v6424, %v6517
      %v6550 = vsub.f32 %v6427, %v6518
      %v6551 = vsub.f32 %v6430, %v6519
      %v6552 = vsub.f32 %v6433, %v6520
      %v6553 = vsub.f32 %v6436, %v6521
      %v6554 = vsub.f32 %v6439, %v6522
      %v6555 = vsub.f32 %v6442, %v6523
      %v6556 = vsub.f32 %v6445, %v6524
      %v6557 = vsub.f32 %v6448, %v6525
      %v6558 = vsub.f32 %v6451, %v6526
      %v6559 = vsub.f32 %v6454, %v6527
      %v6560 = vsub.f32 %v6457, %v6528
      %v6561 = vsub.f32 %v6460, %v6529
      %v6562 = vsub.f32 %v6463, %v6530
      %v6563 = vsub.f32 %v6466, %v6531
      %v6564 = vsub.f32 %v6469, %v6532
      %v6565 = vsub.f32 %v6472, %v6533
      %v6566 = vsub.f32 %v6475, %v6534
      %v6567 = vsub.f32 %v6478, %v6535
      %v6568 = vsub.f32 %v6481, %v6536
      %v6569 = vsub.f32 %v6484, %v6537
      %v6570 = vsub.f32 %v6487, %v6538
      %v6571 = vsub.f32 %v6490, %v6539
      %v6572 = vsub.f32 %v6493, %v6540
      %v6573 = vsub.f32 %v6496, %v6541
      %v6574 = vsub.f32 %v6499, %v6542
      %v6575 = vsub.f32 %v6502, %v6543
      %v6576 = vsub.f32 %v6505, %v6544
      %v6577 = vsub.f32 %v6508, %v6545
      %v6578 = vsub.f32 %v6511, %v6546
      %v6579 = vsub.f32 %v6514, %v6547
      %v6580 = vadd.f32 %v6548, 1e-05
      %v6581 = vadd.f32 %v6549, 1e-05
      %v6582 = vadd.f32 %v6550, 1e-05
      %v6583 = vadd.f32 %v6551, 1e-05
      %v6584 = vadd.f32 %v6552, 1e-05
      %v6585 = vadd.f32 %v6553, 1e-05
      %v6586 = vadd.f32 %v6554, 1e-05
      %v6587 = vadd.f32 %v6555, 1e-05
      %v6588 = vadd.f32 %v6556, 1e-05
      %v6589 = vadd.f32 %v6557, 1e-05
      %v6590 = vadd.f32 %v6558, 1e-05
      %v6591 = vadd.f32 %v6559, 1e-05
      %v6592 = vadd.f32 %v6560, 1e-05
      %v6593 = vadd.f32 %v6561, 1e-05
      %v6594 = vadd.f32 %v6562, 1e-05
      %v6595 = vadd.f32 %v6563, 1e-05
      %v6596 = vadd.f32 %v6564, 1e-05
      %v6597 = vadd.f32 %v6565, 1e-05
      %v6598 = vadd.f32 %v6566, 1e-05
      %v6599 = vadd.f32 %v6567, 1e-05
      %v6600 = vadd.f32 %v6568, 1e-05
      %v6601 = vadd.f32 %v6569, 1e-05
      %v6602 = vadd.f32 %v6570, 1e-05
      %v6603 = vadd.f32 %v6571, 1e-05
      %v6604 = vadd.f32 %v6572, 1e-05
      %v6605 = vadd.f32 %v6573, 1e-05
      %v6606 = vadd.f32 %v6574, 1e-05
      %v6607 = vadd.f32 %v6575, 1e-05
      %v6608 = vadd.f32 %v6576, 1e-05
      %v6609 = vadd.f32 %v6577, 1e-05
      %v6610 = vadd.f32 %v6578, 1e-05
      %v6611 = vadd.f32 %v6579, 1e-05
      %v6612 = vrsqrt.pop %v6580
      %v6613 = vmul.f32 %v6612, %v6580
      %v6614 = vmul.f32 %v6613, %v6612
      %v6615 = vmul.f32 0.5, %v6614
      %v6616 = vsub.f32 1.5, %v6615
      %v6617 = vmul.f32 %v6612, %v6616
      %vm6618 = vweird.f32 %v6580
      %vm6619 = vweird.f32 %v6612
      %vm6620 = vmor %vm6618, %vm6619
      %v6621 = vsel %vm6620, %v6612, %v6617
      %v6622 = vrsqrt.pop %v6581
      %v6623 = vmul.f32 %v6622, %v6581
      %v6624 = vmul.f32 %v6623, %v6622
      %v6625 = vmul.f32 0.5, %v6624
      %v6626 = vsub.f32 1.5, %v6625
      %v6627 = vmul.f32 %v6622, %v6626
      %vm6628 = vweird.f32 %v6581
      %vm6629 = vweird.f32 %v6622
      %vm6630 = vmor %vm6628, %vm6629
      %v6631 = vsel %vm6630, %v6622, %v6627
      %v6632 = vrsqrt.pop %v6582
      %v6633 = vmul.f32 %v6632, %v6582
      %v6634 = vmul.f32 %v6633, %v6632
      %v6635 = vmul.f32 0.5, %v6634
      %v6636 = vsub.f32 1.5, %v6635
      %v6637 = vmul.f32 %v6632, %v6636
      %vm6638 = vweird.f32 %v6582
      %vm6639 = vweird.f32 %v6632
      %vm6640 = vmor %vm6638, %vm6639
      %v6641 = vsel %vm6640, %v6632, %v6637
      %v6642 = vrsqrt.pop %v6583
      %v6643 = vmul.f32 %v6642, %v6583
      %v6644 = vmul.f32 %v6643, %v6642
      %v6645 = vmul.f32 0.5, %v6644
      %v6646 = vsub.f32 1.5, %v6645
      %v6647 = vmul.f32 %v6642, %v6646
      %vm6648 = vweird.f32 %v6583
      %vm6649 = vweird.f32 %v6642
      %vm6650 = vmor %vm6648, %vm6649
      %v6651 = vsel %vm6650, %v6642, %v6647
      %v6652 = vrsqrt.pop %v6584
      %v6653 = vmul.f32 %v6652, %v6584
      %v6654 = vmul.f32 %v6653, %v6652
      %v6655 = vmul.f32 0.5, %v6654
      %v6656 = vsub.f32 1.5, %v6655
      %v6657 = vmul.f32 %v6652, %v6656
      %vm6658 = vweird.f32 %v6584
      %vm6659 = vweird.f32 %v6652
      %vm6660 = vmor %vm6658, %vm6659
      %v6661 = vsel %vm6660, %v6652, %v6657
      %v6662 = vrsqrt.pop %v6585
      %v6663 = vmul.f32 %v6662, %v6585
      %v6664 = vmul.f32 %v6663, %v6662
      %v6665 = vmul.f32 0.5, %v6664
      %v6666 = vsub.f32 1.5, %v6665
      %v6667 = vmul.f32 %v6662, %v6666
      %vm6668 = vweird.f32 %v6585
      %vm6669 = vweird.f32 %v6662
      %vm6670 = vmor %vm6668, %vm6669
      %v6671 = vsel %vm6670, %v6662, %v6667
      %v6672 = vrsqrt.pop %v6586
      %v6673 = vmul.f32 %v6672, %v6586
      %v6674 = vmul.f32 %v6673, %v6672
      %v6675 = vmul.f32 0.5, %v6674
      %v6676 = vsub.f32 1.5, %v6675
      %v6677 = vmul.f32 %v6672, %v6676
      %vm6678 = vweird.f32 %v6586
      %vm6679 = vweird.f32 %v6672
      %vm6680 = vmor %vm6678, %vm6679
      %v6681 = vsel %vm6680, %v6672, %v6677
      %v6682 = vrsqrt.pop %v6587
      %v6683 = vmul.f32 %v6682, %v6587
      %v6684 = vmul.f32 %v6683, %v6682
      %v6685 = vmul.f32 0.5, %v6684
      %v6686 = vsub.f32 1.5, %v6685
      %v6687 = vmul.f32 %v6682, %v6686
      %vm6688 = vweird.f32 %v6587
      %vm6689 = vweird.f32 %v6682
      %vm6690 = vmor %vm6688, %vm6689
      %v6691 = vsel %vm6690, %v6682, %v6687
      %v6692 = vrsqrt.pop %v6588
      %v6693 = vmul.f32 %v6692, %v6588
      %v6694 = vmul.f32 %v6693, %v6692
      %v6695 = vmul.f32 0.5, %v6694
      %v6696 = vsub.f32 1.5, %v6695
      %v6697 = vmul.f32 %v6692, %v6696
      %vm6698 = vweird.f32 %v6588
      %vm6699 = vweird.f32 %v6692
      %vm6700 = vmor %vm6698, %vm6699
      %v6701 = vsel %vm6700, %v6692, %v6697
      %v6702 = vrsqrt.pop %v6589
      %v6703 = vmul.f32 %v6702, %v6589
      %v6704 = vmul.f32 %v6703, %v6702
      %v6705 = vmul.f32 0.5, %v6704
      %v6706 = vsub.f32 1.5, %v6705
      %v6707 = vmul.f32 %v6702, %v6706
      %vm6708 = vweird.f32 %v6589
      %vm6709 = vweird.f32 %v6702
      %vm6710 = vmor %vm6708, %vm6709
      %v6711 = vsel %vm6710, %v6702, %v6707
      %v6712 = vrsqrt.pop %v6590
      %v6713 = vmul.f32 %v6712, %v6590
      %v6714 = vmul.f32 %v6713, %v6712
      %v6715 = vmul.f32 0.5, %v6714
      %v6716 = vsub.f32 1.5, %v6715
      %v6717 = vmul.f32 %v6712, %v6716
      %vm6718 = vweird.f32 %v6590
      %vm6719 = vweird.f32 %v6712
      %vm6720 = vmor %vm6718, %vm6719
      %v6721 = vsel %vm6720, %v6712, %v6717
      %v6722 = vrsqrt.pop %v6591
      %v6723 = vmul.f32 %v6722, %v6591
      %v6724 = vmul.f32 %v6723, %v6722
      %v6725 = vmul.f32 0.5, %v6724
      %v6726 = vsub.f32 1.5, %v6725
      %v6727 = vmul.f32 %v6722, %v6726
      %vm6728 = vweird.f32 %v6591
      %vm6729 = vweird.f32 %v6722
      %vm6730 = vmor %vm6728, %vm6729
      %v6731 = vsel %vm6730, %v6722, %v6727
      %v6732 = vrsqrt.pop %v6592
      %v6733 = vmul.f32 %v6732, %v6592
      %v6734 = vmul.f32 %v6733, %v6732
      %v6735 = vmul.f32 0.5, %v6734
      %v6736 = vsub.f32 1.5, %v6735
      %v6737 = vmul.f32 %v6732, %v6736
      %vm6738 = vweird.f32 %v6592
      %vm6739 = vweird.f32 %v6732
      %vm6740 = vmor %vm6738, %vm6739
      %v6741 = vsel %vm6740, %v6732, %v6737
      %v6742 = vrsqrt.pop %v6593
      %v6743 = vmul.f32 %v6742, %v6593
      %v6744 = vmul.f32 %v6743, %v6742
      %v6745 = vmul.f32 0.5, %v6744
      %v6746 = vsub.f32 1.5, %v6745
      %v6747 = vmul.f32 %v6742, %v6746
      %vm6748 = vweird.f32 %v6593
      %vm6749 = vweird.f32 %v6742
      %vm6750 = vmor %vm6748, %vm6749
      %v6751 = vsel %vm6750, %v6742, %v6747
      %v6752 = vrsqrt.pop %v6594
      %v6753 = vmul.f32 %v6752, %v6594
      %v6754 = vmul.f32 %v6753, %v6752
      %v6755 = vmul.f32 0.5, %v6754
      %v6756 = vsub.f32 1.5, %v6755
      %v6757 = vmul.f32 %v6752, %v6756
      %vm6758 = vweird.f32 %v6594
      %vm6759 = vweird.f32 %v6752
      %vm6760 = vmor %vm6758, %vm6759
      %v6761 = vsel %vm6760, %v6752, %v6757
      %v6762 = vrsqrt.pop %v6595
      %v6763 = vmul.f32 %v6762, %v6595
      %v6764 = vmul.f32 %v6763, %v6762
      %v6765 = vmul.f32 0.5, %v6764
      %v6766 = vsub.f32 1.5, %v6765
      %v6767 = vmul.f32 %v6762, %v6766
      %vm6768 = vweird.f32 %v6595
      %vm6769 = vweird.f32 %v6762
      %vm6770 = vmor %vm6768, %vm6769
      %v6771 = vsel %vm6770, %v6762, %v6767
      %v6772 = vrsqrt.pop %v6596
      %v6773 = vmul.f32 %v6772, %v6596
      %v6774 = vmul.f32 %v6773, %v6772
      %v6775 = vmul.f32 0.5, %v6774
      %v6776 = vsub.f32 1.5, %v6775
      %v6777 = vmul.f32 %v6772, %v6776
      %vm6778 = vweird.f32 %v6596
      %vm6779 = vweird.f32 %v6772
      %vm6780 = vmor %vm6778, %vm6779
      %v6781 = vsel %vm6780, %v6772, %v6777
      %v6782 = vrsqrt.pop %v6597
      %v6783 = vmul.f32 %v6782, %v6597
      %v6784 = vmul.f32 %v6783, %v6782
      %v6785 = vmul.f32 0.5, %v6784
      %v6786 = vsub.f32 1.5, %v6785
      %v6787 = vmul.f32 %v6782, %v6786
      %vm6788 = vweird.f32 %v6597
      %vm6789 = vweird.f32 %v6782
      %vm6790 = vmor %vm6788, %vm6789
      %v6791 = vsel %vm6790, %v6782, %v6787
      %v6792 = vrsqrt.pop %v6598
      %v6793 = vmul.f32 %v6792, %v6598
      %v6794 = vmul.f32 %v6793, %v6792
      %v6795 = vmul.f32 0.5, %v6794
      %v6796 = vsub.f32 1.5, %v6795
      %v6797 = vmul.f32 %v6792, %v6796
      %vm6798 = vweird.f32 %v6598
      %vm6799 = vweird.f32 %v6792
      %vm6800 = vmor %vm6798, %vm6799
      %v6801 = vsel %vm6800, %v6792, %v6797
      %v6802 = vrsqrt.pop %v6599
      %v6803 = vmul.f32 %v6802, %v6599
      %v6804 = vmul.f32 %v6803, %v6802
      %v6805 = vmul.f32 0.5, %v6804
      %v6806 = vsub.f32 1.5, %v6805
      %v6807 = vmul.f32 %v6802, %v6806
      %vm6808 = vweird.f32 %v6599
      %vm6809 = vweird.f32 %v6802
      %vm6810 = vmor %vm6808, %vm6809
      %v6811 = vsel %vm6810, %v6802, %v6807
      %v6812 = vrsqrt.pop %v6600
      %v6813 = vmul.f32 %v6812, %v6600
      %v6814 = vmul.f32 %v6813, %v6812
      %v6815 = vmul.f32 0.5, %v6814
      %v6816 = vsub.f32 1.5, %v6815
      %v6817 = vmul.f32 %v6812, %v6816
      %vm6818 = vweird.f32 %v6600
      %vm6819 = vweird.f32 %v6812
      %vm6820 = vmor %vm6818, %vm6819
      %v6821 = vsel %vm6820, %v6812, %v6817
      %v6822 = vrsqrt.pop %v6601
      %v6823 = vmul.f32 %v6822, %v6601
      %v6824 = vmul.f32 %v6823, %v6822
      %v6825 = vmul.f32 0.5, %v6824
      %v6826 = vsub.f32 1.5, %v6825
      %v6827 = vmul.f32 %v6822, %v6826
      %vm6828 = vweird.f32 %v6601
      %vm6829 = vweird.f32 %v6822
      %vm6830 = vmor %vm6828, %vm6829
      %v6831 = vsel %vm6830, %v6822, %v6827
      %v6832 = vrsqrt.pop %v6602
      %v6833 = vmul.f32 %v6832, %v6602
      %v6834 = vmul.f32 %v6833, %v6832
      %v6835 = vmul.f32 0.5, %v6834
      %v6836 = vsub.f32 1.5, %v6835
      %v6837 = vmul.f32 %v6832, %v6836
      %vm6838 = vweird.f32 %v6602
      %vm6839 = vweird.f32 %v6832
      %vm6840 = vmor %vm6838, %vm6839
      %v6841 = vsel %vm6840, %v6832, %v6837
      %v6842 = vrsqrt.pop %v6603
      %v6843 = vmul.f32 %v6842, %v6603
      %v6844 = vmul.f32 %v6843, %v6842
      %v6845 = vmul.f32 0.5, %v6844
      %v6846 = vsub.f32 1.5, %v6845
      %v6847 = vmul.f32 %v6842, %v6846
      %vm6848 = vweird.f32 %v6603
      %vm6849 = vweird.f32 %v6842
      %vm6850 = vmor %vm6848, %vm6849
      %v6851 = vsel %vm6850, %v6842, %v6847
      %v6852 = vrsqrt.pop %v6604
      %v6853 = vmul.f32 %v6852, %v6604
      %v6854 = vmul.f32 %v6853, %v6852
      %v6855 = vmul.f32 0.5, %v6854
      %v6856 = vsub.f32 1.5, %v6855
      %v6857 = vmul.f32 %v6852, %v6856
      %vm6858 = vweird.f32 %v6604
      %vm6859 = vweird.f32 %v6852
      %vm6860 = vmor %vm6858, %vm6859
      %v6861 = vsel %vm6860, %v6852, %v6857
      %v6862 = vrsqrt.pop %v6605
      %v6863 = vmul.f32 %v6862, %v6605
      %v6864 = vmul.f32 %v6863, %v6862
      %v6865 = vmul.f32 0.5, %v6864
      %v6866 = vsub.f32 1.5, %v6865
      %v6867 = vmul.f32 %v6862, %v6866
      %vm6868 = vweird.f32 %v6605
      %vm6869 = vweird.f32 %v6862
      %vm6870 = vmor %vm6868, %vm6869
      %v6871 = vsel %vm6870, %v6862, %v6867
      %v6872 = vrsqrt.pop %v6606
      %v6873 = vmul.f32 %v6872, %v6606
      %v6874 = vmul.f32 %v6873, %v6872
      %v6875 = vmul.f32 0.5, %v6874
      %v6876 = vsub.f32 1.5, %v6875
      %v6877 = vmul.f32 %v6872, %v6876
      %vm6878 = vweird.f32 %v6606
      %vm6879 = vweird.f32 %v6872
      %vm6880 = vmor %vm6878, %vm6879
      %v6881 = vsel %vm6880, %v6872, %v6877
      %v6882 = vrsqrt.pop %v6607
      %v6883 = vmul.f32 %v6882, %v6607
      %v6884 = vmul.f32 %v6883, %v6882
      %v6885 = vmul.f32 0.5, %v6884
      %v6886 = vsub.f32 1.5, %v6885
      %v6887 = vmul.f32 %v6882, %v6886
      %vm6888 = vweird.f32 %v6607
      %vm6889 = vweird.f32 %v6882
      %vm6890 = vmor %vm6888, %vm6889
      %v6891 = vsel %vm6890, %v6882, %v6887
      %v6892 = vrsqrt.pop %v6608
      %v6893 = vmul.f32 %v6892, %v6608
      %v6894 = vmul.f32 %v6893, %v6892
      %v6895 = vmul.f32 0.5, %v6894
      %v6896 = vsub.f32 1.5, %v6895
      %v6897 = vmul.f32 %v6892, %v6896
      %vm6898 = vweird.f32 %v6608
      %vm6899 = vweird.f32 %v6892
      %vm6900 = vmor %vm6898, %vm6899
      %v6901 = vsel %vm6900, %v6892, %v6897
      %v6902 = vrsqrt.pop %v6609
      %v6903 = vmul.f32 %v6902, %v6609
      %v6904 = vmul.f32 %v6903, %v6902
      %v6905 = vmul.f32 0.5, %v6904
      %v6906 = vsub.f32 1.5, %v6905
      %v6907 = vmul.f32 %v6902, %v6906
      %vm6908 = vweird.f32 %v6609
      %vm6909 = vweird.f32 %v6902
      %vm6910 = vmor %vm6908, %vm6909
      %v6911 = vsel %vm6910, %v6902, %v6907
      %v6912 = vrsqrt.pop %v6610
      %v6913 = vmul.f32 %v6912, %v6610
      %v6914 = vmul.f32 %v6913, %v6912
      %v6915 = vmul.f32 0.5, %v6914
      %v6916 = vsub.f32 1.5, %v6915
      %v6917 = vmul.f32 %v6912, %v6916
      %vm6918 = vweird.f32 %v6610
      %vm6919 = vweird.f32 %v6912
      %vm6920 = vmor %vm6918, %vm6919
      %v6921 = vsel %vm6920, %v6912, %v6917
      %v6922 = vrsqrt.pop %v6611
      %v6923 = vmul.f32 %v6922, %v6611
      %v6924 = vmul.f32 %v6923, %v6922
      %v6925 = vmul.f32 0.5, %v6924
      %v6926 = vsub.f32 1.5, %v6925
      %v6927 = vmul.f32 %v6922, %v6926
      %vm6928 = vweird.f32 %v6611
      %vm6929 = vweird.f32 %v6922
      %vm6930 = vmor %vm6928, %vm6929
      %v6931 = vsel %vm6930, %v6922, %v6927
      %v6933 = vsel %vm2054, %v6180, 0
      %v6936 = vsel %vm2054, %v6183, 0
      %v6939 = vsel %vm2054, %v6186, 0
      %v6942 = vsel %vm2054, %v6189, 0
      %v6945 = vsel %vm2054, %v6192, 0
      %v6948 = vsel %vm2054, %v6195, 0
      %v6951 = vsel %vm2054, %v6198, 0
      %v6954 = vsel %vm2054, %v6201, 0
      %v6957 = vsel %vm2054, %v6204, 0
      %v6960 = vsel %vm2054, %v6207, 0
      %v6963 = vsel %vm2054, %v6210, 0
      %v6966 = vsel %vm2054, %v6213, 0
      %v6969 = vsel %vm2054, %v6216, 0
      %v6972 = vsel %vm2054, %v6219, 0
      %v6975 = vsel %vm2054, %v6222, 0
      %v6978 = vsel %vm2054, %v6225, 0
      %v6981 = vsel %vm2054, %v6228, 0
      %v6984 = vsel %vm2054, %v6231, 0
      %v6987 = vsel %vm2054, %v6234, 0
      %v6990 = vsel %vm2054, %v6237, 0
      %v6993 = vsel %vm2054, %v6240, 0
      %v6996 = vsel %vm2054, %v6243, 0
      %v6999 = vsel %vm2054, %v6246, 0
      %v7002 = vsel %vm2054, %v6249, 0
      %v7005 = vsel %vm2054, %v6252, 0
      %v7008 = vsel %vm2054, %v6255, 0
      %v7011 = vsel %vm2054, %v6258, 0
      %v7014 = vsel %vm2054, %v6261, 0
      %v7017 = vsel %vm2054, %v6264, 0
      %v7020 = vsel %vm2054, %v6267, 0
      %v7023 = vsel %vm2054, %v6270, 0
      %v7026 = vsel %vm2054, %v6273, 0
      %7028 = vmatpush.msra.mxu0 0.0
      %7029 = vmatpush.msra.mxu0 0.0
      %7030 = vmatpush.msra.mxu0 0.0
      %7031 = vmatpush.msra.mxu0 0.0
      %7032 = vmatpush.msra.mxu0 0.0
      %7033 = vmatpush.msra.mxu0 0.0
      %7034 = vmatpush.msra.mxu0 0.0
      %7035 = vmatpush.msra.mxu0 0.0
      %7036 = vmatpush.msra.mxu0 0.0
      %7037 = vmatpush.msra.mxu0 0.0
      %7038 = vmatpush.msra.mxu0 0.0
      %7039 = vmatpush.msra.mxu0 0.0
      %7040 = vmatpush.msra.mxu0 0.0
      %7041 = vmatpush.msra.mxu0 0.0
      %7042 = vmatpush.msra.mxu0 0.0
      %7043 = vmatpush.msra.mxu0 %v3599
      %7044 = vmatmul.f32.gmra.mxu0 %v6933
      %v7045 = vpop.f32.mrf.mxu0
      %v7046 = vadd.f32 0.0, %v7045
      %7047 = vmatmul.f32.gmra.mxu0 %v6936
      %v7048 = vpop.f32.mrf.mxu0
      %v7049 = vadd.f32 0.0, %v7048
      %7050 = vmatmul.f32.gmra.mxu0 %v6939
      %v7051 = vpop.f32.mrf.mxu0
      %v7052 = vadd.f32 0.0, %v7051
      %7053 = vmatmul.f32.gmra.mxu0 %v6942
      %v7054 = vpop.f32.mrf.mxu0
      %v7055 = vadd.f32 0.0, %v7054
      %7056 = vmatmul.f32.gmra.mxu0 %v6945
      %v7057 = vpop.f32.mrf.mxu0
      %v7058 = vadd.f32 0.0, %v7057
      %7059 = vmatmul.f32.gmra.mxu0 %v6948
      %v7060 = vpop.f32.mrf.mxu0
      %v7061 = vadd.f32 0.0, %v7060
      %7062 = vmatmul.f32.gmra.mxu0 %v6951
      %v7063 = vpop.f32.mrf.mxu0
      %v7064 = vadd.f32 0.0, %v7063
      %7065 = vmatmul.f32.gmra.mxu0 %v6954
      %v7066 = vpop.f32.mrf.mxu0
      %v7067 = vadd.f32 0.0, %v7066
      %7068 = vmatmul.f32.gmra.mxu0 %v6957
      %v7069 = vpop.f32.mrf.mxu0
      %v7070 = vadd.f32 0.0, %v7069
      %7071 = vmatmul.f32.gmra.mxu0 %v6960
      %v7072 = vpop.f32.mrf.mxu0
      %v7073 = vadd.f32 0.0, %v7072
      %7074 = vmatmul.f32.gmra.mxu0 %v6963
      %v7075 = vpop.f32.mrf.mxu0
      %v7076 = vadd.f32 0.0, %v7075
      %7077 = vmatmul.f32.gmra.mxu0 %v6966
      %v7078 = vpop.f32.mrf.mxu0
      %v7079 = vadd.f32 0.0, %v7078
      %7080 = vmatmul.f32.gmra.mxu0 %v6969
      %v7081 = vpop.f32.mrf.mxu0
      %v7082 = vadd.f32 0.0, %v7081
      %7083 = vmatmul.f32.gmra.mxu0 %v6972
      %v7084 = vpop.f32.mrf.mxu0
      %v7085 = vadd.f32 0.0, %v7084
      %7086 = vmatmul.f32.gmra.mxu0 %v6975
      %v7087 = vpop.f32.mrf.mxu0
      %v7088 = vadd.f32 0.0, %v7087
      %7089 = vmatmul.f32.gmra.mxu0 %v6978
      %v7090 = vpop.f32.mrf.mxu0
      %v7091 = vadd.f32 0.0, %v7090
      %7092 = vmatmul.f32.gmra.mxu0 %v6981
      %v7093 = vpop.f32.mrf.mxu0
      %v7094 = vadd.f32 0.0, %v7093
      %7095 = vmatmul.f32.gmra.mxu0 %v6984
      %v7096 = vpop.f32.mrf.mxu0
      %v7097 = vadd.f32 0.0, %v7096
      %7098 = vmatmul.f32.gmra.mxu0 %v6987
      %v7099 = vpop.f32.mrf.mxu0
      %v7100 = vadd.f32 0.0, %v7099
      %7101 = vmatmul.f32.gmra.mxu0 %v6990
      %v7102 = vpop.f32.mrf.mxu0
      %v7103 = vadd.f32 0.0, %v7102
      %7104 = vmatmul.f32.gmra.mxu0 %v6993
      %v7105 = vpop.f32.mrf.mxu0
      %v7106 = vadd.f32 0.0, %v7105
      %7107 = vmatmul.f32.gmra.mxu0 %v6996
      %v7108 = vpop.f32.mrf.mxu0
      %v7109 = vadd.f32 0.0, %v7108
      %7110 = vmatmul.f32.gmra.mxu0 %v6999
      %v7111 = vpop.f32.mrf.mxu0
      %v7112 = vadd.f32 0.0, %v7111
      %7113 = vmatmul.f32.gmra.mxu0 %v7002
      %v7114 = vpop.f32.mrf.mxu0
      %v7115 = vadd.f32 0.0, %v7114
      %7116 = vmatmul.f32.gmra.mxu0 %v7005
      %v7117 = vpop.f32.mrf.mxu0
      %v7118 = vadd.f32 0.0, %v7117
      %7119 = vmatmul.f32.gmra.mxu0 %v7008
      %v7120 = vpop.f32.mrf.mxu0
      %v7121 = vadd.f32 0.0, %v7120
      %7122 = vmatmul.f32.gmra.mxu0 %v7011
      %v7123 = vpop.f32.mrf.mxu0
      %v7124 = vadd.f32 0.0, %v7123
      %7125 = vmatmul.f32.gmra.mxu0 %v7014
      %v7126 = vpop.f32.mrf.mxu0
      %v7127 = vadd.f32 0.0, %v7126
      %7128 = vmatmul.f32.gmra.mxu0 %v7017
      %v7129 = vpop.f32.mrf.mxu0
      %v7130 = vadd.f32 0.0, %v7129
      %7131 = vmatmul.f32.gmra.mxu0 %v7020
      %v7132 = vpop.f32.mrf.mxu0
      %v7133 = vadd.f32 0.0, %v7132
      %7134 = vmatmul.f32.gmra.mxu0 %v7023
      %v7135 = vpop.f32.mrf.mxu0
      %v7136 = vadd.f32 0.0, %v7135
      %7137 = vmatmul.f32.gmra.mxu0 %v7026
      %v7138 = vpop.f32.mrf.mxu0
      %v7139 = vadd.f32 0.0, %v7138
      %7140 = vdwg.mxu0
      %v7142 = vsel %vm2054, %v6621, 0
      %v7145 = vsel %vm2054, %v6631, 0
      %v7148 = vsel %vm2054, %v6641, 0
      %v7151 = vsel %vm2054, %v6651, 0
      %v7154 = vsel %vm2054, %v6661, 0
      %v7157 = vsel %vm2054, %v6671, 0
      %v7160 = vsel %vm2054, %v6681, 0
      %v7163 = vsel %vm2054, %v6691, 0
      %v7166 = vsel %vm2054, %v6701, 0
      %v7169 = vsel %vm2054, %v6711, 0
      %v7172 = vsel %vm2054, %v6721, 0
      %v7175 = vsel %vm2054, %v6731, 0
      %v7178 = vsel %vm2054, %v6741, 0
      %v7181 = vsel %vm2054, %v6751, 0
      %v7184 = vsel %vm2054, %v6761, 0
      %v7187 = vsel %vm2054, %v6771, 0
      %v7190 = vsel %vm2054, %v6781, 0
      %v7193 = vsel %vm2054, %v6791, 0
      %v7196 = vsel %vm2054, %v6801, 0
      %v7199 = vsel %vm2054, %v6811, 0
      %v7202 = vsel %vm2054, %v6821, 0
      %v7205 = vsel %vm2054, %v6831, 0
      %v7208 = vsel %vm2054, %v6841, 0
      %v7211 = vsel %vm2054, %v6851, 0
      %v7214 = vsel %vm2054, %v6861, 0
      %v7217 = vsel %vm2054, %v6871, 0
      %v7220 = vsel %vm2054, %v6881, 0
      %v7223 = vsel %vm2054, %v6891, 0
      %v7226 = vsel %vm2054, %v6901, 0
      %v7229 = vsel %vm2054, %v6911, 0
      %v7232 = vsel %vm2054, %v6921, 0
      %v7235 = vsel %vm2054, %v6931, 0
      %7237 = vmatpush.msra.mxu0 0.0
      %7238 = vmatpush.msra.mxu0 0.0
      %7239 = vmatpush.msra.mxu0 0.0
      %7240 = vmatpush.msra.mxu0 0.0
      %7241 = vmatpush.msra.mxu0 0.0
      %7242 = vmatpush.msra.mxu0 0.0
      %7243 = vmatpush.msra.mxu0 0.0
      %7244 = vmatpush.msra.mxu0 0.0
      %7245 = vmatpush.msra.mxu0 0.0
      %7246 = vmatpush.msra.mxu0 0.0
      %7247 = vmatpush.msra.mxu0 0.0
      %7248 = vmatpush.msra.mxu0 0.0
      %7249 = vmatpush.msra.mxu0 0.0
      %7250 = vmatpush.msra.mxu0 0.0
      %7251 = vmatpush.msra.mxu0 0.0
      %7252 = vmatpush.msra.mxu0 %v3599
      %7253 = vmatmul.f32.gmra.mxu0 %v7142
      %v7254 = vpop.f32.mrf.mxu0
      %v7255 = vadd.f32 0.0, %v7254
      %7256 = vmatmul.f32.gmra.mxu0 %v7145
      %v7257 = vpop.f32.mrf.mxu0
      %v7258 = vadd.f32 0.0, %v7257
      %7259 = vmatmul.f32.gmra.mxu0 %v7148
      %v7260 = vpop.f32.mrf.mxu0
      %v7261 = vadd.f32 0.0, %v7260
      %7262 = vmatmul.f32.gmra.mxu0 %v7151
      %v7263 = vpop.f32.mrf.mxu0
      %v7264 = vadd.f32 0.0, %v7263
      %7265 = vmatmul.f32.gmra.mxu0 %v7154
      %v7266 = vpop.f32.mrf.mxu0
      %v7267 = vadd.f32 0.0, %v7266
      %7268 = vmatmul.f32.gmra.mxu0 %v7157
      %v7269 = vpop.f32.mrf.mxu0
      %v7270 = vadd.f32 0.0, %v7269
      %7271 = vmatmul.f32.gmra.mxu0 %v7160
      %v7272 = vpop.f32.mrf.mxu0
      %v7273 = vadd.f32 0.0, %v7272
      %7274 = vmatmul.f32.gmra.mxu0 %v7163
      %v7275 = vpop.f32.mrf.mxu0
      %v7276 = vadd.f32 0.0, %v7275
      %7277 = vmatmul.f32.gmra.mxu0 %v7166
      %v7278 = vpop.f32.mrf.mxu0
      %v7279 = vadd.f32 0.0, %v7278
      %7280 = vmatmul.f32.gmra.mxu0 %v7169
      %v7281 = vpop.f32.mrf.mxu0
      %v7282 = vadd.f32 0.0, %v7281
      %7283 = vmatmul.f32.gmra.mxu0 %v7172
      %v7284 = vpop.f32.mrf.mxu0
      %v7285 = vadd.f32 0.0, %v7284
      %7286 = vmatmul.f32.gmra.mxu0 %v7175
      %v7287 = vpop.f32.mrf.mxu0
      %v7288 = vadd.f32 0.0, %v7287
      %7289 = vmatmul.f32.gmra.mxu0 %v7178
      %v7290 = vpop.f32.mrf.mxu0
      %v7291 = vadd.f32 0.0, %v7290
      %7292 = vmatmul.f32.gmra.mxu0 %v7181
      %v7293 = vpop.f32.mrf.mxu0
      %v7294 = vadd.f32 0.0, %v7293
      %7295 = vmatmul.f32.gmra.mxu0 %v7184
      %v7296 = vpop.f32.mrf.mxu0
      %v7297 = vadd.f32 0.0, %v7296
      %7298 = vmatmul.f32.gmra.mxu0 %v7187
      %v7299 = vpop.f32.mrf.mxu0
      %v7300 = vadd.f32 0.0, %v7299
      %7301 = vmatmul.f32.gmra.mxu0 %v7190
      %v7302 = vpop.f32.mrf.mxu0
      %v7303 = vadd.f32 0.0, %v7302
      %7304 = vmatmul.f32.gmra.mxu0 %v7193
      %v7305 = vpop.f32.mrf.mxu0
      %v7306 = vadd.f32 0.0, %v7305
      %7307 = vmatmul.f32.gmra.mxu0 %v7196
      %v7308 = vpop.f32.mrf.mxu0
      %v7309 = vadd.f32 0.0, %v7308
      %7310 = vmatmul.f32.gmra.mxu0 %v7199
      %v7311 = vpop.f32.mrf.mxu0
      %v7312 = vadd.f32 0.0, %v7311
      %7313 = vmatmul.f32.gmra.mxu0 %v7202
      %v7314 = vpop.f32.mrf.mxu0
      %v7315 = vadd.f32 0.0, %v7314
      %7316 = vmatmul.f32.gmra.mxu0 %v7205
      %v7317 = vpop.f32.mrf.mxu0
      %v7318 = vadd.f32 0.0, %v7317
      %7319 = vmatmul.f32.gmra.mxu0 %v7208
      %v7320 = vpop.f32.mrf.mxu0
      %v7321 = vadd.f32 0.0, %v7320
      %7322 = vmatmul.f32.gmra.mxu0 %v7211
      %v7323 = vpop.f32.mrf.mxu0
      %v7324 = vadd.f32 0.0, %v7323
      %7325 = vmatmul.f32.gmra.mxu0 %v7214
      %v7326 = vpop.f32.mrf.mxu0
      %v7327 = vadd.f32 0.0, %v7326
      %7328 = vmatmul.f32.gmra.mxu0 %v7217
      %v7329 = vpop.f32.mrf.mxu0
      %v7330 = vadd.f32 0.0, %v7329
      %7331 = vmatmul.f32.gmra.mxu0 %v7220
      %v7332 = vpop.f32.mrf.mxu0
      %v7333 = vadd.f32 0.0, %v7332
      %7334 = vmatmul.f32.gmra.mxu0 %v7223
      %v7335 = vpop.f32.mrf.mxu0
      %v7336 = vadd.f32 0.0, %v7335
      %7337 = vmatmul.f32.gmra.mxu0 %v7226
      %v7338 = vpop.f32.mrf.mxu0
      %v7339 = vadd.f32 0.0, %v7338
      %7340 = vmatmul.f32.gmra.mxu0 %v7229
      %v7341 = vpop.f32.mrf.mxu0
      %v7342 = vadd.f32 0.0, %v7341
      %7343 = vmatmul.f32.gmra.mxu0 %v7232
      %v7344 = vpop.f32.mrf.mxu0
      %v7345 = vadd.f32 0.0, %v7344
      %7346 = vmatmul.f32.gmra.mxu0 %v7235
      %v7347 = vpop.f32.mrf.mxu0
      %v7348 = vadd.f32 0.0, %v7347
      %7349 = vdwg.mxu0
      %v7350 = vsub.f32 %v5987, %v7046
      %v7351 = vsub.f32 %v5989, %v7049
      %v7352 = vsub.f32 %v5992, %v7052
      %v7353 = vsub.f32 %v5994, %v7055
      %v7354 = vsub.f32 %v5997, %v7058
      %v7355 = vsub.f32 %v5999, %v7061
      %v7356 = vsub.f32 %v6002, %v7064
      %v7357 = vsub.f32 %v6004, %v7067
      %v7358 = vsub.f32 %v6007, %v7070
      %v7359 = vsub.f32 %v6009, %v7073
      %v7360 = vsub.f32 %v6012, %v7076
      %v7361 = vsub.f32 %v6014, %v7079
      %v7362 = vsub.f32 %v6017, %v7082
      %v7363 = vsub.f32 %v6019, %v7085
      %v7364 = vsub.f32 %v6022, %v7088
      %v7365 = vsub.f32 %v6024, %v7091
      %v7366 = vsub.f32 %v6027, %v7094
      %v7367 = vsub.f32 %v6029, %v7097
      %v7368 = vsub.f32 %v6032, %v7100
      %v7369 = vsub.f32 %v6034, %v7103
      %v7370 = vsub.f32 %v6037, %v7106
      %v7371 = vsub.f32 %v6039, %v7109
      %v7372 = vsub.f32 %v6042, %v7112
      %v7373 = vsub.f32 %v6044, %v7115
      %v7374 = vsub.f32 %v6047, %v7118
      %v7375 = vsub.f32 %v6049, %v7121
      %v7376 = vsub.f32 %v6052, %v7124
      %v7377 = vsub.f32 %v6054, %v7127
      %v7378 = vsub.f32 %v6057, %v7130
      %v7379 = vsub.f32 %v6059, %v7133
      %v7380 = vsub.f32 %v6062, %v7136
      %v7381 = vsub.f32 %v6064, %v7139
      %v7382 = vmul.f32 %v7350, %v7255
      %v7383 = vmul.f32 %v7351, %v7258
      %v7384 = vmul.f32 %v7352, %v7261
      %v7385 = vmul.f32 %v7353, %v7264
      %v7386 = vmul.f32 %v7354, %v7267
      %v7387 = vmul.f32 %v7355, %v7270
      %v7388 = vmul.f32 %v7356, %v7273
      %v7389 = vmul.f32 %v7357, %v7276
      %v7390 = vmul.f32 %v7358, %v7279
      %v7391 = vmul.f32 %v7359, %v7282
      %v7392 = vmul.f32 %v7360, %v7285
      %v7393 = vmul.f32 %v7361, %v7288
      %v7394 = vmul.f32 %v7362, %v7291
      %v7395 = vmul.f32 %v7363, %v7294
      %v7396 = vmul.f32 %v7364, %v7297
      %v7397 = vmul.f32 %v7365, %v7300
      %v7398 = vmul.f32 %v7366, %v7303
      %v7399 = vmul.f32 %v7367, %v7306
      %v7400 = vmul.f32 %v7368, %v7309
      %v7401 = vmul.f32 %v7369, %v7312
      %v7402 = vmul.f32 %v7370, %v7315
      %v7403 = vmul.f32 %v7371, %v7318
      %v7404 = vmul.f32 %v7372, %v7321
      %v7405 = vmul.f32 %v7373, %v7324
      %v7406 = vmul.f32 %v7374, %v7327
      %v7407 = vmul.f32 %v7375, %v7330
      %v7408 = vmul.f32 %v7376, %v7333
      %v7409 = vmul.f32 %v7377, %v7336
      %v7410 = vmul.f32 %v7378, %v7339
      %v7411 = vmul.f32 %v7379, %v7342
      %v7412 = vmul.f32 %v7380, %v7345
      %v7413 = vmul.f32 %v7381, %v7348
      %v7414 = vperm.slane %v4085, 2
      %v7415 = vmul.f32 %v7382, %v7414
      %v7416 = vmul.f32 %v7383, %v7414
      %v7417 = vmul.f32 %v7384, %v7414
      %v7418 = vmul.f32 %v7385, %v7414
      %v7419 = vmul.f32 %v7386, %v7414
      %v7420 = vmul.f32 %v7387, %v7414
      %v7421 = vmul.f32 %v7388, %v7414
      %v7422 = vmul.f32 %v7389, %v7414
      %v7423 = vmul.f32 %v7390, %v7414
      %v7424 = vmul.f32 %v7391, %v7414
      %v7425 = vmul.f32 %v7392, %v7414
      %v7426 = vmul.f32 %v7393, %v7414
      %v7427 = vmul.f32 %v7394, %v7414
      %v7428 = vmul.f32 %v7395, %v7414
      %v7429 = vmul.f32 %v7396, %v7414
      %v7430 = vmul.f32 %v7397, %v7414
      %v7431 = vmul.f32 %v7398, %v7414
      %v7432 = vmul.f32 %v7399, %v7414
      %v7433 = vmul.f32 %v7400, %v7414
      %v7434 = vmul.f32 %v7401, %v7414
      %v7435 = vmul.f32 %v7402, %v7414
      %v7436 = vmul.f32 %v7403, %v7414
      %v7437 = vmul.f32 %v7404, %v7414
      %v7438 = vmul.f32 %v7405, %v7414
      %v7439 = vmul.f32 %v7406, %v7414
      %v7440 = vmul.f32 %v7407, %v7414
      %v7441 = vmul.f32 %v7408, %v7414
      %v7442 = vmul.f32 %v7409, %v7414
      %v7443 = vmul.f32 %v7410, %v7414
      %v7444 = vmul.f32 %v7411, %v7414
      %v7445 = vmul.f32 %v7412, %v7414
      %v7446 = vmul.f32 %v7413, %v7414
      %v7447 = vperm.slane %v4085, 3
      %v7448 = vadd.f32 %v7415, %v7447
      %v7449 = vadd.f32 %v7416, %v7447
      %v7450 = vadd.f32 %v7417, %v7447
      %v7451 = vadd.f32 %v7418, %v7447
      %v7452 = vadd.f32 %v7419, %v7447
      %v7453 = vadd.f32 %v7420, %v7447
      %v7454 = vadd.f32 %v7421, %v7447
      %v7455 = vadd.f32 %v7422, %v7447
      %v7456 = vadd.f32 %v7423, %v7447
      %v7457 = vadd.f32 %v7424, %v7447
      %v7458 = vadd.f32 %v7425, %v7447
      %v7459 = vadd.f32 %v7426, %v7447
      %v7460 = vadd.f32 %v7427, %v7447
      %v7461 = vadd.f32 %v7428, %v7447
      %v7462 = vadd.f32 %v7429, %v7447
      %v7463 = vadd.f32 %v7430, %v7447
      %v7464 = vadd.f32 %v7431, %v7447
      %v7465 = vadd.f32 %v7432, %v7447
      %v7466 = vadd.f32 %v7433, %v7447
      %v7467 = vadd.f32 %v7434, %v7447
      %v7468 = vadd.f32 %v7435, %v7447
      %v7469 = vadd.f32 %v7436, %v7447
      %v7470 = vadd.f32 %v7437, %v7447
      %v7471 = vadd.f32 %v7438, %v7447
      %v7472 = vadd.f32 %v7439, %v7447
      %v7473 = vadd.f32 %v7440, %v7447
      %v7474 = vadd.f32 %v7441, %v7447
      %v7475 = vadd.f32 %v7442, %v7447
      %v7476 = vadd.f32 %v7443, %v7447
      %v7477 = vadd.f32 %v7444, %v7447
      %v7478 = vadd.f32 %v7445, %v7447
      %v7479 = vadd.f32 %v7446, %v7447
      %v7480 = vadd.f32 %v7448, %v4416
      %v7481 = vadd.f32 %v7449, %v4417
      %v7482 = vadd.f32 %v7450, %v4418
      %v7483 = vadd.f32 %v7451, %v4419
      %v7484 = vadd.f32 %v7452, %v4420
      %v7485 = vadd.f32 %v7453, %v4421
      %v7486 = vadd.f32 %v7454, %v4422
      %v7487 = vadd.f32 %v7455, %v4423
      %v7488 = vadd.f32 %v7456, %v4424
      %v7489 = vadd.f32 %v7457, %v4425
      %v7490 = vadd.f32 %v7458, %v4426
      %v7491 = vadd.f32 %v7459, %v4427
      %v7492 = vadd.f32 %v7460, %v4428
      %v7493 = vadd.f32 %v7461, %v4429
      %v7494 = vadd.f32 %v7462, %v4430
      %v7495 = vadd.f32 %v7463, %v4431
      %v7496 = vadd.f32 %v7464, %v4432
      %v7497 = vadd.f32 %v7465, %v4433
      %v7498 = vadd.f32 %v7466, %v4434
      %v7499 = vadd.f32 %v7467, %v4435
      %v7500 = vadd.f32 %v7468, %v4436
      %v7501 = vadd.f32 %v7469, %v4437
      %v7502 = vadd.f32 %v7470, %v4438
      %v7503 = vadd.f32 %v7471, %v4439
      %v7504 = vadd.f32 %v7472, %v4440
      %v7505 = vadd.f32 %v7473, %v4441
      %v7506 = vadd.f32 %v7474, %v4442
      %v7507 = vadd.f32 %v7475, %v4443
      %v7508 = vadd.f32 %v7476, %v4444
      %v7509 = vadd.f32 %v7477, %v4445
      %v7510 = vadd.f32 %v7478, %v4446
      %v7511 = vadd.f32 %v7479, %v4447
      %v7512 = vld [vmem:[%s16] sm:$0xff]
      %v7513 = vld [vmem:[%s16 + $0x8] sm:$0xff]
      %v7514 = vld [vmem:[%s16 + $0x10] sm:$0xff]
      %v7515 = vld [vmem:[%s16 + $0x18] sm:$0xff]
      %v7516 = vld [vmem:[#allocation2] sm:$0x1]
      %v7518 = vperm.slane %v7516, 0
      %v7521 = vsel %vm1026, %v7480, 0
      %v7524 = vsel %vm1026, %v7481, 0
      %v7527 = vsel %vm1026, %v7482, 0
      %v7530 = vsel %vm1026, %v7483, 0
      %v7533 = vsel %vm1026, %v7484, 0
      %v7536 = vsel %vm1026, %v7485, 0
      %v7539 = vsel %vm1026, %v7486, 0
      %v7542 = vsel %vm1026, %v7487, 0
      %v7545 = vsel %vm1026, %v7488, 0
      %v7548 = vsel %vm1026, %v7489, 0
      %v7551 = vsel %vm1026, %v7490, 0
      %v7554 = vsel %vm1026, %v7491, 0
      %v7557 = vsel %vm1026, %v7492, 0
      %v7560 = vsel %vm1026, %v7493, 0
      %v7563 = vsel %vm1026, %v7494, 0
      %v7566 = vsel %vm1026, %v7495, 0
      %v7569 = vsel %vm1026, %v7496, 0
      %v7572 = vsel %vm1026, %v7497, 0
      %v7575 = vsel %vm1026, %v7498, 0
      %v7578 = vsel %vm1026, %v7499, 0
      %v7581 = vsel %vm1026, %v7500, 0
      %v7584 = vsel %vm1026, %v7501, 0
      %v7587 = vsel %vm1026, %v7502, 0
      %v7590 = vsel %vm1026, %v7503, 0
      %v7593 = vsel %vm1026, %v7504, 0
      %v7596 = vsel %vm1026, %v7505, 0
      %v7599 = vsel %vm1026, %v7506, 0
      %v7602 = vsel %vm1026, %v7507, 0
      %v7605 = vsel %vm1026, %v7508, 0
      %v7608 = vsel %vm1026, %v7509, 0
      %v7611 = vsel %vm1026, %v7510, 0
      %v7614 = vsel %vm1026, %v7511, 0
      %7616 = vmatpush.msra.mxu0 0.0
      %7617 = vmatpush.msra.mxu0 0.0
      %7618 = vmatpush.msra.mxu0 0.0
      %7619 = vmatpush.msra.mxu0 0.0
      %7620 = vmatpush.msra.mxu0 0.0
      %7621 = vmatpush.msra.mxu0 0.0
      %7622 = vmatpush.msra.mxu0 0.0
      %7623 = vmatpush.msra.mxu0 0.0
      %7624 = vmatpush.msra.mxu0 0.0
      %7625 = vmatpush.msra.mxu0 0.0
      %7626 = vmatpush.msra.mxu0 0.0
      %7627 = vmatpush.msra.mxu0 0.0
      %7628 = vmatpush.msra.mxu0 %v7515
      %7629 = vmatpush.msra.mxu0 %v7514
      %7630 = vmatpush.msra.mxu0 %v7513
      %7631 = vmatpush.msra.mxu0 %v7512
      %7632 = vmatmul.f32.gmra.mxu0 %v7521
      %v7633 = vpop.f32.mrf.mxu0
      %v7634 = vadd.f32 %v7518, %v7633
      %7635 = vmatmul.f32.gmra.mxu0 %v7524
      %v7636 = vpop.f32.mrf.mxu0
      %v7637 = vadd.f32 %v7518, %v7636
      %7638 = vmatmul.f32.gmra.mxu0 %v7527
      %v7639 = vpop.f32.mrf.mxu0
      %v7640 = vadd.f32 %v7518, %v7639
      %7641 = vmatmul.f32.gmra.mxu0 %v7530
      %v7642 = vpop.f32.mrf.mxu0
      %v7643 = vadd.f32 %v7518, %v7642
      %7644 = vmatmul.f32.gmra.mxu0 %v7533
      %v7645 = vpop.f32.mrf.mxu0
      %v7646 = vadd.f32 %v7518, %v7645
      %7647 = vmatmul.f32.gmra.mxu0 %v7536
      %v7648 = vpop.f32.mrf.mxu0
      %v7649 = vadd.f32 %v7518, %v7648
      %7650 = vmatmul.f32.gmra.mxu0 %v7539
      %v7651 = vpop.f32.mrf.mxu0
      %v7652 = vadd.f32 %v7518, %v7651
      %7653 = vmatmul.f32.gmra.mxu0 %v7542
      %v7654 = vpop.f32.mrf.mxu0
      %v7655 = vadd.f32 %v7518, %v7654
      %7656 = vmatmul.f32.gmra.mxu0 %v7545
      %v7657 = vpop.f32.mrf.mxu0
      %v7658 = vadd.f32 %v7518, %v7657
      %7659 = vmatmul.f32.gmra.mxu0 %v7548
      %v7660 = vpop.f32.mrf.mxu0
      %v7661 = vadd.f32 %v7518, %v7660
      %7662 = vmatmul.f32.gmra.mxu0 %v7551
      %v7663 = vpop.f32.mrf.mxu0
      %v7664 = vadd.f32 %v7518, %v7663
      %7665 = vmatmul.f32.gmra.mxu0 %v7554
      %v7666 = vpop.f32.mrf.mxu0
      %v7667 = vadd.f32 %v7518, %v7666
      %7668 = vmatmul.f32.gmra.mxu0 %v7557
      %v7669 = vpop.f32.mrf.mxu0
      %v7670 = vadd.f32 %v7518, %v7669
      %7671 = vmatmul.f32.gmra.mxu0 %v7560
      %v7672 = vpop.f32.mrf.mxu0
      %v7673 = vadd.f32 %v7518, %v7672
      %7674 = vmatmul.f32.gmra.mxu0 %v7563
      %v7675 = vpop.f32.mrf.mxu0
      %v7676 = vadd.f32 %v7518, %v7675
      %7677 = vmatmul.f32.gmra.mxu0 %v7566
      %v7678 = vpop.f32.mrf.mxu0
      %v7679 = vadd.f32 %v7518, %v7678
      %7680 = vmatmul.f32.gmra.mxu0 %v7569
      %v7681 = vpop.f32.mrf.mxu0
      %v7682 = vadd.f32 %v7518, %v7681
      %7683 = vmatmul.f32.gmra.mxu0 %v7572
      %v7684 = vpop.f32.mrf.mxu0
      %v7685 = vadd.f32 %v7518, %v7684
      %7686 = vmatmul.f32.gmra.mxu0 %v7575
      %v7687 = vpop.f32.mrf.mxu0
      %v7688 = vadd.f32 %v7518, %v7687
      %7689 = vmatmul.f32.gmra.mxu0 %v7578
      %v7690 = vpop.f32.mrf.mxu0
      %v7691 = vadd.f32 %v7518, %v7690
      %7692 = vmatmul.f32.gmra.mxu0 %v7581
      %v7693 = vpop.f32.mrf.mxu0
      %v7694 = vadd.f32 %v7518, %v7693
      %7695 = vmatmul.f32.gmra.mxu0 %v7584
      %v7696 = vpop.f32.mrf.mxu0
      %v7697 = vadd.f32 %v7518, %v7696
      %7698 = vmatmul.f32.gmra.mxu0 %v7587
      %v7699 = vpop.f32.mrf.mxu0
      %v7700 = vadd.f32 %v7518, %v7699
      %7701 = vmatmul.f32.gmra.mxu0 %v7590
      %v7702 = vpop.f32.mrf.mxu0
      %v7703 = vadd.f32 %v7518, %v7702
      %7704 = vmatmul.f32.gmra.mxu0 %v7593
      %v7705 = vpop.f32.mrf.mxu0
      %v7706 = vadd.f32 %v7518, %v7705
      %7707 = vmatmul.f32.gmra.mxu0 %v7596
      %v7708 = vpop.f32.mrf.mxu0
      %v7709 = vadd.f32 %v7518, %v7708
      %7710 = vmatmul.f32.gmra.mxu0 %v7599
      %v7711 = vpop.f32.mrf.mxu0
      %v7712 = vadd.f32 %v7518, %v7711
      %7713 = vmatmul.f32.gmra.mxu0 %v7602
      %v7714 = vpop.f32.mrf.mxu0
      %v7715 = vadd.f32 %v7518, %v7714
      %7716 = vmatmul.f32.gmra.mxu0 %v7605
      %v7717 = vpop.f32.mrf.mxu0
      %v7718 = vadd.f32 %v7518, %v7717
      %7719 = vmatmul.f32.gmra.mxu0 %v7608
      %v7720 = vpop.f32.mrf.mxu0
      %v7721 = vadd.f32 %v7518, %v7720
      %7722 = vmatmul.f32.gmra.mxu0 %v7611
      %v7723 = vpop.f32.mrf.mxu0
      %v7724 = vadd.f32 %v7518, %v7723
      %7725 = vmatmul.f32.gmra.mxu0 %v7614
      %v7726 = vpop.f32.mrf.mxu0
      %v7727 = vadd.f32 %v7518, %v7726
      %7728 = vdwg.mxu0
      %vm7729 = vcmask 7168
      %7730 = vst.msk [vmem:[%s579] sm:$0xff] %vm7729, %v7634
      %7731 = vst.msk [vmem:[%s579 + $0x8] sm:$0xff] %vm7729, %v7637
      %7732 = vst.msk [vmem:[%s579 + $0x10] sm:$0xff] %vm7729, %v7640
      %7733 = vst.msk [vmem:[%s579 + $0x18] sm:$0xff] %vm7729, %v7643
      %7734 = vst.msk [vmem:[%s579 + $0x20] sm:$0xff] %vm7729, %v7646
      %7735 = vst.msk [vmem:[%s579 + $0x28] sm:$0xff] %vm7729, %v7649
      %7736 = vst.msk [vmem:[%s579 + $0x30] sm:$0xff] %vm7729, %v7652
      %7737 = vst.msk [vmem:[%s579 + $0x38] sm:$0xff] %vm7729, %v7655
      %7738 = vst.msk [vmem:[%s579 + $0x40] sm:$0xff] %vm7729, %v7658
      %7739 = vst.msk [vmem:[%s579 + $0x48] sm:$0xff] %vm7729, %v7661
      %7740 = vst.msk [vmem:[%s579 + $0x50] sm:$0xff] %vm7729, %v7664
      %7741 = vst.msk [vmem:[%s579 + $0x58] sm:$0xff] %vm7729, %v7667
      %7742 = vst.msk [vmem:[%s579 + $0x60] sm:$0xff] %vm7729, %v7670
      %7743 = vst.msk [vmem:[%s579 + $0x68] sm:$0xff] %vm7729, %v7673
      %7744 = vst.msk [vmem:[%s579 + $0x70] sm:$0xff] %vm7729, %v7676
      %7745 = vst.msk [vmem:[%s579 + $0x78] sm:$0xff] %vm7729, %v7679
      %7746 = vst.msk [vmem:[%s579 + $0x80] sm:$0xff] %vm7729, %v7682
      %7747 = vst.msk [vmem:[%s579 + $0x88] sm:$0xff] %vm7729, %v7685
      %7748 = vst.msk [vmem:[%s579 + $0x90] sm:$0xff] %vm7729, %v7688
      %7749 = vst.msk [vmem:[%s579 + $0x98] sm:$0xff] %vm7729, %v7691
      %7750 = vst.msk [vmem:[%s579 + $0xa0] sm:$0xff] %vm7729, %v7694
      %7751 = vst.msk [vmem:[%s579 + $0xa8] sm:$0xff] %vm7729, %v7697
      %7752 = vst.msk [vmem:[%s579 + $0xb0] sm:$0xff] %vm7729, %v7700
      %7753 = vst.msk [vmem:[%s579 + $0xb8] sm:$0xff] %vm7729, %v7703
      %7754 = vst.msk [vmem:[%s579 + $0xc0] sm:$0xff] %vm7729, %v7706
      %7755 = vst.msk [vmem:[%s579 + $0xc8] sm:$0xff] %vm7729, %v7709
      %7756 = vst.msk [vmem:[%s579 + $0xd0] sm:$0xff] %vm7729, %v7712
      %7757 = vst.msk [vmem:[%s579 + $0xd8] sm:$0xff] %vm7729, %v7715
      %7758 = vst.msk [vmem:[%s579 + $0xe0] sm:$0xff] %vm7729, %v7718
      %7759 = vst.msk [vmem:[%s579 + $0xe8] sm:$0xff] %vm7729, %v7721
      %7760 = vst.msk [vmem:[%s579 + $0xf0] sm:$0xff] %vm7729, %v7724
      %7761 = vst.msk [vmem:[%s579 + $0xf8] sm:$0xff] %vm7729, %v7727
      %s7762 = smul.u32 32, %s31
      %p7763 = scmp.lt.s32.totalorder %s7762, 63
      %s7764 = scalar_select %p7763, %s7762, 63
      %s7765 = smul.addr %s7764, 8
      %s7766 = scalar_lea.vmem %s18, %s7765
      // Predicated region
      $region93: #{tpu_custom_call.1} parent=91 // pred_check
        %p7767 = pneg %p432
      $region94: #{tpu_custom_call.1} parent=91 // pred_check_branch
        %7769 = sbr.rel (%p7767) target = $region96
      $region95: #{tpu_custom_call.1} parent=91 // pred_region
        %s7770 = smul.u32 32, %s31
      $region96: #{tpu_custom_call.1} parent=91 // pred_fallthru
        _
    $region92: #{tpu_custom_call.1} parent=5 // pred_fallthru
      _
    %p7771 = scmp.le.s32.totalorder 2, %s26
    // Predicated region
    $region97: #{tpu_custom_call.1} parent=5 // pred_check
      %p7772 = pneg %p7771
    $region98: #{tpu_custom_call.1} parent=5 // pred_check_branch
      %7774 = sbr.rel (%p7772) target = $region100
    $region99: #{tpu_custom_call.1} parent=5 // pred_region
      %s7775 = ssub.s32 %s26, 2
      // Predicated region
      $region101: #{tpu_custom_call.1} parent=99 // pred_check
        %p7776 = pneg %p438
      $region102: #{tpu_custom_call.1} parent=99 // pred_check_branch
        %7778 = sbr.rel (%p7776) target = $region104
      $region103: #{tpu_custom_call.1} parent=99 // pred_region
        %s7779 = smul.u32 32, %s32
        %p7780 = scmp.lt.s32.totalorder %s7779, 63
        %s7781 = scalar_select %p7780, %s7779, 63
        %s7782 = smul.addr %s7781, 8
        %s7783 = scalar_lea.vmem %s18, %s7782
      $region104: #{tpu_custom_call.1} parent=99 // pred_fallthru
        _
    $region100: #{tpu_custom_call.1} parent=5 // pred_fallthru
      _
  $region6: #{tpu_custom_call.1} parent=0 // loop_footer
    %s30 = sadd.s32 1, %s26
  $region7: #{tpu_custom_call.1} parent=0 // loop_footer_branch
    %25 = sbr.rel target = $region3
  $region8: #{tpu_custom_call.1} parent=0 // loop_exit
    _

</llo_original>
